<compile_context>
chip_gen: v5e
topology: v5e:2x2
jax: 0.10.0
libtpu: 0.0.40
codegen_flags: <defaults>
</compile_context>

<pallas_src>
import functools

import jax
import jax.numpy as jnp
from jax.experimental import pallas as pl
from jax.experimental.pallas import tpu as pltpu


# =============================================================================
# Fused transformer-block kernel
# =============================================================================
def _experimental_block_kernel(
    x_ref,                         # (TB, S, D)  activation tile
    ln1w_ref, ln1b_ref,            # (1, D)
    wqkv_ref, bqkv_ref,            # (D, 3D), (1, 3D)
    wproj3_ref, bproj_ref,         # (nh, hd, D), (1, D)
    ln2w_ref, ln2b_ref,            # (1, D)
    w1_ref, b1_ref,                # (D, H),  (1, H)
    w2_ref, b2_ref,                # (H, D),  (1, D)
    o_ref,                         # (TB, S, D)
    *, num_heads, head_dim, eps,
):
    f32 = jnp.float32
    cdtype = x_ref.dtype                      # MXU operand dtype (== weights)
    tb, s_len, d = x_ref.shape

    xf = x_ref[...].astype(f32).reshape(tb * s_len, d)   # f32 residual stream

    def _layernorm(v, w_r, b_r):
        # Fused single-pass statistics: var = E[x^2] - mu^2.
        mu = jnp.mean(v, axis=-1, keepdims=True)
        ms = jnp.mean(v * v, axis=-1, keepdims=True)
        inv = jax.lax.rsqrt(ms - mu * mu + eps)
        return (v - mu) * inv * w_r[...].astype(f32) + b_r[...].astype(f32)

    # ---- LN1 + fused QKV projection (one big matmul, M = TB*S) -------------
    h = _layernorm(xf, ln1w_ref, ln1b_ref).astype(cdtype)
    qkv = jnp.dot(h, wqkv_ref[...], preferred_element_type=f32)
    qkv = (qkv + bqkv_ref[...].astype(f32)).astype(cdtype)        # (TB*S, 3D)

    # ---- head-batched multi-head self-attention (per batch element) --------
    scale = float(head_dim) ** -0.5
    attn_rows = []
    for b in range(tb):                                   # static, small
        qkv_b = qkv[b * s_len:(b + 1) * s_len, :]         # (S, 3D) row slice
        # One 2-D transpose + reshape puts heads in the leading (batch) dim.
        qkv_t = qkv_b.T.reshape(3, num_heads, head_dim, s_len)    # (3,nh,hd,S)
        q_t, k_t, v_t = qkv_t[0], qkv_t[1], qkv_t[2]      # (nh, hd, S) each
        q_s = jnp.swapaxes(q_t, 1, 2)                     # (nh, S, hd)
        v_s = jnp.swapaxes(v_t, 1, 2)                     # (nh, S, hd)

        # scores: canonical batched matmul (b,m,k)x(b,k,n), K^T already laid out
        s_f = jnp.einsum("hqe,hek->hqk", q_s, k_t,
                         preferred_element_type=f32) * scale      # (nh,S,S) f32
        s_f = s_f - jnp.max(s_f, axis=-1, keepdims=True)          # stable
        p = jnp.exp(s_f)
        denom = jnp.sum(p, axis=-1, keepdims=True)
        p = (p * pl.reciprocal(denom, approx=True)).astype(cdtype)

        ctx = jnp.einsum("hqk,hke->hqe", p, v_s,
                         preferred_element_type=f32).astype(cdtype)  # (nh,S,hd)

        # Per-head output projection, summed over heads (no lane concatenate).
        pp = jnp.einsum("hqe,hed->hqd", ctx, wproj3_ref[...],
                        preferred_element_type=f32)                  # (nh,S,D)
        attn_b = pp[0]
        for hh in range(1, num_heads):
            attn_b = attn_b + pp[hh]
        attn_rows.append(attn_b)                                     # (S,D) f32

    attn = attn_rows[0] if tb == 1 else jnp.concatenate(attn_rows, axis=0)
    y = xf + attn + bproj_ref[...].astype(f32)            # first residual, f32

    # ---- LN2 + MLP + second residual ----------------------------------------
    g = _layernorm(y, ln2w_ref, ln2b_ref).astype(cdtype)
    hmid = jnp.dot(g, w1_ref[...], preferred_element_type=f32) \
        + b1_ref[...].astype(f32)
    # TODO(synk): PyTorch nn.GELU() default is the exact erf form; the tanh
    # approximation is used here (EUP path, |diff| ~ 1e-3).
    hmid = jax.nn.gelu(hmid, approximate=True).astype(cdtype)
    mlp = jnp.dot(hmid, w2_ref[...], preferred_element_type=f32) \
        + b2_ref[...].astype(f32)

    o_ref[...] = (y + mlp).reshape(tb, s_len, d).astype(o_ref.dtype)


# =============================================================================
# Wrapper
# =============================================================================
def _pick_batch_tile(B, block_b):
    """Largest divisor of B that is <= block_b and keeps grid >= 2 when B >= 2
    (so both v7x TensorCores get work)."""
    best = 1
    for cand in range(1, B + 1):
        if B % cand:
            continue
        if cand > block_b:
            break
        if B >= 2 and B // cand < 2:
            continue
        best = cand
    return best


@functools.partial(jax.jit, static_argnames=("num_heads", "block_b"))
def experimental_block_forward(x, params, *, num_heads, block_b=8):
    """x: (B, S, D); params: dict of block weights (see init function)."""
    B, S, D = x.shape
    assert D % num_heads == 0
    head_dim = D // num_heads

    # Cast parameters to the activation dtype ONCE outside the kernel.
    cast = {k: v.astype(x.dtype) for k, v in params.items()}
    # Output-projection weight reshaped (free, wrapper-side) to (nh, hd, D)
    # so the kernel can do a head-batched projection without a concatenate.
    w_proj3 = cast["w_proj"].reshape(num_heads, head_dim, D)

    tb = _pick_batch_tile(B, block_b)
    grid = (B // tb,)

    weights = [cast["ln1_w"], cast["ln1_b"], cast["w_qkv"], cast["b_qkv"],
               w_proj3, cast["b_proj"], cast["ln2_w"], cast["ln2_b"],
               cast["w1"], cast["b1"], cast["w2"], cast["b2"]]

    def _const_spec(arr):
        nd = arr.ndim
        # Constant index_map -> DMA'd once; single-buffer to halve weight VMEM.
        return pl.BlockSpec(arr.shape, lambda b: (0,) * nd,
                            pipeline_mode=pl.Buffered(1))

    # Rough VMEM budget: weights (single-buffered) + double-buffered in/out
    # activation tiles + f32 intermediates, with 2x margin.
    itemsize = jnp.dtype(x.dtype).itemsize
    hidden = cast["w1"].shape[1]
    weight_bytes = sum(int(w.size) * itemsize for w in weights)
    act_tile = tb * S * D * itemsize
    interm = 4 * (tb * S * (3 * D + 4 * D + hidden) + num_heads * S * S * 2)
    vmem_limit = int(min(max(2 * (weight_bytes + 4 * act_tile + interm),
                             16 * 1024 * 1024),
                         48 * 1024 * 1024))

    kernel = functools.partial(_experimental_block_kernel,
                               num_heads=num_heads, head_dim=head_dim, eps=1e-5)

    return pl.pallas_call(
        kernel,
        out_shape=jax.ShapeDtypeStruct((B, S, D), x.dtype),
        grid_spec=pl.GridSpec(
            grid=grid,
            in_specs=[pl.BlockSpec((tb, S, D), lambda b: (b, 0, 0))]
                     + [_const_spec(w) for w in weights],
            out_specs=pl.BlockSpec((tb, S, D), lambda b: (b, 0, 0)),
        ),
        # Alias x -> output (same shape/dtype, read-before-write per block).
        # Callers that reuse x afterwards rely on XLA's defensive copy.
        input_output_aliases={0: 0},
        compiler_params=pltpu.CompilerParams(
            dimension_semantics=("parallel",),
            vmem_limit_bytes=vmem_limit,
        ),
    )(x, *weights)


# =============================================================================
# Deterministic parameter construction (plain JAX glue)
# =============================================================================
def init_experimental_block_params(key, dim, num_heads, mlp_ratio=4.0,
                                   qkv_bias=False, dtype=jnp.float32):
    hidden = int(dim * mlp_ratio)
    ks = jax.random.split(key, 6)
    std = 0.02

    def lin_w(k, fan_in, fan_out):
        return (jax.random.normal(k, (fan_in, fan_out), jnp.float32) * std
                ).astype(dtype)

    b_qkv = (jax.random.normal(ks[1], (1, 3 * dim), jnp.float32) * std
             if qkv_bias else jnp.zeros((1, 3 * dim), jnp.float32))
    return {
        "ln1_w": jnp.ones((1, dim), dtype),
        "ln1_b": jnp.zeros((1, dim), dtype),
        "w_qkv": lin_w(ks[0], dim, 3 * dim),
        "b_qkv": b_qkv.astype(dtype),
        "w_proj": lin_w(ks[2], dim, dim),
        "b_proj": (jax.random.normal(ks[3], (1, dim), jnp.float32) * std
                   ).astype(dtype),
        "ln2_w": jnp.ones((1, dim), dtype),
        "ln2_b": jnp.zeros((1, dim), dtype),
        "w1": lin_w(ks[4], dim, hidden),
        "b1": jnp.zeros((1, hidden), dtype),
        "w2": lin_w(ks[5], hidden, dim),
        "b2": jnp.zeros((1, dim), dtype),
    }


# =============================================================================
# Pure-JAX reference (mirrors the PyTorch forward, dropout = 0)
# =============================================================================
def experimental_block_reference(x, params, *, num_heads, eps=1e-5):
    B, S, D = x.shape
    hd = D // num_heads
    xf = x.astype(jnp.float32)
    pf = {k: v.astype(jnp.float32) for k, v in params.items()}

    def ln(v, w, b):
        mu = v.mean(-1, keepdims=True)
        var = ((v - mu) ** 2).mean(-1, keepdims=True)
        return (v - mu) * jax.lax.rsqrt(var + eps) * w + b

    h = ln(xf, pf["ln1_w"], pf["ln1_b"])
    qkv = h @ pf["w_qkv"] + pf["b_qkv"]                        # (B,S,3D)
    qkv = qkv.reshape(B, S, 3, num_heads, hd).transpose(2, 0, 3, 1, 4)
    q, k, v = qkv[0], qkv[1], qkv[2]                           # (B,nh,S,hd)
    att = (q @ jnp.swapaxes(k, -1, -2)) * (hd ** -0.5)
    att = jax.nn.softmax(att, axis=-1)
    ctx = (att @ v).transpose(0, 2, 1, 3).reshape(B, S, D)
    y = xf + ctx @ pf["w_proj"] + pf["b_proj"]
    g = ln(y, pf["ln2_w"], pf["ln2_b"])
    m = jax.nn.gelu(g @ pf["w1"] + pf["b1"], approximate=True)
    out = y + m @ pf["w2"] + pf["b2"]
    return out.astype(x.dtype)


# =============================================================================
# Demo / correctness check
# =============================================================================
if __name__ == "__main__":
    # Small ViT-like config: D=128 (lane-dense), 4 heads (head_dim=32),
    # mlp hidden = 512, seq 128 so each grid step's matmul M = TB*S = 256,
    # batch 4 split into grid=(2,) parallel steps of TB=2.
    batch, seq, dim, heads = 4, 128, 128, 4

    key = jax.random.PRNGKey(0)
    kx, kp = jax.random.split(key)
    x = jax.random.normal(kx, (batch, seq, dim), dtype=jnp.float32)
    params = init_experimental_block_params(kp, dim, heads, mlp_ratio=4.0,
                                            qkv_bias=False)

    # Reference computed first (defensive w.r.t. the input/output alias on x).
    ref = experimental_block_reference(x, params, num_heads=heads)

    out = experimental_block_forward(x, params, num_heads=heads, block_b=2)
    out = jax.block_until_ready(out)

    assert out.shape == (batch, seq, dim)
    assert bool(jnp.all(jnp.isfinite(out)))
    max_err = float(jnp.max(jnp.abs(out - ref)))
    assert jnp.allclose(out, ref, atol=5e-3, rtol=5e-3), max_err

    # TODO(synk): only the standard attention / standard MLP / use_mamba=False
    # path of ExperimentalBlock is implemented (fourier/linear/kan/hybrid
    # attention and mamba branches have no reference code provided).

    print("KERNEL_OK")
</pallas_src>

<mosaic_0001>
module attributes {stable_mosaic.version = 11 : i64} {
  func.func @_experimental_block_kernel(%arg0: i32, %arg1: memref<2x128x128xf32, #tpu.memory_space<vmem>>, %arg2: memref<1x128xf32, #tpu.memory_space<vmem>>, %arg3: memref<1x128xf32, #tpu.memory_space<vmem>>, %arg4: memref<128x384xf32, #tpu.memory_space<vmem>>, %arg5: memref<1x384xf32, #tpu.memory_space<vmem>>, %arg6: memref<4x32x128xf32, #tpu.memory_space<vmem>>, %arg7: memref<1x128xf32, #tpu.memory_space<vmem>>, %arg8: memref<1x128xf32, #tpu.memory_space<vmem>>, %arg9: memref<1x128xf32, #tpu.memory_space<vmem>>, %arg10: memref<128x512xf32, #tpu.memory_space<vmem>>, %arg11: memref<1x512xf32, #tpu.memory_space<vmem>>, %arg12: memref<512x128xf32, #tpu.memory_space<vmem>>, %arg13: memref<1x128xf32, #tpu.memory_space<vmem>>, %arg14: memref<2x128x128xf32, #tpu.memory_space<vmem>>) attributes {dimension_semantics = [#tpu.dimension_semantics<parallel>], iteration_bounds = array<i64: 2>, scalar_prefetch = 0 : i64, scratch_operands = 0 : i64, tpu.core_type = #tpu.core_type<tc>, window_params = [{transform_indices = @transform_0, window_bounds = array<i64: 2, 128, 128>}, {pipeline_mode = #tpu.pipeline_mode<synchronous>, transform_indices = @transform_1, window_bounds = array<i64: 1, 128>}, {pipeline_mode = #tpu.pipeline_mode<synchronous>, transform_indices = @transform_2, window_bounds = array<i64: 1, 128>}, {pipeline_mode = #tpu.pipeline_mode<synchronous>, transform_indices = @transform_3, window_bounds = array<i64: 128, 384>}, {pipeline_mode = #tpu.pipeline_mode<synchronous>, transform_indices = @transform_4, window_bounds = array<i64: 1, 384>}, {pipeline_mode = #tpu.pipeline_mode<synchronous>, transform_indices = @transform_5, window_bounds = array<i64: 4, 32, 128>}, {pipeline_mode = #tpu.pipeline_mode<synchronous>, transform_indices = @transform_6, window_bounds = array<i64: 1, 128>}, {pipeline_mode = #tpu.pipeline_mode<synchronous>, transform_indices = @transform_7, window_bounds = array<i64: 1, 128>}, {pipeline_mode = #tpu.pipeline_mode<synchronous>, transform_indices = @transform_8, window_bounds = array<i64: 1, 128>}, {pipeline_mode = #tpu.pipeline_mode<synchronous>, transform_indices = @transform_9, window_bounds = array<i64: 128, 512>}, {pipeline_mode = #tpu.pipeline_mode<synchronous>, transform_indices = @transform_10, window_bounds = array<i64: 1, 512>}, {pipeline_mode = #tpu.pipeline_mode<synchronous>, transform_indices = @transform_11, window_bounds = array<i64: 512, 128>}, {pipeline_mode = #tpu.pipeline_mode<synchronous>, transform_indices = @transform_12, window_bounds = array<i64: 1, 128>}, {transform_indices = @transform_13, window_bounds = array<i64: 2, 128, 128>}]} {
    %c0 = arith.constant 0 : index
    %c0_0 = arith.constant 0 : index
    %c0_1 = arith.constant 0 : index
    %0 = vector.load %arg1[%c0, %c0_0, %c0_1] : memref<2x128x128xf32, #tpu.memory_space<vmem>>, vector<2x128x128xf32>
    %1 = vector.shape_cast %0 : vector<2x128x128xf32> to vector<256x128xf32>
    %cst = arith.constant dense<0.000000e+00> : vector<256xf32>
    %2 = vector.multi_reduction <add>, %1, %cst [1] : vector<256x128xf32> to vector<256xf32>
    %3 = vector.shape_cast %2 : vector<256xf32> to vector<256x1xf32>
    %cst_2 = arith.constant 1.280000e+02 : f32
    %4 = vector.broadcast %cst_2 : f32 to vector<256x1xf32>
    %5 = arith.divf %3, %4 : vector<256x1xf32>
    %6 = arith.mulf %1, %1 : vector<256x128xf32>
    %cst_3 = arith.constant dense<0.000000e+00> : vector<256xf32>
    %7 = vector.multi_reduction <add>, %6, %cst_3 [1] : vector<256x128xf32> to vector<256xf32>
    %8 = vector.shape_cast %7 : vector<256xf32> to vector<256x1xf32>
    %cst_4 = arith.constant 1.280000e+02 : f32
    %9 = vector.broadcast %cst_4 : f32 to vector<256x1xf32>
    %10 = arith.divf %8, %9 : vector<256x1xf32>
    %11 = arith.mulf %5, %5 : vector<256x1xf32>
    %12 = arith.subf %10, %11 : vector<256x1xf32>
    %cst_5 = arith.constant 9.99999974E-6 : f32
    %13 = vector.broadcast %cst_5 : f32 to vector<256x1xf32>
    %14 = arith.addf %12, %13 : vector<256x1xf32>
    %15 = math.rsqrt %14 : vector<256x1xf32>
    %16 = vector.broadcast %5 : vector<256x1xf32> to vector<256x128xf32>
    %17 = arith.subf %1, %16 : vector<256x128xf32>
    %18 = vector.broadcast %15 : vector<256x1xf32> to vector<256x128xf32>
    %19 = arith.mulf %17, %18 : vector<256x128xf32>
    %c0_6 = arith.constant 0 : index
    %c0_7 = arith.constant 0 : index
    %20 = vector.load %arg2[%c0_6, %c0_7] : memref<1x128xf32, #tpu.memory_space<vmem>>, vector<1x128xf32>
    %21 = vector.broadcast %20 : vector<1x128xf32> to vector<256x128xf32>
    %22 = arith.mulf %19, %21 : vector<256x128xf32>
    %c0_8 = arith.constant 0 : index
    %c0_9 = arith.constant 0 : index
    %23 = vector.load %arg3[%c0_8, %c0_9] : memref<1x128xf32, #tpu.memory_space<vmem>>, vector<1x128xf32>
    %24 = vector.broadcast %23 : vector<1x128xf32> to vector<256x128xf32>
    %25 = arith.addf %22, %24 : vector<256x128xf32>
    %c0_10 = arith.constant 0 : index
    %c0_11 = arith.constant 0 : index
    %26 = vector.load %arg4[%c0_10, %c0_11] : memref<128x384xf32, #tpu.memory_space<vmem>>, vector<128x384xf32>
    %cst_12 = arith.constant dense<0.000000e+00> : vector<256x384xf32>
    %27 = tpu.matmul %25, %26, %cst_12 {dimension_numbers = #tpu.dot_dimension_numbers<[1], [0], [0], [1], [0, 0, 1, 1], [], []>} : vector<256x128xf32>, vector<128x384xf32>, vector<256x384xf32> -> vector<256x384xf32>
    %c0_13 = arith.constant 0 : index
    %c0_14 = arith.constant 0 : index
    %28 = vector.load %arg5[%c0_13, %c0_14] : memref<1x384xf32, #tpu.memory_space<vmem>>, vector<1x384xf32>
    %29 = vector.broadcast %28 : vector<1x384xf32> to vector<256x384xf32>
    %30 = arith.addf %27, %29 : vector<256x384xf32>
    %31 = vector.extract_strided_slice %30 {offsets = [0, 0], sizes = [128, 384], strides = [1, 1]} : vector<256x384xf32> to vector<128x384xf32>
    %32 = tpu.transpose %31, [1, 0] : vector<128x384xf32> -> vector<384x128xf32>
    %33 = vector.shape_cast %32 : vector<384x128xf32> to vector<3x4x32x128xf32>
    %34 = vector.extract_strided_slice %33 {offsets = [0, 0, 0, 0], sizes = [1, 4, 32, 128], strides = [1, 1, 1, 1]} : vector<3x4x32x128xf32> to vector<1x4x32x128xf32>
    %35 = vector.shape_cast %34 : vector<1x4x32x128xf32> to vector<4x32x128xf32>
    %36 = vector.extract_strided_slice %33 {offsets = [1, 0, 0, 0], sizes = [1, 4, 32, 128], strides = [1, 1, 1, 1]} : vector<3x4x32x128xf32> to vector<1x4x32x128xf32>
    %37 = vector.shape_cast %36 : vector<1x4x32x128xf32> to vector<4x32x128xf32>
    %38 = vector.extract_strided_slice %33 {offsets = [2, 0, 0, 0], sizes = [1, 4, 32, 128], strides = [1, 1, 1, 1]} : vector<3x4x32x128xf32> to vector<1x4x32x128xf32>
    %39 = vector.shape_cast %38 : vector<1x4x32x128xf32> to vector<4x32x128xf32>
    %40 = tpu.transpose %35, [0, 2, 1] : vector<4x32x128xf32> -> vector<4x128x32xf32>
    %41 = tpu.transpose %39, [0, 2, 1] : vector<4x32x128xf32> -> vector<4x128x32xf32>
    "tpu.trace_start"() <{level = 10 : i32, message = "hqe,hek->hqk"}> : () -> ()
    %cst_15 = arith.constant dense<0.000000e+00> : vector<4x128x128xf32>
    %42 = tpu.matmul %40, %37, %cst_15 {dimension_numbers = #tpu.dot_dimension_numbers<[2], [1], [1], [2], [0, 0, 0, 1, 1, 2], [0], [0]>} : vector<4x128x32xf32>, vector<4x32x128xf32>, vector<4x128x128xf32> -> vector<4x128x128xf32>
    "tpu.trace_stop"() : () -> ()
    %cst_16 = arith.constant 0.176776692 : f32
    %43 = vector.broadcast %cst_16 : f32 to vector<4x128x128xf32>
    %44 = arith.mulf %42, %43 : vector<4x128x128xf32>
    %cst_17 = arith.constant dense<0xFF800000> : vector<4x128xf32>
    %45 = vector.multi_reduction <maximumf>, %44, %cst_17 [2] : vector<4x128x128xf32> to vector<4x128xf32>
    %46 = vector.shape_cast %45 : vector<4x128xf32> to vector<4x128x1xf32>
    %47 = vector.broadcast %46 : vector<4x128x1xf32> to vector<4x128x128xf32>
    %48 = arith.subf %44, %47 : vector<4x128x128xf32>
    %49 = math.exp %48 : vector<4x128x128xf32>
    %cst_18 = arith.constant dense<0.000000e+00> : vector<4x128xf32>
    %50 = vector.multi_reduction <add>, %49, %cst_18 [2] : vector<4x128x128xf32> to vector<4x128xf32>
    %51 = vector.shape_cast %50 : vector<4x128xf32> to vector<4x128x1xf32>
    %52 = tpu.reciprocal %51 {approx = true} : vector<4x128x1xf32> -> vector<4x128x1xf32>
    %53 = vector.broadcast %52 : vector<4x128x1xf32> to vector<4x128x128xf32>
    %54 = arith.mulf %49, %53 : vector<4x128x128xf32>
    "tpu.trace_start"() <{level = 10 : i32, message = "hqk,hke->hqe"}> : () -> ()
    %cst_19 = arith.constant dense<0.000000e+00> : vector<4x128x32xf32>
    %55 = tpu.matmul %54, %41, %cst_19 {dimension_numbers = #tpu.dot_dimension_numbers<[2], [1], [1], [2], [0, 0, 0, 1, 1, 2], [0], [0]>} : vector<4x128x128xf32>, vector<4x128x32xf32>, vector<4x128x32xf32> -> vector<4x128x32xf32>
    "tpu.trace_stop"() : () -> ()
    %c0_20 = arith.constant 0 : index
    %c0_21 = arith.constant 0 : index
    %c0_22 = arith.constant 0 : index
    %56 = vector.load %arg6[%c0_20, %c0_21, %c0_22] : memref<4x32x128xf32, #tpu.memory_space<vmem>>, vector<4x32x128xf32>
    "tpu.trace_start"() <{level = 10 : i32, message = "hqe,hed->hqd"}> : () -> ()
    %cst_23 = arith.constant dense<0.000000e+00> : vector<4x128x128xf32>
    %57 = tpu.matmul %55, %56, %cst_23 {dimension_numbers = #tpu.dot_dimension_numbers<[2], [1], [1], [2], [0, 0, 0, 1, 1, 2], [0], [0]>} : vector<4x128x32xf32>, vector<4x32x128xf32>, vector<4x128x128xf32> -> vector<4x128x128xf32>
    "tpu.trace_stop"() : () -> ()
    %58 = vector.extract_strided_slice %57 {offsets = [0, 0, 0], sizes = [1, 128, 128], strides = [1, 1, 1]} : vector<4x128x128xf32> to vector<1x128x128xf32>
    %59 = vector.shape_cast %58 : vector<1x128x128xf32> to vector<128x128xf32>
    %60 = vector.extract_strided_slice %57 {offsets = [1, 0, 0], sizes = [1, 128, 128], strides = [1, 1, 1]} : vector<4x128x128xf32> to vector<1x128x128xf32>
    %61 = vector.shape_cast %60 : vector<1x128x128xf32> to vector<128x128xf32>
    %62 = arith.addf %59, %61 : vector<128x128xf32>
    %63 = vector.extract_strided_slice %57 {offsets = [2, 0, 0], sizes = [1, 128, 128], strides = [1, 1, 1]} : vector<4x128x128xf32> to vector<1x128x128xf32>
    %64 = vector.shape_cast %63 : vector<1x128x128xf32> to vector<128x128xf32>
    %65 = arith.addf %62, %64 : vector<128x128xf32>
    %66 = vector.extract_strided_slice %57 {offsets = [3, 0, 0], sizes = [1, 128, 128], strides = [1, 1, 1]} : vector<4x128x128xf32> to vector<1x128x128xf32>
    %67 = vector.shape_cast %66 : vector<1x128x128xf32> to vector<128x128xf32>
    %68 = arith.addf %65, %67 : vector<128x128xf32>
    %69 = vector.extract_strided_slice %30 {offsets = [128, 0], sizes = [128, 384], strides = [1, 1]} : vector<256x384xf32> to vector<128x384xf32>
    %70 = tpu.transpose %69, [1, 0] : vector<128x384xf32> -> vector<384x128xf32>
    %71 = vector.shape_cast %70 : vector<384x128xf32> to vector<3x4x32x128xf32>
    %72 = vector.extract_strided_slice %71 {offsets = [0, 0, 0, 0], sizes = [1, 4, 32, 128], strides = [1, 1, 1, 1]} : vector<3x4x32x128xf32> to vector<1x4x32x128xf32>
    %73 = vector.shape_cast %72 : vector<1x4x32x128xf32> to vector<4x32x128xf32>
    %74 = vector.extract_strided_slice %71 {offsets = [1, 0, 0, 0], sizes = [1, 4, 32, 128], strides = [1, 1, 1, 1]} : vector<3x4x32x128xf32> to vector<1x4x32x128xf32>
    %75 = vector.shape_cast %74 : vector<1x4x32x128xf32> to vector<4x32x128xf32>
    %76 = vector.extract_strided_slice %71 {offsets = [2, 0, 0, 0], sizes = [1, 4, 32, 128], strides = [1, 1, 1, 1]} : vector<3x4x32x128xf32> to vector<1x4x32x128xf32>
    %77 = vector.shape_cast %76 : vector<1x4x32x128xf32> to vector<4x32x128xf32>
    %78 = tpu.transpose %73, [0, 2, 1] : vector<4x32x128xf32> -> vector<4x128x32xf32>
    %79 = tpu.transpose %77, [0, 2, 1] : vector<4x32x128xf32> -> vector<4x128x32xf32>
    "tpu.trace_start"() <{level = 10 : i32, message = "hqe,hek->hqk"}> : () -> ()
    %cst_24 = arith.constant dense<0.000000e+00> : vector<4x128x128xf32>
    %80 = tpu.matmul %78, %75, %cst_24 {dimension_numbers = #tpu.dot_dimension_numbers<[2], [1], [1], [2], [0, 0, 0, 1, 1, 2], [0], [0]>} : vector<4x128x32xf32>, vector<4x32x128xf32>, vector<4x128x128xf32> -> vector<4x128x128xf32>
    "tpu.trace_stop"() : () -> ()
    %cst_25 = arith.constant 0.176776692 : f32
    %81 = vector.broadcast %cst_25 : f32 to vector<4x128x128xf32>
    %82 = arith.mulf %80, %81 : vector<4x128x128xf32>
    %cst_26 = arith.constant dense<0xFF800000> : vector<4x128xf32>
    %83 = vector.multi_reduction <maximumf>, %82, %cst_26 [2] : vector<4x128x128xf32> to vector<4x128xf32>
    %84 = vector.shape_cast %83 : vector<4x128xf32> to vector<4x128x1xf32>
    %85 = vector.broadcast %84 : vector<4x128x1xf32> to vector<4x128x128xf32>
    %86 = arith.subf %82, %85 : vector<4x128x128xf32>
    %87 = math.exp %86 : vector<4x128x128xf32>
    %cst_27 = arith.constant dense<0.000000e+00> : vector<4x128xf32>
    %88 = vector.multi_reduction <add>, %87, %cst_27 [2] : vector<4x128x128xf32> to vector<4x128xf32>
    %89 = vector.shape_cast %88 : vector<4x128xf32> to vector<4x128x1xf32>
    %90 = tpu.reciprocal %89 {approx = true} : vector<4x128x1xf32> -> vector<4x128x1xf32>
    %91 = vector.broadcast %90 : vector<4x128x1xf32> to vector<4x128x128xf32>
    %92 = arith.mulf %87, %91 : vector<4x128x128xf32>
    "tpu.trace_start"() <{level = 10 : i32, message = "hqk,hke->hqe"}> : () -> ()
    %cst_28 = arith.constant dense<0.000000e+00> : vector<4x128x32xf32>
    %93 = tpu.matmul %92, %79, %cst_28 {dimension_numbers = #tpu.dot_dimension_numbers<[2], [1], [1], [2], [0, 0, 0, 1, 1, 2], [0], [0]>} : vector<4x128x128xf32>, vector<4x128x32xf32>, vector<4x128x32xf32> -> vector<4x128x32xf32>
    "tpu.trace_stop"() : () -> ()
    %c0_29 = arith.constant 0 : index
    %c0_30 = arith.constant 0 : index
    %c0_31 = arith.constant 0 : index
    %94 = vector.load %arg6[%c0_29, %c0_30, %c0_31] : memref<4x32x128xf32, #tpu.memory_space<vmem>>, vector<4x32x128xf32>
    "tpu.trace_start"() <{level = 10 : i32, message = "hqe,hed->hqd"}> : () -> ()
    %cst_32 = arith.constant dense<0.000000e+00> : vector<4x128x128xf32>
    %95 = tpu.matmul %93, %94, %cst_32 {dimension_numbers = #tpu.dot_dimension_numbers<[2], [1], [1], [2], [0, 0, 0, 1, 1, 2], [0], [0]>} : vector<4x128x32xf32>, vector<4x32x128xf32>, vector<4x128x128xf32> -> vector<4x128x128xf32>
    "tpu.trace_stop"() : () -> ()
    %96 = vector.extract_strided_slice %95 {offsets = [0, 0, 0], sizes = [1, 128, 128], strides = [1, 1, 1]} : vector<4x128x128xf32> to vector<1x128x128xf32>
    %97 = vector.shape_cast %96 : vector<1x128x128xf32> to vector<128x128xf32>
    %98 = vector.extract_strided_slice %95 {offsets = [1, 0, 0], sizes = [1, 128, 128], strides = [1, 1, 1]} : vector<4x128x128xf32> to vector<1x128x128xf32>
    %99 = vector.shape_cast %98 : vector<1x128x128xf32> to vector<128x128xf32>
    %100 = arith.addf %97, %99 : vector<128x128xf32>
    %101 = vector.extract_strided_slice %95 {offsets = [2, 0, 0], sizes = [1, 128, 128], strides = [1, 1, 1]} : vector<4x128x128xf32> to vector<1x128x128xf32>
    %102 = vector.shape_cast %101 : vector<1x128x128xf32> to vector<128x128xf32>
    %103 = arith.addf %100, %102 : vector<128x128xf32>
    %104 = vector.extract_strided_slice %95 {offsets = [3, 0, 0], sizes = [1, 128, 128], strides = [1, 1, 1]} : vector<4x128x128xf32> to vector<1x128x128xf32>
    %105 = vector.shape_cast %104 : vector<1x128x128xf32> to vector<128x128xf32>
    %106 = arith.addf %103, %105 : vector<128x128xf32>
    %107 = tpu.concatenate %68, %106 in 0 : vector<128x128xf32>, vector<128x128xf32> -> vector<256x128xf32>
    %108 = arith.addf %1, %107 : vector<256x128xf32>
    %c0_33 = arith.constant 0 : index
    %c0_34 = arith.constant 0 : index
    %109 = vector.load %arg7[%c0_33, %c0_34] : memref<1x128xf32, #tpu.memory_space<vmem>>, vector<1x128xf32>
    %110 = vector.broadcast %109 : vector<1x128xf32> to vector<256x128xf32>
    %111 = arith.addf %108, %110 : vector<256x128xf32>
    %cst_35 = arith.constant dense<0.000000e+00> : vector<256xf32>
    %112 = vector.multi_reduction <add>, %111, %cst_35 [1] : vector<256x128xf32> to vector<256xf32>
    %113 = vector.shape_cast %112 : vector<256xf32> to vector<256x1xf32>
    %cst_36 = arith.constant 1.280000e+02 : f32
    %114 = vector.broadcast %cst_36 : f32 to vector<256x1xf32>
    %115 = arith.divf %113, %114 : vector<256x1xf32>
    %116 = arith.mulf %111, %111 : vector<256x128xf32>
    %cst_37 = arith.constant dense<0.000000e+00> : vector<256xf32>
    %117 = vector.multi_reduction <add>, %116, %cst_37 [1] : vector<256x128xf32> to vector<256xf32>
    %118 = vector.shape_cast %117 : vector<256xf32> to vector<256x1xf32>
    %cst_38 = arith.constant 1.280000e+02 : f32
    %119 = vector.broadcast %cst_38 : f32 to vector<256x1xf32>
    %120 = arith.divf %118, %119 : vector<256x1xf32>
    %121 = arith.mulf %115, %115 : vector<256x1xf32>
    %122 = arith.subf %120, %121 : vector<256x1xf32>
    %cst_39 = arith.constant 9.99999974E-6 : f32
    %123 = vector.broadcast %cst_39 : f32 to vector<256x1xf32>
    %124 = arith.addf %122, %123 : vector<256x1xf32>
    %125 = math.rsqrt %124 : vector<256x1xf32>
    %126 = vector.broadcast %115 : vector<256x1xf32> to vector<256x128xf32>
    %127 = arith.subf %111, %126 : vector<256x128xf32>
    %128 = vector.broadcast %125 : vector<256x1xf32> to vector<256x128xf32>
    %129 = arith.mulf %127, %128 : vector<256x128xf32>
    %c0_40 = arith.constant 0 : index
    %c0_41 = arith.constant 0 : index
    %130 = vector.load %arg8[%c0_40, %c0_41] : memref<1x128xf32, #tpu.memory_space<vmem>>, vector<1x128xf32>
    %131 = vector.broadcast %130 : vector<1x128xf32> to vector<256x128xf32>
    %132 = arith.mulf %129, %131 : vector<256x128xf32>
    %c0_42 = arith.constant 0 : index
    %c0_43 = arith.constant 0 : index
    %133 = vector.load %arg9[%c0_42, %c0_43] : memref<1x128xf32, #tpu.memory_space<vmem>>, vector<1x128xf32>
    %134 = vector.broadcast %133 : vector<1x128xf32> to vector<256x128xf32>
    %135 = arith.addf %132, %134 : vector<256x128xf32>
    %c0_44 = arith.constant 0 : index
    %c0_45 = arith.constant 0 : index
    %136 = vector.load %arg10[%c0_44, %c0_45] : memref<128x512xf32, #tpu.memory_space<vmem>>, vector<128x512xf32>
    %cst_46 = arith.constant dense<0.000000e+00> : vector<256x512xf32>
    %137 = tpu.matmul %135, %136, %cst_46 {dimension_numbers = #tpu.dot_dimension_numbers<[1], [0], [0], [1], [0, 0, 1, 1], [], []>} : vector<256x128xf32>, vector<128x512xf32>, vector<256x512xf32> -> vector<256x512xf32>
    %c0_47 = arith.constant 0 : index
    %c0_48 = arith.constant 0 : index
    %138 = vector.load %arg11[%c0_47, %c0_48] : memref<1x512xf32, #tpu.memory_space<vmem>>, vector<1x512xf32>
    %139 = vector.broadcast %138 : vector<1x512xf32> to vector<256x512xf32>
    %140 = arith.addf %137, %139 : vector<256x512xf32>
    %141 = arith.mulf %140, %140 : vector<256x512xf32>
    %142 = arith.mulf %140, %141 : vector<256x512xf32>
    %cst_49 = arith.constant 4.471500e-02 : f32
    %143 = vector.broadcast %cst_49 : f32 to vector<256x512xf32>
    %144 = arith.mulf %143, %142 : vector<256x512xf32>
    %145 = arith.addf %140, %144 : vector<256x512xf32>
    %cst_50 = arith.constant 0.797884583 : f32
    %146 = vector.broadcast %cst_50 : f32 to vector<256x512xf32>
    %147 = arith.mulf %146, %145 : vector<256x512xf32>
    %148 = math.tanh %147 : vector<256x512xf32>
    %cst_51 = arith.constant 1.000000e+00 : f32
    %149 = vector.broadcast %cst_51 : f32 to vector<256x512xf32>
    %150 = arith.addf %149, %148 : vector<256x512xf32>
    %cst_52 = arith.constant 5.000000e-01 : f32
    %151 = vector.broadcast %cst_52 : f32 to vector<256x512xf32>
    %152 = arith.mulf %151, %150 : vector<256x512xf32>
    %153 = arith.mulf %140, %152 : vector<256x512xf32>
    %c0_53 = arith.constant 0 : index
    %c0_54 = arith.constant 0 : index
    %154 = vector.load %arg12[%c0_53, %c0_54] : memref<512x128xf32, #tpu.memory_space<vmem>>, vector<512x128xf32>
    %cst_55 = arith.constant dense<0.000000e+00> : vector<256x128xf32>
    %155 = tpu.matmul %153, %154, %cst_55 {dimension_numbers = #tpu.dot_dimension_numbers<[1], [0], [0], [1], [0, 0, 1, 1], [], []>} : vector<256x512xf32>, vector<512x128xf32>, vector<256x128xf32> -> vector<256x128xf32>
    %c0_56 = arith.constant 0 : index
    %c0_57 = arith.constant 0 : index
    %156 = vector.load %arg13[%c0_56, %c0_57] : memref<1x128xf32, #tpu.memory_space<vmem>>, vector<1x128xf32>
    %157 = vector.broadcast %156 : vector<1x128xf32> to vector<256x128xf32>
    %158 = arith.addf %155, %157 : vector<256x128xf32>
    %159 = arith.addf %111, %158 : vector<256x128xf32>
    %160 = vector.shape_cast %159 : vector<256x128xf32> to vector<2x128x128xf32>
    %c0_58 = arith.constant 0 : index
    %c0_59 = arith.constant 0 : index
    %c0_60 = arith.constant 0 : index
    %161 = vector.load %arg14[%c0_58, %c0_59, %c0_60] : memref<2x128x128xf32, #tpu.memory_space<vmem>>, vector<2x128x128xf32>
    tpu.vector_store %arg14[%c0_58, %c0_59, %c0_60], %160 {strides = array<i32>} : memref<2x128x128xf32, #tpu.memory_space<vmem>>, vector<2x128x128xf32>,
    return
  }
  func.func @transform_0(%arg0: i32) -> (i32, i32, i32) {
    %c0_i32 = arith.constant 0 : i32
    %c0_i32_0 = arith.constant 0 : i32
    %c0_i32_1 = arith.constant 0 : i32
    return %arg0, %c0_i32, %c0_i32_0 : i32, i32, i32
  }
  func.func @transform_1(%arg0: i32) -> (i32, i32) {
    %c0_i32 = arith.constant 0 : i32
    %c0_i32_0 = arith.constant 0 : i32
    %c0_i32_1 = arith.constant 0 : i32
    return %c0_i32, %c0_i32_0 : i32, i32
  }
  func.func @transform_2(%arg0: i32) -> (i32, i32) {
    %c0_i32 = arith.constant 0 : i32
    %c0_i32_0 = arith.constant 0 : i32
    %c0_i32_1 = arith.constant 0 : i32
    return %c0_i32, %c0_i32_0 : i32, i32
  }
  func.func @transform_3(%arg0: i32) -> (i32, i32) {
    %c0_i32 = arith.constant 0 : i32
    %c0_i32_0 = arith.constant 0 : i32
    %c0_i32_1 = arith.constant 0 : i32
    return %c0_i32, %c0_i32_0 : i32, i32
  }
  func.func @transform_4(%arg0: i32) -> (i32, i32) {
    %c0_i32 = arith.constant 0 : i32
    %c0_i32_0 = arith.constant 0 : i32
    %c0_i32_1 = arith.constant 0 : i32
    return %c0_i32, %c0_i32_0 : i32, i32
  }
  func.func @transform_5(%arg0: i32) -> (i32, i32, i32) {
    %c0_i32 = arith.constant 0 : i32
    %c0_i32_0 = arith.constant 0 : i32
    %c0_i32_1 = arith.constant 0 : i32
    %c0_i32_2 = arith.constant 0 : i32
    return %c0_i32, %c0_i32_0, %c0_i32_1 : i32, i32, i32
  }
  func.func @transform_6(%arg0: i32) -> (i32, i32) {
    %c0_i32 = arith.constant 0 : i32
    %c0_i32_0 = arith.constant 0 : i32
    %c0_i32_1 = arith.constant 0 : i32
    return %c0_i32, %c0_i32_0 : i32, i32
  }
  func.func @transform_7(%arg0: i32) -> (i32, i32) {
    %c0_i32 = arith.constant 0 : i32
    %c0_i32_0 = arith.constant 0 : i32
    %c0_i32_1 = arith.constant 0 : i32
    return %c0_i32, %c0_i32_0 : i32, i32
  }
  func.func @transform_8(%arg0: i32) -> (i32, i32) {
    %c0_i32 = arith.constant 0 : i32
    %c0_i32_0 = arith.constant 0 : i32
    %c0_i32_1 = arith.constant 0 : i32
    return %c0_i32, %c0_i32_0 : i32, i32
  }
  func.func @transform_9(%arg0: i32) -> (i32, i32) {
    %c0_i32 = arith.constant 0 : i32
    %c0_i32_0 = arith.constant 0 : i32
    %c0_i32_1 = arith.constant 0 : i32
    return %c0_i32, %c0_i32_0 : i32, i32
  }
  func.func @transform_10(%arg0: i32) -> (i32, i32) {
    %c0_i32 = arith.constant 0 : i32
    %c0_i32_0 = arith.constant 0 : i32
    %c0_i32_1 = arith.constant 0 : i32
    return %c0_i32, %c0_i32_0 : i32, i32
  }
  func.func @transform_11(%arg0: i32) -> (i32, i32) {
    %c0_i32 = arith.constant 0 : i32
    %c0_i32_0 = arith.constant 0 : i32
    %c0_i32_1 = arith.constant 0 : i32
    return %c0_i32, %c0_i32_0 : i32, i32
  }
  func.func @transform_12(%arg0: i32) -> (i32, i32) {
    %c0_i32 = arith.constant 0 : i32
    %c0_i32_0 = arith.constant 0 : i32
    %c0_i32_1 = arith.constant 0 : i32
    return %c0_i32, %c0_i32_0 : i32, i32
  }
  func.func @transform_13(%arg0: i32) -> (i32, i32, i32) {
    %c0_i32 = arith.constant 0 : i32
    %c0_i32_0 = arith.constant 0 : i32
    %c0_i32_1 = arith.constant 0 : i32
    return %arg0, %c0_i32, %c0_i32_0 : i32, i32, i32
  }
}

</mosaic_0001>

<llo_original>
// kernel: experimental_block_forward.1
$region0: #{experimental_block_forward.1}
  #allocation0 [shape = 'u32[]', space=smem, size = 0x4, offset = 0x4, fixed_abs, tag = 'smem constant byte address 0x4 - core index']
  #allocation1 [shape = 'u32[72,128]{1,0:T(1,128)}', space=vmem, size = 0x9000, scoped, tag = 'internal scratch']
  %s0 = inlined_call_operand.hbm [shape: f32[4,128,128], index: 0, kind: input, shape index: {}, may-alias: {0,13}]
  %s1 = inlined_call_operand.hbm [shape: f32[1,128], index: 1, kind: input, shape index: {}]
  %s2 = inlined_call_operand.hbm [shape: f32[1,128], index: 2, kind: input, shape index: {}]
  %s3 = inlined_call_operand.hbm [shape: f32[128,384], index: 3, kind: input, shape index: {}]
  %s4 = inlined_call_operand.hbm [shape: f32[1,384], index: 4, kind: input, shape index: {}]
  %s5 = inlined_call_operand.hbm [shape: f32[4,32,128], index: 5, kind: input, shape index: {}]
  %s6 = inlined_call_operand.hbm [shape: f32[1,128], index: 6, kind: input, shape index: {}]
  %s7 = inlined_call_operand.hbm [shape: f32[1,128], index: 7, kind: input, shape index: {}]
  %s8 = inlined_call_operand.hbm [shape: f32[1,128], index: 8, kind: input, shape index: {}]
  %s9 = inlined_call_operand.vmem [shape: f32[128,512], index: 9, kind: input, shape index: {}]
  %s10 = inlined_call_operand.hbm [shape: f32[1,512], index: 10, kind: input, shape index: {}]
  %s11 = inlined_call_operand.vmem [shape: f32[512,128], index: 11, kind: input, shape index: {}]
  %s12 = inlined_call_operand.hbm [shape: f32[1,128], index: 12, kind: input, shape index: {}]
  %s13 = inlined_call_operand.hbm [shape: f32[4,128,128], index: 13, kind: output, shape index: {}, may-alias: {0,13}]
  %s14 = sld [smem:[#allocation0]]
  $region129: #{experimental_block_forward.1} parent=0
    _
  %s16 = ssub.s32 1, %s14
  %s17 = scalar_select 0, %s16, %s14
  $region1: #{experimental_block_forward.1} parent=0
    #allocation2 [shape = 'u8[262144]{0}', space=vmem, size = 0x40000, scoped, tag = 'input window, operand 0']
    #allocation3 [shape = 's32[2]{0}', space=sflag, size = 0x8, scoped, tag = 'scoped memory for experimental_block_forward.1']
    #allocation4 [shape = 's32[2]{0}', space=sflag, size = 0x8, scoped, tag = 'scoped memory for experimental_block_forward.1']
    #allocation5 [shape = 'u8[512]{0}', space=vmem, size = 0x400, scoped, tag = 'input window, operand 1, single buffered']
    #allocation6 [shape = 's32[1]{0}', space=sflag, size = 0x4, scoped, tag = 'scoped memory for experimental_block_forward.1']
    #allocation7 [shape = 'u8[512]{0}', space=vmem, size = 0x400, scoped, tag = 'input window, operand 2, single buffered']
    #allocation8 [shape = 'u8[196608]{0}', space=vmem, size = 0x30000, scoped, tag = 'input window, operand 3, single buffered']
    #allocation9 [shape = 's32[1]{0}', space=sflag, size = 0x4, scoped, tag = 'scoped memory for experimental_block_forward.1']
    #allocation10 [shape = 'u8[1536]{0}', space=vmem, size = 0x800, scoped, tag = 'input window, operand 4, single buffered']
    #allocation11 [shape = 'u8[65536]{0}', space=vmem, size = 0x10000, scoped, tag = 'input window, operand 5, single buffered']
    #allocation12 [shape = 's32[1]{0}', space=sflag, size = 0x4, scoped, tag = 'scoped memory for experimental_block_forward.1']
    #allocation13 [shape = 'u8[512]{0}', space=vmem, size = 0x400, scoped, tag = 'input window, operand 6, single buffered']
    #allocation14 [shape = 'u8[512]{0}', space=vmem, size = 0x400, scoped, tag = 'input window, operand 7, single buffered']
    #allocation15 [shape = 's32[1]{0}', space=sflag, size = 0x4, scoped, tag = 'scoped memory for experimental_block_forward.1']
    #allocation16 [shape = 'u8[512]{0}', space=vmem, size = 0x400, scoped, tag = 'input window, operand 8, single buffered']
    #allocation17 [shape = 'u8[2048]{0}', space=vmem, size = 0x800, scoped, tag = 'input window, operand 10, single buffered']
    #allocation18 [shape = 's32[1]{0}', space=sflag, size = 0x4, scoped, tag = 'scoped memory for experimental_block_forward.1']
    #allocation19 [shape = 'u8[512]{0}', space=vmem, size = 0x400, scoped, tag = 'input window, operand 12, single buffered']
    #allocation20 [shape = 'u8[262144]{0}', space=vmem, size = 0x40000, scoped, tag = 'output window, operand 0']
    %18 = vsyncpa [#allocation3], 0
    %s19 = scalar_lea.sflag [#allocation3], 1
    %20 = vsyncpa %s19, 0
    %21 = vsyncpa [#allocation6], 0
    %22 = vsyncpa [#allocation9], 0
    %23 = vsyncpa [#allocation12], 0
    %24 = vsyncpa [#allocation15], 0
    %25 = vsyncpa [#allocation18], 0
    %26 = vsyncpa [#allocation4], 0
    %s27 = scalar_lea.sflag [#allocation4], 1
    %28 = vsyncpa %s27, 0
    loop: start=0, step=1, limit=4
    $region2: #{experimental_block_forward.1} parent=1 // loop_pre_header
      _
    $region3: #{experimental_block_forward.1} parent=1 // loop_header
      %s30 = sphi 0, %s34
      %p31 = scmp.ge.s32.totalorder %s30, 4
      %s40 = sphi 0, %s42
      %s43 = sphi 0, %s40
      %s44 = sphi 0, %s43
      %s60 = sphi 0, %s44
      %s64 = sphi 0, %s64
      %s66 = sphi 0, %s64
      %s67 = sphi 0, %s66
      %s81 = sphi 0, %s67
      %s85 = sphi 0, %s85
      %s87 = sphi 0, %s85
      %s88 = sphi 0, %s87
      %s102 = sphi 0, %s88
      %s106 = sphi 0, %s106
      %s108 = sphi 0, %s106
      %s109 = sphi 0, %s108
      %s123 = sphi 0, %s109
      %s127 = sphi 0, %s127
      %s129 = sphi 0, %s127
      %s130 = sphi 0, %s129
      %s144 = sphi 0, %s130
      %s148 = sphi 0, %s148
      %s150 = sphi 0, %s148
      %s151 = sphi 0, %s150
      %s165 = sphi 0, %s151
      %s169 = sphi 0, %s169
      %s171 = sphi 0, %s169
      %s172 = sphi 0, %s171
      %s186 = sphi 0, %s172
      %s190 = sphi 0, %s190
      %s192 = sphi 0, %s190
      %s193 = sphi 0, %s192
      %s207 = sphi 0, %s193
      %s211 = sphi 0, %s211
      %s213 = sphi 0, %s211
      %s214 = sphi 0, %s213
      %s228 = sphi 0, %s214
      %s232 = sphi 0, %s232
      %s234 = sphi 0, %s232
      %s235 = sphi 0, %s234
      %s249 = sphi 0, %s235
      %s253 = sphi 0, %s253
      %s255 = sphi 0, %s253
      %s256 = sphi 0, %s255
      %s270 = sphi 0, %s256
      %s274 = sphi 0, %s274
      %s276 = sphi 0, %s274
      %s277 = sphi 0, %s276
      %s291 = sphi 0, %s277
      %s295 = sphi 0, %s295
      %s297 = sphi 0, %s295
      %s298 = sphi 0, %s297
      %s312 = sphi 0, %s298
      %s318 = sphi 0, %s320
      %s321 = sphi 0, %s318
      %s322 = sphi 0, %s321
      %s338 = sphi 0, %s322
    $region4: #{experimental_block_forward.1} parent=1 // loop_header_branch
      %33 = sbr.rel (%p31) target = $region8
    $region5: #{experimental_block_forward.1} parent=1 // loop_body
      %s35 = ssub.s32 %s30, 1
      %s36 = ssub.s32 %s30, 2
      %s37 = sadd.s32 %s30, 1
      %s38 = ssub.s32 %s30, %s37
      %p39 = scmp.eq.s32.totalorder %s38, 0
      %s41 = sadd.s32 %s40, 1
      %s42 = scalar_select %p39, %s40, %s41
      %p45 = pneg %p39
      %p46 = scmp.eq.s32.totalorder %s30, 1
      %p47 = por %p45, %p46
      %p48 = scmp.ne.s32.totalorder %s40, %s43
      %p49 = scmp.eq.s32.totalorder %s30, 0
      %p50 = por %p48, %p49
      %p51 = scmp.ne.s32.totalorder %s40, %s43
      %p52 = scmp.eq.s32.totalorder %s35, 1
      %p53 = por %p51, %p52
      %p54 = scmp.ne.s32.totalorder %s43, %s44
      %p55 = scmp.eq.s32.totalorder %s35, 0
      %p56 = por %p54, %p55
      %p57 = scmp.ne.s32.totalorder %s43, %s44
      %p58 = scmp.eq.s32.totalorder %s36, 1
      %p59 = por %p57, %p58
      %p61 = scmp.ne.s32.totalorder %s44, %s60
      %p62 = scmp.eq.s32.totalorder %s36, 0
      %p63 = por %p61, %p62
      %s65 = sadd.s32 %s64, 1
      %p68 = scmp.eq.s32.totalorder %s30, 1
      %p69 = scmp.ne.s32.totalorder %s64, %s66
      %p70 = scmp.eq.s32.totalorder %s30, 0
      %p71 = por %p69, %p70
      %p72 = scmp.ne.s32.totalorder %s64, %s66
      %p73 = scmp.eq.s32.totalorder %s35, 1
      %p74 = por %p72, %p73
      %p75 = scmp.ne.s32.totalorder %s66, %s67
      %p76 = scmp.eq.s32.totalorder %s35, 0
      %p77 = por %p75, %p76
      %p78 = scmp.ne.s32.totalorder %s66, %s67
      %p79 = scmp.eq.s32.totalorder %s36, 1
      %p80 = por %p78, %p79
      %p82 = scmp.ne.s32.totalorder %s67, %s81
      %p83 = scmp.eq.s32.totalorder %s36, 0
      %p84 = por %p82, %p83
      %s86 = sadd.s32 %s85, 1
      %p89 = scmp.eq.s32.totalorder %s30, 1
      %p90 = scmp.ne.s32.totalorder %s85, %s87
      %p91 = scmp.eq.s32.totalorder %s30, 0
      %p92 = por %p90, %p91
      %p93 = scmp.ne.s32.totalorder %s85, %s87
      %p94 = scmp.eq.s32.totalorder %s35, 1
      %p95 = por %p93, %p94
      %p96 = scmp.ne.s32.totalorder %s87, %s88
      %p97 = scmp.eq.s32.totalorder %s35, 0
      %p98 = por %p96, %p97
      %p99 = scmp.ne.s32.totalorder %s87, %s88
      %p100 = scmp.eq.s32.totalorder %s36, 1
      %p101 = por %p99, %p100
      %p103 = scmp.ne.s32.totalorder %s88, %s102
      %p104 = scmp.eq.s32.totalorder %s36, 0
      %p105 = por %p103, %p104
      %s107 = sadd.s32 %s106, 1
      %p110 = scmp.eq.s32.totalorder %s30, 1
      %p111 = scmp.ne.s32.totalorder %s106, %s108
      %p112 = scmp.eq.s32.totalorder %s30, 0
      %p113 = por %p111, %p112
      %p114 = scmp.ne.s32.totalorder %s106, %s108
      %p115 = scmp.eq.s32.totalorder %s35, 1
      %p116 = por %p114, %p115
      %p117 = scmp.ne.s32.totalorder %s108, %s109
      %p118 = scmp.eq.s32.totalorder %s35, 0
      %p119 = por %p117, %p118
      %p120 = scmp.ne.s32.totalorder %s108, %s109
      %p121 = scmp.eq.s32.totalorder %s36, 1
      %p122 = por %p120, %p121
      %p124 = scmp.ne.s32.totalorder %s109, %s123
      %p125 = scmp.eq.s32.totalorder %s36, 0
      %p126 = por %p124, %p125
      %s128 = sadd.s32 %s127, 1
      %p131 = scmp.eq.s32.totalorder %s30, 1
      %p132 = scmp.ne.s32.totalorder %s127, %s129
      %p133 = scmp.eq.s32.totalorder %s30, 0
      %p134 = por %p132, %p133
      %p135 = scmp.ne.s32.totalorder %s127, %s129
      %p136 = scmp.eq.s32.totalorder %s35, 1
      %p137 = por %p135, %p136
      %p138 = scmp.ne.s32.totalorder %s129, %s130
      %p139 = scmp.eq.s32.totalorder %s35, 0
      %p140 = por %p138, %p139
      %p141 = scmp.ne.s32.totalorder %s129, %s130
      %p142 = scmp.eq.s32.totalorder %s36, 1
      %p143 = por %p141, %p142
      %p145 = scmp.ne.s32.totalorder %s130, %s144
      %p146 = scmp.eq.s32.totalorder %s36, 0
      %p147 = por %p145, %p146
      %s149 = sadd.s32 %s148, 1
      %p152 = scmp.eq.s32.totalorder %s30, 1
      %p153 = scmp.ne.s32.totalorder %s148, %s150
      %p154 = scmp.eq.s32.totalorder %s30, 0
      %p155 = por %p153, %p154
      %p156 = scmp.ne.s32.totalorder %s148, %s150
      %p157 = scmp.eq.s32.totalorder %s35, 1
      %p158 = por %p156, %p157
      %p159 = scmp.ne.s32.totalorder %s150, %s151
      %p160 = scmp.eq.s32.totalorder %s35, 0
      %p161 = por %p159, %p160
      %p162 = scmp.ne.s32.totalorder %s150, %s151
      %p163 = scmp.eq.s32.totalorder %s36, 1
      %p164 = por %p162, %p163
      %p166 = scmp.ne.s32.totalorder %s151, %s165
      %p167 = scmp.eq.s32.totalorder %s36, 0
      %p168 = por %p166, %p167
      %s170 = sadd.s32 %s169, 1
      %p173 = scmp.eq.s32.totalorder %s30, 1
      %p174 = scmp.ne.s32.totalorder %s169, %s171
      %p175 = scmp.eq.s32.totalorder %s30, 0
      %p176 = por %p174, %p175
      %p177 = scmp.ne.s32.totalorder %s169, %s171
      %p178 = scmp.eq.s32.totalorder %s35, 1
      %p179 = por %p177, %p178
      %p180 = scmp.ne.s32.totalorder %s171, %s172
      %p181 = scmp.eq.s32.totalorder %s35, 0
      %p182 = por %p180, %p181
      %p183 = scmp.ne.s32.totalorder %s171, %s172
      %p184 = scmp.eq.s32.totalorder %s36, 1
      %p185 = por %p183, %p184
      %p187 = scmp.ne.s32.totalorder %s172, %s186
      %p188 = scmp.eq.s32.totalorder %s36, 0
      %p189 = por %p187, %p188
      %s191 = sadd.s32 %s190, 1
      %p194 = scmp.eq.s32.totalorder %s30, 1
      %p195 = scmp.ne.s32.totalorder %s190, %s192
      %p196 = scmp.eq.s32.totalorder %s30, 0
      %p197 = por %p195, %p196
      %p198 = scmp.ne.s32.totalorder %s190, %s192
      %p199 = scmp.eq.s32.totalorder %s35, 1
      %p200 = por %p198, %p199
      %p201 = scmp.ne.s32.totalorder %s192, %s193
      %p202 = scmp.eq.s32.totalorder %s35, 0
      %p203 = por %p201, %p202
      %p204 = scmp.ne.s32.totalorder %s192, %s193
      %p205 = scmp.eq.s32.totalorder %s36, 1
      %p206 = por %p204, %p205
      %p208 = scmp.ne.s32.totalorder %s193, %s207
      %p209 = scmp.eq.s32.totalorder %s36, 0
      %p210 = por %p208, %p209
      %s212 = sadd.s32 %s211, 1
      %p215 = scmp.eq.s32.totalorder %s30, 1
      %p216 = scmp.ne.s32.totalorder %s211, %s213
      %p217 = scmp.eq.s32.totalorder %s30, 0
      %p218 = por %p216, %p217
      %p219 = scmp.ne.s32.totalorder %s211, %s213
      %p220 = scmp.eq.s32.totalorder %s35, 1
      %p221 = por %p219, %p220
      %p222 = scmp.ne.s32.totalorder %s213, %s214
      %p223 = scmp.eq.s32.totalorder %s35, 0
      %p224 = por %p222, %p223
      %p225 = scmp.ne.s32.totalorder %s213, %s214
      %p226 = scmp.eq.s32.totalorder %s36, 1
      %p227 = por %p225, %p226
      %p229 = scmp.ne.s32.totalorder %s214, %s228
      %p230 = scmp.eq.s32.totalorder %s36, 0
      %p231 = por %p229, %p230
      %s233 = sadd.s32 %s232, 1
      %p236 = scmp.eq.s32.totalorder %s30, 1
      %p237 = scmp.ne.s32.totalorder %s232, %s234
      %p238 = scmp.eq.s32.totalorder %s30, 0
      %p239 = por %p237, %p238
      %p240 = scmp.ne.s32.totalorder %s232, %s234
      %p241 = scmp.eq.s32.totalorder %s35, 1
      %p242 = por %p240, %p241
      %p243 = scmp.ne.s32.totalorder %s234, %s235
      %p244 = scmp.eq.s32.totalorder %s35, 0
      %p245 = por %p243, %p244
      %p246 = scmp.ne.s32.totalorder %s234, %s235
      %p247 = scmp.eq.s32.totalorder %s36, 1
      %p248 = por %p246, %p247
      %p250 = scmp.ne.s32.totalorder %s235, %s249
      %p251 = scmp.eq.s32.totalorder %s36, 0
      %p252 = por %p250, %p251
      %s254 = sadd.s32 %s253, 1
      %p257 = scmp.eq.s32.totalorder %s30, 1
      %p258 = scmp.ne.s32.totalorder %s253, %s255
      %p259 = scmp.eq.s32.totalorder %s30, 0
      %p260 = por %p258, %p259
      %p261 = scmp.ne.s32.totalorder %s253, %s255
      %p262 = scmp.eq.s32.totalorder %s35, 1
      %p263 = por %p261, %p262
      %p264 = scmp.ne.s32.totalorder %s255, %s256
      %p265 = scmp.eq.s32.totalorder %s35, 0
      %p266 = por %p264, %p265
      %p267 = scmp.ne.s32.totalorder %s255, %s256
      %p268 = scmp.eq.s32.totalorder %s36, 1
      %p269 = por %p267, %p268
      %p271 = scmp.ne.s32.totalorder %s256, %s270
      %p272 = scmp.eq.s32.totalorder %s36, 0
      %p273 = por %p271, %p272
      %s275 = sadd.s32 %s274, 1
      %p278 = scmp.eq.s32.totalorder %s30, 1
      %p279 = scmp.ne.s32.totalorder %s274, %s276
      %p280 = scmp.eq.s32.totalorder %s30, 0
      %p281 = por %p279, %p280
      %p282 = scmp.ne.s32.totalorder %s274, %s276
      %p283 = scmp.eq.s32.totalorder %s35, 1
      %p284 = por %p282, %p283
      %p285 = scmp.ne.s32.totalorder %s276, %s277
      %p286 = scmp.eq.s32.totalorder %s35, 0
      %p287 = por %p285, %p286
      %p288 = scmp.ne.s32.totalorder %s276, %s277
      %p289 = scmp.eq.s32.totalorder %s36, 1
      %p290 = por %p288, %p289
      %p292 = scmp.ne.s32.totalorder %s277, %s291
      %p293 = scmp.eq.s32.totalorder %s36, 0
      %p294 = por %p292, %p293
      %s296 = sadd.s32 %s295, 1
      %p299 = scmp.eq.s32.totalorder %s30, 1
      %p300 = scmp.ne.s32.totalorder %s295, %s297
      %p301 = scmp.eq.s32.totalorder %s30, 0
      %p302 = por %p300, %p301
      %p303 = scmp.ne.s32.totalorder %s295, %s297
      %p304 = scmp.eq.s32.totalorder %s35, 1
      %p305 = por %p303, %p304
      %p306 = scmp.ne.s32.totalorder %s297, %s298
      %p307 = scmp.eq.s32.totalorder %s35, 0
      %p308 = por %p306, %p307
      %p309 = scmp.ne.s32.totalorder %s297, %s298
      %p310 = scmp.eq.s32.totalorder %s36, 1
      %p311 = por %p309, %p310
      %p313 = scmp.ne.s32.totalorder %s298, %s312
      %p314 = scmp.eq.s32.totalorder %s36, 0
      %p315 = por %p313, %p314
      %s316 = ssub.s32 %s30, %s37
      %p317 = scmp.eq.s32.totalorder %s316, 0
      %s319 = sadd.s32 %s318, 1
      %s320 = scalar_select %p317, %s318, %s319
      %p323 = pneg %p317
      %p324 = scmp.eq.s32.totalorder %s30, 1
      %p325 = por %p323, %p324
      %p326 = scmp.ne.s32.totalorder %s318, %s321
      %p327 = scmp.eq.s32.totalorder %s30, 0
      %p328 = por %p326, %p327
      %p329 = scmp.ne.s32.totalorder %s318, %s321
      %p330 = scmp.eq.s32.totalorder %s35, 1
      %p331 = por %p329, %p330
      %p332 = scmp.ne.s32.totalorder %s321, %s322
      %p333 = scmp.eq.s32.totalorder %s35, 0
      %p334 = por %p332, %p333
      %p335 = scmp.ne.s32.totalorder %s321, %s322
      %p336 = scmp.eq.s32.totalorder %s36, 1
      %p337 = por %p335, %p336
      %p339 = scmp.ne.s32.totalorder %s322, %s338
      %p340 = scmp.eq.s32.totalorder %s36, 0
      %p341 = por %p339, %p340
      %p342 = scmp.le.s32.totalorder 1, %s30
      %p343 = scmp.lt.s32.totalorder %s30, 3
      %p344 = pnand %p342, %p343
      %p345 = pneg %p344
      // Predicated region
      $region9: #{experimental_block_forward.1} parent=5 // pred_check
        _
      $region10: #{experimental_block_forward.1} parent=5 // pred_check_branch
        %347 = sbr.rel (%p344) target = $region12
      $region11: #{experimental_block_forward.1} parent=5 // pred_region
        %s348 = ssub.s32 %s30, 1
        // Predicated region
        $region13: #{experimental_block_forward.1} parent=11 // pred_check
          %p349 = pneg %p77
        $region14: #{experimental_block_forward.1} parent=11 // pred_check_branch
          %351 = sbr.rel (%p349) target = $region16
        $region15: #{experimental_block_forward.1} parent=11 // pred_region
          %353 = vsyncadd [#allocation6], 0
          %s355 = sshll.u32 %s1, 4
          %s356 = int_to_ptr.hbm [resolvable:$true] %s355
          %s357 = sshll.u32 [#allocation5], 4
          %s358 = int_to_ptr.vmem [resolvable:$true] %s357
          %360 = dma.hbm_to_vmem [thread:$0]  %s356, 16, %s358, [#allocation6]
        $region16: #{experimental_block_forward.1} parent=11 // pred_fallthru
          _
        // Predicated region
        $region17: #{experimental_block_forward.1} parent=11 // pred_check
          %p361 = pneg %p98
        $region18: #{experimental_block_forward.1} parent=11 // pred_check_branch
          %363 = sbr.rel (%p361) target = $region20
        $region19: #{experimental_block_forward.1} parent=11 // pred_region
          %365 = vsyncadd [#allocation6], 0
          %s367 = sshll.u32 %s2, 4
          %s368 = int_to_ptr.hbm [resolvable:$true] %s367
          %s369 = sshll.u32 [#allocation7], 4
          %s370 = int_to_ptr.vmem [resolvable:$true] %s369
          %372 = dma.hbm_to_vmem [thread:$0]  %s368, 16, %s370, [#allocation6]
        $region20: #{experimental_block_forward.1} parent=11 // pred_fallthru
          _
        // Predicated region
        $region21: #{experimental_block_forward.1} parent=11 // pred_check
          %p373 = pneg %p119
        $region22: #{experimental_block_forward.1} parent=11 // pred_check_branch
          %375 = sbr.rel (%p373) target = $region24
        $region23: #{experimental_block_forward.1} parent=11 // pred_region
          %377 = vsyncadd [#allocation9], 0
          %s378 = sshll.u32 %s3, 4
          %s379 = int_to_ptr.hbm [resolvable:$true] %s378
          %s380 = sshll.u32 [#allocation8], 4
          %s381 = int_to_ptr.vmem [resolvable:$true] %s380
          %386 = dma.hbm_to_vmem [thread:$0]  %s379, 6144, %s381, [#allocation9], 384, 384, 24
        $region24: #{experimental_block_forward.1} parent=11 // pred_fallthru
          _
        // Predicated region
        $region25: #{experimental_block_forward.1} parent=11 // pred_check
          %p387 = pneg %p140
        $region26: #{experimental_block_forward.1} parent=11 // pred_check_branch
          %389 = sbr.rel (%p387) target = $region28
        $region27: #{experimental_block_forward.1} parent=11 // pred_region
          %391 = vsyncadd [#allocation9], 0
          %s393 = sshll.u32 %s4, 4
          %s394 = int_to_ptr.hbm [resolvable:$true] %s393
          %s395 = sshll.u32 [#allocation10], 4
          %s396 = int_to_ptr.vmem [resolvable:$true] %s395
          %398 = dma.hbm_to_vmem [thread:$0]  %s394, 48, %s396, [#allocation9]
        $region28: #{experimental_block_forward.1} parent=11 // pred_fallthru
          _
        // Predicated region
        $region29: #{experimental_block_forward.1} parent=11 // pred_check
          %p399 = pneg %p161
        $region30: #{experimental_block_forward.1} parent=11 // pred_check_branch
          %401 = sbr.rel (%p399) target = $region32
        $region31: #{experimental_block_forward.1} parent=11 // pred_region
          %403 = vsyncadd [#allocation12], 0
          %s404 = sshll.u32 %s5, 4
          %s405 = int_to_ptr.hbm [resolvable:$true] %s404
          %s406 = sshll.u32 [#allocation11], 4
          %s407 = int_to_ptr.vmem [resolvable:$true] %s406
          %412 = dma.hbm_to_vmem [thread:$0]  %s405, 2048, %s407, [#allocation12], 128, 128, 8
        $region32: #{experimental_block_forward.1} parent=11 // pred_fallthru
          _
        // Predicated region
        $region33: #{experimental_block_forward.1} parent=11 // pred_check
          %p413 = pneg %p182
        $region34: #{experimental_block_forward.1} parent=11 // pred_check_branch
          %415 = sbr.rel (%p413) target = $region36
        $region35: #{experimental_block_forward.1} parent=11 // pred_region
          %417 = vsyncadd [#allocation12], 0
          %s419 = sshll.u32 %s6, 4
          %s420 = int_to_ptr.hbm [resolvable:$true] %s419
          %s421 = sshll.u32 [#allocation13], 4
          %s422 = int_to_ptr.vmem [resolvable:$true] %s421
          %424 = dma.hbm_to_vmem [thread:$0]  %s420, 16, %s422, [#allocation12]
        $region36: #{experimental_block_forward.1} parent=11 // pred_fallthru
          _
        // Predicated region
        $region37: #{experimental_block_forward.1} parent=11 // pred_check
          %p425 = pneg %p203
        $region38: #{experimental_block_forward.1} parent=11 // pred_check_branch
          %427 = sbr.rel (%p425) target = $region40
        $region39: #{experimental_block_forward.1} parent=11 // pred_region
          %429 = vsyncadd [#allocation15], 0
          %s431 = sshll.u32 %s7, 4
          %s432 = int_to_ptr.hbm [resolvable:$true] %s431
          %s433 = sshll.u32 [#allocation14], 4
          %s434 = int_to_ptr.vmem [resolvable:$true] %s433
          %436 = dma.hbm_to_vmem [thread:$0]  %s432, 16, %s434, [#allocation15]
        $region40: #{experimental_block_forward.1} parent=11 // pred_fallthru
          _
        // Predicated region
        $region41: #{experimental_block_forward.1} parent=11 // pred_check
          %p437 = pneg %p224
        $region42: #{experimental_block_forward.1} parent=11 // pred_check_branch
          %439 = sbr.rel (%p437) target = $region44
        $region43: #{experimental_block_forward.1} parent=11 // pred_region
          %441 = vsyncadd [#allocation15], 0
          %s443 = sshll.u32 %s8, 4
          %s444 = int_to_ptr.hbm [resolvable:$true] %s443
          %s445 = sshll.u32 [#allocation16], 4
          %s446 = int_to_ptr.vmem [resolvable:$true] %s445
          %448 = dma.hbm_to_vmem [thread:$0]  %s444, 16, %s446, [#allocation15]
        $region44: #{experimental_block_forward.1} parent=11 // pred_fallthru
          _
        // Predicated region
        $region45: #{experimental_block_forward.1} parent=11 // pred_check
          %p449 = pneg %p245
        $region46: #{experimental_block_forward.1} parent=11 // pred_check_branch
          %451 = sbr.rel (%p449) target = $region48
        $region47: #{experimental_block_forward.1} parent=11 // pred_region
          _
        $region48: #{experimental_block_forward.1} parent=11 // pred_fallthru
          _
        // Predicated region
        $region49: #{experimental_block_forward.1} parent=11 // pred_check
          %p452 = pneg %p266
        $region50: #{experimental_block_forward.1} parent=11 // pred_check_branch
          %454 = sbr.rel (%p452) target = $region52
        $region51: #{experimental_block_forward.1} parent=11 // pred_region
          %456 = vsyncadd [#allocation18], 0
          %s458 = sshll.u32 %s10, 4
          %s459 = int_to_ptr.hbm [resolvable:$true] %s458
          %s460 = sshll.u32 [#allocation17], 4
          %s461 = int_to_ptr.vmem [resolvable:$true] %s460
          %463 = dma.hbm_to_vmem [thread:$0]  %s459, 64, %s461, [#allocation18]
        $region52: #{experimental_block_forward.1} parent=11 // pred_fallthru
          _
        // Predicated region
        $region53: #{experimental_block_forward.1} parent=11 // pred_check
          %p464 = pneg %p287
        $region54: #{experimental_block_forward.1} parent=11 // pred_check_branch
          %466 = sbr.rel (%p464) target = $region56
        $region55: #{experimental_block_forward.1} parent=11 // pred_region
          _
        $region56: #{experimental_block_forward.1} parent=11 // pred_fallthru
          _
        // Predicated region
        $region57: #{experimental_block_forward.1} parent=11 // pred_check
          %p467 = pneg %p308
        $region58: #{experimental_block_forward.1} parent=11 // pred_check_branch
          %469 = sbr.rel (%p467) target = $region60
        $region59: #{experimental_block_forward.1} parent=11 // pred_region
          %471 = vsyncadd [#allocation18], 0
          %s473 = sshll.u32 %s12, 4
          %s474 = int_to_ptr.hbm [resolvable:$true] %s473
          %s475 = sshll.u32 [#allocation19], 4
          %s476 = int_to_ptr.vmem [resolvable:$true] %s475
          %478 = dma.hbm_to_vmem [thread:$0]  %s474, 16, %s476, [#allocation18]
        $region60: #{experimental_block_forward.1} parent=11 // pred_fallthru
          _
      $region12: #{experimental_block_forward.1} parent=5 // pred_fallthru
        _
      %p479 = scmp.lt.s32.totalorder %s30, 2
      // Predicated region
      $region61: #{experimental_block_forward.1} parent=5 // pred_check
        %p480 = pneg %p479
      $region62: #{experimental_block_forward.1} parent=5 // pred_check_branch
        %482 = sbr.rel (%p480) target = $region64
      $region63: #{experimental_block_forward.1} parent=5 // pred_region
        // Predicated region
        $region65: #{experimental_block_forward.1} parent=63 // pred_check
          %p483 = pneg %p50
        $region66: #{experimental_block_forward.1} parent=63 // pred_check_branch
          %485 = sbr.rel (%p483) target = $region68
        $region67: #{experimental_block_forward.1} parent=63 // pred_region
          %s486 = sand.u32 %s40, 1
          %s487 = scalar_lea.sflag [#allocation3], %s486
          %s488 = sand.u32 %s40, 1
          %s489 = smul.addr %s488, 256
          %s490 = scalar_lea.vmem [#allocation2], %s489
          %s491 = smul.u32 2, %s30
          %493 = vsyncadd %s487, 0
          %s494 = smul.addr %s491, 16
          %s495 = smul.addr %s494, 8
          %s496 = scalar_lea.hbm %s0, %s495
          %s497 = sshll.u32 %s496, 4
          %s498 = int_to_ptr.hbm [resolvable:$true] %s497
          %s499 = sshll.u32 %s490, 4
          %s500 = int_to_ptr.vmem [resolvable:$true] %s499
          %505 = dma.hbm_to_vmem [thread:$0]  %s498, 4096, %s500, %s487, 128, 128, 8
        $region68: #{experimental_block_forward.1} parent=63 // pred_fallthru
          _
      $region64: #{experimental_block_forward.1} parent=5 // pred_fallthru
        _
      %p506 = scmp.le.s32.totalorder 1, %s30
      %p507 = scmp.lt.s32.totalorder %s30, 3
      %p508 = pnand %p506, %p507
      %p509 = pneg %p508
      // Predicated region
      $region69: #{experimental_block_forward.1} parent=5 // pred_check
        _
      $region70: #{experimental_block_forward.1} parent=5 // pred_check_branch
        %511 = sbr.rel (%p508) target = $region72
      $region71: #{experimental_block_forward.1} parent=5 // pred_region
        %s512 = ssub.s32 %s30, 1
        %s513 = sand.u32 %s43, 1
        %s514 = scalar_lea.sflag [#allocation3], %s513
        %s515 = sand.u32 %s43, 1
        %s516 = smul.addr %s515, 256
        %s517 = scalar_lea.vmem [#allocation2], %s516
        // Predicated region
        $region73: #{experimental_block_forward.1} parent=71 // pred_check
          %p518 = pneg %p56
        $region74: #{experimental_block_forward.1} parent=71 // pred_check_branch
          %520 = sbr.rel (%p518) target = $region76
        $region75: #{experimental_block_forward.1} parent=71 // pred_region
          %522 = dma.done %s514, 4096
        $region76: #{experimental_block_forward.1} parent=71 // pred_fallthru
          _
        // Predicated region
        $region77: #{experimental_block_forward.1} parent=71 // pred_check
          %p523 = pneg %p77
        $region78: #{experimental_block_forward.1} parent=71 // pred_check_branch
          %525 = sbr.rel (%p523) target = $region80
        $region79: #{experimental_block_forward.1} parent=71 // pred_region
          %527 = dma.done [#allocation6], 16
        $region80: #{experimental_block_forward.1} parent=71 // pred_fallthru
          _
        // Predicated region
        $region81: #{experimental_block_forward.1} parent=71 // pred_check
          %p528 = pneg %p98
        $region82: #{experimental_block_forward.1} parent=71 // pred_check_branch
          %530 = sbr.rel (%p528) target = $region84
        $region83: #{experimental_block_forward.1} parent=71 // pred_region
          %532 = dma.done [#allocation6], 16
        $region84: #{experimental_block_forward.1} parent=71 // pred_fallthru
          _
        // Predicated region
        $region85: #{experimental_block_forward.1} parent=71 // pred_check
          %p533 = pneg %p119
        $region86: #{experimental_block_forward.1} parent=71 // pred_check_branch
          %535 = sbr.rel (%p533) target = $region88
        $region87: #{experimental_block_forward.1} parent=71 // pred_region
          %537 = dma.done [#allocation9], 6144
        $region88: #{experimental_block_forward.1} parent=71 // pred_fallthru
          _
        // Predicated region
        $region89: #{experimental_block_forward.1} parent=71 // pred_check
          %p538 = pneg %p140
        $region90: #{experimental_block_forward.1} parent=71 // pred_check_branch
          %540 = sbr.rel (%p538) target = $region92
        $region91: #{experimental_block_forward.1} parent=71 // pred_region
          %542 = dma.done [#allocation9], 48
        $region92: #{experimental_block_forward.1} parent=71 // pred_fallthru
          _
        // Predicated region
        $region93: #{experimental_block_forward.1} parent=71 // pred_check
          %p543 = pneg %p161
        $region94: #{experimental_block_forward.1} parent=71 // pred_check_branch
          %545 = sbr.rel (%p543) target = $region96
        $region95: #{experimental_block_forward.1} parent=71 // pred_region
          %547 = dma.done [#allocation12], 2048
        $region96: #{experimental_block_forward.1} parent=71 // pred_fallthru
          _
        // Predicated region
        $region97: #{experimental_block_forward.1} parent=71 // pred_check
          %p548 = pneg %p182
        $region98: #{experimental_block_forward.1} parent=71 // pred_check_branch
          %550 = sbr.rel (%p548) target = $region100
        $region99: #{experimental_block_forward.1} parent=71 // pred_region
          %552 = dma.done [#allocation12], 16
        $region100: #{experimental_block_forward.1} parent=71 // pred_fallthru
          _
        // Predicated region
        $region101: #{experimental_block_forward.1} parent=71 // pred_check
          %p553 = pneg %p203
        $region102: #{experimental_block_forward.1} parent=71 // pred_check_branch
          %555 = sbr.rel (%p553) target = $region104
        $region103: #{experimental_block_forward.1} parent=71 // pred_region
          %557 = dma.done [#allocation15], 16
        $region104: #{experimental_block_forward.1} parent=71 // pred_fallthru
          _
        // Predicated region
        $region105: #{experimental_block_forward.1} parent=71 // pred_check
          %p558 = pneg %p224
        $region106: #{experimental_block_forward.1} parent=71 // pred_check_branch
          %560 = sbr.rel (%p558) target = $region108
        $region107: #{experimental_block_forward.1} parent=71 // pred_region
          %562 = dma.done [#allocation15], 16
        $region108: #{experimental_block_forward.1} parent=71 // pred_fallthru
          _
        // Predicated region
        $region109: #{experimental_block_forward.1} parent=71 // pred_check
          %p563 = pneg %p266
        $region110: #{experimental_block_forward.1} parent=71 // pred_check_branch
          %565 = sbr.rel (%p563) target = $region112
        $region111: #{experimental_block_forward.1} parent=71 // pred_region
          %567 = dma.done [#allocation18], 64
        $region112: #{experimental_block_forward.1} parent=71 // pred_fallthru
          _
        // Predicated region
        $region113: #{experimental_block_forward.1} parent=71 // pred_check
          %p568 = pneg %p308
        $region114: #{experimental_block_forward.1} parent=71 // pred_check_branch
          %570 = sbr.rel (%p568) target = $region116
        $region115: #{experimental_block_forward.1} parent=71 // pred_region
          %572 = dma.done [#allocation18], 16
        $region116: #{experimental_block_forward.1} parent=71 // pred_fallthru
          _
        %s573 = sand.u32 %s43, 1
        %s574 = scalar_lea.sflag [#allocation3], %s573
        %s575 = sand.u32 %s43, 1
        %s576 = smul.addr %s575, 256
        %s577 = scalar_lea.vmem [#allocation2], %s576
        %p578 = pneg %p56
        %p579 = pneg %p53
        %p580 = pneg %p77
        %p581 = pneg %p74
        %p582 = pneg %p98
        %p583 = pneg %p95
        %p584 = pneg %p119
        %p585 = pneg %p116
        %p586 = pneg %p140
        %p587 = pneg %p137
        %p588 = pneg %p161
        %p589 = pneg %p158
        %p590 = pneg %p182
        %p591 = pneg %p179
        %p592 = pneg %p203
        %p593 = pneg %p200
        %p594 = pneg %p224
        %p595 = pneg %p221
        %p596 = pneg %p245
        %p597 = pneg %p242
        %p598 = pneg %p266
        %p599 = pneg %p263
        %p600 = pneg %p287
        %p601 = pneg %p284
        %p602 = pneg %p308
        %p603 = pneg %p305
        %p604 = pneg %p334
        %p605 = pneg %p331
        %s606 = sand.u32 %s321, 1
        %s607 = scalar_lea.sflag [#allocation4], %s606
        %s608 = sand.u32 %s321, 1
        %s609 = smul.addr %s608, 256
        %s610 = scalar_lea.vmem [#allocation20], %s609
        %s611 = smul.u32 2, %s35
        %s612 = smul.u32 2, %s35
        %v613 = vld [vmem:[%s517] sm:$0xff]
        %v614 = vld [vmem:[%s517 + $0x8] sm:$0xff]
        %v615 = vld [vmem:[%s517 + $0x10] sm:$0xff]
        %v616 = vld [vmem:[%s517 + $0x18] sm:$0xff]
        %v617 = vld [vmem:[%s517 + $0x20] sm:$0xff]
        %v618 = vld [vmem:[%s517 + $0x28] sm:$0xff]
        %v619 = vld [vmem:[%s517 + $0x30] sm:$0xff]
        %v620 = vld [vmem:[%s517 + $0x38] sm:$0xff]
        %v621 = vld [vmem:[%s517 + $0x40] sm:$0xff]
        %v622 = vld [vmem:[%s517 + $0x48] sm:$0xff]
        %v623 = vld [vmem:[%s517 + $0x50] sm:$0xff]
        %v624 = vld [vmem:[%s517 + $0x58] sm:$0xff]
        %v625 = vld [vmem:[%s517 + $0x60] sm:$0xff]
        %v626 = vld [vmem:[%s517 + $0x68] sm:$0xff]
        %v627 = vld [vmem:[%s517 + $0x70] sm:$0xff]
        %v628 = vld [vmem:[%s517 + $0x78] sm:$0xff]
        %v629 = vld [vmem:[%s517 + $0x80] sm:$0xff]
        %v630 = vld [vmem:[%s517 + $0x88] sm:$0xff]
        %v631 = vld [vmem:[%s517 + $0x90] sm:$0xff]
        %v632 = vld [vmem:[%s517 + $0x98] sm:$0xff]
        %v633 = vld [vmem:[%s517 + $0xa0] sm:$0xff]
        %v634 = vld [vmem:[%s517 + $0xa8] sm:$0xff]
        %v635 = vld [vmem:[%s517 + $0xb0] sm:$0xff]
        %v636 = vld [vmem:[%s517 + $0xb8] sm:$0xff]
        %v637 = vld [vmem:[%s517 + $0xc0] sm:$0xff]
        %v638 = vld [vmem:[%s517 + $0xc8] sm:$0xff]
        %v639 = vld [vmem:[%s517 + $0xd0] sm:$0xff]
        %v640 = vld [vmem:[%s517 + $0xd8] sm:$0xff]
        %v641 = vld [vmem:[%s517 + $0xe0] sm:$0xff]
        %v642 = vld [vmem:[%s517 + $0xe8] sm:$0xff]
        %v643 = vld [vmem:[%s517 + $0xf0] sm:$0xff]
        %v644 = vld [vmem:[%s517 + $0xf8] sm:$0xff]
        %645 = vadd.xlane.f32.xlu0 %v613
        %v646 = vpop.xlane.xlu0 %645
        %647 = vadd.xlane.f32.xlu0 %v614
        %v648 = vpop.xlane.xlu0 %647
        %649 = vadd.xlane.f32.xlu0 %v615
        %v650 = vpop.xlane.xlu0 %649
        %651 = vadd.xlane.f32.xlu0 %v616
        %v652 = vpop.xlane.xlu0 %651
        %653 = vadd.xlane.f32.xlu0 %v617
        %v654 = vpop.xlane.xlu0 %653
        %655 = vadd.xlane.f32.xlu0 %v618
        %v656 = vpop.xlane.xlu0 %655
        %657 = vadd.xlane.f32.xlu0 %v619
        %v658 = vpop.xlane.xlu0 %657
        %659 = vadd.xlane.f32.xlu0 %v620
        %v660 = vpop.xlane.xlu0 %659
        %661 = vadd.xlane.f32.xlu0 %v621
        %v662 = vpop.xlane.xlu0 %661
        %663 = vadd.xlane.f32.xlu0 %v622
        %v664 = vpop.xlane.xlu0 %663
        %665 = vadd.xlane.f32.xlu0 %v623
        %v666 = vpop.xlane.xlu0 %665
        %667 = vadd.xlane.f32.xlu0 %v624
        %v668 = vpop.xlane.xlu0 %667
        %669 = vadd.xlane.f32.xlu0 %v625
        %v670 = vpop.xlane.xlu0 %669
        %671 = vadd.xlane.f32.xlu0 %v626
        %v672 = vpop.xlane.xlu0 %671
        %673 = vadd.xlane.f32.xlu0 %v627
        %v674 = vpop.xlane.xlu0 %673
        %675 = vadd.xlane.f32.xlu0 %v628
        %v676 = vpop.xlane.xlu0 %675
        %677 = vadd.xlane.f32.xlu0 %v629
        %v678 = vpop.xlane.xlu0 %677
        %679 = vadd.xlane.f32.xlu0 %v630
        %v680 = vpop.xlane.xlu0 %679
        %681 = vadd.xlane.f32.xlu0 %v631
        %v682 = vpop.xlane.xlu0 %681
        %683 = vadd.xlane.f32.xlu0 %v632
        %v684 = vpop.xlane.xlu0 %683
        %685 = vadd.xlane.f32.xlu0 %v633
        %v686 = vpop.xlane.xlu0 %685
        %687 = vadd.xlane.f32.xlu0 %v634
        %v688 = vpop.xlane.xlu0 %687
        %689 = vadd.xlane.f32.xlu0 %v635
        %v690 = vpop.xlane.xlu0 %689
        %691 = vadd.xlane.f32.xlu0 %v636
        %v692 = vpop.xlane.xlu0 %691
        %693 = vadd.xlane.f32.xlu0 %v637
        %v694 = vpop.xlane.xlu0 %693
        %695 = vadd.xlane.f32.xlu0 %v638
        %v696 = vpop.xlane.xlu0 %695
        %697 = vadd.xlane.f32.xlu0 %v639
        %v698 = vpop.xlane.xlu0 %697
        %699 = vadd.xlane.f32.xlu0 %v640
        %v700 = vpop.xlane.xlu0 %699
        %701 = vadd.xlane.f32.xlu0 %v641
        %v702 = vpop.xlane.xlu0 %701
        %703 = vadd.xlane.f32.xlu0 %v642
        %v704 = vpop.xlane.xlu0 %703
        %705 = vadd.xlane.f32.xlu0 %v643
        %v706 = vpop.xlane.xlu0 %705
        %707 = vadd.xlane.f32.xlu0 %v644
        %v708 = vpop.xlane.xlu0 %707
        %v709 = vrcp.pop 128.0
        %v710 = vmul.f32 128.0, %v709
        %v711 = vsub.f32 1.0, %v710
        %v712 = vmul.f32 %v709, %v711
        %v713 = vadd.f32 %v709, %v712
        %vm714 = vweird.f32 %v709
        %v715 = vsel %vm714, %v709, %v713
        %v716 = vmul.f32 %v646, %v715
        %v717 = vmul.f32 %v648, %v715
        %v718 = vmul.f32 %v650, %v715
        %v719 = vmul.f32 %v652, %v715
        %v720 = vmul.f32 %v654, %v715
        %v721 = vmul.f32 %v656, %v715
        %v722 = vmul.f32 %v658, %v715
        %v723 = vmul.f32 %v660, %v715
        %v724 = vmul.f32 %v662, %v715
        %v725 = vmul.f32 %v664, %v715
        %v726 = vmul.f32 %v666, %v715
        %v727 = vmul.f32 %v668, %v715
        %v728 = vmul.f32 %v670, %v715
        %v729 = vmul.f32 %v672, %v715
        %v730 = vmul.f32 %v674, %v715
        %v731 = vmul.f32 %v676, %v715
        %v732 = vmul.f32 %v678, %v715
        %v733 = vmul.f32 %v680, %v715
        %v734 = vmul.f32 %v682, %v715
        %v735 = vmul.f32 %v684, %v715
        %v736 = vmul.f32 %v686, %v715
        %v737 = vmul.f32 %v688, %v715
        %v738 = vmul.f32 %v690, %v715
        %v739 = vmul.f32 %v692, %v715
        %v740 = vmul.f32 %v694, %v715
        %v741 = vmul.f32 %v696, %v715
        %v742 = vmul.f32 %v698, %v715
        %v743 = vmul.f32 %v700, %v715
        %v744 = vmul.f32 %v702, %v715
        %v745 = vmul.f32 %v704, %v715
        %v746 = vmul.f32 %v706, %v715
        %v747 = vmul.f32 %v708, %v715
        %v748 = vmul.f32 %v613, %v613
        %v749 = vmul.f32 %v614, %v614
        %v750 = vmul.f32 %v615, %v615
        %v751 = vmul.f32 %v616, %v616
        %v752 = vmul.f32 %v617, %v617
        %v753 = vmul.f32 %v618, %v618
        %v754 = vmul.f32 %v619, %v619
        %v755 = vmul.f32 %v620, %v620
        %v756 = vmul.f32 %v621, %v621
        %v757 = vmul.f32 %v622, %v622
        %v758 = vmul.f32 %v623, %v623
        %v759 = vmul.f32 %v624, %v624
        %v760 = vmul.f32 %v625, %v625
        %v761 = vmul.f32 %v626, %v626
        %v762 = vmul.f32 %v627, %v627
        %v763 = vmul.f32 %v628, %v628
        %v764 = vmul.f32 %v629, %v629
        %v765 = vmul.f32 %v630, %v630
        %v766 = vmul.f32 %v631, %v631
        %v767 = vmul.f32 %v632, %v632
        %v768 = vmul.f32 %v633, %v633
        %v769 = vmul.f32 %v634, %v634
        %v770 = vmul.f32 %v635, %v635
        %v771 = vmul.f32 %v636, %v636
        %v772 = vmul.f32 %v637, %v637
        %v773 = vmul.f32 %v638, %v638
        %v774 = vmul.f32 %v639, %v639
        %v775 = vmul.f32 %v640, %v640
        %v776 = vmul.f32 %v641, %v641
        %v777 = vmul.f32 %v642, %v642
        %v778 = vmul.f32 %v643, %v643
        %v779 = vmul.f32 %v644, %v644
        %780 = vadd.xlane.f32.xlu0 %v748
        %v781 = vpop.xlane.xlu0 %780
        %782 = vadd.xlane.f32.xlu0 %v749
        %v783 = vpop.xlane.xlu0 %782
        %784 = vadd.xlane.f32.xlu0 %v750
        %v785 = vpop.xlane.xlu0 %784
        %786 = vadd.xlane.f32.xlu0 %v751
        %v787 = vpop.xlane.xlu0 %786
        %788 = vadd.xlane.f32.xlu0 %v752
        %v789 = vpop.xlane.xlu0 %788
        %790 = vadd.xlane.f32.xlu0 %v753
        %v791 = vpop.xlane.xlu0 %790
        %792 = vadd.xlane.f32.xlu0 %v754
        %v793 = vpop.xlane.xlu0 %792
        %794 = vadd.xlane.f32.xlu0 %v755
        %v795 = vpop.xlane.xlu0 %794
        %796 = vadd.xlane.f32.xlu0 %v756
        %v797 = vpop.xlane.xlu0 %796
        %798 = vadd.xlane.f32.xlu0 %v757
        %v799 = vpop.xlane.xlu0 %798
        %800 = vadd.xlane.f32.xlu0 %v758
        %v801 = vpop.xlane.xlu0 %800
        %802 = vadd.xlane.f32.xlu0 %v759
        %v803 = vpop.xlane.xlu0 %802
        %804 = vadd.xlane.f32.xlu0 %v760
        %v805 = vpop.xlane.xlu0 %804
        %806 = vadd.xlane.f32.xlu0 %v761
        %v807 = vpop.xlane.xlu0 %806
        %808 = vadd.xlane.f32.xlu0 %v762
        %v809 = vpop.xlane.xlu0 %808
        %810 = vadd.xlane.f32.xlu0 %v763
        %v811 = vpop.xlane.xlu0 %810
        %812 = vadd.xlane.f32.xlu0 %v764
        %v813 = vpop.xlane.xlu0 %812
        %814 = vadd.xlane.f32.xlu0 %v765
        %v815 = vpop.xlane.xlu0 %814
        %816 = vadd.xlane.f32.xlu0 %v766
        %v817 = vpop.xlane.xlu0 %816
        %818 = vadd.xlane.f32.xlu0 %v767
        %v819 = vpop.xlane.xlu0 %818
        %820 = vadd.xlane.f32.xlu0 %v768
        %v821 = vpop.xlane.xlu0 %820
        %822 = vadd.xlane.f32.xlu0 %v769
        %v823 = vpop.xlane.xlu0 %822
        %824 = vadd.xlane.f32.xlu0 %v770
        %v825 = vpop.xlane.xlu0 %824
        %826 = vadd.xlane.f32.xlu0 %v771
        %v827 = vpop.xlane.xlu0 %826
        %828 = vadd.xlane.f32.xlu0 %v772
        %v829 = vpop.xlane.xlu0 %828
        %830 = vadd.xlane.f32.xlu0 %v773
        %v831 = vpop.xlane.xlu0 %830
        %832 = vadd.xlane.f32.xlu0 %v774
        %v833 = vpop.xlane.xlu0 %832
        %834 = vadd.xlane.f32.xlu0 %v775
        %v835 = vpop.xlane.xlu0 %834
        %836 = vadd.xlane.f32.xlu0 %v776
        %v837 = vpop.xlane.xlu0 %836
        %838 = vadd.xlane.f32.xlu0 %v777
        %v839 = vpop.xlane.xlu0 %838
        %840 = vadd.xlane.f32.xlu0 %v778
        %v841 = vpop.xlane.xlu0 %840
        %842 = vadd.xlane.f32.xlu0 %v779
        %v843 = vpop.xlane.xlu0 %842
        %v844 = vmul.f32 %v781, %v715
        %v845 = vmul.f32 %v783, %v715
        %v846 = vmul.f32 %v785, %v715
        %v847 = vmul.f32 %v787, %v715
        %v848 = vmul.f32 %v789, %v715
        %v849 = vmul.f32 %v791, %v715
        %v850 = vmul.f32 %v793, %v715
        %v851 = vmul.f32 %v795, %v715
        %v852 = vmul.f32 %v797, %v715
        %v853 = vmul.f32 %v799, %v715
        %v854 = vmul.f32 %v801, %v715
        %v855 = vmul.f32 %v803, %v715
        %v856 = vmul.f32 %v805, %v715
        %v857 = vmul.f32 %v807, %v715
        %v858 = vmul.f32 %v809, %v715
        %v859 = vmul.f32 %v811, %v715
        %v860 = vmul.f32 %v813, %v715
        %v861 = vmul.f32 %v815, %v715
        %v862 = vmul.f32 %v817, %v715
        %v863 = vmul.f32 %v819, %v715
        %v864 = vmul.f32 %v821, %v715
        %v865 = vmul.f32 %v823, %v715
        %v866 = vmul.f32 %v825, %v715
        %v867 = vmul.f32 %v827, %v715
        %v868 = vmul.f32 %v829, %v715
        %v869 = vmul.f32 %v831, %v715
        %v870 = vmul.f32 %v833, %v715
        %v871 = vmul.f32 %v835, %v715
        %v872 = vmul.f32 %v837, %v715
        %v873 = vmul.f32 %v839, %v715
        %v874 = vmul.f32 %v841, %v715
        %v875 = vmul.f32 %v843, %v715
        %v876 = vmul.f32 %v716, %v716
        %v877 = vmul.f32 %v717, %v717
        %v878 = vmul.f32 %v718, %v718
        %v879 = vmul.f32 %v719, %v719
        %v880 = vmul.f32 %v720, %v720
        %v881 = vmul.f32 %v721, %v721
        %v882 = vmul.f32 %v722, %v722
        %v883 = vmul.f32 %v723, %v723
        %v884 = vmul.f32 %v724, %v724
        %v885 = vmul.f32 %v725, %v725
        %v886 = vmul.f32 %v726, %v726
        %v887 = vmul.f32 %v727, %v727
        %v888 = vmul.f32 %v728, %v728
        %v889 = vmul.f32 %v729, %v729
        %v890 = vmul.f32 %v730, %v730
        %v891 = vmul.f32 %v731, %v731
        %v892 = vmul.f32 %v732, %v732
        %v893 = vmul.f32 %v733, %v733
        %v894 = vmul.f32 %v734, %v734
        %v895 = vmul.f32 %v735, %v735
        %v896 = vmul.f32 %v736, %v736
        %v897 = vmul.f32 %v737, %v737
        %v898 = vmul.f32 %v738, %v738
        %v899 = vmul.f32 %v739, %v739
        %v900 = vmul.f32 %v740, %v740
        %v901 = vmul.f32 %v741, %v741
        %v902 = vmul.f32 %v742, %v742
        %v903 = vmul.f32 %v743, %v743
        %v904 = vmul.f32 %v744, %v744
        %v905 = vmul.f32 %v745, %v745
        %v906 = vmul.f32 %v746, %v746
        %v907 = vmul.f32 %v747, %v747
        %v908 = vsub.f32 %v844, %v876
        %v909 = vsub.f32 %v845, %v877
        %v910 = vsub.f32 %v846, %v878
        %v911 = vsub.f32 %v847, %v879
        %v912 = vsub.f32 %v848, %v880
        %v913 = vsub.f32 %v849, %v881
        %v914 = vsub.f32 %v850, %v882
        %v915 = vsub.f32 %v851, %v883
        %v916 = vsub.f32 %v852, %v884
        %v917 = vsub.f32 %v853, %v885
        %v918 = vsub.f32 %v854, %v886
        %v919 = vsub.f32 %v855, %v887
        %v920 = vsub.f32 %v856, %v888
        %v921 = vsub.f32 %v857, %v889
        %v922 = vsub.f32 %v858, %v890
        %v923 = vsub.f32 %v859, %v891
        %v924 = vsub.f32 %v860, %v892
        %v925 = vsub.f32 %v861, %v893
        %v926 = vsub.f32 %v862, %v894
        %v927 = vsub.f32 %v863, %v895
        %v928 = vsub.f32 %v864, %v896
        %v929 = vsub.f32 %v865, %v897
        %v930 = vsub.f32 %v866, %v898
        %v931 = vsub.f32 %v867, %v899
        %v932 = vsub.f32 %v868, %v900
        %v933 = vsub.f32 %v869, %v901
        %v934 = vsub.f32 %v870, %v902
        %v935 = vsub.f32 %v871, %v903
        %v936 = vsub.f32 %v872, %v904
        %v937 = vsub.f32 %v873, %v905
        %v938 = vsub.f32 %v874, %v906
        %v939 = vsub.f32 %v875, %v907
        %v940 = vadd.f32 %v908, 1e-05
        %v941 = vadd.f32 %v909, 1e-05
        %v942 = vadd.f32 %v910, 1e-05
        %v943 = vadd.f32 %v911, 1e-05
        %v944 = vadd.f32 %v912, 1e-05
        %v945 = vadd.f32 %v913, 1e-05
        %v946 = vadd.f32 %v914, 1e-05
        %v947 = vadd.f32 %v915, 1e-05
        %v948 = vadd.f32 %v916, 1e-05
        %v949 = vadd.f32 %v917, 1e-05
        %v950 = vadd.f32 %v918, 1e-05
        %v951 = vadd.f32 %v919, 1e-05
        %v952 = vadd.f32 %v920, 1e-05
        %v953 = vadd.f32 %v921, 1e-05
        %v954 = vadd.f32 %v922, 1e-05
        %v955 = vadd.f32 %v923, 1e-05
        %v956 = vadd.f32 %v924, 1e-05
        %v957 = vadd.f32 %v925, 1e-05
        %v958 = vadd.f32 %v926, 1e-05
        %v959 = vadd.f32 %v927, 1e-05
        %v960 = vadd.f32 %v928, 1e-05
        %v961 = vadd.f32 %v929, 1e-05
        %v962 = vadd.f32 %v930, 1e-05
        %v963 = vadd.f32 %v931, 1e-05
        %v964 = vadd.f32 %v932, 1e-05
        %v965 = vadd.f32 %v933, 1e-05
        %v966 = vadd.f32 %v934, 1e-05
        %v967 = vadd.f32 %v935, 1e-05
        %v968 = vadd.f32 %v936, 1e-05
        %v969 = vadd.f32 %v937, 1e-05
        %v970 = vadd.f32 %v938, 1e-05
        %v971 = vadd.f32 %v939, 1e-05
        %v972 = vrsqrt.pop %v940
        %v973 = vmul.f32 %v972, %v940
        %v974 = vmul.f32 %v973, %v972
        %v975 = vmul.f32 0.5, %v974
        %v976 = vsub.f32 1.5, %v975
        %v977 = vmul.f32 %v972, %v976
        %vm978 = vweird.f32 %v940
        %vm979 = vweird.f32 %v972
        %vm980 = vmor %vm978, %vm979
        %v981 = vsel %vm980, %v972, %v977
        %v982 = vrsqrt.pop %v941
        %v983 = vmul.f32 %v982, %v941
        %v984 = vmul.f32 %v983, %v982
        %v985 = vmul.f32 0.5, %v984
        %v986 = vsub.f32 1.5, %v985
        %v987 = vmul.f32 %v982, %v986
        %vm988 = vweird.f32 %v941
        %vm989 = vweird.f32 %v982
        %vm990 = vmor %vm988, %vm989
        %v991 = vsel %vm990, %v982, %v987
        %v992 = vrsqrt.pop %v942
        %v993 = vmul.f32 %v992, %v942
        %v994 = vmul.f32 %v993, %v992
        %v995 = vmul.f32 0.5, %v994
        %v996 = vsub.f32 1.5, %v995
        %v997 = vmul.f32 %v992, %v996
        %vm998 = vweird.f32 %v942
        %vm999 = vweird.f32 %v992
        %vm1000 = vmor %vm998, %vm999
        %v1001 = vsel %vm1000, %v992, %v997
        %v1002 = vrsqrt.pop %v943
        %v1003 = vmul.f32 %v1002, %v943
        %v1004 = vmul.f32 %v1003, %v1002
        %v1005 = vmul.f32 0.5, %v1004
        %v1006 = vsub.f32 1.5, %v1005
        %v1007 = vmul.f32 %v1002, %v1006
        %vm1008 = vweird.f32 %v943
        %vm1009 = vweird.f32 %v1002
        %vm1010 = vmor %vm1008, %vm1009
        %v1011 = vsel %vm1010, %v1002, %v1007
        %v1012 = vrsqrt.pop %v944
        %v1013 = vmul.f32 %v1012, %v944
        %v1014 = vmul.f32 %v1013, %v1012
        %v1015 = vmul.f32 0.5, %v1014
        %v1016 = vsub.f32 1.5, %v1015
        %v1017 = vmul.f32 %v1012, %v1016
        %vm1018 = vweird.f32 %v944
        %vm1019 = vweird.f32 %v1012
        %vm1020 = vmor %vm1018, %vm1019
        %v1021 = vsel %vm1020, %v1012, %v1017
        %v1022 = vrsqrt.pop %v945
        %v1023 = vmul.f32 %v1022, %v945
        %v1024 = vmul.f32 %v1023, %v1022
        %v1025 = vmul.f32 0.5, %v1024
        %v1026 = vsub.f32 1.5, %v1025
        %v1027 = vmul.f32 %v1022, %v1026
        %vm1028 = vweird.f32 %v945
        %vm1029 = vweird.f32 %v1022
        %vm1030 = vmor %vm1028, %vm1029
        %v1031 = vsel %vm1030, %v1022, %v1027
        %v1032 = vrsqrt.pop %v946
        %v1033 = vmul.f32 %v1032, %v946
        %v1034 = vmul.f32 %v1033, %v1032
        %v1035 = vmul.f32 0.5, %v1034
        %v1036 = vsub.f32 1.5, %v1035
        %v1037 = vmul.f32 %v1032, %v1036
        %vm1038 = vweird.f32 %v946
        %vm1039 = vweird.f32 %v1032
        %vm1040 = vmor %vm1038, %vm1039
        %v1041 = vsel %vm1040, %v1032, %v1037
        %v1042 = vrsqrt.pop %v947
        %v1043 = vmul.f32 %v1042, %v947
        %v1044 = vmul.f32 %v1043, %v1042
        %v1045 = vmul.f32 0.5, %v1044
        %v1046 = vsub.f32 1.5, %v1045
        %v1047 = vmul.f32 %v1042, %v1046
        %vm1048 = vweird.f32 %v947
        %vm1049 = vweird.f32 %v1042
        %vm1050 = vmor %vm1048, %vm1049
        %v1051 = vsel %vm1050, %v1042, %v1047
        %v1052 = vrsqrt.pop %v948
        %v1053 = vmul.f32 %v1052, %v948
        %v1054 = vmul.f32 %v1053, %v1052
        %v1055 = vmul.f32 0.5, %v1054
        %v1056 = vsub.f32 1.5, %v1055
        %v1057 = vmul.f32 %v1052, %v1056
        %vm1058 = vweird.f32 %v948
        %vm1059 = vweird.f32 %v1052
        %vm1060 = vmor %vm1058, %vm1059
        %v1061 = vsel %vm1060, %v1052, %v1057
        %v1062 = vrsqrt.pop %v949
        %v1063 = vmul.f32 %v1062, %v949
        %v1064 = vmul.f32 %v1063, %v1062
        %v1065 = vmul.f32 0.5, %v1064
        %v1066 = vsub.f32 1.5, %v1065
        %v1067 = vmul.f32 %v1062, %v1066
        %vm1068 = vweird.f32 %v949
        %vm1069 = vweird.f32 %v1062
        %vm1070 = vmor %vm1068, %vm1069
        %v1071 = vsel %vm1070, %v1062, %v1067
        %v1072 = vrsqrt.pop %v950
        %v1073 = vmul.f32 %v1072, %v950
        %v1074 = vmul.f32 %v1073, %v1072
        %v1075 = vmul.f32 0.5, %v1074
        %v1076 = vsub.f32 1.5, %v1075
        %v1077 = vmul.f32 %v1072, %v1076
        %vm1078 = vweird.f32 %v950
        %vm1079 = vweird.f32 %v1072
        %vm1080 = vmor %vm1078, %vm1079
        %v1081 = vsel %vm1080, %v1072, %v1077
        %v1082 = vrsqrt.pop %v951
        %v1083 = vmul.f32 %v1082, %v951
        %v1084 = vmul.f32 %v1083, %v1082
        %v1085 = vmul.f32 0.5, %v1084
        %v1086 = vsub.f32 1.5, %v1085
        %v1087 = vmul.f32 %v1082, %v1086
        %vm1088 = vweird.f32 %v951
        %vm1089 = vweird.f32 %v1082
        %vm1090 = vmor %vm1088, %vm1089
        %v1091 = vsel %vm1090, %v1082, %v1087
        %v1092 = vrsqrt.pop %v952
        %v1093 = vmul.f32 %v1092, %v952
        %v1094 = vmul.f32 %v1093, %v1092
        %v1095 = vmul.f32 0.5, %v1094
        %v1096 = vsub.f32 1.5, %v1095
        %v1097 = vmul.f32 %v1092, %v1096
        %vm1098 = vweird.f32 %v952
        %vm1099 = vweird.f32 %v1092
        %vm1100 = vmor %vm1098, %vm1099
        %v1101 = vsel %vm1100, %v1092, %v1097
        %v1102 = vrsqrt.pop %v953
        %v1103 = vmul.f32 %v1102, %v953
        %v1104 = vmul.f32 %v1103, %v1102
        %v1105 = vmul.f32 0.5, %v1104
        %v1106 = vsub.f32 1.5, %v1105
        %v1107 = vmul.f32 %v1102, %v1106
        %vm1108 = vweird.f32 %v953
        %vm1109 = vweird.f32 %v1102
        %vm1110 = vmor %vm1108, %vm1109
        %v1111 = vsel %vm1110, %v1102, %v1107
        %v1112 = vrsqrt.pop %v954
        %v1113 = vmul.f32 %v1112, %v954
        %v1114 = vmul.f32 %v1113, %v1112
        %v1115 = vmul.f32 0.5, %v1114
        %v1116 = vsub.f32 1.5, %v1115
        %v1117 = vmul.f32 %v1112, %v1116
        %vm1118 = vweird.f32 %v954
        %vm1119 = vweird.f32 %v1112
        %vm1120 = vmor %vm1118, %vm1119
        %v1121 = vsel %vm1120, %v1112, %v1117
        %v1122 = vrsqrt.pop %v955
        %v1123 = vmul.f32 %v1122, %v955
        %v1124 = vmul.f32 %v1123, %v1122
        %v1125 = vmul.f32 0.5, %v1124
        %v1126 = vsub.f32 1.5, %v1125
        %v1127 = vmul.f32 %v1122, %v1126
        %vm1128 = vweird.f32 %v955
        %vm1129 = vweird.f32 %v1122
        %vm1130 = vmor %vm1128, %vm1129
        %v1131 = vsel %vm1130, %v1122, %v1127
        %v1132 = vrsqrt.pop %v956
        %v1133 = vmul.f32 %v1132, %v956
        %v1134 = vmul.f32 %v1133, %v1132
        %v1135 = vmul.f32 0.5, %v1134
        %v1136 = vsub.f32 1.5, %v1135
        %v1137 = vmul.f32 %v1132, %v1136
        %vm1138 = vweird.f32 %v956
        %vm1139 = vweird.f32 %v1132
        %vm1140 = vmor %vm1138, %vm1139
        %v1141 = vsel %vm1140, %v1132, %v1137
        %v1142 = vrsqrt.pop %v957
        %v1143 = vmul.f32 %v1142, %v957
        %v1144 = vmul.f32 %v1143, %v1142
        %v1145 = vmul.f32 0.5, %v1144
        %v1146 = vsub.f32 1.5, %v1145
        %v1147 = vmul.f32 %v1142, %v1146
        %vm1148 = vweird.f32 %v957
        %vm1149 = vweird.f32 %v1142
        %vm1150 = vmor %vm1148, %vm1149
        %v1151 = vsel %vm1150, %v1142, %v1147
        %v1152 = vrsqrt.pop %v958
        %v1153 = vmul.f32 %v1152, %v958
        %v1154 = vmul.f32 %v1153, %v1152
        %v1155 = vmul.f32 0.5, %v1154
        %v1156 = vsub.f32 1.5, %v1155
        %v1157 = vmul.f32 %v1152, %v1156
        %vm1158 = vweird.f32 %v958
        %vm1159 = vweird.f32 %v1152
        %vm1160 = vmor %vm1158, %vm1159
        %v1161 = vsel %vm1160, %v1152, %v1157
        %v1162 = vrsqrt.pop %v959
        %v1163 = vmul.f32 %v1162, %v959
        %v1164 = vmul.f32 %v1163, %v1162
        %v1165 = vmul.f32 0.5, %v1164
        %v1166 = vsub.f32 1.5, %v1165
        %v1167 = vmul.f32 %v1162, %v1166
        %vm1168 = vweird.f32 %v959
        %vm1169 = vweird.f32 %v1162
        %vm1170 = vmor %vm1168, %vm1169
        %v1171 = vsel %vm1170, %v1162, %v1167
        %v1172 = vrsqrt.pop %v960
        %v1173 = vmul.f32 %v1172, %v960
        %v1174 = vmul.f32 %v1173, %v1172
        %v1175 = vmul.f32 0.5, %v1174
        %v1176 = vsub.f32 1.5, %v1175
        %v1177 = vmul.f32 %v1172, %v1176
        %vm1178 = vweird.f32 %v960
        %vm1179 = vweird.f32 %v1172
        %vm1180 = vmor %vm1178, %vm1179
        %v1181 = vsel %vm1180, %v1172, %v1177
        %v1182 = vrsqrt.pop %v961
        %v1183 = vmul.f32 %v1182, %v961
        %v1184 = vmul.f32 %v1183, %v1182
        %v1185 = vmul.f32 0.5, %v1184
        %v1186 = vsub.f32 1.5, %v1185
        %v1187 = vmul.f32 %v1182, %v1186
        %vm1188 = vweird.f32 %v961
        %vm1189 = vweird.f32 %v1182
        %vm1190 = vmor %vm1188, %vm1189
        %v1191 = vsel %vm1190, %v1182, %v1187
        %v1192 = vrsqrt.pop %v962
        %v1193 = vmul.f32 %v1192, %v962
        %v1194 = vmul.f32 %v1193, %v1192
        %v1195 = vmul.f32 0.5, %v1194
        %v1196 = vsub.f32 1.5, %v1195
        %v1197 = vmul.f32 %v1192, %v1196
        %vm1198 = vweird.f32 %v962
        %vm1199 = vweird.f32 %v1192
        %vm1200 = vmor %vm1198, %vm1199
        %v1201 = vsel %vm1200, %v1192, %v1197
        %v1202 = vrsqrt.pop %v963
        %v1203 = vmul.f32 %v1202, %v963
        %v1204 = vmul.f32 %v1203, %v1202
        %v1205 = vmul.f32 0.5, %v1204
        %v1206 = vsub.f32 1.5, %v1205
        %v1207 = vmul.f32 %v1202, %v1206
        %vm1208 = vweird.f32 %v963
        %vm1209 = vweird.f32 %v1202
        %vm1210 = vmor %vm1208, %vm1209
        %v1211 = vsel %vm1210, %v1202, %v1207
        %v1212 = vrsqrt.pop %v964
        %v1213 = vmul.f32 %v1212, %v964
        %v1214 = vmul.f32 %v1213, %v1212
        %v1215 = vmul.f32 0.5, %v1214
        %v1216 = vsub.f32 1.5, %v1215
        %v1217 = vmul.f32 %v1212, %v1216
        %vm1218 = vweird.f32 %v964
        %vm1219 = vweird.f32 %v1212
        %vm1220 = vmor %vm1218, %vm1219
        %v1221 = vsel %vm1220, %v1212, %v1217
        %v1222 = vrsqrt.pop %v965
        %v1223 = vmul.f32 %v1222, %v965
        %v1224 = vmul.f32 %v1223, %v1222
        %v1225 = vmul.f32 0.5, %v1224
        %v1226 = vsub.f32 1.5, %v1225
        %v1227 = vmul.f32 %v1222, %v1226
        %vm1228 = vweird.f32 %v965
        %vm1229 = vweird.f32 %v1222
        %vm1230 = vmor %vm1228, %vm1229
        %v1231 = vsel %vm1230, %v1222, %v1227
        %v1232 = vrsqrt.pop %v966
        %v1233 = vmul.f32 %v1232, %v966
        %v1234 = vmul.f32 %v1233, %v1232
        %v1235 = vmul.f32 0.5, %v1234
        %v1236 = vsub.f32 1.5, %v1235
        %v1237 = vmul.f32 %v1232, %v1236
        %vm1238 = vweird.f32 %v966
        %vm1239 = vweird.f32 %v1232
        %vm1240 = vmor %vm1238, %vm1239
        %v1241 = vsel %vm1240, %v1232, %v1237
        %v1242 = vrsqrt.pop %v967
        %v1243 = vmul.f32 %v1242, %v967
        %v1244 = vmul.f32 %v1243, %v1242
        %v1245 = vmul.f32 0.5, %v1244
        %v1246 = vsub.f32 1.5, %v1245
        %v1247 = vmul.f32 %v1242, %v1246
        %vm1248 = vweird.f32 %v967
        %vm1249 = vweird.f32 %v1242
        %vm1250 = vmor %vm1248, %vm1249
        %v1251 = vsel %vm1250, %v1242, %v1247
        %v1252 = vrsqrt.pop %v968
        %v1253 = vmul.f32 %v1252, %v968
        %v1254 = vmul.f32 %v1253, %v1252
        %v1255 = vmul.f32 0.5, %v1254
        %v1256 = vsub.f32 1.5, %v1255
        %v1257 = vmul.f32 %v1252, %v1256
        %vm1258 = vweird.f32 %v968
        %vm1259 = vweird.f32 %v1252
        %vm1260 = vmor %vm1258, %vm1259
        %v1261 = vsel %vm1260, %v1252, %v1257
        %v1262 = vrsqrt.pop %v969
        %v1263 = vmul.f32 %v1262, %v969
        %v1264 = vmul.f32 %v1263, %v1262
        %v1265 = vmul.f32 0.5, %v1264
        %v1266 = vsub.f32 1.5, %v1265
        %v1267 = vmul.f32 %v1262, %v1266
        %vm1268 = vweird.f32 %v969
        %vm1269 = vweird.f32 %v1262
        %vm1270 = vmor %vm1268, %vm1269
        %v1271 = vsel %vm1270, %v1262, %v1267
        %v1272 = vrsqrt.pop %v970
        %v1273 = vmul.f32 %v1272, %v970
        %v1274 = vmul.f32 %v1273, %v1272
        %v1275 = vmul.f32 0.5, %v1274
        %v1276 = vsub.f32 1.5, %v1275
        %v1277 = vmul.f32 %v1272, %v1276
        %vm1278 = vweird.f32 %v970
        %vm1279 = vweird.f32 %v1272
        %vm1280 = vmor %vm1278, %vm1279
        %v1281 = vsel %vm1280, %v1272, %v1277
        %v1282 = vrsqrt.pop %v971
        %v1283 = vmul.f32 %v1282, %v971
        %v1284 = vmul.f32 %v1283, %v1282
        %v1285 = vmul.f32 0.5, %v1284
        %v1286 = vsub.f32 1.5, %v1285
        %v1287 = vmul.f32 %v1282, %v1286
        %vm1288 = vweird.f32 %v971
        %vm1289 = vweird.f32 %v1282
        %vm1290 = vmor %vm1288, %vm1289
        %v1291 = vsel %vm1290, %v1282, %v1287
        %v1292 = vsub.f32 %v613, %v716
        %v1293 = vsub.f32 %v614, %v717
        %v1294 = vsub.f32 %v615, %v718
        %v1295 = vsub.f32 %v616, %v719
        %v1296 = vsub.f32 %v617, %v720
        %v1297 = vsub.f32 %v618, %v721
        %v1298 = vsub.f32 %v619, %v722
        %v1299 = vsub.f32 %v620, %v723
        %v1300 = vsub.f32 %v621, %v724
        %v1301 = vsub.f32 %v622, %v725
        %v1302 = vsub.f32 %v623, %v726
        %v1303 = vsub.f32 %v624, %v727
        %v1304 = vsub.f32 %v625, %v728
        %v1305 = vsub.f32 %v626, %v729
        %v1306 = vsub.f32 %v627, %v730
        %v1307 = vsub.f32 %v628, %v731
        %v1308 = vsub.f32 %v629, %v732
        %v1309 = vsub.f32 %v630, %v733
        %v1310 = vsub.f32 %v631, %v734
        %v1311 = vsub.f32 %v632, %v735
        %v1312 = vsub.f32 %v633, %v736
        %v1313 = vsub.f32 %v634, %v737
        %v1314 = vsub.f32 %v635, %v738
        %v1315 = vsub.f32 %v636, %v739
        %v1316 = vsub.f32 %v637, %v740
        %v1317 = vsub.f32 %v638, %v741
        %v1318 = vsub.f32 %v639, %v742
        %v1319 = vsub.f32 %v640, %v743
        %v1320 = vsub.f32 %v641, %v744
        %v1321 = vsub.f32 %v642, %v745
        %v1322 = vsub.f32 %v643, %v746
        %v1323 = vsub.f32 %v644, %v747
        %v1324 = vmul.f32 %v1292, %v981
        %v1325 = vmul.f32 %v1293, %v991
        %v1326 = vmul.f32 %v1294, %v1001
        %v1327 = vmul.f32 %v1295, %v1011
        %v1328 = vmul.f32 %v1296, %v1021
        %v1329 = vmul.f32 %v1297, %v1031
        %v1330 = vmul.f32 %v1298, %v1041
        %v1331 = vmul.f32 %v1299, %v1051
        %v1332 = vmul.f32 %v1300, %v1061
        %v1333 = vmul.f32 %v1301, %v1071
        %v1334 = vmul.f32 %v1302, %v1081
        %v1335 = vmul.f32 %v1303, %v1091
        %v1336 = vmul.f32 %v1304, %v1101
        %v1337 = vmul.f32 %v1305, %v1111
        %v1338 = vmul.f32 %v1306, %v1121
        %v1339 = vmul.f32 %v1307, %v1131
        %v1340 = vmul.f32 %v1308, %v1141
        %v1341 = vmul.f32 %v1309, %v1151
        %v1342 = vmul.f32 %v1310, %v1161
        %v1343 = vmul.f32 %v1311, %v1171
        %v1344 = vmul.f32 %v1312, %v1181
        %v1345 = vmul.f32 %v1313, %v1191
        %v1346 = vmul.f32 %v1314, %v1201
        %v1347 = vmul.f32 %v1315, %v1211
        %v1348 = vmul.f32 %v1316, %v1221
        %v1349 = vmul.f32 %v1317, %v1231
        %v1350 = vmul.f32 %v1318, %v1241
        %v1351 = vmul.f32 %v1319, %v1251
        %v1352 = vmul.f32 %v1320, %v1261
        %v1353 = vmul.f32 %v1321, %v1271
        %v1354 = vmul.f32 %v1322, %v1281
        %v1355 = vmul.f32 %v1323, %v1291
        %v1356 = vld [vmem:[#allocation5] sm:$0x1]
        %v1358 = vperm.slane %v1356, 0
        %v1360 = vmul.f32 %v1324, %v1358
        %v1361 = vmul.f32 %v1325, %v1358
        %v1362 = vmul.f32 %v1326, %v1358
        %v1363 = vmul.f32 %v1327, %v1358
        %v1364 = vmul.f32 %v1328, %v1358
        %v1365 = vmul.f32 %v1329, %v1358
        %v1366 = vmul.f32 %v1330, %v1358
        %v1367 = vmul.f32 %v1331, %v1358
        %v1368 = vmul.f32 %v1332, %v1358
        %v1369 = vmul.f32 %v1333, %v1358
        %v1370 = vmul.f32 %v1334, %v1358
        %v1371 = vmul.f32 %v1335, %v1358
        %v1372 = vmul.f32 %v1336, %v1358
        %v1373 = vmul.f32 %v1337, %v1358
        %v1374 = vmul.f32 %v1338, %v1358
        %v1375 = vmul.f32 %v1339, %v1358
        %v1376 = vmul.f32 %v1340, %v1358
        %v1377 = vmul.f32 %v1341, %v1358
        %v1378 = vmul.f32 %v1342, %v1358
        %v1379 = vmul.f32 %v1343, %v1358
        %v1380 = vmul.f32 %v1344, %v1358
        %v1381 = vmul.f32 %v1345, %v1358
        %v1382 = vmul.f32 %v1346, %v1358
        %v1383 = vmul.f32 %v1347, %v1358
        %v1384 = vmul.f32 %v1348, %v1358
        %v1385 = vmul.f32 %v1349, %v1358
        %v1386 = vmul.f32 %v1350, %v1358
        %v1387 = vmul.f32 %v1351, %v1358
        %v1388 = vmul.f32 %v1352, %v1358
        %v1389 = vmul.f32 %v1353, %v1358
        %v1390 = vmul.f32 %v1354, %v1358
        %v1391 = vmul.f32 %v1355, %v1358
        %v1392 = vld [vmem:[#allocation7] sm:$0x1]
        %v1394 = vperm.slane %v1392, 0
        %v1396 = vadd.f32 %v1360, %v1394
        %v1397 = vadd.f32 %v1361, %v1394
        %v1398 = vadd.f32 %v1362, %v1394
        %v1399 = vadd.f32 %v1363, %v1394
        %v1400 = vadd.f32 %v1364, %v1394
        %v1401 = vadd.f32 %v1365, %v1394
        %v1402 = vadd.f32 %v1366, %v1394
        %v1403 = vadd.f32 %v1367, %v1394
        %v1404 = vadd.f32 %v1368, %v1394
        %v1405 = vadd.f32 %v1369, %v1394
        %v1406 = vadd.f32 %v1370, %v1394
        %v1407 = vadd.f32 %v1371, %v1394
        %v1408 = vadd.f32 %v1372, %v1394
        %v1409 = vadd.f32 %v1373, %v1394
        %v1410 = vadd.f32 %v1374, %v1394
        %v1411 = vadd.f32 %v1375, %v1394
        %v1412 = vadd.f32 %v1376, %v1394
        %v1413 = vadd.f32 %v1377, %v1394
        %v1414 = vadd.f32 %v1378, %v1394
        %v1415 = vadd.f32 %v1379, %v1394
        %v1416 = vadd.f32 %v1380, %v1394
        %v1417 = vadd.f32 %v1381, %v1394
        %v1418 = vadd.f32 %v1382, %v1394
        %v1419 = vadd.f32 %v1383, %v1394
        %v1420 = vadd.f32 %v1384, %v1394
        %v1421 = vadd.f32 %v1385, %v1394
        %v1422 = vadd.f32 %v1386, %v1394
        %v1423 = vadd.f32 %v1387, %v1394
        %v1424 = vadd.f32 %v1388, %v1394
        %v1425 = vadd.f32 %v1389, %v1394
        %v1426 = vadd.f32 %v1390, %v1394
        %v1427 = vadd.f32 %v1391, %v1394
        %v1428 = vld [vmem:[#allocation8] sm:$0xff]
        %v1429 = vld [vmem:[#allocation8 + $0x8] sm:$0xff]
        %v1430 = vld [vmem:[#allocation8 + $0x10] sm:$0xff]
        %v1431 = vld [vmem:[#allocation8 + $0x18] sm:$0xff]
        %v1432 = vld [vmem:[#allocation8 + $0x20] sm:$0xff]
        %v1433 = vld [vmem:[#allocation8 + $0x28] sm:$0xff]
        %v1434 = vld [vmem:[#allocation8 + $0x30] sm:$0xff]
        %v1435 = vld [vmem:[#allocation8 + $0x38] sm:$0xff]
        %v1436 = vld [vmem:[#allocation8 + $0x40] sm:$0xff]
        %v1437 = vld [vmem:[#allocation8 + $0x48] sm:$0xff]
        %v1438 = vld [vmem:[#allocation8 + $0x50] sm:$0xff]
        %v1439 = vld [vmem:[#allocation8 + $0x58] sm:$0xff]
        %v1440 = vld [vmem:[#allocation8 + $0x60] sm:$0xff]
        %v1441 = vld [vmem:[#allocation8 + $0x68] sm:$0xff]
        %v1442 = vld [vmem:[#allocation8 + $0x70] sm:$0xff]
        %v1443 = vld [vmem:[#allocation8 + $0x78] sm:$0xff]
        %v1444 = vld [vmem:[#allocation8 + $0x80] sm:$0xff]
        %v1445 = vld [vmem:[#allocation8 + $0x88] sm:$0xff]
        %v1446 = vld [vmem:[#allocation8 + $0x90] sm:$0xff]
        %v1447 = vld [vmem:[#allocation8 + $0x98] sm:$0xff]
        %v1448 = vld [vmem:[#allocation8 + $0xa0] sm:$0xff]
        %v1449 = vld [vmem:[#allocation8 + $0xa8] sm:$0xff]
        %v1450 = vld [vmem:[#allocation8 + $0xb0] sm:$0xff]
        %v1451 = vld [vmem:[#allocation8 + $0xb8] sm:$0xff]
        %v1452 = vld [vmem:[#allocation8 + $0xc0] sm:$0xff]
        %v1453 = vld [vmem:[#allocation8 + $0xc8] sm:$0xff]
        %v1454 = vld [vmem:[#allocation8 + $0xd0] sm:$0xff]
        %v1455 = vld [vmem:[#allocation8 + $0xd8] sm:$0xff]
        %v1456 = vld [vmem:[#allocation8 + $0xe0] sm:$0xff]
        %v1457 = vld [vmem:[#allocation8 + $0xe8] sm:$0xff]
        %v1458 = vld [vmem:[#allocation8 + $0xf0] sm:$0xff]
        %v1459 = vld [vmem:[#allocation8 + $0xf8] sm:$0xff]
        %v1460 = vld [vmem:[#allocation8 + $0x100] sm:$0xff]
        %v1461 = vld [vmem:[#allocation8 + $0x108] sm:$0xff]
        %v1462 = vld [vmem:[#allocation8 + $0x110] sm:$0xff]
        %v1463 = vld [vmem:[#allocation8 + $0x118] sm:$0xff]
        %v1464 = vld [vmem:[#allocation8 + $0x120] sm:$0xff]
        %v1465 = vld [vmem:[#allocation8 + $0x128] sm:$0xff]
        %v1466 = vld [vmem:[#allocation8 + $0x130] sm:$0xff]
        %v1467 = vld [vmem:[#allocation8 + $0x138] sm:$0xff]
        %v1468 = vld [vmem:[#allocation8 + $0x140] sm:$0xff]
        %v1469 = vld [vmem:[#allocation8 + $0x148] sm:$0xff]
        %v1470 = vld [vmem:[#allocation8 + $0x150] sm:$0xff]
        %v1471 = vld [vmem:[#allocation8 + $0x158] sm:$0xff]
        %v1472 = vld [vmem:[#allocation8 + $0x160] sm:$0xff]
        %v1473 = vld [vmem:[#allocation8 + $0x168] sm:$0xff]
        %v1474 = vld [vmem:[#allocation8 + $0x170] sm:$0xff]
        %v1475 = vld [vmem:[#allocation8 + $0x178] sm:$0xff]
        %v1476 = vld [vmem:[#allocation10] sm:$0x7]
        %v1478 = vperm.slane %v1476, 0
        %v1479 = vperm.slane %v1476, 1
        %v1480 = vperm.slane %v1476, 2
        %1484 = vmatpush.msra.mxu0 %v1473
        %1485 = vmatpush.msra.mxu0 %v1470
        %1486 = vmatpush.msra.mxu0 %v1467
        %1487 = vmatpush.msra.mxu0 %v1464
        %1488 = vmatpush.msra.mxu0 %v1461
        %1489 = vmatpush.msra.mxu0 %v1458
        %1490 = vmatpush.msra.mxu0 %v1455
        %1491 = vmatpush.msra.mxu0 %v1452
        %1492 = vmatpush.msra.mxu0 %v1449
        %1493 = vmatpush.msra.mxu0 %v1446
        %1494 = vmatpush.msra.mxu0 %v1443
        %1495 = vmatpush.msra.mxu0 %v1440
        %1496 = vmatpush.msra.mxu0 %v1437
        %1497 = vmatpush.msra.mxu0 %v1434
        %1498 = vmatpush.msra.mxu0 %v1431
        %1499 = vmatpush.msra.mxu0 %v1428
        %1500 = vmatmul.f32.gmra.mxu0 %v1396
        %v1501 = vpop.f32.mrf.mxu0
        %v1502 = vadd.f32 %v1478, %v1501
        %1503 = vmatmul.f32.gmra.mxu0 %v1397
        %v1504 = vpop.f32.mrf.mxu0
        %v1505 = vadd.f32 %v1478, %v1504
        %1506 = vmatmul.f32.gmra.mxu0 %v1398
        %v1507 = vpop.f32.mrf.mxu0
        %v1508 = vadd.f32 %v1478, %v1507
        %1509 = vmatmul.f32.gmra.mxu0 %v1399
        %v1510 = vpop.f32.mrf.mxu0
        %v1511 = vadd.f32 %v1478, %v1510
        %1512 = vmatmul.f32.gmra.mxu0 %v1400
        %v1513 = vpop.f32.mrf.mxu0
        %v1514 = vadd.f32 %v1478, %v1513
        %1515 = vmatmul.f32.gmra.mxu0 %v1401
        %v1516 = vpop.f32.mrf.mxu0
        %v1517 = vadd.f32 %v1478, %v1516
        %1518 = vmatmul.f32.gmra.mxu0 %v1402
        %v1519 = vpop.f32.mrf.mxu0
        %v1520 = vadd.f32 %v1478, %v1519
        %1521 = vmatmul.f32.gmra.mxu0 %v1403
        %v1522 = vpop.f32.mrf.mxu0
        %v1523 = vadd.f32 %v1478, %v1522
        %1524 = vmatmul.f32.gmra.mxu0 %v1404
        %v1525 = vpop.f32.mrf.mxu0
        %v1526 = vadd.f32 %v1478, %v1525
        %1527 = vmatmul.f32.gmra.mxu0 %v1405
        %v1528 = vpop.f32.mrf.mxu0
        %v1529 = vadd.f32 %v1478, %v1528
        %1530 = vmatmul.f32.gmra.mxu0 %v1406
        %v1531 = vpop.f32.mrf.mxu0
        %v1532 = vadd.f32 %v1478, %v1531
        %1533 = vmatmul.f32.gmra.mxu0 %v1407
        %v1534 = vpop.f32.mrf.mxu0
        %v1535 = vadd.f32 %v1478, %v1534
        %1536 = vmatmul.f32.gmra.mxu0 %v1408
        %v1537 = vpop.f32.mrf.mxu0
        %v1538 = vadd.f32 %v1478, %v1537
        %1539 = vmatmul.f32.gmra.mxu0 %v1409
        %v1540 = vpop.f32.mrf.mxu0
        %v1541 = vadd.f32 %v1478, %v1540
        %1542 = vmatmul.f32.gmra.mxu0 %v1410
        %v1543 = vpop.f32.mrf.mxu0
        %v1544 = vadd.f32 %v1478, %v1543
        %1545 = vmatmul.f32.gmra.mxu0 %v1411
        %v1546 = vpop.f32.mrf.mxu0
        %v1547 = vadd.f32 %v1478, %v1546
        %1548 = vmatmul.f32.gmra.mxu0 %v1412
        %v1549 = vpop.f32.mrf.mxu0
        %v1550 = vadd.f32 %v1478, %v1549
        %1551 = vmatmul.f32.gmra.mxu0 %v1413
        %v1552 = vpop.f32.mrf.mxu0
        %v1553 = vadd.f32 %v1478, %v1552
        %1554 = vmatmul.f32.gmra.mxu0 %v1414
        %v1555 = vpop.f32.mrf.mxu0
        %v1556 = vadd.f32 %v1478, %v1555
        %1557 = vmatmul.f32.gmra.mxu0 %v1415
        %v1558 = vpop.f32.mrf.mxu0
        %v1559 = vadd.f32 %v1478, %v1558
        %1560 = vmatmul.f32.gmra.mxu0 %v1416
        %v1561 = vpop.f32.mrf.mxu0
        %v1562 = vadd.f32 %v1478, %v1561
        %1563 = vmatmul.f32.gmra.mxu0 %v1417
        %v1564 = vpop.f32.mrf.mxu0
        %v1565 = vadd.f32 %v1478, %v1564
        %1566 = vmatmul.f32.gmra.mxu0 %v1418
        %v1567 = vpop.f32.mrf.mxu0
        %v1568 = vadd.f32 %v1478, %v1567
        %1569 = vmatmul.f32.gmra.mxu0 %v1419
        %v1570 = vpop.f32.mrf.mxu0
        %v1571 = vadd.f32 %v1478, %v1570
        %1572 = vmatmul.f32.gmra.mxu0 %v1420
        %v1573 = vpop.f32.mrf.mxu0
        %v1574 = vadd.f32 %v1478, %v1573
        %1575 = vmatmul.f32.gmra.mxu0 %v1421
        %v1576 = vpop.f32.mrf.mxu0
        %v1577 = vadd.f32 %v1478, %v1576
        %1578 = vmatmul.f32.gmra.mxu0 %v1422
        %v1579 = vpop.f32.mrf.mxu0
        %v1580 = vadd.f32 %v1478, %v1579
        %1581 = vmatmul.f32.gmra.mxu0 %v1423
        %v1582 = vpop.f32.mrf.mxu0
        %v1583 = vadd.f32 %v1478, %v1582
        %1584 = vmatmul.f32.gmra.mxu0 %v1424
        %v1585 = vpop.f32.mrf.mxu0
        %v1586 = vadd.f32 %v1478, %v1585
        %1587 = vmatmul.f32.gmra.mxu0 %v1425
        %v1588 = vpop.f32.mrf.mxu0
        %v1589 = vadd.f32 %v1478, %v1588
        %1590 = vmatmul.f32.gmra.mxu0 %v1426
        %v1591 = vpop.f32.mrf.mxu0
        %v1592 = vadd.f32 %v1478, %v1591
        %1593 = vmatmul.f32.gmra.mxu0 %v1427
        %v1594 = vpop.f32.mrf.mxu0
        %v1595 = vadd.f32 %v1478, %v1594
        %1596 = vdwg.mxu0
        %1597 = vmatpush.msra.mxu0 %v1474
        %1598 = vmatpush.msra.mxu0 %v1471
        %1599 = vmatpush.msra.mxu0 %v1468
        %1600 = vmatpush.msra.mxu0 %v1465
        %1601 = vmatpush.msra.mxu0 %v1462
        %1602 = vmatpush.msra.mxu0 %v1459
        %1603 = vmatpush.msra.mxu0 %v1456
        %1604 = vmatpush.msra.mxu0 %v1453
        %1605 = vmatpush.msra.mxu0 %v1450
        %1606 = vmatpush.msra.mxu0 %v1447
        %1607 = vmatpush.msra.mxu0 %v1444
        %1608 = vmatpush.msra.mxu0 %v1441
        %1609 = vmatpush.msra.mxu0 %v1438
        %1610 = vmatpush.msra.mxu0 %v1435
        %1611 = vmatpush.msra.mxu0 %v1432
        %1612 = vmatpush.msra.mxu0 %v1429
        %1613 = vmatmul.f32.gmra.mxu0 %v1396
        %v1614 = vpop.f32.mrf.mxu0
        %v1615 = vadd.f32 %v1479, %v1614
        %1616 = vmatmul.f32.gmra.mxu0 %v1397
        %v1617 = vpop.f32.mrf.mxu0
        %v1618 = vadd.f32 %v1479, %v1617
        %1619 = vmatmul.f32.gmra.mxu0 %v1398
        %v1620 = vpop.f32.mrf.mxu0
        %v1621 = vadd.f32 %v1479, %v1620
        %1622 = vmatmul.f32.gmra.mxu0 %v1399
        %v1623 = vpop.f32.mrf.mxu0
        %v1624 = vadd.f32 %v1479, %v1623
        %1625 = vmatmul.f32.gmra.mxu0 %v1400
        %v1626 = vpop.f32.mrf.mxu0
        %v1627 = vadd.f32 %v1479, %v1626
        %1628 = vmatmul.f32.gmra.mxu0 %v1401
        %v1629 = vpop.f32.mrf.mxu0
        %v1630 = vadd.f32 %v1479, %v1629
        %1631 = vmatmul.f32.gmra.mxu0 %v1402
        %v1632 = vpop.f32.mrf.mxu0
        %v1633 = vadd.f32 %v1479, %v1632
        %1634 = vmatmul.f32.gmra.mxu0 %v1403
        %v1635 = vpop.f32.mrf.mxu0
        %v1636 = vadd.f32 %v1479, %v1635
        %1637 = vmatmul.f32.gmra.mxu0 %v1404
        %v1638 = vpop.f32.mrf.mxu0
        %v1639 = vadd.f32 %v1479, %v1638
        %1640 = vmatmul.f32.gmra.mxu0 %v1405
        %v1641 = vpop.f32.mrf.mxu0
        %v1642 = vadd.f32 %v1479, %v1641
        %1643 = vmatmul.f32.gmra.mxu0 %v1406
        %v1644 = vpop.f32.mrf.mxu0
        %v1645 = vadd.f32 %v1479, %v1644
        %1646 = vmatmul.f32.gmra.mxu0 %v1407
        %v1647 = vpop.f32.mrf.mxu0
        %v1648 = vadd.f32 %v1479, %v1647
        %1649 = vmatmul.f32.gmra.mxu0 %v1408
        %v1650 = vpop.f32.mrf.mxu0
        %v1651 = vadd.f32 %v1479, %v1650
        %1652 = vmatmul.f32.gmra.mxu0 %v1409
        %v1653 = vpop.f32.mrf.mxu0
        %v1654 = vadd.f32 %v1479, %v1653
        %1655 = vmatmul.f32.gmra.mxu0 %v1410
        %v1656 = vpop.f32.mrf.mxu0
        %v1657 = vadd.f32 %v1479, %v1656
        %1658 = vmatmul.f32.gmra.mxu0 %v1411
        %v1659 = vpop.f32.mrf.mxu0
        %v1660 = vadd.f32 %v1479, %v1659
        %1661 = vmatmul.f32.gmra.mxu0 %v1412
        %v1662 = vpop.f32.mrf.mxu0
        %v1663 = vadd.f32 %v1479, %v1662
        %1664 = vmatmul.f32.gmra.mxu0 %v1413
        %v1665 = vpop.f32.mrf.mxu0
        %v1666 = vadd.f32 %v1479, %v1665
        %1667 = vmatmul.f32.gmra.mxu0 %v1414
        %v1668 = vpop.f32.mrf.mxu0
        %v1669 = vadd.f32 %v1479, %v1668
        %1670 = vmatmul.f32.gmra.mxu0 %v1415
        %v1671 = vpop.f32.mrf.mxu0
        %v1672 = vadd.f32 %v1479, %v1671
        %1673 = vmatmul.f32.gmra.mxu0 %v1416
        %v1674 = vpop.f32.mrf.mxu0
        %v1675 = vadd.f32 %v1479, %v1674
        %1676 = vmatmul.f32.gmra.mxu0 %v1417
        %v1677 = vpop.f32.mrf.mxu0
        %v1678 = vadd.f32 %v1479, %v1677
        %1679 = vmatmul.f32.gmra.mxu0 %v1418
        %v1680 = vpop.f32.mrf.mxu0
        %v1681 = vadd.f32 %v1479, %v1680
        %1682 = vmatmul.f32.gmra.mxu0 %v1419
        %v1683 = vpop.f32.mrf.mxu0
        %v1684 = vadd.f32 %v1479, %v1683
        %1685 = vmatmul.f32.gmra.mxu0 %v1420
        %v1686 = vpop.f32.mrf.mxu0
        %v1687 = vadd.f32 %v1479, %v1686
        %1688 = vmatmul.f32.gmra.mxu0 %v1421
        %v1689 = vpop.f32.mrf.mxu0
        %v1690 = vadd.f32 %v1479, %v1689
        %1691 = vmatmul.f32.gmra.mxu0 %v1422
        %v1692 = vpop.f32.mrf.mxu0
        %v1693 = vadd.f32 %v1479, %v1692
        %1694 = vmatmul.f32.gmra.mxu0 %v1423
        %v1695 = vpop.f32.mrf.mxu0
        %v1696 = vadd.f32 %v1479, %v1695
        %1697 = vmatmul.f32.gmra.mxu0 %v1424
        %v1698 = vpop.f32.mrf.mxu0
        %v1699 = vadd.f32 %v1479, %v1698
        %1700 = vmatmul.f32.gmra.mxu0 %v1425
        %v1701 = vpop.f32.mrf.mxu0
        %v1702 = vadd.f32 %v1479, %v1701
        %1703 = vmatmul.f32.gmra.mxu0 %v1426
        %v1704 = vpop.f32.mrf.mxu0
        %v1705 = vadd.f32 %v1479, %v1704
        %1706 = vmatmul.f32.gmra.mxu0 %v1427
        %v1707 = vpop.f32.mrf.mxu0
        %v1708 = vadd.f32 %v1479, %v1707
        %1709 = vdwg.mxu0
        %1710 = vmatpush.msra.mxu0 %v1475
        %1711 = vmatpush.msra.mxu0 %v1472
        %1712 = vmatpush.msra.mxu0 %v1469
        %1713 = vmatpush.msra.mxu0 %v1466
        %1714 = vmatpush.msra.mxu0 %v1463
        %1715 = vmatpush.msra.mxu0 %v1460
        %1716 = vmatpush.msra.mxu0 %v1457
        %1717 = vmatpush.msra.mxu0 %v1454
        %1718 = vmatpush.msra.mxu0 %v1451
        %1719 = vmatpush.msra.mxu0 %v1448
        %1720 = vmatpush.msra.mxu0 %v1445
        %1721 = vmatpush.msra.mxu0 %v1442
        %1722 = vmatpush.msra.mxu0 %v1439
        %1723 = vmatpush.msra.mxu0 %v1436
        %1724 = vmatpush.msra.mxu0 %v1433
        %1725 = vmatpush.msra.mxu0 %v1430
        %1726 = vmatmul.f32.gmra.mxu0 %v1396
        %v1727 = vpop.f32.mrf.mxu0
        %v1728 = vadd.f32 %v1480, %v1727
        %1729 = vmatmul.f32.gmra.mxu0 %v1397
        %v1730 = vpop.f32.mrf.mxu0
        %v1731 = vadd.f32 %v1480, %v1730
        %1732 = vmatmul.f32.gmra.mxu0 %v1398
        %v1733 = vpop.f32.mrf.mxu0
        %v1734 = vadd.f32 %v1480, %v1733
        %1735 = vmatmul.f32.gmra.mxu0 %v1399
        %v1736 = vpop.f32.mrf.mxu0
        %v1737 = vadd.f32 %v1480, %v1736
        %1738 = vmatmul.f32.gmra.mxu0 %v1400
        %v1739 = vpop.f32.mrf.mxu0
        %v1740 = vadd.f32 %v1480, %v1739
        %1741 = vmatmul.f32.gmra.mxu0 %v1401
        %v1742 = vpop.f32.mrf.mxu0
        %v1743 = vadd.f32 %v1480, %v1742
        %1744 = vmatmul.f32.gmra.mxu0 %v1402
        %v1745 = vpop.f32.mrf.mxu0
        %v1746 = vadd.f32 %v1480, %v1745
        %1747 = vmatmul.f32.gmra.mxu0 %v1403
        %v1748 = vpop.f32.mrf.mxu0
        %v1749 = vadd.f32 %v1480, %v1748
        %1750 = vmatmul.f32.gmra.mxu0 %v1404
        %v1751 = vpop.f32.mrf.mxu0
        %v1752 = vadd.f32 %v1480, %v1751
        %1753 = vmatmul.f32.gmra.mxu0 %v1405
        %v1754 = vpop.f32.mrf.mxu0
        %v1755 = vadd.f32 %v1480, %v1754
        %1756 = vmatmul.f32.gmra.mxu0 %v1406
        %v1757 = vpop.f32.mrf.mxu0
        %v1758 = vadd.f32 %v1480, %v1757
        %1759 = vmatmul.f32.gmra.mxu0 %v1407
        %v1760 = vpop.f32.mrf.mxu0
        %v1761 = vadd.f32 %v1480, %v1760
        %1762 = vmatmul.f32.gmra.mxu0 %v1408
        %v1763 = vpop.f32.mrf.mxu0
        %v1764 = vadd.f32 %v1480, %v1763
        %1765 = vmatmul.f32.gmra.mxu0 %v1409
        %v1766 = vpop.f32.mrf.mxu0
        %v1767 = vadd.f32 %v1480, %v1766
        %1768 = vmatmul.f32.gmra.mxu0 %v1410
        %v1769 = vpop.f32.mrf.mxu0
        %v1770 = vadd.f32 %v1480, %v1769
        %1771 = vmatmul.f32.gmra.mxu0 %v1411
        %v1772 = vpop.f32.mrf.mxu0
        %v1773 = vadd.f32 %v1480, %v1772
        %1774 = vmatmul.f32.gmra.mxu0 %v1412
        %v1775 = vpop.f32.mrf.mxu0
        %v1776 = vadd.f32 %v1480, %v1775
        %1777 = vmatmul.f32.gmra.mxu0 %v1413
        %v1778 = vpop.f32.mrf.mxu0
        %v1779 = vadd.f32 %v1480, %v1778
        %1780 = vmatmul.f32.gmra.mxu0 %v1414
        %v1781 = vpop.f32.mrf.mxu0
        %v1782 = vadd.f32 %v1480, %v1781
        %1783 = vmatmul.f32.gmra.mxu0 %v1415
        %v1784 = vpop.f32.mrf.mxu0
        %v1785 = vadd.f32 %v1480, %v1784
        %1786 = vmatmul.f32.gmra.mxu0 %v1416
        %v1787 = vpop.f32.mrf.mxu0
        %v1788 = vadd.f32 %v1480, %v1787
        %1789 = vmatmul.f32.gmra.mxu0 %v1417
        %v1790 = vpop.f32.mrf.mxu0
        %v1791 = vadd.f32 %v1480, %v1790
        %1792 = vmatmul.f32.gmra.mxu0 %v1418
        %v1793 = vpop.f32.mrf.mxu0
        %v1794 = vadd.f32 %v1480, %v1793
        %1795 = vmatmul.f32.gmra.mxu0 %v1419
        %v1796 = vpop.f32.mrf.mxu0
        %v1797 = vadd.f32 %v1480, %v1796
        %1798 = vmatmul.f32.gmra.mxu0 %v1420
        %v1799 = vpop.f32.mrf.mxu0
        %v1800 = vadd.f32 %v1480, %v1799
        %1801 = vmatmul.f32.gmra.mxu0 %v1421
        %v1802 = vpop.f32.mrf.mxu0
        %v1803 = vadd.f32 %v1480, %v1802
        %1804 = vmatmul.f32.gmra.mxu0 %v1422
        %v1805 = vpop.f32.mrf.mxu0
        %v1806 = vadd.f32 %v1480, %v1805
        %1807 = vmatmul.f32.gmra.mxu0 %v1423
        %v1808 = vpop.f32.mrf.mxu0
        %v1809 = vadd.f32 %v1480, %v1808
        %1810 = vmatmul.f32.gmra.mxu0 %v1424
        %v1811 = vpop.f32.mrf.mxu0
        %v1812 = vadd.f32 %v1480, %v1811
        %1813 = vmatmul.f32.gmra.mxu0 %v1425
        %v1814 = vpop.f32.mrf.mxu0
        %v1815 = vadd.f32 %v1480, %v1814
        %1816 = vmatmul.f32.gmra.mxu0 %v1426
        %v1817 = vpop.f32.mrf.mxu0
        %v1818 = vadd.f32 %v1480, %v1817
        %1819 = vmatmul.f32.gmra.mxu0 %v1427
        %v1820 = vpop.f32.mrf.mxu0
        %v1821 = vadd.f32 %v1480, %v1820
        %1822 = vdwg.mxu0
        %1823 = vxpose.xlu0.b32.start [1/16] %v1502, 128
        %1824 = vxpose.xlu0.b32.cont [2/16] %v1505, 128
        %1825 = vxpose.xlu0.b32.cont [3/16] %v1508, 128
        %1826 = vxpose.xlu0.b32.cont [4/16] %v1511, 128
        %1827 = vxpose.xlu0.b32.cont [5/16] %v1514, 128
        %1828 = vxpose.xlu0.b32.cont [6/16] %v1517, 128
        %1829 = vxpose.xlu0.b32.cont [7/16] %v1520, 128
        %1830 = vxpose.xlu0.b32.cont [8/16] %v1523, 128
        %1831 = vxpose.xlu0.b32.cont [9/16] %v1526, 128
        %1832 = vxpose.xlu0.b32.cont [10/16] %v1529, 128
        %1833 = vxpose.xlu0.b32.cont [11/16] %v1532, 128
        %1834 = vxpose.xlu0.b32.cont [12/16] %v1535, 128
        %1835 = vxpose.xlu0.b32.cont [13/16] %v1538, 128
        %1836 = vxpose.xlu0.b32.cont [14/16] %v1541, 128
        %1837 = vxpose.xlu0.b32.cont [15/16] %v1544, 128
        %1838 = vxpose.xlu0.b32.end [16/16] %v1547, 128
        %v1839 = vpop.trf.xlu0
        %v1840 = vpop.trf.xlu0
        %v1841 = vpop.trf.xlu0
        %v1842 = vpop.trf.xlu0
        %v1843 = vpop.trf.xlu0
        %v1844 = vpop.trf.xlu0
        %v1845 = vpop.trf.xlu0
        %v1846 = vpop.trf.xlu0
        %v1847 = vpop.trf.xlu0
        %v1848 = vpop.trf.xlu0
        %v1849 = vpop.trf.xlu0
        %v1850 = vpop.trf.xlu0
        %v1851 = vpop.trf.xlu0
        %v1852 = vpop.trf.xlu0
        %v1853 = vpop.trf.xlu0
        %v1854 = vpop.trf.xlu0
        %1855 = vxpose.xlu0.b32.start [1/16] %v1615, 128
        %1856 = vxpose.xlu0.b32.cont [2/16] %v1618, 128
        %1857 = vxpose.xlu0.b32.cont [3/16] %v1621, 128
        %1858 = vxpose.xlu0.b32.cont [4/16] %v1624, 128
        %1859 = vxpose.xlu0.b32.cont [5/16] %v1627, 128
        %1860 = vxpose.xlu0.b32.cont [6/16] %v1630, 128
        %1861 = vxpose.xlu0.b32.cont [7/16] %v1633, 128
        %1862 = vxpose.xlu0.b32.cont [8/16] %v1636, 128
        %1863 = vxpose.xlu0.b32.cont [9/16] %v1639, 128
        %1864 = vxpose.xlu0.b32.cont [10/16] %v1642, 128
        %1865 = vxpose.xlu0.b32.cont [11/16] %v1645, 128
        %1866 = vxpose.xlu0.b32.cont [12/16] %v1648, 128
        %1867 = vxpose.xlu0.b32.cont [13/16] %v1651, 128
        %1868 = vxpose.xlu0.b32.cont [14/16] %v1654, 128
        %1869 = vxpose.xlu0.b32.cont [15/16] %v1657, 128
        %1870 = vxpose.xlu0.b32.end [16/16] %v1660, 128
        %v1871 = vpop.trf.xlu0
        %v1872 = vpop.trf.xlu0
        %v1873 = vpop.trf.xlu0
        %v1874 = vpop.trf.xlu0
        %v1875 = vpop.trf.xlu0
        %v1876 = vpop.trf.xlu0
        %v1877 = vpop.trf.xlu0
        %v1878 = vpop.trf.xlu0
        %v1879 = vpop.trf.xlu0
        %v1880 = vpop.trf.xlu0
        %v1881 = vpop.trf.xlu0
        %v1882 = vpop.trf.xlu0
        %v1883 = vpop.trf.xlu0
        %v1884 = vpop.trf.xlu0
        %v1885 = vpop.trf.xlu0
        %v1886 = vpop.trf.xlu0
        %1887 = vxpose.xlu0.b32.start [1/16] %v1728, 128
        %1888 = vxpose.xlu0.b32.cont [2/16] %v1731, 128
        %1889 = vxpose.xlu0.b32.cont [3/16] %v1734, 128
        %1890 = vxpose.xlu0.b32.cont [4/16] %v1737, 128
        %1891 = vxpose.xlu0.b32.cont [5/16] %v1740, 128
        %1892 = vxpose.xlu0.b32.cont [6/16] %v1743, 128
        %1893 = vxpose.xlu0.b32.cont [7/16] %v1746, 128
        %1894 = vxpose.xlu0.b32.cont [8/16] %v1749, 128
        %1895 = vxpose.xlu0.b32.cont [9/16] %v1752, 128
        %1896 = vxpose.xlu0.b32.cont [10/16] %v1755, 128
        %1897 = vxpose.xlu0.b32.cont [11/16] %v1758, 128
        %1898 = vxpose.xlu0.b32.cont [12/16] %v1761, 128
        %1899 = vxpose.xlu0.b32.cont [13/16] %v1764, 128
        %1900 = vxpose.xlu0.b32.cont [14/16] %v1767, 128
        %1901 = vxpose.xlu0.b32.cont [15/16] %v1770, 128
        %1902 = vxpose.xlu0.b32.end [16/16] %v1773, 128
        %v1903 = vpop.trf.xlu0
        %v1904 = vpop.trf.xlu0
        %v1905 = vpop.trf.xlu0
        %v1906 = vpop.trf.xlu0
        %v1907 = vpop.trf.xlu0
        %v1908 = vpop.trf.xlu0
        %v1909 = vpop.trf.xlu0
        %v1910 = vpop.trf.xlu0
        %v1911 = vpop.trf.xlu0
        %v1912 = vpop.trf.xlu0
        %v1913 = vpop.trf.xlu0
        %v1914 = vpop.trf.xlu0
        %v1915 = vpop.trf.xlu0
        %v1916 = vpop.trf.xlu0
        %v1917 = vpop.trf.xlu0
        %v1918 = vpop.trf.xlu0
        %1919 = vxpose.xlu0.b32.start [1/16] %v1839, 128
        %1920 = vxpose.xlu0.b32.cont [2/16] %v1840, 128
        %1921 = vxpose.xlu0.b32.cont [3/16] %v1841, 128
        %1922 = vxpose.xlu0.b32.cont [4/16] %v1842, 128
        %1923 = vxpose.xlu0.b32.cont [5/16] 0.0, 128
        %1924 = vxpose.xlu0.b32.cont [6/16] 0.0, 128
        %1925 = vxpose.xlu0.b32.cont [7/16] 0.0, 128
        %1926 = vxpose.xlu0.b32.cont [8/16] 0.0, 128
        %1927 = vxpose.xlu0.b32.cont [9/16] 0.0, 128
        %1928 = vxpose.xlu0.b32.cont [10/16] 0.0, 128
        %1929 = vxpose.xlu0.b32.cont [11/16] 0.0, 128
        %1930 = vxpose.xlu0.b32.cont [12/16] 0.0, 128
        %1931 = vxpose.xlu0.b32.cont [13/16] 0.0, 128
        %1932 = vxpose.xlu0.b32.cont [14/16] 0.0, 128
        %1933 = vxpose.xlu0.b32.cont [15/16] 0.0, 128
        %1934 = vxpose.xlu0.b32.end [16/16] 0.0, 128
        %v1935 = vpop.trf.xlu0
        %v1936 = vpop.trf.xlu0
        %v1937 = vpop.trf.xlu0
        %v1938 = vpop.trf.xlu0
        %v1939 = vpop.trf.xlu0
        %v1940 = vpop.trf.xlu0
        %v1941 = vpop.trf.xlu0
        %v1942 = vpop.trf.xlu0
        %v1943 = vpop.trf.xlu0
        %v1944 = vpop.trf.xlu0
        %v1945 = vpop.trf.xlu0
        %v1946 = vpop.trf.xlu0
        %v1947 = vpop.trf.xlu0
        %v1948 = vpop.trf.xlu0
        %v1949 = vpop.trf.xlu0
        %v1950 = vpop.trf.xlu0
        %1951 = vxpose.xlu0.b32.start [1/16] %v1843, 128
        %1952 = vxpose.xlu0.b32.cont [2/16] %v1844, 128
        %1953 = vxpose.xlu0.b32.cont [3/16] %v1845, 128
        %1954 = vxpose.xlu0.b32.cont [4/16] %v1846, 128
        %1955 = vxpose.xlu0.b32.cont [5/16] 0.0, 128
        %1956 = vxpose.xlu0.b32.cont [6/16] 0.0, 128
        %1957 = vxpose.xlu0.b32.cont [7/16] 0.0, 128
        %1958 = vxpose.xlu0.b32.cont [8/16] 0.0, 128
        %1959 = vxpose.xlu0.b32.cont [9/16] 0.0, 128
        %1960 = vxpose.xlu0.b32.cont [10/16] 0.0, 128
        %1961 = vxpose.xlu0.b32.cont [11/16] 0.0, 128
        %1962 = vxpose.xlu0.b32.cont [12/16] 0.0, 128
        %1963 = vxpose.xlu0.b32.cont [13/16] 0.0, 128
        %1964 = vxpose.xlu0.b32.cont [14/16] 0.0, 128
        %1965 = vxpose.xlu0.b32.cont [15/16] 0.0, 128
        %1966 = vxpose.xlu0.b32.end [16/16] 0.0, 128
        %v1967 = vpop.trf.xlu0
        %v1968 = vpop.trf.xlu0
        %v1969 = vpop.trf.xlu0
        %v1970 = vpop.trf.xlu0
        %v1971 = vpop.trf.xlu0
        %v1972 = vpop.trf.xlu0
        %v1973 = vpop.trf.xlu0
        %v1974 = vpop.trf.xlu0
        %v1975 = vpop.trf.xlu0
        %v1976 = vpop.trf.xlu0
        %v1977 = vpop.trf.xlu0
        %v1978 = vpop.trf.xlu0
        %v1979 = vpop.trf.xlu0
        %v1980 = vpop.trf.xlu0
        %v1981 = vpop.trf.xlu0
        %v1982 = vpop.trf.xlu0
        %1983 = vxpose.xlu0.b32.start [1/16] %v1847, 128
        %1984 = vxpose.xlu0.b32.cont [2/16] %v1848, 128
        %1985 = vxpose.xlu0.b32.cont [3/16] %v1849, 128
        %1986 = vxpose.xlu0.b32.cont [4/16] %v1850, 128
        %1987 = vxpose.xlu0.b32.cont [5/16] 0.0, 128
        %1988 = vxpose.xlu0.b32.cont [6/16] 0.0, 128
        %1989 = vxpose.xlu0.b32.cont [7/16] 0.0, 128
        %1990 = vxpose.xlu0.b32.cont [8/16] 0.0, 128
        %1991 = vxpose.xlu0.b32.cont [9/16] 0.0, 128
        %1992 = vxpose.xlu0.b32.cont [10/16] 0.0, 128
        %1993 = vxpose.xlu0.b32.cont [11/16] 0.0, 128
        %1994 = vxpose.xlu0.b32.cont [12/16] 0.0, 128
        %1995 = vxpose.xlu0.b32.cont [13/16] 0.0, 128
        %1996 = vxpose.xlu0.b32.cont [14/16] 0.0, 128
        %1997 = vxpose.xlu0.b32.cont [15/16] 0.0, 128
        %1998 = vxpose.xlu0.b32.end [16/16] 0.0, 128
        %v1999 = vpop.trf.xlu0
        %v2000 = vpop.trf.xlu0
        %v2001 = vpop.trf.xlu0
        %v2002 = vpop.trf.xlu0
        %v2003 = vpop.trf.xlu0
        %v2004 = vpop.trf.xlu0
        %v2005 = vpop.trf.xlu0
        %v2006 = vpop.trf.xlu0
        %v2007 = vpop.trf.xlu0
        %v2008 = vpop.trf.xlu0
        %v2009 = vpop.trf.xlu0
        %v2010 = vpop.trf.xlu0
        %v2011 = vpop.trf.xlu0
        %v2012 = vpop.trf.xlu0
        %v2013 = vpop.trf.xlu0
        %v2014 = vpop.trf.xlu0
        %2015 = vxpose.xlu0.b32.start [1/16] %v1851, 128
        %2016 = vxpose.xlu0.b32.cont [2/16] %v1852, 128
        %2017 = vxpose.xlu0.b32.cont [3/16] %v1853, 128
        %2018 = vxpose.xlu0.b32.cont [4/16] %v1854, 128
        %2019 = vxpose.xlu0.b32.cont [5/16] 0.0, 128
        %2020 = vxpose.xlu0.b32.cont [6/16] 0.0, 128
        %2021 = vxpose.xlu0.b32.cont [7/16] 0.0, 128
        %2022 = vxpose.xlu0.b32.cont [8/16] 0.0, 128
        %2023 = vxpose.xlu0.b32.cont [9/16] 0.0, 128
        %2024 = vxpose.xlu0.b32.cont [10/16] 0.0, 128
        %2025 = vxpose.xlu0.b32.cont [11/16] 0.0, 128
        %2026 = vxpose.xlu0.b32.cont [12/16] 0.0, 128
        %2027 = vxpose.xlu0.b32.cont [13/16] 0.0, 128
        %2028 = vxpose.xlu0.b32.cont [14/16] 0.0, 128
        %2029 = vxpose.xlu0.b32.cont [15/16] 0.0, 128
        %2030 = vxpose.xlu0.b32.end [16/16] 0.0, 128
        %v2031 = vpop.trf.xlu0
        %v2032 = vpop.trf.xlu0
        %v2033 = vpop.trf.xlu0
        %v2034 = vpop.trf.xlu0
        %v2035 = vpop.trf.xlu0
        %v2036 = vpop.trf.xlu0
        %v2037 = vpop.trf.xlu0
        %v2038 = vpop.trf.xlu0
        %v2039 = vpop.trf.xlu0
        %v2040 = vpop.trf.xlu0
        %v2041 = vpop.trf.xlu0
        %v2042 = vpop.trf.xlu0
        %v2043 = vpop.trf.xlu0
        %v2044 = vpop.trf.xlu0
        %v2045 = vpop.trf.xlu0
        %v2046 = vpop.trf.xlu0
        %vm2047 = vcmask 261120
        %v2049 = vsel %vm2047, %v1935, 0
        %v2052 = vsel %vm2047, %v1936, 0
        %v2055 = vsel %vm2047, %v1937, 0
        %v2058 = vsel %vm2047, %v1938, 0
        %v2061 = vsel %vm2047, %v1939, 0
        %v2064 = vsel %vm2047, %v1940, 0
        %v2067 = vsel %vm2047, %v1941, 0
        %v2070 = vsel %vm2047, %v1942, 0
        %v2073 = vsel %vm2047, %v1943, 0
        %v2076 = vsel %vm2047, %v1944, 0
        %v2079 = vsel %vm2047, %v1945, 0
        %v2082 = vsel %vm2047, %v1946, 0
        %v2085 = vsel %vm2047, %v1947, 0
        %v2088 = vsel %vm2047, %v1948, 0
        %v2091 = vsel %vm2047, %v1949, 0
        %v2094 = vsel %vm2047, %v1950, 0
        %2096 = vmatpush.msra.mxu0 0.0
        %2097 = vmatpush.msra.mxu0 0.0
        %2098 = vmatpush.msra.mxu0 0.0
        %2099 = vmatpush.msra.mxu0 0.0
        %2100 = vmatpush.msra.mxu0 0.0
        %2101 = vmatpush.msra.mxu0 0.0
        %2102 = vmatpush.msra.mxu0 0.0
        %2103 = vmatpush.msra.mxu0 0.0
        %2104 = vmatpush.msra.mxu0 0.0
        %2105 = vmatpush.msra.mxu0 0.0
        %2106 = vmatpush.msra.mxu0 0.0
        %2107 = vmatpush.msra.mxu0 0.0
        %2108 = vmatpush.msra.mxu0 %v1874
        %2109 = vmatpush.msra.mxu0 %v1873
        %2110 = vmatpush.msra.mxu0 %v1872
        %2111 = vmatpush.msra.mxu0 %v1871
        %2112 = vmatmul.f32.gmra.mxu0 %v2049
        %v2113 = vpop.f32.mrf.mxu0
        %v2114 = vadd.f32 0.0, %v2113
        %2115 = vmatmul.f32.gmra.mxu0 %v2052
        %v2116 = vpop.f32.mrf.mxu0
        %v2117 = vadd.f32 0.0, %v2116
        %2118 = vmatmul.f32.gmra.mxu0 %v2055
        %v2119 = vpop.f32.mrf.mxu0
        %v2120 = vadd.f32 0.0, %v2119
        %2121 = vmatmul.f32.gmra.mxu0 %v2058
        %v2122 = vpop.f32.mrf.mxu0
        %v2123 = vadd.f32 0.0, %v2122
        %2124 = vmatmul.f32.gmra.mxu0 %v2061
        %v2125 = vpop.f32.mrf.mxu0
        %v2126 = vadd.f32 0.0, %v2125
        %2127 = vmatmul.f32.gmra.mxu0 %v2064
        %v2128 = vpop.f32.mrf.mxu0
        %v2129 = vadd.f32 0.0, %v2128
        %2130 = vmatmul.f32.gmra.mxu0 %v2067
        %v2131 = vpop.f32.mrf.mxu0
        %v2132 = vadd.f32 0.0, %v2131
        %2133 = vmatmul.f32.gmra.mxu0 %v2070
        %v2134 = vpop.f32.mrf.mxu0
        %v2135 = vadd.f32 0.0, %v2134
        %2136 = vmatmul.f32.gmra.mxu0 %v2073
        %v2137 = vpop.f32.mrf.mxu0
        %v2138 = vadd.f32 0.0, %v2137
        %2139 = vmatmul.f32.gmra.mxu0 %v2076
        %v2140 = vpop.f32.mrf.mxu0
        %v2141 = vadd.f32 0.0, %v2140
        %2142 = vmatmul.f32.gmra.mxu0 %v2079
        %v2143 = vpop.f32.mrf.mxu0
        %v2144 = vadd.f32 0.0, %v2143
        %2145 = vmatmul.f32.gmra.mxu0 %v2082
        %v2146 = vpop.f32.mrf.mxu0
        %v2147 = vadd.f32 0.0, %v2146
        %2148 = vmatmul.f32.gmra.mxu0 %v2085
        %v2149 = vpop.f32.mrf.mxu0
        %v2150 = vadd.f32 0.0, %v2149
        %2151 = vmatmul.f32.gmra.mxu0 %v2088
        %v2152 = vpop.f32.mrf.mxu0
        %v2153 = vadd.f32 0.0, %v2152
        %2154 = vmatmul.f32.gmra.mxu0 %v2091
        %v2155 = vpop.f32.mrf.mxu0
        %v2156 = vadd.f32 0.0, %v2155
        %2157 = vmatmul.f32.gmra.mxu0 %v2094
        %v2158 = vpop.f32.mrf.mxu0
        %v2159 = vadd.f32 0.0, %v2158
        %2160 = vdwg.mxu0
        %v2162 = vsel %vm2047, %v1967, 0
        %v2165 = vsel %vm2047, %v1968, 0
        %v2168 = vsel %vm2047, %v1969, 0
        %v2171 = vsel %vm2047, %v1970, 0
        %v2174 = vsel %vm2047, %v1971, 0
        %v2177 = vsel %vm2047, %v1972, 0
        %v2180 = vsel %vm2047, %v1973, 0
        %v2183 = vsel %vm2047, %v1974, 0
        %v2186 = vsel %vm2047, %v1975, 0
        %v2189 = vsel %vm2047, %v1976, 0
        %v2192 = vsel %vm2047, %v1977, 0
        %v2195 = vsel %vm2047, %v1978, 0
        %v2198 = vsel %vm2047, %v1979, 0
        %v2201 = vsel %vm2047, %v1980, 0
        %v2204 = vsel %vm2047, %v1981, 0
        %v2207 = vsel %vm2047, %v1982, 0
        %2209 = vmatpush.msra.mxu0 0.0
        %2210 = vmatpush.msra.mxu0 0.0
        %2211 = vmatpush.msra.mxu0 0.0
        %2212 = vmatpush.msra.mxu0 0.0
        %2213 = vmatpush.msra.mxu0 0.0
        %2214 = vmatpush.msra.mxu0 0.0
        %2215 = vmatpush.msra.mxu0 0.0
        %2216 = vmatpush.msra.mxu0 0.0
        %2217 = vmatpush.msra.mxu0 0.0
        %2218 = vmatpush.msra.mxu0 0.0
        %2219 = vmatpush.msra.mxu0 0.0
        %2220 = vmatpush.msra.mxu0 0.0
        %2221 = vmatpush.msra.mxu0 %v1878
        %2222 = vmatpush.msra.mxu0 %v1877
        %2223 = vmatpush.msra.mxu0 %v1876
        %2224 = vmatpush.msra.mxu0 %v1875
        %2225 = vmatmul.f32.gmra.mxu0 %v2162
        %v2226 = vpop.f32.mrf.mxu0
        %v2227 = vadd.f32 0.0, %v2226
        %2228 = vmatmul.f32.gmra.mxu0 %v2165
        %v2229 = vpop.f32.mrf.mxu0
        %v2230 = vadd.f32 0.0, %v2229
        %2231 = vmatmul.f32.gmra.mxu0 %v2168
        %v2232 = vpop.f32.mrf.mxu0
        %v2233 = vadd.f32 0.0, %v2232
        %2234 = vmatmul.f32.gmra.mxu0 %v2171
        %v2235 = vpop.f32.mrf.mxu0
        %v2236 = vadd.f32 0.0, %v2235
        %2237 = vmatmul.f32.gmra.mxu0 %v2174
        %v2238 = vpop.f32.mrf.mxu0
        %v2239 = vadd.f32 0.0, %v2238
        %2240 = vmatmul.f32.gmra.mxu0 %v2177
        %v2241 = vpop.f32.mrf.mxu0
        %v2242 = vadd.f32 0.0, %v2241
        %2243 = vmatmul.f32.gmra.mxu0 %v2180
        %v2244 = vpop.f32.mrf.mxu0
        %v2245 = vadd.f32 0.0, %v2244
        %2246 = vmatmul.f32.gmra.mxu0 %v2183
        %v2247 = vpop.f32.mrf.mxu0
        %v2248 = vadd.f32 0.0, %v2247
        %2249 = vmatmul.f32.gmra.mxu0 %v2186
        %v2250 = vpop.f32.mrf.mxu0
        %v2251 = vadd.f32 0.0, %v2250
        %2252 = vmatmul.f32.gmra.mxu0 %v2189
        %v2253 = vpop.f32.mrf.mxu0
        %v2254 = vadd.f32 0.0, %v2253
        %2255 = vmatmul.f32.gmra.mxu0 %v2192
        %v2256 = vpop.f32.mrf.mxu0
        %v2257 = vadd.f32 0.0, %v2256
        %2258 = vmatmul.f32.gmra.mxu0 %v2195
        %v2259 = vpop.f32.mrf.mxu0
        %v2260 = vadd.f32 0.0, %v2259
        %2261 = vmatmul.f32.gmra.mxu0 %v2198
        %v2262 = vpop.f32.mrf.mxu0
        %v2263 = vadd.f32 0.0, %v2262
        %2264 = vmatmul.f32.gmra.mxu0 %v2201
        %v2265 = vpop.f32.mrf.mxu0
        %v2266 = vadd.f32 0.0, %v2265
        %2267 = vmatmul.f32.gmra.mxu0 %v2204
        %v2268 = vpop.f32.mrf.mxu0
        %v2269 = vadd.f32 0.0, %v2268
        %2270 = vmatmul.f32.gmra.mxu0 %v2207
        %v2271 = vpop.f32.mrf.mxu0
        %v2272 = vadd.f32 0.0, %v2271
        %2273 = vdwg.mxu0
        %v2275 = vsel %vm2047, %v1999, 0
        %v2278 = vsel %vm2047, %v2000, 0
        %v2281 = vsel %vm2047, %v2001, 0
        %v2284 = vsel %vm2047, %v2002, 0
        %v2287 = vsel %vm2047, %v2003, 0
        %v2290 = vsel %vm2047, %v2004, 0
        %v2293 = vsel %vm2047, %v2005, 0
        %v2296 = vsel %vm2047, %v2006, 0
        %v2299 = vsel %vm2047, %v2007, 0
        %v2302 = vsel %vm2047, %v2008, 0
        %v2305 = vsel %vm2047, %v2009, 0
        %v2308 = vsel %vm2047, %v2010, 0
        %v2311 = vsel %vm2047, %v2011, 0
        %v2314 = vsel %vm2047, %v2012, 0
        %v2317 = vsel %vm2047, %v2013, 0
        %v2320 = vsel %vm2047, %v2014, 0
        %2322 = vmatpush.msra.mxu0 0.0
        %2323 = vmatpush.msra.mxu0 0.0
        %2324 = vmatpush.msra.mxu0 0.0
        %2325 = vmatpush.msra.mxu0 0.0
        %2326 = vmatpush.msra.mxu0 0.0
        %2327 = vmatpush.msra.mxu0 0.0
        %2328 = vmatpush.msra.mxu0 0.0
        %2329 = vmatpush.msra.mxu0 0.0
        %2330 = vmatpush.msra.mxu0 0.0
        %2331 = vmatpush.msra.mxu0 0.0
        %2332 = vmatpush.msra.mxu0 0.0
        %2333 = vmatpush.msra.mxu0 0.0
        %2334 = vmatpush.msra.mxu0 %v1882
        %2335 = vmatpush.msra.mxu0 %v1881
        %2336 = vmatpush.msra.mxu0 %v1880
        %2337 = vmatpush.msra.mxu0 %v1879
        %2338 = vmatmul.f32.gmra.mxu0 %v2275
        %v2339 = vpop.f32.mrf.mxu0
        %v2340 = vadd.f32 0.0, %v2339
        %2341 = vmatmul.f32.gmra.mxu0 %v2278
        %v2342 = vpop.f32.mrf.mxu0
        %v2343 = vadd.f32 0.0, %v2342
        %2344 = vmatmul.f32.gmra.mxu0 %v2281
        %v2345 = vpop.f32.mrf.mxu0
        %v2346 = vadd.f32 0.0, %v2345
        %2347 = vmatmul.f32.gmra.mxu0 %v2284
        %v2348 = vpop.f32.mrf.mxu0
        %v2349 = vadd.f32 0.0, %v2348
        %2350 = vmatmul.f32.gmra.mxu0 %v2287
        %v2351 = vpop.f32.mrf.mxu0
        %v2352 = vadd.f32 0.0, %v2351
        %2353 = vmatmul.f32.gmra.mxu0 %v2290
        %v2354 = vpop.f32.mrf.mxu0
        %v2355 = vadd.f32 0.0, %v2354
        %2356 = vmatmul.f32.gmra.mxu0 %v2293
        %v2357 = vpop.f32.mrf.mxu0
        %v2358 = vadd.f32 0.0, %v2357
        %2359 = vmatmul.f32.gmra.mxu0 %v2296
        %v2360 = vpop.f32.mrf.mxu0
        %v2361 = vadd.f32 0.0, %v2360
        %2362 = vmatmul.f32.gmra.mxu0 %v2299
        %v2363 = vpop.f32.mrf.mxu0
        %v2364 = vadd.f32 0.0, %v2363
        %2365 = vmatmul.f32.gmra.mxu0 %v2302
        %v2366 = vpop.f32.mrf.mxu0
        %v2367 = vadd.f32 0.0, %v2366
        %2368 = vmatmul.f32.gmra.mxu0 %v2305
        %v2369 = vpop.f32.mrf.mxu0
        %v2370 = vadd.f32 0.0, %v2369
        %2371 = vmatmul.f32.gmra.mxu0 %v2308
        %v2372 = vpop.f32.mrf.mxu0
        %v2373 = vadd.f32 0.0, %v2372
        %2374 = vmatmul.f32.gmra.mxu0 %v2311
        %v2375 = vpop.f32.mrf.mxu0
        %v2376 = vadd.f32 0.0, %v2375
        %2377 = vmatmul.f32.gmra.mxu0 %v2314
        %v2378 = vpop.f32.mrf.mxu0
        %v2379 = vadd.f32 0.0, %v2378
        %2380 = vmatmul.f32.gmra.mxu0 %v2317
        %v2381 = vpop.f32.mrf.mxu0
        %v2382 = vadd.f32 0.0, %v2381
        %2383 = vmatmul.f32.gmra.mxu0 %v2320
        %v2384 = vpop.f32.mrf.mxu0
        %v2385 = vadd.f32 0.0, %v2384
        %2386 = vdwg.mxu0
        %v2388 = vsel %vm2047, %v2031, 0
        %v2391 = vsel %vm2047, %v2032, 0
        %v2394 = vsel %vm2047, %v2033, 0
        %v2397 = vsel %vm2047, %v2034, 0
        %v2400 = vsel %vm2047, %v2035, 0
        %v2403 = vsel %vm2047, %v2036, 0
        %v2406 = vsel %vm2047, %v2037, 0
        %v2409 = vsel %vm2047, %v2038, 0
        %v2412 = vsel %vm2047, %v2039, 0
        %v2415 = vsel %vm2047, %v2040, 0
        %v2418 = vsel %vm2047, %v2041, 0
        %v2421 = vsel %vm2047, %v2042, 0
        %v2424 = vsel %vm2047, %v2043, 0
        %v2427 = vsel %vm2047, %v2044, 0
        %v2430 = vsel %vm2047, %v2045, 0
        %v2433 = vsel %vm2047, %v2046, 0
        %2435 = vmatpush.msra.mxu0 0.0
        %2436 = vmatpush.msra.mxu0 0.0
        %2437 = vmatpush.msra.mxu0 0.0
        %2438 = vmatpush.msra.mxu0 0.0
        %2439 = vmatpush.msra.mxu0 0.0
        %2440 = vmatpush.msra.mxu0 0.0
        %2441 = vmatpush.msra.mxu0 0.0
        %2442 = vmatpush.msra.mxu0 0.0
        %2443 = vmatpush.msra.mxu0 0.0
        %2444 = vmatpush.msra.mxu0 0.0
        %2445 = vmatpush.msra.mxu0 0.0
        %2446 = vmatpush.msra.mxu0 0.0
        %2447 = vmatpush.msra.mxu0 %v1886
        %2448 = vmatpush.msra.mxu0 %v1885
        %2449 = vmatpush.msra.mxu0 %v1884
        %2450 = vmatpush.msra.mxu0 %v1883
        %2451 = vmatmul.f32.gmra.mxu0 %v2388
        %v2452 = vpop.f32.mrf.mxu0
        %v2453 = vadd.f32 0.0, %v2452
        %2454 = vmatmul.f32.gmra.mxu0 %v2391
        %v2455 = vpop.f32.mrf.mxu0
        %v2456 = vadd.f32 0.0, %v2455
        %2457 = vmatmul.f32.gmra.mxu0 %v2394
        %v2458 = vpop.f32.mrf.mxu0
        %v2459 = vadd.f32 0.0, %v2458
        %2460 = vmatmul.f32.gmra.mxu0 %v2397
        %v2461 = vpop.f32.mrf.mxu0
        %v2462 = vadd.f32 0.0, %v2461
        %2463 = vmatmul.f32.gmra.mxu0 %v2400
        %v2464 = vpop.f32.mrf.mxu0
        %v2465 = vadd.f32 0.0, %v2464
        %2466 = vmatmul.f32.gmra.mxu0 %v2403
        %v2467 = vpop.f32.mrf.mxu0
        %v2468 = vadd.f32 0.0, %v2467
        %2469 = vmatmul.f32.gmra.mxu0 %v2406
        %v2470 = vpop.f32.mrf.mxu0
        %v2471 = vadd.f32 0.0, %v2470
        %2472 = vmatmul.f32.gmra.mxu0 %v2409
        %v2473 = vpop.f32.mrf.mxu0
        %v2474 = vadd.f32 0.0, %v2473
        %2475 = vmatmul.f32.gmra.mxu0 %v2412
        %v2476 = vpop.f32.mrf.mxu0
        %v2477 = vadd.f32 0.0, %v2476
        %2478 = vmatmul.f32.gmra.mxu0 %v2415
        %v2479 = vpop.f32.mrf.mxu0
        %v2480 = vadd.f32 0.0, %v2479
        %2481 = vmatmul.f32.gmra.mxu0 %v2418
        %v2482 = vpop.f32.mrf.mxu0
        %v2483 = vadd.f32 0.0, %v2482
        %2484 = vmatmul.f32.gmra.mxu0 %v2421
        %v2485 = vpop.f32.mrf.mxu0
        %v2486 = vadd.f32 0.0, %v2485
        %2487 = vmatmul.f32.gmra.mxu0 %v2424
        %v2488 = vpop.f32.mrf.mxu0
        %v2489 = vadd.f32 0.0, %v2488
        %2490 = vmatmul.f32.gmra.mxu0 %v2427
        %v2491 = vpop.f32.mrf.mxu0
        %v2492 = vadd.f32 0.0, %v2491
        %2493 = vmatmul.f32.gmra.mxu0 %v2430
        %v2494 = vpop.f32.mrf.mxu0
        %v2495 = vadd.f32 0.0, %v2494
        %2496 = vmatmul.f32.gmra.mxu0 %v2433
        %v2497 = vpop.f32.mrf.mxu0
        %v2498 = vadd.f32 0.0, %v2497
        %2499 = vdwg.mxu0
        %v2500 = vmul.f32 %v2114, 0.17677669
        %v2501 = vmul.f32 %v2117, 0.17677669
        %v2502 = vmul.f32 %v2120, 0.17677669
        %v2503 = vmul.f32 %v2123, 0.17677669
        %v2504 = vmul.f32 %v2126, 0.17677669
        %v2505 = vmul.f32 %v2129, 0.17677669
        %v2506 = vmul.f32 %v2132, 0.17677669
        %v2507 = vmul.f32 %v2135, 0.17677669
        %v2508 = vmul.f32 %v2138, 0.17677669
        %v2509 = vmul.f32 %v2141, 0.17677669
        %v2510 = vmul.f32 %v2144, 0.17677669
        %v2511 = vmul.f32 %v2147, 0.17677669
        %v2512 = vmul.f32 %v2150, 0.17677669
        %v2513 = vmul.f32 %v2153, 0.17677669
        %v2514 = vmul.f32 %v2156, 0.17677669
        %v2515 = vmul.f32 %v2159, 0.17677669
        %v2516 = vmul.f32 %v2227, 0.17677669
        %v2517 = vmul.f32 %v2230, 0.17677669
        %v2518 = vmul.f32 %v2233, 0.17677669
        %v2519 = vmul.f32 %v2236, 0.17677669
        %v2520 = vmul.f32 %v2239, 0.17677669
        %v2521 = vmul.f32 %v2242, 0.17677669
        %v2522 = vmul.f32 %v2245, 0.17677669
        %v2523 = vmul.f32 %v2248, 0.17677669
        %v2524 = vmul.f32 %v2251, 0.17677669
        %v2525 = vmul.f32 %v2254, 0.17677669
        %v2526 = vmul.f32 %v2257, 0.17677669
        %v2527 = vmul.f32 %v2260, 0.17677669
        %v2528 = vmul.f32 %v2263, 0.17677669
        %v2529 = vmul.f32 %v2266, 0.17677669
        %v2530 = vmul.f32 %v2269, 0.17677669
        %v2531 = vmul.f32 %v2272, 0.17677669
        %v2532 = vmul.f32 %v2340, 0.17677669
        %v2533 = vmul.f32 %v2343, 0.17677669
        %v2534 = vmul.f32 %v2346, 0.17677669
        %v2535 = vmul.f32 %v2349, 0.17677669
        %v2536 = vmul.f32 %v2352, 0.17677669
        %v2537 = vmul.f32 %v2355, 0.17677669
        %v2538 = vmul.f32 %v2358, 0.17677669
        %v2539 = vmul.f32 %v2361, 0.17677669
        %v2540 = vmul.f32 %v2364, 0.17677669
        %v2541 = vmul.f32 %v2367, 0.17677669
        %v2542 = vmul.f32 %v2370, 0.17677669
        %v2543 = vmul.f32 %v2373, 0.17677669
        %v2544 = vmul.f32 %v2376, 0.17677669
        %v2545 = vmul.f32 %v2379, 0.17677669
        %v2546 = vmul.f32 %v2382, 0.17677669
        %v2547 = vmul.f32 %v2385, 0.17677669
        %v2548 = vmul.f32 %v2453, 0.17677669
        %v2549 = vmul.f32 %v2456, 0.17677669
        %v2550 = vmul.f32 %v2459, 0.17677669
        %v2551 = vmul.f32 %v2462, 0.17677669
        %v2552 = vmul.f32 %v2465, 0.17677669
        %v2553 = vmul.f32 %v2468, 0.17677669
        %v2554 = vmul.f32 %v2471, 0.17677669
        %v2555 = vmul.f32 %v2474, 0.17677669
        %v2556 = vmul.f32 %v2477, 0.17677669
        %v2557 = vmul.f32 %v2480, 0.17677669
        %v2558 = vmul.f32 %v2483, 0.17677669
        %v2559 = vmul.f32 %v2486, 0.17677669
        %v2560 = vmul.f32 %v2489, 0.17677669
        %v2561 = vmul.f32 %v2492, 0.17677669
        %v2562 = vmul.f32 %v2495, 0.17677669
        %v2563 = vmul.f32 %v2498, 0.17677669
        %2564 = vmax.xlane.f32.xlu0 %v2500
        %v2565 = vpop.xlane.xlu0 %2564
        %2566 = vmax.xlane.f32.xlu0 %v2501
        %v2567 = vpop.xlane.xlu0 %2566
        %2568 = vmax.xlane.f32.xlu0 %v2502
        %v2569 = vpop.xlane.xlu0 %2568
        %2570 = vmax.xlane.f32.xlu0 %v2503
        %v2571 = vpop.xlane.xlu0 %2570
        %2572 = vmax.xlane.f32.xlu0 %v2504
        %v2573 = vpop.xlane.xlu0 %2572
        %2574 = vmax.xlane.f32.xlu0 %v2505
        %v2575 = vpop.xlane.xlu0 %2574
        %2576 = vmax.xlane.f32.xlu0 %v2506
        %v2577 = vpop.xlane.xlu0 %2576
        %2578 = vmax.xlane.f32.xlu0 %v2507
        %v2579 = vpop.xlane.xlu0 %2578
        %2580 = vmax.xlane.f32.xlu0 %v2508
        %v2581 = vpop.xlane.xlu0 %2580
        %2582 = vmax.xlane.f32.xlu0 %v2509
        %v2583 = vpop.xlane.xlu0 %2582
        %2584 = vmax.xlane.f32.xlu0 %v2510
        %v2585 = vpop.xlane.xlu0 %2584
        %2586 = vmax.xlane.f32.xlu0 %v2511
        %v2587 = vpop.xlane.xlu0 %2586
        %2588 = vmax.xlane.f32.xlu0 %v2512
        %v2589 = vpop.xlane.xlu0 %2588
        %2590 = vmax.xlane.f32.xlu0 %v2513
        %v2591 = vpop.xlane.xlu0 %2590
        %2592 = vmax.xlane.f32.xlu0 %v2514
        %v2593 = vpop.xlane.xlu0 %2592
        %2594 = vmax.xlane.f32.xlu0 %v2515
        %v2595 = vpop.xlane.xlu0 %2594
        %2596 = vmax.xlane.f32.xlu0 %v2516
        %v2597 = vpop.xlane.xlu0 %2596
        %2598 = vmax.xlane.f32.xlu0 %v2517
        %v2599 = vpop.xlane.xlu0 %2598
        %2600 = vmax.xlane.f32.xlu0 %v2518
        %v2601 = vpop.xlane.xlu0 %2600
        %2602 = vmax.xlane.f32.xlu0 %v2519
        %v2603 = vpop.xlane.xlu0 %2602
        %2604 = vmax.xlane.f32.xlu0 %v2520
        %v2605 = vpop.xlane.xlu0 %2604
        %2606 = vmax.xlane.f32.xlu0 %v2521
        %v2607 = vpop.xlane.xlu0 %2606
        %2608 = vmax.xlane.f32.xlu0 %v2522
        %v2609 = vpop.xlane.xlu0 %2608
        %2610 = vmax.xlane.f32.xlu0 %v2523
        %v2611 = vpop.xlane.xlu0 %2610
        %2612 = vmax.xlane.f32.xlu0 %v2524
        %v2613 = vpop.xlane.xlu0 %2612
        %2614 = vmax.xlane.f32.xlu0 %v2525
        %v2615 = vpop.xlane.xlu0 %2614
        %2616 = vmax.xlane.f32.xlu0 %v2526
        %v2617 = vpop.xlane.xlu0 %2616
        %2618 = vmax.xlane.f32.xlu0 %v2527
        %v2619 = vpop.xlane.xlu0 %2618
        %2620 = vmax.xlane.f32.xlu0 %v2528
        %v2621 = vpop.xlane.xlu0 %2620
        %2622 = vmax.xlane.f32.xlu0 %v2529
        %v2623 = vpop.xlane.xlu0 %2622
        %2624 = vmax.xlane.f32.xlu0 %v2530
        %v2625 = vpop.xlane.xlu0 %2624
        %2626 = vmax.xlane.f32.xlu0 %v2531
        %v2627 = vpop.xlane.xlu0 %2626
        %2628 = vmax.xlane.f32.xlu0 %v2532
        %v2629 = vpop.xlane.xlu0 %2628
        %2630 = vmax.xlane.f32.xlu0 %v2533
        %v2631 = vpop.xlane.xlu0 %2630
        %2632 = vmax.xlane.f32.xlu0 %v2534
        %v2633 = vpop.xlane.xlu0 %2632
        %2634 = vmax.xlane.f32.xlu0 %v2535
        %v2635 = vpop.xlane.xlu0 %2634
        %2636 = vmax.xlane.f32.xlu0 %v2536
        %v2637 = vpop.xlane.xlu0 %2636
        %2638 = vmax.xlane.f32.xlu0 %v2537
        %v2639 = vpop.xlane.xlu0 %2638
        %2640 = vmax.xlane.f32.xlu0 %v2538
        %v2641 = vpop.xlane.xlu0 %2640
        %2642 = vmax.xlane.f32.xlu0 %v2539
        %v2643 = vpop.xlane.xlu0 %2642
        %2644 = vmax.xlane.f32.xlu0 %v2540
        %v2645 = vpop.xlane.xlu0 %2644
        %2646 = vmax.xlane.f32.xlu0 %v2541
        %v2647 = vpop.xlane.xlu0 %2646
        %2648 = vmax.xlane.f32.xlu0 %v2542
        %v2649 = vpop.xlane.xlu0 %2648
        %2650 = vmax.xlane.f32.xlu0 %v2543
        %v2651 = vpop.xlane.xlu0 %2650
        %2652 = vmax.xlane.f32.xlu0 %v2544
        %v2653 = vpop.xlane.xlu0 %2652
        %2654 = vmax.xlane.f32.xlu0 %v2545
        %v2655 = vpop.xlane.xlu0 %2654
        %2656 = vmax.xlane.f32.xlu0 %v2546
        %v2657 = vpop.xlane.xlu0 %2656
        %2658 = vmax.xlane.f32.xlu0 %v2547
        %v2659 = vpop.xlane.xlu0 %2658
        %2660 = vmax.xlane.f32.xlu0 %v2548
        %v2661 = vpop.xlane.xlu0 %2660
        %2662 = vmax.xlane.f32.xlu0 %v2549
        %v2663 = vpop.xlane.xlu0 %2662
        %2664 = vmax.xlane.f32.xlu0 %v2550
        %v2665 = vpop.xlane.xlu0 %2664
        %2666 = vmax.xlane.f32.xlu0 %v2551
        %v2667 = vpop.xlane.xlu0 %2666
        %2668 = vmax.xlane.f32.xlu0 %v2552
        %v2669 = vpop.xlane.xlu0 %2668
        %2670 = vmax.xlane.f32.xlu0 %v2553
        %v2671 = vpop.xlane.xlu0 %2670
        %2672 = vmax.xlane.f32.xlu0 %v2554
        %v2673 = vpop.xlane.xlu0 %2672
        %2674 = vmax.xlane.f32.xlu0 %v2555
        %v2675 = vpop.xlane.xlu0 %2674
        %2676 = vmax.xlane.f32.xlu0 %v2556
        %v2677 = vpop.xlane.xlu0 %2676
        %2678 = vmax.xlane.f32.xlu0 %v2557
        %v2679 = vpop.xlane.xlu0 %2678
        %2680 = vmax.xlane.f32.xlu0 %v2558
        %v2681 = vpop.xlane.xlu0 %2680
        %2682 = vmax.xlane.f32.xlu0 %v2559
        %v2683 = vpop.xlane.xlu0 %2682
        %2684 = vmax.xlane.f32.xlu0 %v2560
        %v2685 = vpop.xlane.xlu0 %2684
        %2686 = vmax.xlane.f32.xlu0 %v2561
        %v2687 = vpop.xlane.xlu0 %2686
        %2688 = vmax.xlane.f32.xlu0 %v2562
        %v2689 = vpop.xlane.xlu0 %2688
        %2690 = vmax.xlane.f32.xlu0 %v2563
        %v2691 = vpop.xlane.xlu0 %2690
        %v2692 = vsub.f32 %v2500, %v2565
        %v2693 = vsub.f32 %v2501, %v2567
        %v2694 = vsub.f32 %v2502, %v2569
        %v2695 = vsub.f32 %v2503, %v2571
        %v2696 = vsub.f32 %v2504, %v2573
        %v2697 = vsub.f32 %v2505, %v2575
        %v2698 = vsub.f32 %v2506, %v2577
        %v2699 = vsub.f32 %v2507, %v2579
        %v2700 = vsub.f32 %v2508, %v2581
        %v2701 = vsub.f32 %v2509, %v2583
        %v2702 = vsub.f32 %v2510, %v2585
        %v2703 = vsub.f32 %v2511, %v2587
        %v2704 = vsub.f32 %v2512, %v2589
        %v2705 = vsub.f32 %v2513, %v2591
        %v2706 = vsub.f32 %v2514, %v2593
        %v2707 = vsub.f32 %v2515, %v2595
        %v2708 = vsub.f32 %v2516, %v2597
        %v2709 = vsub.f32 %v2517, %v2599
        %v2710 = vsub.f32 %v2518, %v2601
        %v2711 = vsub.f32 %v2519, %v2603
        %v2712 = vsub.f32 %v2520, %v2605
        %v2713 = vsub.f32 %v2521, %v2607
        %v2714 = vsub.f32 %v2522, %v2609
        %v2715 = vsub.f32 %v2523, %v2611
        %v2716 = vsub.f32 %v2524, %v2613
        %v2717 = vsub.f32 %v2525, %v2615
        %v2718 = vsub.f32 %v2526, %v2617
        %v2719 = vsub.f32 %v2527, %v2619
        %v2720 = vsub.f32 %v2528, %v2621
        %v2721 = vsub.f32 %v2529, %v2623
        %v2722 = vsub.f32 %v2530, %v2625
        %v2723 = vsub.f32 %v2531, %v2627
        %v2724 = vsub.f32 %v2532, %v2629
        %v2725 = vsub.f32 %v2533, %v2631
        %v2726 = vsub.f32 %v2534, %v2633
        %v2727 = vsub.f32 %v2535, %v2635
        %v2728 = vsub.f32 %v2536, %v2637
        %v2729 = vsub.f32 %v2537, %v2639
        %v2730 = vsub.f32 %v2538, %v2641
        %v2731 = vsub.f32 %v2539, %v2643
        %v2732 = vsub.f32 %v2540, %v2645
        %v2733 = vsub.f32 %v2541, %v2647
        %v2734 = vsub.f32 %v2542, %v2649
        %v2735 = vsub.f32 %v2543, %v2651
        %v2736 = vsub.f32 %v2544, %v2653
        %v2737 = vsub.f32 %v2545, %v2655
        %v2738 = vsub.f32 %v2546, %v2657
        %v2739 = vsub.f32 %v2547, %v2659
        %v2740 = vsub.f32 %v2548, %v2661
        %v2741 = vsub.f32 %v2549, %v2663
        %v2742 = vsub.f32 %v2550, %v2665
        %v2743 = vsub.f32 %v2551, %v2667
        %v2744 = vsub.f32 %v2552, %v2669
        %v2745 = vsub.f32 %v2553, %v2671
        %v2746 = vsub.f32 %v2554, %v2673
        %v2747 = vsub.f32 %v2555, %v2675
        %v2748 = vsub.f32 %v2556, %v2677
        %v2749 = vsub.f32 %v2557, %v2679
        %v2750 = vsub.f32 %v2558, %v2681
        %v2751 = vsub.f32 %v2559, %v2683
        %v2752 = vsub.f32 %v2560, %v2685
        %v2753 = vsub.f32 %v2561, %v2687
        %v2754 = vsub.f32 %v2562, %v2689
        %v2755 = vsub.f32 %v2563, %v2691
        %v2756 = vmul.f32 %v2692, 1.442695
        %v2757 = vpow.pop %v2756
        %v2758 = vmul.f32 %v2693, 1.442695
        %v2759 = vpow.pop %v2758
        %v2760 = vmul.f32 %v2694, 1.442695
        %v2761 = vpow.pop %v2760
        %v2762 = vmul.f32 %v2695, 1.442695
        %v2763 = vpow.pop %v2762
        %v2764 = vmul.f32 %v2696, 1.442695
        %v2765 = vpow.pop %v2764
        %v2766 = vmul.f32 %v2697, 1.442695
        %v2767 = vpow.pop %v2766
        %v2768 = vmul.f32 %v2698, 1.442695
        %v2769 = vpow.pop %v2768
        %v2770 = vmul.f32 %v2699, 1.442695
        %v2771 = vpow.pop %v2770
        %v2772 = vmul.f32 %v2700, 1.442695
        %v2773 = vpow.pop %v2772
        %v2774 = vmul.f32 %v2701, 1.442695
        %v2775 = vpow.pop %v2774
        %v2776 = vmul.f32 %v2702, 1.442695
        %v2777 = vpow.pop %v2776
        %v2778 = vmul.f32 %v2703, 1.442695
        %v2779 = vpow.pop %v2778
        %v2780 = vmul.f32 %v2704, 1.442695
        %v2781 = vpow.pop %v2780
        %v2782 = vmul.f32 %v2705, 1.442695
        %v2783 = vpow.pop %v2782
        %v2784 = vmul.f32 %v2706, 1.442695
        %v2785 = vpow.pop %v2784
        %v2786 = vmul.f32 %v2707, 1.442695
        %v2787 = vpow.pop %v2786
        %v2788 = vmul.f32 %v2708, 1.442695
        %v2789 = vpow.pop %v2788
        %v2790 = vmul.f32 %v2709, 1.442695
        %v2791 = vpow.pop %v2790
        %v2792 = vmul.f32 %v2710, 1.442695
        %v2793 = vpow.pop %v2792
        %v2794 = vmul.f32 %v2711, 1.442695
        %v2795 = vpow.pop %v2794
        %v2796 = vmul.f32 %v2712, 1.442695
        %v2797 = vpow.pop %v2796
        %v2798 = vmul.f32 %v2713, 1.442695
        %v2799 = vpow.pop %v2798
        %v2800 = vmul.f32 %v2714, 1.442695
        %v2801 = vpow.pop %v2800
        %v2802 = vmul.f32 %v2715, 1.442695
        %v2803 = vpow.pop %v2802
        %v2804 = vmul.f32 %v2716, 1.442695
        %v2805 = vpow.pop %v2804
        %v2806 = vmul.f32 %v2717, 1.442695
        %v2807 = vpow.pop %v2806
        %v2808 = vmul.f32 %v2718, 1.442695
        %v2809 = vpow.pop %v2808
        %v2810 = vmul.f32 %v2719, 1.442695
        %v2811 = vpow.pop %v2810
        %v2812 = vmul.f32 %v2720, 1.442695
        %v2813 = vpow.pop %v2812
        %v2814 = vmul.f32 %v2721, 1.442695
        %v2815 = vpow.pop %v2814
        %v2816 = vmul.f32 %v2722, 1.442695
        %v2817 = vpow.pop %v2816
        %v2818 = vmul.f32 %v2723, 1.442695
        %v2819 = vpow.pop %v2818
        %v2820 = vmul.f32 %v2724, 1.442695
        %v2821 = vpow.pop %v2820
        %v2822 = vmul.f32 %v2725, 1.442695
        %v2823 = vpow.pop %v2822
        %v2824 = vmul.f32 %v2726, 1.442695
        %v2825 = vpow.pop %v2824
        %v2826 = vmul.f32 %v2727, 1.442695
        %v2827 = vpow.pop %v2826
        %v2828 = vmul.f32 %v2728, 1.442695
        %v2829 = vpow.pop %v2828
        %v2830 = vmul.f32 %v2729, 1.442695
        %v2831 = vpow.pop %v2830
        %v2832 = vmul.f32 %v2730, 1.442695
        %v2833 = vpow.pop %v2832
        %v2834 = vmul.f32 %v2731, 1.442695
        %v2835 = vpow.pop %v2834
        %v2836 = vmul.f32 %v2732, 1.442695
        %v2837 = vpow.pop %v2836
        %v2838 = vmul.f32 %v2733, 1.442695
        %v2839 = vpow.pop %v2838
        %v2840 = vmul.f32 %v2734, 1.442695
        %v2841 = vpow.pop %v2840
        %v2842 = vmul.f32 %v2735, 1.442695
        %v2843 = vpow.pop %v2842
        %v2844 = vmul.f32 %v2736, 1.442695
        %v2845 = vpow.pop %v2844
        %v2846 = vmul.f32 %v2737, 1.442695
        %v2847 = vpow.pop %v2846
        %v2848 = vmul.f32 %v2738, 1.442695
        %v2849 = vpow.pop %v2848
        %v2850 = vmul.f32 %v2739, 1.442695
        %v2851 = vpow.pop %v2850
        %v2852 = vmul.f32 %v2740, 1.442695
        %v2853 = vpow.pop %v2852
        %v2854 = vmul.f32 %v2741, 1.442695
        %v2855 = vpow.pop %v2854
        %v2856 = vmul.f32 %v2742, 1.442695
        %v2857 = vpow.pop %v2856
        %v2858 = vmul.f32 %v2743, 1.442695
        %v2859 = vpow.pop %v2858
        %v2860 = vmul.f32 %v2744, 1.442695
        %v2861 = vpow.pop %v2860
        %v2862 = vmul.f32 %v2745, 1.442695
        %v2863 = vpow.pop %v2862
        %v2864 = vmul.f32 %v2746, 1.442695
        %v2865 = vpow.pop %v2864
        %v2866 = vmul.f32 %v2747, 1.442695
        %v2867 = vpow.pop %v2866
        %v2868 = vmul.f32 %v2748, 1.442695
        %v2869 = vpow.pop %v2868
        %v2870 = vmul.f32 %v2749, 1.442695
        %v2871 = vpow.pop %v2870
        %v2872 = vmul.f32 %v2750, 1.442695
        %v2873 = vpow.pop %v2872
        %v2874 = vmul.f32 %v2751, 1.442695
        %v2875 = vpow.pop %v2874
        %v2876 = vmul.f32 %v2752, 1.442695
        %v2877 = vpow.pop %v2876
        %v2878 = vmul.f32 %v2753, 1.442695
        %v2879 = vpow.pop %v2878
        %v2880 = vmul.f32 %v2754, 1.442695
        %v2881 = vpow.pop %v2880
        %v2882 = vmul.f32 %v2755, 1.442695
        %v2883 = vpow.pop %v2882
        %2884 = vadd.xlane.f32.xlu0 %v2757
        %v2885 = vpop.xlane.xlu0 %2884
        %2886 = vadd.xlane.f32.xlu0 %v2759
        %v2887 = vpop.xlane.xlu0 %2886
        %2888 = vadd.xlane.f32.xlu0 %v2761
        %v2889 = vpop.xlane.xlu0 %2888
        %2890 = vadd.xlane.f32.xlu0 %v2763
        %v2891 = vpop.xlane.xlu0 %2890
        %2892 = vadd.xlane.f32.xlu0 %v2765
        %v2893 = vpop.xlane.xlu0 %2892
        %2894 = vadd.xlane.f32.xlu0 %v2767
        %v2895 = vpop.xlane.xlu0 %2894
        %2896 = vadd.xlane.f32.xlu0 %v2769
        %v2897 = vpop.xlane.xlu0 %2896
        %2898 = vadd.xlane.f32.xlu0 %v2771
        %v2899 = vpop.xlane.xlu0 %2898
        %2900 = vadd.xlane.f32.xlu0 %v2773
        %v2901 = vpop.xlane.xlu0 %2900
        %2902 = vadd.xlane.f32.xlu0 %v2775
        %v2903 = vpop.xlane.xlu0 %2902
        %2904 = vadd.xlane.f32.xlu0 %v2777
        %v2905 = vpop.xlane.xlu0 %2904
        %2906 = vadd.xlane.f32.xlu0 %v2779
        %v2907 = vpop.xlane.xlu0 %2906
        %2908 = vadd.xlane.f32.xlu0 %v2781
        %v2909 = vpop.xlane.xlu0 %2908
        %2910 = vadd.xlane.f32.xlu0 %v2783
        %v2911 = vpop.xlane.xlu0 %2910
        %2912 = vadd.xlane.f32.xlu0 %v2785
        %v2913 = vpop.xlane.xlu0 %2912
        %2914 = vadd.xlane.f32.xlu0 %v2787
        %v2915 = vpop.xlane.xlu0 %2914
        %2916 = vadd.xlane.f32.xlu0 %v2789
        %v2917 = vpop.xlane.xlu0 %2916
        %2918 = vadd.xlane.f32.xlu0 %v2791
        %v2919 = vpop.xlane.xlu0 %2918
        %2920 = vadd.xlane.f32.xlu0 %v2793
        %v2921 = vpop.xlane.xlu0 %2920
        %2922 = vadd.xlane.f32.xlu0 %v2795
        %v2923 = vpop.xlane.xlu0 %2922
        %2924 = vadd.xlane.f32.xlu0 %v2797
        %v2925 = vpop.xlane.xlu0 %2924
        %2926 = vadd.xlane.f32.xlu0 %v2799
        %v2927 = vpop.xlane.xlu0 %2926
        %2928 = vadd.xlane.f32.xlu0 %v2801
        %v2929 = vpop.xlane.xlu0 %2928
        %2930 = vadd.xlane.f32.xlu0 %v2803
        %v2931 = vpop.xlane.xlu0 %2930
        %2932 = vadd.xlane.f32.xlu0 %v2805
        %v2933 = vpop.xlane.xlu0 %2932
        %2934 = vadd.xlane.f32.xlu0 %v2807
        %v2935 = vpop.xlane.xlu0 %2934
        %2936 = vadd.xlane.f32.xlu0 %v2809
        %v2937 = vpop.xlane.xlu0 %2936
        %2938 = vadd.xlane.f32.xlu0 %v2811
        %v2939 = vpop.xlane.xlu0 %2938
        %2940 = vadd.xlane.f32.xlu0 %v2813
        %v2941 = vpop.xlane.xlu0 %2940
        %2942 = vadd.xlane.f32.xlu0 %v2815
        %v2943 = vpop.xlane.xlu0 %2942
        %2944 = vadd.xlane.f32.xlu0 %v2817
        %v2945 = vpop.xlane.xlu0 %2944
        %2946 = vadd.xlane.f32.xlu0 %v2819
        %v2947 = vpop.xlane.xlu0 %2946
        %2948 = vadd.xlane.f32.xlu0 %v2821
        %v2949 = vpop.xlane.xlu0 %2948
        %2950 = vadd.xlane.f32.xlu0 %v2823
        %v2951 = vpop.xlane.xlu0 %2950
        %2952 = vadd.xlane.f32.xlu0 %v2825
        %v2953 = vpop.xlane.xlu0 %2952
        %2954 = vadd.xlane.f32.xlu0 %v2827
        %v2955 = vpop.xlane.xlu0 %2954
        %2956 = vadd.xlane.f32.xlu0 %v2829
        %v2957 = vpop.xlane.xlu0 %2956
        %2958 = vadd.xlane.f32.xlu0 %v2831
        %v2959 = vpop.xlane.xlu0 %2958
        %2960 = vadd.xlane.f32.xlu0 %v2833
        %v2961 = vpop.xlane.xlu0 %2960
        %2962 = vadd.xlane.f32.xlu0 %v2835
        %v2963 = vpop.xlane.xlu0 %2962
        %2964 = vadd.xlane.f32.xlu0 %v2837
        %v2965 = vpop.xlane.xlu0 %2964
        %2966 = vadd.xlane.f32.xlu0 %v2839
        %v2967 = vpop.xlane.xlu0 %2966
        %2968 = vadd.xlane.f32.xlu0 %v2841
        %v2969 = vpop.xlane.xlu0 %2968
        %2970 = vadd.xlane.f32.xlu0 %v2843
        %v2971 = vpop.xlane.xlu0 %2970
        %2972 = vadd.xlane.f32.xlu0 %v2845
        %v2973 = vpop.xlane.xlu0 %2972
        %2974 = vadd.xlane.f32.xlu0 %v2847
        %v2975 = vpop.xlane.xlu0 %2974
        %2976 = vadd.xlane.f32.xlu0 %v2849
        %v2977 = vpop.xlane.xlu0 %2976
        %2978 = vadd.xlane.f32.xlu0 %v2851
        %v2979 = vpop.xlane.xlu0 %2978
        %2980 = vadd.xlane.f32.xlu0 %v2853
        %v2981 = vpop.xlane.xlu0 %2980
        %2982 = vadd.xlane.f32.xlu0 %v2855
        %v2983 = vpop.xlane.xlu0 %2982
        %2984 = vadd.xlane.f32.xlu0 %v2857
        %v2985 = vpop.xlane.xlu0 %2984
        %2986 = vadd.xlane.f32.xlu0 %v2859
        %v2987 = vpop.xlane.xlu0 %2986
        %2988 = vadd.xlane.f32.xlu0 %v2861
        %v2989 = vpop.xlane.xlu0 %2988
        %2990 = vadd.xlane.f32.xlu0 %v2863
        %v2991 = vpop.xlane.xlu0 %2990
        %2992 = vadd.xlane.f32.xlu0 %v2865
        %v2993 = vpop.xlane.xlu0 %2992
        %2994 = vadd.xlane.f32.xlu0 %v2867
        %v2995 = vpop.xlane.xlu0 %2994
        %2996 = vadd.xlane.f32.xlu0 %v2869
        %v2997 = vpop.xlane.xlu0 %2996
        %2998 = vadd.xlane.f32.xlu0 %v2871
        %v2999 = vpop.xlane.xlu0 %2998
        %3000 = vadd.xlane.f32.xlu0 %v2873
        %v3001 = vpop.xlane.xlu0 %3000
        %3002 = vadd.xlane.f32.xlu0 %v2875
        %v3003 = vpop.xlane.xlu0 %3002
        %3004 = vadd.xlane.f32.xlu0 %v2877
        %v3005 = vpop.xlane.xlu0 %3004
        %3006 = vadd.xlane.f32.xlu0 %v2879
        %v3007 = vpop.xlane.xlu0 %3006
        %3008 = vadd.xlane.f32.xlu0 %v2881
        %v3009 = vpop.xlane.xlu0 %3008
        %3010 = vadd.xlane.f32.xlu0 %v2883
        %v3011 = vpop.xlane.xlu0 %3010
        %v3012 = vrcp.pop %v2885
        %v3013 = vrcp.pop %v2887
        %v3014 = vrcp.pop %v2889
        %v3015 = vrcp.pop %v2891
        %v3016 = vrcp.pop %v2893
        %v3017 = vrcp.pop %v2895
        %v3018 = vrcp.pop %v2897
        %v3019 = vrcp.pop %v2899
        %v3020 = vrcp.pop %v2901
        %v3021 = vrcp.pop %v2903
        %v3022 = vrcp.pop %v2905
        %v3023 = vrcp.pop %v2907
        %v3024 = vrcp.pop %v2909
        %v3025 = vrcp.pop %v2911
        %v3026 = vrcp.pop %v2913
        %v3027 = vrcp.pop %v2915
        %v3028 = vrcp.pop %v2917
        %v3029 = vrcp.pop %v2919
        %v3030 = vrcp.pop %v2921
        %v3031 = vrcp.pop %v2923
        %v3032 = vrcp.pop %v2925
        %v3033 = vrcp.pop %v2927
        %v3034 = vrcp.pop %v2929
        %v3035 = vrcp.pop %v2931
        %v3036 = vrcp.pop %v2933
        %v3037 = vrcp.pop %v2935
        %v3038 = vrcp.pop %v2937
        %v3039 = vrcp.pop %v2939
        %v3040 = vrcp.pop %v2941
        %v3041 = vrcp.pop %v2943
        %v3042 = vrcp.pop %v2945
        %v3043 = vrcp.pop %v2947
        %v3044 = vrcp.pop %v2949
        %v3045 = vrcp.pop %v2951
        %v3046 = vrcp.pop %v2953
        %v3047 = vrcp.pop %v2955
        %v3048 = vrcp.pop %v2957
        %v3049 = vrcp.pop %v2959
        %v3050 = vrcp.pop %v2961
        %v3051 = vrcp.pop %v2963
        %v3052 = vrcp.pop %v2965
        %v3053 = vrcp.pop %v2967
        %v3054 = vrcp.pop %v2969
        %v3055 = vrcp.pop %v2971
        %v3056 = vrcp.pop %v2973
        %v3057 = vrcp.pop %v2975
        %v3058 = vrcp.pop %v2977
        %v3059 = vrcp.pop %v2979
        %v3060 = vrcp.pop %v2981
        %v3061 = vrcp.pop %v2983
        %v3062 = vrcp.pop %v2985
        %v3063 = vrcp.pop %v2987
        %v3064 = vrcp.pop %v2989
        %v3065 = vrcp.pop %v2991
        %v3066 = vrcp.pop %v2993
        %v3067 = vrcp.pop %v2995
        %v3068 = vrcp.pop %v2997
        %v3069 = vrcp.pop %v2999
        %v3070 = vrcp.pop %v3001
        %v3071 = vrcp.pop %v3003
        %v3072 = vrcp.pop %v3005
        %v3073 = vrcp.pop %v3007
        %v3074 = vrcp.pop %v3009
        %v3075 = vrcp.pop %v3011
        %v3076 = vmul.f32 %v2757, %v3012
        %v3077 = vmul.f32 %v2759, %v3013
        %v3078 = vmul.f32 %v2761, %v3014
        %v3079 = vmul.f32 %v2763, %v3015
        %v3080 = vmul.f32 %v2765, %v3016
        %v3081 = vmul.f32 %v2767, %v3017
        %v3082 = vmul.f32 %v2769, %v3018
        %v3083 = vmul.f32 %v2771, %v3019
        %v3084 = vmul.f32 %v2773, %v3020
        %v3085 = vmul.f32 %v2775, %v3021
        %v3086 = vmul.f32 %v2777, %v3022
        %v3087 = vmul.f32 %v2779, %v3023
        %v3088 = vmul.f32 %v2781, %v3024
        %v3089 = vmul.f32 %v2783, %v3025
        %v3090 = vmul.f32 %v2785, %v3026
        %v3091 = vmul.f32 %v2787, %v3027
        %v3092 = vmul.f32 %v2789, %v3028
        %v3093 = vmul.f32 %v2791, %v3029
        %v3094 = vmul.f32 %v2793, %v3030
        %v3095 = vmul.f32 %v2795, %v3031
        %v3096 = vmul.f32 %v2797, %v3032
        %v3097 = vmul.f32 %v2799, %v3033
        %v3098 = vmul.f32 %v2801, %v3034
        %v3099 = vmul.f32 %v2803, %v3035
        %v3100 = vmul.f32 %v2805, %v3036
        %v3101 = vmul.f32 %v2807, %v3037
        %v3102 = vmul.f32 %v2809, %v3038
        %v3103 = vmul.f32 %v2811, %v3039
        %v3104 = vmul.f32 %v2813, %v3040
        %v3105 = vmul.f32 %v2815, %v3041
        %v3106 = vmul.f32 %v2817, %v3042
        %v3107 = vmul.f32 %v2819, %v3043
        %v3108 = vmul.f32 %v2821, %v3044
        %v3109 = vmul.f32 %v2823, %v3045
        %v3110 = vmul.f32 %v2825, %v3046
        %v3111 = vmul.f32 %v2827, %v3047
        %v3112 = vmul.f32 %v2829, %v3048
        %v3113 = vmul.f32 %v2831, %v3049
        %v3114 = vmul.f32 %v2833, %v3050
        %v3115 = vmul.f32 %v2835, %v3051
        %v3116 = vmul.f32 %v2837, %v3052
        %v3117 = vmul.f32 %v2839, %v3053
        %v3118 = vmul.f32 %v2841, %v3054
        %v3119 = vmul.f32 %v2843, %v3055
        %v3120 = vmul.f32 %v2845, %v3056
        %v3121 = vmul.f32 %v2847, %v3057
        %v3122 = vmul.f32 %v2849, %v3058
        %v3123 = vmul.f32 %v2851, %v3059
        %v3124 = vmul.f32 %v2853, %v3060
        %v3125 = vmul.f32 %v2855, %v3061
        %v3126 = vmul.f32 %v2857, %v3062
        %v3127 = vmul.f32 %v2859, %v3063
        %v3128 = vmul.f32 %v2861, %v3064
        %v3129 = vmul.f32 %v2863, %v3065
        %v3130 = vmul.f32 %v2865, %v3066
        %v3131 = vmul.f32 %v2867, %v3067
        %v3132 = vmul.f32 %v2869, %v3068
        %v3133 = vmul.f32 %v2871, %v3069
        %v3134 = vmul.f32 %v2873, %v3070
        %v3135 = vmul.f32 %v2875, %v3071
        %v3136 = vmul.f32 %v2877, %v3072
        %v3137 = vmul.f32 %v2879, %v3073
        %v3138 = vmul.f32 %v2881, %v3074
        %v3139 = vmul.f32 %v2883, %v3075
        %3140 = vmatpush.xpose.msra.mxu0 0.0
        %3141 = vmatpush.xpose.msra.mxu0 0.0
        %3142 = vmatpush.xpose.msra.mxu0 0.0
        %3143 = vmatpush.xpose.msra.mxu0 0.0
        %3144 = vmatpush.xpose.msra.mxu0 0.0
        %3145 = vmatpush.xpose.msra.mxu0 0.0
        %3146 = vmatpush.xpose.msra.mxu0 0.0
        %3147 = vmatpush.xpose.msra.mxu0 0.0
        %3148 = vmatpush.xpose.msra.mxu0 0.0
        %3149 = vmatpush.xpose.msra.mxu0 0.0
        %3150 = vmatpush.xpose.msra.mxu0 0.0
        %3151 = vmatpush.xpose.msra.mxu0 0.0
        %3152 = vmatpush.xpose.msra.mxu0 %v1906
        %3153 = vmatpush.xpose.msra.mxu0 %v1905
        %3154 = vmatpush.xpose.msra.mxu0 %v1904
        %3155 = vmatpush.xpose.msra.mxu0 %v1903
        %3156 = vmatmul.f32.gmra.mxu0 %v3076
        %v3157 = vpop.f32.mrf.mxu0
        %v3158 = vadd.f32 0.0, %v3157
        %3159 = vmatmul.f32.gmra.mxu0 %v3077
        %v3160 = vpop.f32.mrf.mxu0
        %v3161 = vadd.f32 0.0, %v3160
        %3162 = vmatmul.f32.gmra.mxu0 %v3078
        %v3163 = vpop.f32.mrf.mxu0
        %v3164 = vadd.f32 0.0, %v3163
        %3165 = vmatmul.f32.gmra.mxu0 %v3079
        %v3166 = vpop.f32.mrf.mxu0
        %v3167 = vadd.f32 0.0, %v3166
        %3168 = vmatmul.f32.gmra.mxu0 %v3080
        %v3169 = vpop.f32.mrf.mxu0
        %v3170 = vadd.f32 0.0, %v3169
        %3171 = vmatmul.f32.gmra.mxu0 %v3081
        %v3172 = vpop.f32.mrf.mxu0
        %v3173 = vadd.f32 0.0, %v3172
        %3174 = vmatmul.f32.gmra.mxu0 %v3082
        %v3175 = vpop.f32.mrf.mxu0
        %v3176 = vadd.f32 0.0, %v3175
        %3177 = vmatmul.f32.gmra.mxu0 %v3083
        %v3178 = vpop.f32.mrf.mxu0
        %v3179 = vadd.f32 0.0, %v3178
        %3180 = vmatmul.f32.gmra.mxu0 %v3084
        %v3181 = vpop.f32.mrf.mxu0
        %v3182 = vadd.f32 0.0, %v3181
        %3183 = vmatmul.f32.gmra.mxu0 %v3085
        %v3184 = vpop.f32.mrf.mxu0
        %v3185 = vadd.f32 0.0, %v3184
        %3186 = vmatmul.f32.gmra.mxu0 %v3086
        %v3187 = vpop.f32.mrf.mxu0
        %v3188 = vadd.f32 0.0, %v3187
        %3189 = vmatmul.f32.gmra.mxu0 %v3087
        %v3190 = vpop.f32.mrf.mxu0
        %v3191 = vadd.f32 0.0, %v3190
        %3192 = vmatmul.f32.gmra.mxu0 %v3088
        %v3193 = vpop.f32.mrf.mxu0
        %v3194 = vadd.f32 0.0, %v3193
        %3195 = vmatmul.f32.gmra.mxu0 %v3089
        %v3196 = vpop.f32.mrf.mxu0
        %v3197 = vadd.f32 0.0, %v3196
        %3198 = vmatmul.f32.gmra.mxu0 %v3090
        %v3199 = vpop.f32.mrf.mxu0
        %v3200 = vadd.f32 0.0, %v3199
        %3201 = vmatmul.f32.gmra.mxu0 %v3091
        %v3202 = vpop.f32.mrf.mxu0
        %v3203 = vadd.f32 0.0, %v3202
        %3204 = vdwg.mxu0
        %3205 = vmatpush.xpose.msra.mxu0 0.0
        %3206 = vmatpush.xpose.msra.mxu0 0.0
        %3207 = vmatpush.xpose.msra.mxu0 0.0
        %3208 = vmatpush.xpose.msra.mxu0 0.0
        %3209 = vmatpush.xpose.msra.mxu0 0.0
        %3210 = vmatpush.xpose.msra.mxu0 0.0
        %3211 = vmatpush.xpose.msra.mxu0 0.0
        %3212 = vmatpush.xpose.msra.mxu0 0.0
        %3213 = vmatpush.xpose.msra.mxu0 0.0
        %3214 = vmatpush.xpose.msra.mxu0 0.0
        %3215 = vmatpush.xpose.msra.mxu0 0.0
        %3216 = vmatpush.xpose.msra.mxu0 0.0
        %3217 = vmatpush.xpose.msra.mxu0 %v1910
        %3218 = vmatpush.xpose.msra.mxu0 %v1909
        %3219 = vmatpush.xpose.msra.mxu0 %v1908
        %3220 = vmatpush.xpose.msra.mxu0 %v1907
        %3221 = vmatmul.f32.gmra.mxu0 %v3092
        %v3222 = vpop.f32.mrf.mxu0
        %v3223 = vadd.f32 0.0, %v3222
        %3224 = vmatmul.f32.gmra.mxu0 %v3093
        %v3225 = vpop.f32.mrf.mxu0
        %v3226 = vadd.f32 0.0, %v3225
        %3227 = vmatmul.f32.gmra.mxu0 %v3094
        %v3228 = vpop.f32.mrf.mxu0
        %v3229 = vadd.f32 0.0, %v3228
        %3230 = vmatmul.f32.gmra.mxu0 %v3095
        %v3231 = vpop.f32.mrf.mxu0
        %v3232 = vadd.f32 0.0, %v3231
        %3233 = vmatmul.f32.gmra.mxu0 %v3096
        %v3234 = vpop.f32.mrf.mxu0
        %v3235 = vadd.f32 0.0, %v3234
        %3236 = vmatmul.f32.gmra.mxu0 %v3097
        %v3237 = vpop.f32.mrf.mxu0
        %v3238 = vadd.f32 0.0, %v3237
        %3239 = vmatmul.f32.gmra.mxu0 %v3098
        %v3240 = vpop.f32.mrf.mxu0
        %v3241 = vadd.f32 0.0, %v3240
        %3242 = vmatmul.f32.gmra.mxu0 %v3099
        %v3243 = vpop.f32.mrf.mxu0
        %v3244 = vadd.f32 0.0, %v3243
        %3245 = vmatmul.f32.gmra.mxu0 %v3100
        %v3246 = vpop.f32.mrf.mxu0
        %v3247 = vadd.f32 0.0, %v3246
        %3248 = vmatmul.f32.gmra.mxu0 %v3101
        %v3249 = vpop.f32.mrf.mxu0
        %v3250 = vadd.f32 0.0, %v3249
        %3251 = vmatmul.f32.gmra.mxu0 %v3102
        %v3252 = vpop.f32.mrf.mxu0
        %v3253 = vadd.f32 0.0, %v3252
        %3254 = vmatmul.f32.gmra.mxu0 %v3103
        %v3255 = vpop.f32.mrf.mxu0
        %v3256 = vadd.f32 0.0, %v3255
        %3257 = vmatmul.f32.gmra.mxu0 %v3104
        %v3258 = vpop.f32.mrf.mxu0
        %v3259 = vadd.f32 0.0, %v3258
        %3260 = vmatmul.f32.gmra.mxu0 %v3105
        %v3261 = vpop.f32.mrf.mxu0
        %v3262 = vadd.f32 0.0, %v3261
        %3263 = vmatmul.f32.gmra.mxu0 %v3106
        %v3264 = vpop.f32.mrf.mxu0
        %v3265 = vadd.f32 0.0, %v3264
        %3266 = vmatmul.f32.gmra.mxu0 %v3107
        %v3267 = vpop.f32.mrf.mxu0
        %v3268 = vadd.f32 0.0, %v3267
        %3269 = vdwg.mxu0
        %3270 = vmatpush.xpose.msra.mxu0 0.0
        %3271 = vmatpush.xpose.msra.mxu0 0.0
        %3272 = vmatpush.xpose.msra.mxu0 0.0
        %3273 = vmatpush.xpose.msra.mxu0 0.0
        %3274 = vmatpush.xpose.msra.mxu0 0.0
        %3275 = vmatpush.xpose.msra.mxu0 0.0
        %3276 = vmatpush.xpose.msra.mxu0 0.0
        %3277 = vmatpush.xpose.msra.mxu0 0.0
        %3278 = vmatpush.xpose.msra.mxu0 0.0
        %3279 = vmatpush.xpose.msra.mxu0 0.0
        %3280 = vmatpush.xpose.msra.mxu0 0.0
        %3281 = vmatpush.xpose.msra.mxu0 0.0
        %3282 = vmatpush.xpose.msra.mxu0 %v1914
        %3283 = vmatpush.xpose.msra.mxu0 %v1913
        %3284 = vmatpush.xpose.msra.mxu0 %v1912
        %3285 = vmatpush.xpose.msra.mxu0 %v1911
        %3286 = vmatmul.f32.gmra.mxu0 %v3108
        %v3287 = vpop.f32.mrf.mxu0
        %v3288 = vadd.f32 0.0, %v3287
        %3289 = vmatmul.f32.gmra.mxu0 %v3109
        %v3290 = vpop.f32.mrf.mxu0
        %v3291 = vadd.f32 0.0, %v3290
        %3292 = vmatmul.f32.gmra.mxu0 %v3110
        %v3293 = vpop.f32.mrf.mxu0
        %v3294 = vadd.f32 0.0, %v3293
        %3295 = vmatmul.f32.gmra.mxu0 %v3111
        %v3296 = vpop.f32.mrf.mxu0
        %v3297 = vadd.f32 0.0, %v3296
        %3298 = vmatmul.f32.gmra.mxu0 %v3112
        %v3299 = vpop.f32.mrf.mxu0
        %v3300 = vadd.f32 0.0, %v3299
        %3301 = vmatmul.f32.gmra.mxu0 %v3113
        %v3302 = vpop.f32.mrf.mxu0
        %v3303 = vadd.f32 0.0, %v3302
        %3304 = vmatmul.f32.gmra.mxu0 %v3114
        %v3305 = vpop.f32.mrf.mxu0
        %v3306 = vadd.f32 0.0, %v3305
        %3307 = vmatmul.f32.gmra.mxu0 %v3115
        %v3308 = vpop.f32.mrf.mxu0
        %v3309 = vadd.f32 0.0, %v3308
        %3310 = vmatmul.f32.gmra.mxu0 %v3116
        %v3311 = vpop.f32.mrf.mxu0
        %v3312 = vadd.f32 0.0, %v3311
        %3313 = vmatmul.f32.gmra.mxu0 %v3117
        %v3314 = vpop.f32.mrf.mxu0
        %v3315 = vadd.f32 0.0, %v3314
        %3316 = vmatmul.f32.gmra.mxu0 %v3118
        %v3317 = vpop.f32.mrf.mxu0
        %v3318 = vadd.f32 0.0, %v3317
        %3319 = vmatmul.f32.gmra.mxu0 %v3119
        %v3320 = vpop.f32.mrf.mxu0
        %v3321 = vadd.f32 0.0, %v3320
        %3322 = vmatmul.f32.gmra.mxu0 %v3120
        %v3323 = vpop.f32.mrf.mxu0
        %v3324 = vadd.f32 0.0, %v3323
        %3325 = vmatmul.f32.gmra.mxu0 %v3121
        %v3326 = vpop.f32.mrf.mxu0
        %v3327 = vadd.f32 0.0, %v3326
        %3328 = vmatmul.f32.gmra.mxu0 %v3122
        %v3329 = vpop.f32.mrf.mxu0
        %v3330 = vadd.f32 0.0, %v3329
        %3331 = vmatmul.f32.gmra.mxu0 %v3123
        %v3332 = vpop.f32.mrf.mxu0
        %v3333 = vadd.f32 0.0, %v3332
        %3334 = vdwg.mxu0
        %3335 = vmatpush.xpose.msra.mxu0 0.0
        %3336 = vmatpush.xpose.msra.mxu0 0.0
        %3337 = vmatpush.xpose.msra.mxu0 0.0
        %3338 = vmatpush.xpose.msra.mxu0 0.0
        %3339 = vmatpush.xpose.msra.mxu0 0.0
        %3340 = vmatpush.xpose.msra.mxu0 0.0
        %3341 = vmatpush.xpose.msra.mxu0 0.0
        %3342 = vmatpush.xpose.msra.mxu0 0.0
        %3343 = vmatpush.xpose.msra.mxu0 0.0
        %3344 = vmatpush.xpose.msra.mxu0 0.0
        %3345 = vmatpush.xpose.msra.mxu0 0.0
        %3346 = vmatpush.xpose.msra.mxu0 0.0
        %3347 = vmatpush.xpose.msra.mxu0 %v1918
        %3348 = vmatpush.xpose.msra.mxu0 %v1917
        %3349 = vmatpush.xpose.msra.mxu0 %v1916
        %3350 = vmatpush.xpose.msra.mxu0 %v1915
        %3351 = vmatmul.f32.gmra.mxu0 %v3124
        %v3352 = vpop.f32.mrf.mxu0
        %v3353 = vadd.f32 0.0, %v3352
        %3354 = vmatmul.f32.gmra.mxu0 %v3125
        %v3355 = vpop.f32.mrf.mxu0
        %v3356 = vadd.f32 0.0, %v3355
        %3357 = vmatmul.f32.gmra.mxu0 %v3126
        %v3358 = vpop.f32.mrf.mxu0
        %v3359 = vadd.f32 0.0, %v3358
        %3360 = vmatmul.f32.gmra.mxu0 %v3127
        %v3361 = vpop.f32.mrf.mxu0
        %v3362 = vadd.f32 0.0, %v3361
        %3363 = vmatmul.f32.gmra.mxu0 %v3128
        %v3364 = vpop.f32.mrf.mxu0
        %v3365 = vadd.f32 0.0, %v3364
        %3366 = vmatmul.f32.gmra.mxu0 %v3129
        %v3367 = vpop.f32.mrf.mxu0
        %v3368 = vadd.f32 0.0, %v3367
        %3369 = vmatmul.f32.gmra.mxu0 %v3130
        %v3370 = vpop.f32.mrf.mxu0
        %v3371 = vadd.f32 0.0, %v3370
        %3372 = vmatmul.f32.gmra.mxu0 %v3131
        %v3373 = vpop.f32.mrf.mxu0
        %v3374 = vadd.f32 0.0, %v3373
        %3375 = vmatmul.f32.gmra.mxu0 %v3132
        %v3376 = vpop.f32.mrf.mxu0
        %v3377 = vadd.f32 0.0, %v3376
        %3378 = vmatmul.f32.gmra.mxu0 %v3133
        %v3379 = vpop.f32.mrf.mxu0
        %v3380 = vadd.f32 0.0, %v3379
        %3381 = vmatmul.f32.gmra.mxu0 %v3134
        %v3382 = vpop.f32.mrf.mxu0
        %v3383 = vadd.f32 0.0, %v3382
        %3384 = vmatmul.f32.gmra.mxu0 %v3135
        %v3385 = vpop.f32.mrf.mxu0
        %v3386 = vadd.f32 0.0, %v3385
        %3387 = vmatmul.f32.gmra.mxu0 %v3136
        %v3388 = vpop.f32.mrf.mxu0
        %v3389 = vadd.f32 0.0, %v3388
        %3390 = vmatmul.f32.gmra.mxu0 %v3137
        %v3391 = vpop.f32.mrf.mxu0
        %v3392 = vadd.f32 0.0, %v3391
        %3393 = vmatmul.f32.gmra.mxu0 %v3138
        %v3394 = vpop.f32.mrf.mxu0
        %v3395 = vadd.f32 0.0, %v3394
        %3396 = vmatmul.f32.gmra.mxu0 %v3139
        %v3397 = vpop.f32.mrf.mxu0
        %v3398 = vadd.f32 0.0, %v3397
        %3399 = vdwg.mxu0
        %v3400 = vld [vmem:[#allocation11] sm:$0xff]
        %v3401 = vld [vmem:[#allocation11 + $0x8] sm:$0xff]
        %v3402 = vld [vmem:[#allocation11 + $0x10] sm:$0xff]
        %v3403 = vld [vmem:[#allocation11 + $0x18] sm:$0xff]
        %v3404 = vld [vmem:[#allocation11 + $0x20] sm:$0xff]
        %v3405 = vld [vmem:[#allocation11 + $0x28] sm:$0xff]
        %v3406 = vld [vmem:[#allocation11 + $0x30] sm:$0xff]
        %v3407 = vld [vmem:[#allocation11 + $0x38] sm:$0xff]
        %v3408 = vld [vmem:[#allocation11 + $0x40] sm:$0xff]
        %v3409 = vld [vmem:[#allocation11 + $0x48] sm:$0xff]
        %v3410 = vld [vmem:[#allocation11 + $0x50] sm:$0xff]
        %v3411 = vld [vmem:[#allocation11 + $0x58] sm:$0xff]
        %v3412 = vld [vmem:[#allocation11 + $0x60] sm:$0xff]
        %v3413 = vld [vmem:[#allocation11 + $0x68] sm:$0xff]
        %v3414 = vld [vmem:[#allocation11 + $0x70] sm:$0xff]
        %v3415 = vld [vmem:[#allocation11 + $0x78] sm:$0xff]
        %v3417 = vsel %vm2047, %v3158, 0
        %v3420 = vsel %vm2047, %v3161, 0
        %v3423 = vsel %vm2047, %v3164, 0
        %v3426 = vsel %vm2047, %v3167, 0
        %v3429 = vsel %vm2047, %v3170, 0
        %v3432 = vsel %vm2047, %v3173, 0
        %v3435 = vsel %vm2047, %v3176, 0
        %v3438 = vsel %vm2047, %v3179, 0
        %v3441 = vsel %vm2047, %v3182, 0
        %v3444 = vsel %vm2047, %v3185, 0
        %v3447 = vsel %vm2047, %v3188, 0
        %v3450 = vsel %vm2047, %v3191, 0
        %v3453 = vsel %vm2047, %v3194, 0
        %v3456 = vsel %vm2047, %v3197, 0
        %v3459 = vsel %vm2047, %v3200, 0
        %v3462 = vsel %vm2047, %v3203, 0
        %3464 = vmatpush.msra.mxu0 0.0
        %3465 = vmatpush.msra.mxu0 0.0
        %3466 = vmatpush.msra.mxu0 0.0
        %3467 = vmatpush.msra.mxu0 0.0
        %3468 = vmatpush.msra.mxu0 0.0
        %3469 = vmatpush.msra.mxu0 0.0
        %3470 = vmatpush.msra.mxu0 0.0
        %3471 = vmatpush.msra.mxu0 0.0
        %3472 = vmatpush.msra.mxu0 0.0
        %3473 = vmatpush.msra.mxu0 0.0
        %3474 = vmatpush.msra.mxu0 0.0
        %3475 = vmatpush.msra.mxu0 0.0
        %3476 = vmatpush.msra.mxu0 %v3403
        %3477 = vmatpush.msra.mxu0 %v3402
        %3478 = vmatpush.msra.mxu0 %v3401
        %3479 = vmatpush.msra.mxu0 %v3400
        %3480 = vmatmul.f32.gmra.mxu0 %v3417
        %v3481 = vpop.f32.mrf.mxu0
        %v3482 = vadd.f32 0.0, %v3481
        %3483 = vmatmul.f32.gmra.mxu0 %v3420
        %v3484 = vpop.f32.mrf.mxu0
        %v3485 = vadd.f32 0.0, %v3484
        %3486 = vmatmul.f32.gmra.mxu0 %v3423
        %v3487 = vpop.f32.mrf.mxu0
        %v3488 = vadd.f32 0.0, %v3487
        %3489 = vmatmul.f32.gmra.mxu0 %v3426
        %v3490 = vpop.f32.mrf.mxu0
        %v3491 = vadd.f32 0.0, %v3490
        %3492 = vmatmul.f32.gmra.mxu0 %v3429
        %v3493 = vpop.f32.mrf.mxu0
        %v3494 = vadd.f32 0.0, %v3493
        %3495 = vmatmul.f32.gmra.mxu0 %v3432
        %v3496 = vpop.f32.mrf.mxu0
        %v3497 = vadd.f32 0.0, %v3496
        %3498 = vmatmul.f32.gmra.mxu0 %v3435
        %v3499 = vpop.f32.mrf.mxu0
        %v3500 = vadd.f32 0.0, %v3499
        %3501 = vmatmul.f32.gmra.mxu0 %v3438
        %v3502 = vpop.f32.mrf.mxu0
        %v3503 = vadd.f32 0.0, %v3502
        %3504 = vmatmul.f32.gmra.mxu0 %v3441
        %v3505 = vpop.f32.mrf.mxu0
        %v3506 = vadd.f32 0.0, %v3505
        %3507 = vmatmul.f32.gmra.mxu0 %v3444
        %v3508 = vpop.f32.mrf.mxu0
        %v3509 = vadd.f32 0.0, %v3508
        %3510 = vmatmul.f32.gmra.mxu0 %v3447
        %v3511 = vpop.f32.mrf.mxu0
        %v3512 = vadd.f32 0.0, %v3511
        %3513 = vmatmul.f32.gmra.mxu0 %v3450
        %v3514 = vpop.f32.mrf.mxu0
        %v3515 = vadd.f32 0.0, %v3514
        %3516 = vmatmul.f32.gmra.mxu0 %v3453
        %v3517 = vpop.f32.mrf.mxu0
        %v3518 = vadd.f32 0.0, %v3517
        %3519 = vmatmul.f32.gmra.mxu0 %v3456
        %v3520 = vpop.f32.mrf.mxu0
        %v3521 = vadd.f32 0.0, %v3520
        %3522 = vmatmul.f32.gmra.mxu0 %v3459
        %v3523 = vpop.f32.mrf.mxu0
        %v3524 = vadd.f32 0.0, %v3523
        %3525 = vmatmul.f32.gmra.mxu0 %v3462
        %v3526 = vpop.f32.mrf.mxu0
        %v3527 = vadd.f32 0.0, %v3526
        %3528 = vdwg.mxu0
        %v3530 = vsel %vm2047, %v3223, 0
        %v3533 = vsel %vm2047, %v3226, 0
        %v3536 = vsel %vm2047, %v3229, 0
        %v3539 = vsel %vm2047, %v3232, 0
        %v3542 = vsel %vm2047, %v3235, 0
        %v3545 = vsel %vm2047, %v3238, 0
        %v3548 = vsel %vm2047, %v3241, 0
        %v3551 = vsel %vm2047, %v3244, 0
        %v3554 = vsel %vm2047, %v3247, 0
        %v3557 = vsel %vm2047, %v3250, 0
        %v3560 = vsel %vm2047, %v3253, 0
        %v3563 = vsel %vm2047, %v3256, 0
        %v3566 = vsel %vm2047, %v3259, 0
        %v3569 = vsel %vm2047, %v3262, 0
        %v3572 = vsel %vm2047, %v3265, 0
        %v3575 = vsel %vm2047, %v3268, 0
        %3577 = vmatpush.msra.mxu0 0.0
        %3578 = vmatpush.msra.mxu0 0.0
        %3579 = vmatpush.msra.mxu0 0.0
        %3580 = vmatpush.msra.mxu0 0.0
        %3581 = vmatpush.msra.mxu0 0.0
        %3582 = vmatpush.msra.mxu0 0.0
        %3583 = vmatpush.msra.mxu0 0.0
        %3584 = vmatpush.msra.mxu0 0.0
        %3585 = vmatpush.msra.mxu0 0.0
        %3586 = vmatpush.msra.mxu0 0.0
        %3587 = vmatpush.msra.mxu0 0.0
        %3588 = vmatpush.msra.mxu0 0.0
        %3589 = vmatpush.msra.mxu0 %v3407
        %3590 = vmatpush.msra.mxu0 %v3406
        %3591 = vmatpush.msra.mxu0 %v3405
        %3592 = vmatpush.msra.mxu0 %v3404
        %3593 = vmatmul.f32.gmra.mxu0 %v3530
        %v3594 = vpop.f32.mrf.mxu0
        %v3595 = vadd.f32 0.0, %v3594
        %3596 = vmatmul.f32.gmra.mxu0 %v3533
        %v3597 = vpop.f32.mrf.mxu0
        %v3598 = vadd.f32 0.0, %v3597
        %3599 = vmatmul.f32.gmra.mxu0 %v3536
        %v3600 = vpop.f32.mrf.mxu0
        %v3601 = vadd.f32 0.0, %v3600
        %3602 = vmatmul.f32.gmra.mxu0 %v3539
        %v3603 = vpop.f32.mrf.mxu0
        %v3604 = vadd.f32 0.0, %v3603
        %3605 = vmatmul.f32.gmra.mxu0 %v3542
        %v3606 = vpop.f32.mrf.mxu0
        %v3607 = vadd.f32 0.0, %v3606
        %3608 = vmatmul.f32.gmra.mxu0 %v3545
        %v3609 = vpop.f32.mrf.mxu0
        %v3610 = vadd.f32 0.0, %v3609
        %3611 = vmatmul.f32.gmra.mxu0 %v3548
        %v3612 = vpop.f32.mrf.mxu0
        %v3613 = vadd.f32 0.0, %v3612
        %3614 = vmatmul.f32.gmra.mxu0 %v3551
        %v3615 = vpop.f32.mrf.mxu0
        %v3616 = vadd.f32 0.0, %v3615
        %3617 = vmatmul.f32.gmra.mxu0 %v3554
        %v3618 = vpop.f32.mrf.mxu0
        %v3619 = vadd.f32 0.0, %v3618
        %3620 = vmatmul.f32.gmra.mxu0 %v3557
        %v3621 = vpop.f32.mrf.mxu0
        %v3622 = vadd.f32 0.0, %v3621
        %3623 = vmatmul.f32.gmra.mxu0 %v3560
        %v3624 = vpop.f32.mrf.mxu0
        %v3625 = vadd.f32 0.0, %v3624
        %3626 = vmatmul.f32.gmra.mxu0 %v3563
        %v3627 = vpop.f32.mrf.mxu0
        %v3628 = vadd.f32 0.0, %v3627
        %3629 = vmatmul.f32.gmra.mxu0 %v3566
        %v3630 = vpop.f32.mrf.mxu0
        %v3631 = vadd.f32 0.0, %v3630
        %3632 = vmatmul.f32.gmra.mxu0 %v3569
        %v3633 = vpop.f32.mrf.mxu0
        %v3634 = vadd.f32 0.0, %v3633
        %3635 = vmatmul.f32.gmra.mxu0 %v3572
        %v3636 = vpop.f32.mrf.mxu0
        %v3637 = vadd.f32 0.0, %v3636
        %3638 = vmatmul.f32.gmra.mxu0 %v3575
        %v3639 = vpop.f32.mrf.mxu0
        %v3640 = vadd.f32 0.0, %v3639
        %3641 = vdwg.mxu0
        %v3643 = vsel %vm2047, %v3288, 0
        %v3646 = vsel %vm2047, %v3291, 0
        %v3649 = vsel %vm2047, %v3294, 0
        %v3652 = vsel %vm2047, %v3297, 0
        %v3655 = vsel %vm2047, %v3300, 0
        %v3658 = vsel %vm2047, %v3303, 0
        %v3661 = vsel %vm2047, %v3306, 0
        %v3664 = vsel %vm2047, %v3309, 0
        %v3667 = vsel %vm2047, %v3312, 0
        %v3670 = vsel %vm2047, %v3315, 0
        %v3673 = vsel %vm2047, %v3318, 0
        %v3676 = vsel %vm2047, %v3321, 0
        %v3679 = vsel %vm2047, %v3324, 0
        %v3682 = vsel %vm2047, %v3327, 0
        %v3685 = vsel %vm2047, %v3330, 0
        %v3688 = vsel %vm2047, %v3333, 0
        %3690 = vmatpush.msra.mxu0 0.0
        %3691 = vmatpush.msra.mxu0 0.0
        %3692 = vmatpush.msra.mxu0 0.0
        %3693 = vmatpush.msra.mxu0 0.0
        %3694 = vmatpush.msra.mxu0 0.0
        %3695 = vmatpush.msra.mxu0 0.0
        %3696 = vmatpush.msra.mxu0 0.0
        %3697 = vmatpush.msra.mxu0 0.0
        %3698 = vmatpush.msra.mxu0 0.0
        %3699 = vmatpush.msra.mxu0 0.0
        %3700 = vmatpush.msra.mxu0 0.0
        %3701 = vmatpush.msra.mxu0 0.0
        %3702 = vmatpush.msra.mxu0 %v3411
        %3703 = vmatpush.msra.mxu0 %v3410
        %3704 = vmatpush.msra.mxu0 %v3409
        %3705 = vmatpush.msra.mxu0 %v3408
        %3706 = vmatmul.f32.gmra.mxu0 %v3643
        %v3707 = vpop.f32.mrf.mxu0
        %v3708 = vadd.f32 0.0, %v3707
        %3709 = vmatmul.f32.gmra.mxu0 %v3646
        %v3710 = vpop.f32.mrf.mxu0
        %v3711 = vadd.f32 0.0, %v3710
        %3712 = vmatmul.f32.gmra.mxu0 %v3649
        %v3713 = vpop.f32.mrf.mxu0
        %v3714 = vadd.f32 0.0, %v3713
        %3715 = vmatmul.f32.gmra.mxu0 %v3652
        %v3716 = vpop.f32.mrf.mxu0
        %v3717 = vadd.f32 0.0, %v3716
        %3718 = vmatmul.f32.gmra.mxu0 %v3655
        %v3719 = vpop.f32.mrf.mxu0
        %v3720 = vadd.f32 0.0, %v3719
        %3721 = vmatmul.f32.gmra.mxu0 %v3658
        %v3722 = vpop.f32.mrf.mxu0
        %v3723 = vadd.f32 0.0, %v3722
        %3724 = vmatmul.f32.gmra.mxu0 %v3661
        %v3725 = vpop.f32.mrf.mxu0
        %v3726 = vadd.f32 0.0, %v3725
        %3727 = vmatmul.f32.gmra.mxu0 %v3664
        %v3728 = vpop.f32.mrf.mxu0
        %v3729 = vadd.f32 0.0, %v3728
        %3730 = vmatmul.f32.gmra.mxu0 %v3667
        %v3731 = vpop.f32.mrf.mxu0
        %v3732 = vadd.f32 0.0, %v3731
        %3733 = vmatmul.f32.gmra.mxu0 %v3670
        %v3734 = vpop.f32.mrf.mxu0
        %v3735 = vadd.f32 0.0, %v3734
        %3736 = vmatmul.f32.gmra.mxu0 %v3673
        %v3737 = vpop.f32.mrf.mxu0
        %v3738 = vadd.f32 0.0, %v3737
        %3739 = vmatmul.f32.gmra.mxu0 %v3676
        %v3740 = vpop.f32.mrf.mxu0
        %v3741 = vadd.f32 0.0, %v3740
        %3742 = vmatmul.f32.gmra.mxu0 %v3679
        %v3743 = vpop.f32.mrf.mxu0
        %v3744 = vadd.f32 0.0, %v3743
        %3745 = vmatmul.f32.gmra.mxu0 %v3682
        %v3746 = vpop.f32.mrf.mxu0
        %v3747 = vadd.f32 0.0, %v3746
        %3748 = vmatmul.f32.gmra.mxu0 %v3685
        %v3749 = vpop.f32.mrf.mxu0
        %v3750 = vadd.f32 0.0, %v3749
        %3751 = vmatmul.f32.gmra.mxu0 %v3688
        %v3752 = vpop.f32.mrf.mxu0
        %v3753 = vadd.f32 0.0, %v3752
        %3754 = vdwg.mxu0
        %v3756 = vsel %vm2047, %v3353, 0
        %v3759 = vsel %vm2047, %v3356, 0
        %v3762 = vsel %vm2047, %v3359, 0
        %v3765 = vsel %vm2047, %v3362, 0
        %v3768 = vsel %vm2047, %v3365, 0
        %v3771 = vsel %vm2047, %v3368, 0
        %v3774 = vsel %vm2047, %v3371, 0
        %v3777 = vsel %vm2047, %v3374, 0
        %v3780 = vsel %vm2047, %v3377, 0
        %v3783 = vsel %vm2047, %v3380, 0
        %v3786 = vsel %vm2047, %v3383, 0
        %v3789 = vsel %vm2047, %v3386, 0
        %v3792 = vsel %vm2047, %v3389, 0
        %v3795 = vsel %vm2047, %v3392, 0
        %v3798 = vsel %vm2047, %v3395, 0
        %v3801 = vsel %vm2047, %v3398, 0
        %3803 = vmatpush.msra.mxu0 0.0
        %3804 = vmatpush.msra.mxu0 0.0
        %3805 = vmatpush.msra.mxu0 0.0
        %3806 = vmatpush.msra.mxu0 0.0
        %3807 = vmatpush.msra.mxu0 0.0
        %3808 = vmatpush.msra.mxu0 0.0
        %3809 = vmatpush.msra.mxu0 0.0
        %3810 = vmatpush.msra.mxu0 0.0
        %3811 = vmatpush.msra.mxu0 0.0
        %3812 = vmatpush.msra.mxu0 0.0
        %3813 = vmatpush.msra.mxu0 0.0
        %3814 = vmatpush.msra.mxu0 0.0
        %3815 = vmatpush.msra.mxu0 %v3415
        %3816 = vmatpush.msra.mxu0 %v3414
        %3817 = vmatpush.msra.mxu0 %v3413
        %3818 = vmatpush.msra.mxu0 %v3412
        %3819 = vmatmul.f32.gmra.mxu0 %v3756
        %v3820 = vpop.f32.mrf.mxu0
        %v3821 = vadd.f32 0.0, %v3820
        %3822 = vmatmul.f32.gmra.mxu0 %v3759
        %v3823 = vpop.f32.mrf.mxu0
        %v3824 = vadd.f32 0.0, %v3823
        %3825 = vmatmul.f32.gmra.mxu0 %v3762
        %v3826 = vpop.f32.mrf.mxu0
        %v3827 = vadd.f32 0.0, %v3826
        %3828 = vmatmul.f32.gmra.mxu0 %v3765
        %v3829 = vpop.f32.mrf.mxu0
        %v3830 = vadd.f32 0.0, %v3829
        %3831 = vmatmul.f32.gmra.mxu0 %v3768
        %v3832 = vpop.f32.mrf.mxu0
        %v3833 = vadd.f32 0.0, %v3832
        %3834 = vmatmul.f32.gmra.mxu0 %v3771
        %v3835 = vpop.f32.mrf.mxu0
        %v3836 = vadd.f32 0.0, %v3835
        %3837 = vmatmul.f32.gmra.mxu0 %v3774
        %v3838 = vpop.f32.mrf.mxu0
        %v3839 = vadd.f32 0.0, %v3838
        %3840 = vmatmul.f32.gmra.mxu0 %v3777
        %v3841 = vpop.f32.mrf.mxu0
        %v3842 = vadd.f32 0.0, %v3841
        %3843 = vmatmul.f32.gmra.mxu0 %v3780
        %v3844 = vpop.f32.mrf.mxu0
        %v3845 = vadd.f32 0.0, %v3844
        %3846 = vmatmul.f32.gmra.mxu0 %v3783
        %v3847 = vpop.f32.mrf.mxu0
        %v3848 = vadd.f32 0.0, %v3847
        %3849 = vmatmul.f32.gmra.mxu0 %v3786
        %v3850 = vpop.f32.mrf.mxu0
        %v3851 = vadd.f32 0.0, %v3850
        %3852 = vmatmul.f32.gmra.mxu0 %v3789
        %v3853 = vpop.f32.mrf.mxu0
        %v3854 = vadd.f32 0.0, %v3853
        %3855 = vmatmul.f32.gmra.mxu0 %v3792
        %v3856 = vpop.f32.mrf.mxu0
        %v3857 = vadd.f32 0.0, %v3856
        %3858 = vmatmul.f32.gmra.mxu0 %v3795
        %v3859 = vpop.f32.mrf.mxu0
        %v3860 = vadd.f32 0.0, %v3859
        %3861 = vmatmul.f32.gmra.mxu0 %v3798
        %v3862 = vpop.f32.mrf.mxu0
        %v3863 = vadd.f32 0.0, %v3862
        %3864 = vmatmul.f32.gmra.mxu0 %v3801
        %v3865 = vpop.f32.mrf.mxu0
        %v3866 = vadd.f32 0.0, %v3865
        %3867 = vdwg.mxu0
        %v3868 = vadd.f32 %v3482, %v3595
        %v3869 = vadd.f32 %v3485, %v3598
        %v3870 = vadd.f32 %v3488, %v3601
        %v3871 = vadd.f32 %v3491, %v3604
        %v3872 = vadd.f32 %v3494, %v3607
        %v3873 = vadd.f32 %v3497, %v3610
        %v3874 = vadd.f32 %v3500, %v3613
        %v3875 = vadd.f32 %v3503, %v3616
        %v3876 = vadd.f32 %v3506, %v3619
        %v3877 = vadd.f32 %v3509, %v3622
        %v3878 = vadd.f32 %v3512, %v3625
        %v3879 = vadd.f32 %v3515, %v3628
        %v3880 = vadd.f32 %v3518, %v3631
        %v3881 = vadd.f32 %v3521, %v3634
        %v3882 = vadd.f32 %v3524, %v3637
        %v3883 = vadd.f32 %v3527, %v3640
        %v3884 = vadd.f32 %v3868, %v3708
        %v3885 = vadd.f32 %v3869, %v3711
        %v3886 = vadd.f32 %v3870, %v3714
        %v3887 = vadd.f32 %v3871, %v3717
        %v3888 = vadd.f32 %v3872, %v3720
        %v3889 = vadd.f32 %v3873, %v3723
        %v3890 = vadd.f32 %v3874, %v3726
        %v3891 = vadd.f32 %v3875, %v3729
        %v3892 = vadd.f32 %v3876, %v3732
        %v3893 = vadd.f32 %v3877, %v3735
        %v3894 = vadd.f32 %v3878, %v3738
        %v3895 = vadd.f32 %v3879, %v3741
        %v3896 = vadd.f32 %v3880, %v3744
        %v3897 = vadd.f32 %v3881, %v3747
        %v3898 = vadd.f32 %v3882, %v3750
        %v3899 = vadd.f32 %v3883, %v3753
        %v3900 = vadd.f32 %v3884, %v3821
        %v3901 = vadd.f32 %v3885, %v3824
        %v3902 = vadd.f32 %v3886, %v3827
        %v3903 = vadd.f32 %v3887, %v3830
        %v3904 = vadd.f32 %v3888, %v3833
        %v3905 = vadd.f32 %v3889, %v3836
        %v3906 = vadd.f32 %v3890, %v3839
        %v3907 = vadd.f32 %v3891, %v3842
        %v3908 = vadd.f32 %v3892, %v3845
        %v3909 = vadd.f32 %v3893, %v3848
        %v3910 = vadd.f32 %v3894, %v3851
        %v3911 = vadd.f32 %v3895, %v3854
        %v3912 = vadd.f32 %v3896, %v3857
        %v3913 = vadd.f32 %v3897, %v3860
        %v3914 = vadd.f32 %v3898, %v3863
        %v3915 = vadd.f32 %v3899, %v3866
        %3916 = vxpose.xlu0.b32.start [1/16] %v1550, 128
        %3917 = vxpose.xlu0.b32.cont [2/16] %v1553, 128
        %3918 = vxpose.xlu0.b32.cont [3/16] %v1556, 128
        %3919 = vxpose.xlu0.b32.cont [4/16] %v1559, 128
        %3920 = vxpose.xlu0.b32.cont [5/16] %v1562, 128
        %3921 = vxpose.xlu0.b32.cont [6/16] %v1565, 128
        %3922 = vxpose.xlu0.b32.cont [7/16] %v1568, 128
        %3923 = vxpose.xlu0.b32.cont [8/16] %v1571, 128
        %3924 = vxpose.xlu0.b32.cont [9/16] %v1574, 128
        %3925 = vxpose.xlu0.b32.cont [10/16] %v1577, 128
        %3926 = vxpose.xlu0.b32.cont [11/16] %v1580, 128
        %3927 = vxpose.xlu0.b32.cont [12/16] %v1583, 128
        %3928 = vxpose.xlu0.b32.cont [13/16] %v1586, 128
        %3929 = vxpose.xlu0.b32.cont [14/16] %v1589, 128
        %3930 = vxpose.xlu0.b32.cont [15/16] %v1592, 128
        %3931 = vxpose.xlu0.b32.end [16/16] %v1595, 128
        %v3932 = vpop.trf.xlu0
        %v3933 = vpop.trf.xlu0
        %v3934 = vpop.trf.xlu0
        %v3935 = vpop.trf.xlu0
        %v3936 = vpop.trf.xlu0
        %v3937 = vpop.trf.xlu0
        %v3938 = vpop.trf.xlu0
        %v3939 = vpop.trf.xlu0
        %v3940 = vpop.trf.xlu0
        %v3941 = vpop.trf.xlu0
        %v3942 = vpop.trf.xlu0
        %v3943 = vpop.trf.xlu0
        %v3944 = vpop.trf.xlu0
        %v3945 = vpop.trf.xlu0
        %v3946 = vpop.trf.xlu0
        %v3947 = vpop.trf.xlu0
        %3948 = vxpose.xlu0.b32.start [1/16] %v1663, 128
        %3949 = vxpose.xlu0.b32.cont [2/16] %v1666, 128
        %3950 = vxpose.xlu0.b32.cont [3/16] %v1669, 128
        %3951 = vxpose.xlu0.b32.cont [4/16] %v1672, 128
        %3952 = vxpose.xlu0.b32.cont [5/16] %v1675, 128
        %3953 = vxpose.xlu0.b32.cont [6/16] %v1678, 128
        %3954 = vxpose.xlu0.b32.cont [7/16] %v1681, 128
        %3955 = vxpose.xlu0.b32.cont [8/16] %v1684, 128
        %3956 = vxpose.xlu0.b32.cont [9/16] %v1687, 128
        %3957 = vxpose.xlu0.b32.cont [10/16] %v1690, 128
        %3958 = vxpose.xlu0.b32.cont [11/16] %v1693, 128
        %3959 = vxpose.xlu0.b32.cont [12/16] %v1696, 128
        %3960 = vxpose.xlu0.b32.cont [13/16] %v1699, 128
        %3961 = vxpose.xlu0.b32.cont [14/16] %v1702, 128
        %3962 = vxpose.xlu0.b32.cont [15/16] %v1705, 128
        %3963 = vxpose.xlu0.b32.end [16/16] %v1708, 128
        %v3964 = vpop.trf.xlu0
        %v3965 = vpop.trf.xlu0
        %v3966 = vpop.trf.xlu0
        %v3967 = vpop.trf.xlu0
        %v3968 = vpop.trf.xlu0
        %v3969 = vpop.trf.xlu0
        %v3970 = vpop.trf.xlu0
        %v3971 = vpop.trf.xlu0
        %v3972 = vpop.trf.xlu0
        %v3973 = vpop.trf.xlu0
        %v3974 = vpop.trf.xlu0
        %v3975 = vpop.trf.xlu0
        %v3976 = vpop.trf.xlu0
        %v3977 = vpop.trf.xlu0
        %v3978 = vpop.trf.xlu0
        %v3979 = vpop.trf.xlu0
        %3980 = vxpose.xlu0.b32.start [1/16] %v1776, 128
        %3981 = vxpose.xlu0.b32.cont [2/16] %v1779, 128
        %3982 = vxpose.xlu0.b32.cont [3/16] %v1782, 128
        %3983 = vxpose.xlu0.b32.cont [4/16] %v1785, 128
        %3984 = vxpose.xlu0.b32.cont [5/16] %v1788, 128
        %3985 = vxpose.xlu0.b32.cont [6/16] %v1791, 128
        %3986 = vxpose.xlu0.b32.cont [7/16] %v1794, 128
        %3987 = vxpose.xlu0.b32.cont [8/16] %v1797, 128
        %3988 = vxpose.xlu0.b32.cont [9/16] %v1800, 128
        %3989 = vxpose.xlu0.b32.cont [10/16] %v1803, 128
        %3990 = vxpose.xlu0.b32.cont [11/16] %v1806, 128
        %3991 = vxpose.xlu0.b32.cont [12/16] %v1809, 128
        %3992 = vxpose.xlu0.b32.cont [13/16] %v1812, 128
        %3993 = vxpose.xlu0.b32.cont [14/16] %v1815, 128
        %3994 = vxpose.xlu0.b32.cont [15/16] %v1818, 128
        %3995 = vxpose.xlu0.b32.end [16/16] %v1821, 128
        %v3996 = vpop.trf.xlu0
        %v3997 = vpop.trf.xlu0
        %v3998 = vpop.trf.xlu0
        %v3999 = vpop.trf.xlu0
        %v4000 = vpop.trf.xlu0
        %v4001 = vpop.trf.xlu0
        %v4002 = vpop.trf.xlu0
        %v4003 = vpop.trf.xlu0
        %v4004 = vpop.trf.xlu0
        %v4005 = vpop.trf.xlu0
        %v4006 = vpop.trf.xlu0
        %v4007 = vpop.trf.xlu0
        %v4008 = vpop.trf.xlu0
        %v4009 = vpop.trf.xlu0
        %v4010 = vpop.trf.xlu0
        %v4011 = vpop.trf.xlu0
        %4012 = vxpose.xlu0.b32.start [1/16] %v3932, 128
        %4013 = vxpose.xlu0.b32.cont [2/16] %v3933, 128
        %4014 = vxpose.xlu0.b32.cont [3/16] %v3934, 128
        %4015 = vxpose.xlu0.b32.cont [4/16] %v3935, 128
        %4016 = vxpose.xlu0.b32.cont [5/16] 0.0, 128
        %4017 = vxpose.xlu0.b32.cont [6/16] 0.0, 128
        %4018 = vxpose.xlu0.b32.cont [7/16] 0.0, 128
        %4019 = vxpose.xlu0.b32.cont [8/16] 0.0, 128
        %4020 = vxpose.xlu0.b32.cont [9/16] 0.0, 128
        %4021 = vxpose.xlu0.b32.cont [10/16] 0.0, 128
        %4022 = vxpose.xlu0.b32.cont [11/16] 0.0, 128
        %4023 = vxpose.xlu0.b32.cont [12/16] 0.0, 128
        %4024 = vxpose.xlu0.b32.cont [13/16] 0.0, 128
        %4025 = vxpose.xlu0.b32.cont [14/16] 0.0, 128
        %4026 = vxpose.xlu0.b32.cont [15/16] 0.0, 128
        %4027 = vxpose.xlu0.b32.end [16/16] 0.0, 128
        %v4028 = vpop.trf.xlu0
        %v4029 = vpop.trf.xlu0
        %v4030 = vpop.trf.xlu0
        %v4031 = vpop.trf.xlu0
        %v4032 = vpop.trf.xlu0
        %v4033 = vpop.trf.xlu0
        %v4034 = vpop.trf.xlu0
        %v4035 = vpop.trf.xlu0
        %v4036 = vpop.trf.xlu0
        %v4037 = vpop.trf.xlu0
        %v4038 = vpop.trf.xlu0
        %v4039 = vpop.trf.xlu0
        %v4040 = vpop.trf.xlu0
        %v4041 = vpop.trf.xlu0
        %v4042 = vpop.trf.xlu0
        %v4043 = vpop.trf.xlu0
        %4044 = vxpose.xlu0.b32.start [1/16] %v3936, 128
        %4045 = vxpose.xlu0.b32.cont [2/16] %v3937, 128
        %4046 = vxpose.xlu0.b32.cont [3/16] %v3938, 128
        %4047 = vxpose.xlu0.b32.cont [4/16] %v3939, 128
        %4048 = vxpose.xlu0.b32.cont [5/16] 0.0, 128
        %4049 = vxpose.xlu0.b32.cont [6/16] 0.0, 128
        %4050 = vxpose.xlu0.b32.cont [7/16] 0.0, 128
        %4051 = vxpose.xlu0.b32.cont [8/16] 0.0, 128
        %4052 = vxpose.xlu0.b32.cont [9/16] 0.0, 128
        %4053 = vxpose.xlu0.b32.cont [10/16] 0.0, 128
        %4054 = vxpose.xlu0.b32.cont [11/16] 0.0, 128
        %4055 = vxpose.xlu0.b32.cont [12/16] 0.0, 128
        %4056 = vxpose.xlu0.b32.cont [13/16] 0.0, 128
        %4057 = vxpose.xlu0.b32.cont [14/16] 0.0, 128
        %4058 = vxpose.xlu0.b32.cont [15/16] 0.0, 128
        %4059 = vxpose.xlu0.b32.end [16/16] 0.0, 128
        %v4060 = vpop.trf.xlu0
        %v4061 = vpop.trf.xlu0
        %v4062 = vpop.trf.xlu0
        %v4063 = vpop.trf.xlu0
        %v4064 = vpop.trf.xlu0
        %v4065 = vpop.trf.xlu0
        %v4066 = vpop.trf.xlu0
        %v4067 = vpop.trf.xlu0
        %v4068 = vpop.trf.xlu0
        %v4069 = vpop.trf.xlu0
        %v4070 = vpop.trf.xlu0
        %v4071 = vpop.trf.xlu0
        %v4072 = vpop.trf.xlu0
        %v4073 = vpop.trf.xlu0
        %v4074 = vpop.trf.xlu0
        %v4075 = vpop.trf.xlu0
        %4076 = vxpose.xlu0.b32.start [1/16] %v3940, 128
        %4077 = vxpose.xlu0.b32.cont [2/16] %v3941, 128
        %4078 = vxpose.xlu0.b32.cont [3/16] %v3942, 128
        %4079 = vxpose.xlu0.b32.cont [4/16] %v3943, 128
        %4080 = vxpose.xlu0.b32.cont [5/16] 0.0, 128
        %4081 = vxpose.xlu0.b32.cont [6/16] 0.0, 128
        %4082 = vxpose.xlu0.b32.cont [7/16] 0.0, 128
        %4083 = vxpose.xlu0.b32.cont [8/16] 0.0, 128
        %4084 = vxpose.xlu0.b32.cont [9/16] 0.0, 128
        %4085 = vxpose.xlu0.b32.cont [10/16] 0.0, 128
        %4086 = vxpose.xlu0.b32.cont [11/16] 0.0, 128
        %4087 = vxpose.xlu0.b32.cont [12/16] 0.0, 128
        %4088 = vxpose.xlu0.b32.cont [13/16] 0.0, 128
        %4089 = vxpose.xlu0.b32.cont [14/16] 0.0, 128
        %4090 = vxpose.xlu0.b32.cont [15/16] 0.0, 128
        %4091 = vxpose.xlu0.b32.end [16/16] 0.0, 128
        %v4092 = vpop.trf.xlu0
        %v4093 = vpop.trf.xlu0
        %v4094 = vpop.trf.xlu0
        %v4095 = vpop.trf.xlu0
        %v4096 = vpop.trf.xlu0
        %v4097 = vpop.trf.xlu0
        %v4098 = vpop.trf.xlu0
        %v4099 = vpop.trf.xlu0
        %v4100 = vpop.trf.xlu0
        %v4101 = vpop.trf.xlu0
        %v4102 = vpop.trf.xlu0
        %v4103 = vpop.trf.xlu0
        %v4104 = vpop.trf.xlu0
        %v4105 = vpop.trf.xlu0
        %v4106 = vpop.trf.xlu0
        %v4107 = vpop.trf.xlu0
        %4108 = vxpose.xlu0.b32.start [1/16] %v3944, 128
        %4109 = vxpose.xlu0.b32.cont [2/16] %v3945, 128
        %4110 = vxpose.xlu0.b32.cont [3/16] %v3946, 128
        %4111 = vxpose.xlu0.b32.cont [4/16] %v3947, 128
        %4112 = vxpose.xlu0.b32.cont [5/16] 0.0, 128
        %4113 = vxpose.xlu0.b32.cont [6/16] 0.0, 128
        %4114 = vxpose.xlu0.b32.cont [7/16] 0.0, 128
        %4115 = vxpose.xlu0.b32.cont [8/16] 0.0, 128
        %4116 = vxpose.xlu0.b32.cont [9/16] 0.0, 128
        %4117 = vxpose.xlu0.b32.cont [10/16] 0.0, 128
        %4118 = vxpose.xlu0.b32.cont [11/16] 0.0, 128
        %4119 = vxpose.xlu0.b32.cont [12/16] 0.0, 128
        %4120 = vxpose.xlu0.b32.cont [13/16] 0.0, 128
        %4121 = vxpose.xlu0.b32.cont [14/16] 0.0, 128
        %4122 = vxpose.xlu0.b32.cont [15/16] 0.0, 128
        %4123 = vxpose.xlu0.b32.end [16/16] 0.0, 128
        %v4124 = vpop.trf.xlu0
        %v4125 = vpop.trf.xlu0
        %v4126 = vpop.trf.xlu0
        %v4127 = vpop.trf.xlu0
        %v4128 = vpop.trf.xlu0
        %v4129 = vpop.trf.xlu0
        %v4130 = vpop.trf.xlu0
        %v4131 = vpop.trf.xlu0
        %v4132 = vpop.trf.xlu0
        %v4133 = vpop.trf.xlu0
        %v4134 = vpop.trf.xlu0
        %v4135 = vpop.trf.xlu0
        %v4136 = vpop.trf.xlu0
        %v4137 = vpop.trf.xlu0
        %v4138 = vpop.trf.xlu0
        %v4139 = vpop.trf.xlu0
        %v4141 = vsel %vm2047, %v4028, 0
        %v4144 = vsel %vm2047, %v4029, 0
        %v4147 = vsel %vm2047, %v4030, 0
        %v4150 = vsel %vm2047, %v4031, 0
        %v4153 = vsel %vm2047, %v4032, 0
        %v4156 = vsel %vm2047, %v4033, 0
        %v4159 = vsel %vm2047, %v4034, 0
        %v4162 = vsel %vm2047, %v4035, 0
        %v4165 = vsel %vm2047, %v4036, 0
        %v4168 = vsel %vm2047, %v4037, 0
        %v4171 = vsel %vm2047, %v4038, 0
        %v4174 = vsel %vm2047, %v4039, 0
        %v4177 = vsel %vm2047, %v4040, 0
        %v4180 = vsel %vm2047, %v4041, 0
        %v4183 = vsel %vm2047, %v4042, 0
        %v4186 = vsel %vm2047, %v4043, 0
        %4188 = vmatpush.msra.mxu0 0.0
        %4189 = vmatpush.msra.mxu0 0.0
        %4190 = vmatpush.msra.mxu0 0.0
        %4191 = vmatpush.msra.mxu0 0.0
        %4192 = vmatpush.msra.mxu0 0.0
        %4193 = vmatpush.msra.mxu0 0.0
        %4194 = vmatpush.msra.mxu0 0.0
        %4195 = vmatpush.msra.mxu0 0.0
        %4196 = vmatpush.msra.mxu0 0.0
        %4197 = vmatpush.msra.mxu0 0.0
        %4198 = vmatpush.msra.mxu0 0.0
        %4199 = vmatpush.msra.mxu0 0.0
        %4200 = vmatpush.msra.mxu0 %v3967
        %4201 = vmatpush.msra.mxu0 %v3966
        %4202 = vmatpush.msra.mxu0 %v3965
        %4203 = vmatpush.msra.mxu0 %v3964
        %4204 = vmatmul.f32.gmra.mxu0 %v4141
        %v4205 = vpop.f32.mrf.mxu0
        %v4206 = vadd.f32 0.0, %v4205
        %4207 = vmatmul.f32.gmra.mxu0 %v4144
        %v4208 = vpop.f32.mrf.mxu0
        %v4209 = vadd.f32 0.0, %v4208
        %4210 = vmatmul.f32.gmra.mxu0 %v4147
        %v4211 = vpop.f32.mrf.mxu0
        %v4212 = vadd.f32 0.0, %v4211
        %4213 = vmatmul.f32.gmra.mxu0 %v4150
        %v4214 = vpop.f32.mrf.mxu0
        %v4215 = vadd.f32 0.0, %v4214
        %4216 = vmatmul.f32.gmra.mxu0 %v4153
        %v4217 = vpop.f32.mrf.mxu0
        %v4218 = vadd.f32 0.0, %v4217
        %4219 = vmatmul.f32.gmra.mxu0 %v4156
        %v4220 = vpop.f32.mrf.mxu0
        %v4221 = vadd.f32 0.0, %v4220
        %4222 = vmatmul.f32.gmra.mxu0 %v4159
        %v4223 = vpop.f32.mrf.mxu0
        %v4224 = vadd.f32 0.0, %v4223
        %4225 = vmatmul.f32.gmra.mxu0 %v4162
        %v4226 = vpop.f32.mrf.mxu0
        %v4227 = vadd.f32 0.0, %v4226
        %4228 = vmatmul.f32.gmra.mxu0 %v4165
        %v4229 = vpop.f32.mrf.mxu0
        %v4230 = vadd.f32 0.0, %v4229
        %4231 = vmatmul.f32.gmra.mxu0 %v4168
        %v4232 = vpop.f32.mrf.mxu0
        %v4233 = vadd.f32 0.0, %v4232
        %4234 = vmatmul.f32.gmra.mxu0 %v4171
        %v4235 = vpop.f32.mrf.mxu0
        %v4236 = vadd.f32 0.0, %v4235
        %4237 = vmatmul.f32.gmra.mxu0 %v4174
        %v4238 = vpop.f32.mrf.mxu0
        %v4239 = vadd.f32 0.0, %v4238
        %4240 = vmatmul.f32.gmra.mxu0 %v4177
        %v4241 = vpop.f32.mrf.mxu0
        %v4242 = vadd.f32 0.0, %v4241
        %4243 = vmatmul.f32.gmra.mxu0 %v4180
        %v4244 = vpop.f32.mrf.mxu0
        %v4245 = vadd.f32 0.0, %v4244
        %4246 = vmatmul.f32.gmra.mxu0 %v4183
        %v4247 = vpop.f32.mrf.mxu0
        %v4248 = vadd.f32 0.0, %v4247
        %4249 = vmatmul.f32.gmra.mxu0 %v4186
        %v4250 = vpop.f32.mrf.mxu0
        %v4251 = vadd.f32 0.0, %v4250
        %4252 = vdwg.mxu0
        %v4254 = vsel %vm2047, %v4060, 0
        %v4257 = vsel %vm2047, %v4061, 0
        %v4260 = vsel %vm2047, %v4062, 0
        %v4263 = vsel %vm2047, %v4063, 0
        %v4266 = vsel %vm2047, %v4064, 0
        %v4269 = vsel %vm2047, %v4065, 0
        %v4272 = vsel %vm2047, %v4066, 0
        %v4275 = vsel %vm2047, %v4067, 0
        %v4278 = vsel %vm2047, %v4068, 0
        %v4281 = vsel %vm2047, %v4069, 0
        %v4284 = vsel %vm2047, %v4070, 0
        %v4287 = vsel %vm2047, %v4071, 0
        %v4290 = vsel %vm2047, %v4072, 0
        %v4293 = vsel %vm2047, %v4073, 0
        %v4296 = vsel %vm2047, %v4074, 0
        %v4299 = vsel %vm2047, %v4075, 0
        %4301 = vmatpush.msra.mxu0 0.0
        %4302 = vmatpush.msra.mxu0 0.0
        %4303 = vmatpush.msra.mxu0 0.0
        %4304 = vmatpush.msra.mxu0 0.0
        %4305 = vmatpush.msra.mxu0 0.0
        %4306 = vmatpush.msra.mxu0 0.0
        %4307 = vmatpush.msra.mxu0 0.0
        %4308 = vmatpush.msra.mxu0 0.0
        %4309 = vmatpush.msra.mxu0 0.0
        %4310 = vmatpush.msra.mxu0 0.0
        %4311 = vmatpush.msra.mxu0 0.0
        %4312 = vmatpush.msra.mxu0 0.0
        %4313 = vmatpush.msra.mxu0 %v3971
        %4314 = vmatpush.msra.mxu0 %v3970
        %4315 = vmatpush.msra.mxu0 %v3969
        %4316 = vmatpush.msra.mxu0 %v3968
        %4317 = vmatmul.f32.gmra.mxu0 %v4254
        %v4318 = vpop.f32.mrf.mxu0
        %v4319 = vadd.f32 0.0, %v4318
        %4320 = vmatmul.f32.gmra.mxu0 %v4257
        %v4321 = vpop.f32.mrf.mxu0
        %v4322 = vadd.f32 0.0, %v4321
        %4323 = vmatmul.f32.gmra.mxu0 %v4260
        %v4324 = vpop.f32.mrf.mxu0
        %v4325 = vadd.f32 0.0, %v4324
        %4326 = vmatmul.f32.gmra.mxu0 %v4263
        %v4327 = vpop.f32.mrf.mxu0
        %v4328 = vadd.f32 0.0, %v4327
        %4329 = vmatmul.f32.gmra.mxu0 %v4266
        %v4330 = vpop.f32.mrf.mxu0
        %v4331 = vadd.f32 0.0, %v4330
        %4332 = vmatmul.f32.gmra.mxu0 %v4269
        %v4333 = vpop.f32.mrf.mxu0
        %v4334 = vadd.f32 0.0, %v4333
        %4335 = vmatmul.f32.gmra.mxu0 %v4272
        %v4336 = vpop.f32.mrf.mxu0
        %v4337 = vadd.f32 0.0, %v4336
        %4338 = vmatmul.f32.gmra.mxu0 %v4275
        %v4339 = vpop.f32.mrf.mxu0
        %v4340 = vadd.f32 0.0, %v4339
        %4341 = vmatmul.f32.gmra.mxu0 %v4278
        %v4342 = vpop.f32.mrf.mxu0
        %v4343 = vadd.f32 0.0, %v4342
        %4344 = vmatmul.f32.gmra.mxu0 %v4281
        %v4345 = vpop.f32.mrf.mxu0
        %v4346 = vadd.f32 0.0, %v4345
        %4347 = vmatmul.f32.gmra.mxu0 %v4284
        %v4348 = vpop.f32.mrf.mxu0
        %v4349 = vadd.f32 0.0, %v4348
        %4350 = vmatmul.f32.gmra.mxu0 %v4287
        %v4351 = vpop.f32.mrf.mxu0
        %v4352 = vadd.f32 0.0, %v4351
        %4353 = vmatmul.f32.gmra.mxu0 %v4290
        %v4354 = vpop.f32.mrf.mxu0
        %v4355 = vadd.f32 0.0, %v4354
        %4356 = vmatmul.f32.gmra.mxu0 %v4293
        %v4357 = vpop.f32.mrf.mxu0
        %v4358 = vadd.f32 0.0, %v4357
        %4359 = vmatmul.f32.gmra.mxu0 %v4296
        %v4360 = vpop.f32.mrf.mxu0
        %v4361 = vadd.f32 0.0, %v4360
        %4362 = vmatmul.f32.gmra.mxu0 %v4299
        %v4363 = vpop.f32.mrf.mxu0
        %v4364 = vadd.f32 0.0, %v4363
        %4365 = vdwg.mxu0
        %v4367 = vsel %vm2047, %v4092, 0
        %v4370 = vsel %vm2047, %v4093, 0
        %v4373 = vsel %vm2047, %v4094, 0
        %v4376 = vsel %vm2047, %v4095, 0
        %v4379 = vsel %vm2047, %v4096, 0
        %v4382 = vsel %vm2047, %v4097, 0
        %v4385 = vsel %vm2047, %v4098, 0
        %v4388 = vsel %vm2047, %v4099, 0
        %v4391 = vsel %vm2047, %v4100, 0
        %v4394 = vsel %vm2047, %v4101, 0
        %v4397 = vsel %vm2047, %v4102, 0
        %v4400 = vsel %vm2047, %v4103, 0
        %v4403 = vsel %vm2047, %v4104, 0
        %v4406 = vsel %vm2047, %v4105, 0
        %v4409 = vsel %vm2047, %v4106, 0
        %v4412 = vsel %vm2047, %v4107, 0
        %4414 = vmatpush.msra.mxu0 0.0
        %4415 = vmatpush.msra.mxu0 0.0
        %4416 = vmatpush.msra.mxu0 0.0
        %4417 = vmatpush.msra.mxu0 0.0
        %4418 = vmatpush.msra.mxu0 0.0
        %4419 = vmatpush.msra.mxu0 0.0
        %4420 = vmatpush.msra.mxu0 0.0
        %4421 = vmatpush.msra.mxu0 0.0
        %4422 = vmatpush.msra.mxu0 0.0
        %4423 = vmatpush.msra.mxu0 0.0
        %4424 = vmatpush.msra.mxu0 0.0
        %4425 = vmatpush.msra.mxu0 0.0
        %4426 = vmatpush.msra.mxu0 %v3975
        %4427 = vmatpush.msra.mxu0 %v3974
        %4428 = vmatpush.msra.mxu0 %v3973
        %4429 = vmatpush.msra.mxu0 %v3972
        %4430 = vmatmul.f32.gmra.mxu0 %v4367
        %v4431 = vpop.f32.mrf.mxu0
        %v4432 = vadd.f32 0.0, %v4431
        %4433 = vmatmul.f32.gmra.mxu0 %v4370
        %v4434 = vpop.f32.mrf.mxu0
        %v4435 = vadd.f32 0.0, %v4434
        %4436 = vmatmul.f32.gmra.mxu0 %v4373
        %v4437 = vpop.f32.mrf.mxu0
        %v4438 = vadd.f32 0.0, %v4437
        %4439 = vmatmul.f32.gmra.mxu0 %v4376
        %v4440 = vpop.f32.mrf.mxu0
        %v4441 = vadd.f32 0.0, %v4440
        %4442 = vmatmul.f32.gmra.mxu0 %v4379
        %v4443 = vpop.f32.mrf.mxu0
        %v4444 = vadd.f32 0.0, %v4443
        %4445 = vmatmul.f32.gmra.mxu0 %v4382
        %v4446 = vpop.f32.mrf.mxu0
        %v4447 = vadd.f32 0.0, %v4446
        %4448 = vmatmul.f32.gmra.mxu0 %v4385
        %v4449 = vpop.f32.mrf.mxu0
        %v4450 = vadd.f32 0.0, %v4449
        %4451 = vmatmul.f32.gmra.mxu0 %v4388
        %v4452 = vpop.f32.mrf.mxu0
        %v4453 = vadd.f32 0.0, %v4452
        %4454 = vmatmul.f32.gmra.mxu0 %v4391
        %v4455 = vpop.f32.mrf.mxu0
        %v4456 = vadd.f32 0.0, %v4455
        %4457 = vmatmul.f32.gmra.mxu0 %v4394
        %v4458 = vpop.f32.mrf.mxu0
        %v4459 = vadd.f32 0.0, %v4458
        %4460 = vmatmul.f32.gmra.mxu0 %v4397
        %v4461 = vpop.f32.mrf.mxu0
        %v4462 = vadd.f32 0.0, %v4461
        %4463 = vmatmul.f32.gmra.mxu0 %v4400
        %v4464 = vpop.f32.mrf.mxu0
        %v4465 = vadd.f32 0.0, %v4464
        %4466 = vmatmul.f32.gmra.mxu0 %v4403
        %v4467 = vpop.f32.mrf.mxu0
        %v4468 = vadd.f32 0.0, %v4467
        %4469 = vmatmul.f32.gmra.mxu0 %v4406
        %v4470 = vpop.f32.mrf.mxu0
        %v4471 = vadd.f32 0.0, %v4470
        %4472 = vmatmul.f32.gmra.mxu0 %v4409
        %v4473 = vpop.f32.mrf.mxu0
        %v4474 = vadd.f32 0.0, %v4473
        %4475 = vmatmul.f32.gmra.mxu0 %v4412
        %v4476 = vpop.f32.mrf.mxu0
        %v4477 = vadd.f32 0.0, %v4476
        %4478 = vdwg.mxu0
        %v4480 = vsel %vm2047, %v4124, 0
        %v4483 = vsel %vm2047, %v4125, 0
        %v4486 = vsel %vm2047, %v4126, 0
        %v4489 = vsel %vm2047, %v4127, 0
        %v4492 = vsel %vm2047, %v4128, 0
        %v4495 = vsel %vm2047, %v4129, 0
        %v4498 = vsel %vm2047, %v4130, 0
        %v4501 = vsel %vm2047, %v4131, 0
        %v4504 = vsel %vm2047, %v4132, 0
        %v4507 = vsel %vm2047, %v4133, 0
        %v4510 = vsel %vm2047, %v4134, 0
        %v4513 = vsel %vm2047, %v4135, 0
        %v4516 = vsel %vm2047, %v4136, 0
        %v4519 = vsel %vm2047, %v4137, 0
        %v4522 = vsel %vm2047, %v4138, 0
        %v4525 = vsel %vm2047, %v4139, 0
        %4527 = vmatpush.msra.mxu0 0.0
        %4528 = vmatpush.msra.mxu0 0.0
        %4529 = vmatpush.msra.mxu0 0.0
        %4530 = vmatpush.msra.mxu0 0.0
        %4531 = vmatpush.msra.mxu0 0.0
        %4532 = vmatpush.msra.mxu0 0.0
        %4533 = vmatpush.msra.mxu0 0.0
        %4534 = vmatpush.msra.mxu0 0.0
        %4535 = vmatpush.msra.mxu0 0.0
        %4536 = vmatpush.msra.mxu0 0.0
        %4537 = vmatpush.msra.mxu0 0.0
        %4538 = vmatpush.msra.mxu0 0.0
        %4539 = vmatpush.msra.mxu0 %v3979
        %4540 = vmatpush.msra.mxu0 %v3978
        %4541 = vmatpush.msra.mxu0 %v3977
        %4542 = vmatpush.msra.mxu0 %v3976
        %4543 = vmatmul.f32.gmra.mxu0 %v4480
        %v4544 = vpop.f32.mrf.mxu0
        %v4545 = vadd.f32 0.0, %v4544
        %4546 = vmatmul.f32.gmra.mxu0 %v4483
        %v4547 = vpop.f32.mrf.mxu0
        %v4548 = vadd.f32 0.0, %v4547
        %4549 = vmatmul.f32.gmra.mxu0 %v4486
        %v4550 = vpop.f32.mrf.mxu0
        %v4551 = vadd.f32 0.0, %v4550
        %4552 = vmatmul.f32.gmra.mxu0 %v4489
        %v4553 = vpop.f32.mrf.mxu0
        %v4554 = vadd.f32 0.0, %v4553
        %4555 = vmatmul.f32.gmra.mxu0 %v4492
        %v4556 = vpop.f32.mrf.mxu0
        %v4557 = vadd.f32 0.0, %v4556
        %4558 = vmatmul.f32.gmra.mxu0 %v4495
        %v4559 = vpop.f32.mrf.mxu0
        %v4560 = vadd.f32 0.0, %v4559
        %4561 = vmatmul.f32.gmra.mxu0 %v4498
        %v4562 = vpop.f32.mrf.mxu0
        %v4563 = vadd.f32 0.0, %v4562
        %4564 = vmatmul.f32.gmra.mxu0 %v4501
        %v4565 = vpop.f32.mrf.mxu0
        %v4566 = vadd.f32 0.0, %v4565
        %4567 = vmatmul.f32.gmra.mxu0 %v4504
        %v4568 = vpop.f32.mrf.mxu0
        %v4569 = vadd.f32 0.0, %v4568
        %4570 = vmatmul.f32.gmra.mxu0 %v4507
        %v4571 = vpop.f32.mrf.mxu0
        %v4572 = vadd.f32 0.0, %v4571
        %4573 = vmatmul.f32.gmra.mxu0 %v4510
        %v4574 = vpop.f32.mrf.mxu0
        %v4575 = vadd.f32 0.0, %v4574
        %4576 = vmatmul.f32.gmra.mxu0 %v4513
        %v4577 = vpop.f32.mrf.mxu0
        %v4578 = vadd.f32 0.0, %v4577
        %4579 = vmatmul.f32.gmra.mxu0 %v4516
        %v4580 = vpop.f32.mrf.mxu0
        %v4581 = vadd.f32 0.0, %v4580
        %4582 = vmatmul.f32.gmra.mxu0 %v4519
        %v4583 = vpop.f32.mrf.mxu0
        %v4584 = vadd.f32 0.0, %v4583
        %4585 = vmatmul.f32.gmra.mxu0 %v4522
        %v4586 = vpop.f32.mrf.mxu0
        %v4587 = vadd.f32 0.0, %v4586
        %4588 = vmatmul.f32.gmra.mxu0 %v4525
        %v4589 = vpop.f32.mrf.mxu0
        %v4590 = vadd.f32 0.0, %v4589
        %4591 = vdwg.mxu0
        %v4592 = vmul.f32 %v4206, 0.17677669
        %v4593 = vmul.f32 %v4209, 0.17677669
        %v4594 = vmul.f32 %v4212, 0.17677669
        %v4595 = vmul.f32 %v4215, 0.17677669
        %v4596 = vmul.f32 %v4218, 0.17677669
        %v4597 = vmul.f32 %v4221, 0.17677669
        %v4598 = vmul.f32 %v4224, 0.17677669
        %v4599 = vmul.f32 %v4227, 0.17677669
        %v4600 = vmul.f32 %v4230, 0.17677669
        %v4601 = vmul.f32 %v4233, 0.17677669
        %v4602 = vmul.f32 %v4236, 0.17677669
        %v4603 = vmul.f32 %v4239, 0.17677669
        %v4604 = vmul.f32 %v4242, 0.17677669
        %v4605 = vmul.f32 %v4245, 0.17677669
        %v4606 = vmul.f32 %v4248, 0.17677669
        %v4607 = vmul.f32 %v4251, 0.17677669
        %v4608 = vmul.f32 %v4319, 0.17677669
        %v4609 = vmul.f32 %v4322, 0.17677669
        %v4610 = vmul.f32 %v4325, 0.17677669
        %v4611 = vmul.f32 %v4328, 0.17677669
        %v4612 = vmul.f32 %v4331, 0.17677669
        %v4613 = vmul.f32 %v4334, 0.17677669
        %v4614 = vmul.f32 %v4337, 0.17677669
        %v4615 = vmul.f32 %v4340, 0.17677669
        %v4616 = vmul.f32 %v4343, 0.17677669
        %v4617 = vmul.f32 %v4346, 0.17677669
        %v4618 = vmul.f32 %v4349, 0.17677669
        %v4619 = vmul.f32 %v4352, 0.17677669
        %v4620 = vmul.f32 %v4355, 0.17677669
        %v4621 = vmul.f32 %v4358, 0.17677669
        %v4622 = vmul.f32 %v4361, 0.17677669
        %v4623 = vmul.f32 %v4364, 0.17677669
        %v4624 = vmul.f32 %v4432, 0.17677669
        %v4625 = vmul.f32 %v4435, 0.17677669
        %v4626 = vmul.f32 %v4438, 0.17677669
        %v4627 = vmul.f32 %v4441, 0.17677669
        %v4628 = vmul.f32 %v4444, 0.17677669
        %v4629 = vmul.f32 %v4447, 0.17677669
        %v4630 = vmul.f32 %v4450, 0.17677669
        %v4631 = vmul.f32 %v4453, 0.17677669
        %v4632 = vmul.f32 %v4456, 0.17677669
        %v4633 = vmul.f32 %v4459, 0.17677669
        %v4634 = vmul.f32 %v4462, 0.17677669
        %v4635 = vmul.f32 %v4465, 0.17677669
        %v4636 = vmul.f32 %v4468, 0.17677669
        %v4637 = vmul.f32 %v4471, 0.17677669
        %v4638 = vmul.f32 %v4474, 0.17677669
        %v4639 = vmul.f32 %v4477, 0.17677669
        %v4640 = vmul.f32 %v4545, 0.17677669
        %v4641 = vmul.f32 %v4548, 0.17677669
        %v4642 = vmul.f32 %v4551, 0.17677669
        %v4643 = vmul.f32 %v4554, 0.17677669
        %v4644 = vmul.f32 %v4557, 0.17677669
        %v4645 = vmul.f32 %v4560, 0.17677669
        %v4646 = vmul.f32 %v4563, 0.17677669
        %v4647 = vmul.f32 %v4566, 0.17677669
        %v4648 = vmul.f32 %v4569, 0.17677669
        %v4649 = vmul.f32 %v4572, 0.17677669
        %v4650 = vmul.f32 %v4575, 0.17677669
        %v4651 = vmul.f32 %v4578, 0.17677669
        %v4652 = vmul.f32 %v4581, 0.17677669
        %v4653 = vmul.f32 %v4584, 0.17677669
        %v4654 = vmul.f32 %v4587, 0.17677669
        %v4655 = vmul.f32 %v4590, 0.17677669
        %4656 = vmax.xlane.f32.xlu0 %v4592
        %v4657 = vpop.xlane.xlu0 %4656
        %4658 = vmax.xlane.f32.xlu0 %v4593
        %v4659 = vpop.xlane.xlu0 %4658
        %4660 = vmax.xlane.f32.xlu0 %v4594
        %v4661 = vpop.xlane.xlu0 %4660
        %4662 = vmax.xlane.f32.xlu0 %v4595
        %v4663 = vpop.xlane.xlu0 %4662
        %4664 = vmax.xlane.f32.xlu0 %v4596
        %v4665 = vpop.xlane.xlu0 %4664
        %4666 = vmax.xlane.f32.xlu0 %v4597
        %v4667 = vpop.xlane.xlu0 %4666
        %4668 = vmax.xlane.f32.xlu0 %v4598
        %v4669 = vpop.xlane.xlu0 %4668
        %4670 = vmax.xlane.f32.xlu0 %v4599
        %v4671 = vpop.xlane.xlu0 %4670
        %4672 = vmax.xlane.f32.xlu0 %v4600
        %v4673 = vpop.xlane.xlu0 %4672
        %4674 = vmax.xlane.f32.xlu0 %v4601
        %v4675 = vpop.xlane.xlu0 %4674
        %4676 = vmax.xlane.f32.xlu0 %v4602
        %v4677 = vpop.xlane.xlu0 %4676
        %4678 = vmax.xlane.f32.xlu0 %v4603
        %v4679 = vpop.xlane.xlu0 %4678
        %4680 = vmax.xlane.f32.xlu0 %v4604
        %v4681 = vpop.xlane.xlu0 %4680
        %4682 = vmax.xlane.f32.xlu0 %v4605
        %v4683 = vpop.xlane.xlu0 %4682
        %4684 = vmax.xlane.f32.xlu0 %v4606
        %v4685 = vpop.xlane.xlu0 %4684
        %4686 = vmax.xlane.f32.xlu0 %v4607
        %v4687 = vpop.xlane.xlu0 %4686
        %4688 = vmax.xlane.f32.xlu0 %v4608
        %v4689 = vpop.xlane.xlu0 %4688
        %4690 = vmax.xlane.f32.xlu0 %v4609
        %v4691 = vpop.xlane.xlu0 %4690
        %4692 = vmax.xlane.f32.xlu0 %v4610
        %v4693 = vpop.xlane.xlu0 %4692
        %4694 = vmax.xlane.f32.xlu0 %v4611
        %v4695 = vpop.xlane.xlu0 %4694
        %4696 = vmax.xlane.f32.xlu0 %v4612
        %v4697 = vpop.xlane.xlu0 %4696
        %4698 = vmax.xlane.f32.xlu0 %v4613
        %v4699 = vpop.xlane.xlu0 %4698
        %4700 = vmax.xlane.f32.xlu0 %v4614
        %v4701 = vpop.xlane.xlu0 %4700
        %4702 = vmax.xlane.f32.xlu0 %v4615
        %v4703 = vpop.xlane.xlu0 %4702
        %4704 = vmax.xlane.f32.xlu0 %v4616
        %v4705 = vpop.xlane.xlu0 %4704
        %4706 = vmax.xlane.f32.xlu0 %v4617
        %v4707 = vpop.xlane.xlu0 %4706
        %4708 = vmax.xlane.f32.xlu0 %v4618
        %v4709 = vpop.xlane.xlu0 %4708
        %4710 = vmax.xlane.f32.xlu0 %v4619
        %v4711 = vpop.xlane.xlu0 %4710
        %4712 = vmax.xlane.f32.xlu0 %v4620
        %v4713 = vpop.xlane.xlu0 %4712
        %4714 = vmax.xlane.f32.xlu0 %v4621
        %v4715 = vpop.xlane.xlu0 %4714
        %4716 = vmax.xlane.f32.xlu0 %v4622
        %v4717 = vpop.xlane.xlu0 %4716
        %4718 = vmax.xlane.f32.xlu0 %v4623
        %v4719 = vpop.xlane.xlu0 %4718
        %4720 = vmax.xlane.f32.xlu0 %v4624
        %v4721 = vpop.xlane.xlu0 %4720
        %4722 = vmax.xlane.f32.xlu0 %v4625
        %v4723 = vpop.xlane.xlu0 %4722
        %4724 = vmax.xlane.f32.xlu0 %v4626
        %v4725 = vpop.xlane.xlu0 %4724
        %4726 = vmax.xlane.f32.xlu0 %v4627
        %v4727 = vpop.xlane.xlu0 %4726
        %4728 = vmax.xlane.f32.xlu0 %v4628
        %v4729 = vpop.xlane.xlu0 %4728
        %4730 = vmax.xlane.f32.xlu0 %v4629
        %v4731 = vpop.xlane.xlu0 %4730
        %4732 = vmax.xlane.f32.xlu0 %v4630
        %v4733 = vpop.xlane.xlu0 %4732
        %4734 = vmax.xlane.f32.xlu0 %v4631
        %v4735 = vpop.xlane.xlu0 %4734
        %4736 = vmax.xlane.f32.xlu0 %v4632
        %v4737 = vpop.xlane.xlu0 %4736
        %4738 = vmax.xlane.f32.xlu0 %v4633
        %v4739 = vpop.xlane.xlu0 %4738
        %4740 = vmax.xlane.f32.xlu0 %v4634
        %v4741 = vpop.xlane.xlu0 %4740
        %4742 = vmax.xlane.f32.xlu0 %v4635
        %v4743 = vpop.xlane.xlu0 %4742
        %4744 = vmax.xlane.f32.xlu0 %v4636
        %v4745 = vpop.xlane.xlu0 %4744
        %4746 = vmax.xlane.f32.xlu0 %v4637
        %v4747 = vpop.xlane.xlu0 %4746
        %4748 = vmax.xlane.f32.xlu0 %v4638
        %v4749 = vpop.xlane.xlu0 %4748
        %4750 = vmax.xlane.f32.xlu0 %v4639
        %v4751 = vpop.xlane.xlu0 %4750
        %4752 = vmax.xlane.f32.xlu0 %v4640
        %v4753 = vpop.xlane.xlu0 %4752
        %4754 = vmax.xlane.f32.xlu0 %v4641
        %v4755 = vpop.xlane.xlu0 %4754
        %4756 = vmax.xlane.f32.xlu0 %v4642
        %v4757 = vpop.xlane.xlu0 %4756
        %4758 = vmax.xlane.f32.xlu0 %v4643
        %v4759 = vpop.xlane.xlu0 %4758
        %4760 = vmax.xlane.f32.xlu0 %v4644
        %v4761 = vpop.xlane.xlu0 %4760
        %4762 = vmax.xlane.f32.xlu0 %v4645
        %v4763 = vpop.xlane.xlu0 %4762
        %4764 = vmax.xlane.f32.xlu0 %v4646
        %v4765 = vpop.xlane.xlu0 %4764
        %4766 = vmax.xlane.f32.xlu0 %v4647
        %v4767 = vpop.xlane.xlu0 %4766
        %4768 = vmax.xlane.f32.xlu0 %v4648
        %v4769 = vpop.xlane.xlu0 %4768
        %4770 = vmax.xlane.f32.xlu0 %v4649
        %v4771 = vpop.xlane.xlu0 %4770
        %4772 = vmax.xlane.f32.xlu0 %v4650
        %v4773 = vpop.xlane.xlu0 %4772
        %4774 = vmax.xlane.f32.xlu0 %v4651
        %v4775 = vpop.xlane.xlu0 %4774
        %4776 = vmax.xlane.f32.xlu0 %v4652
        %v4777 = vpop.xlane.xlu0 %4776
        %4778 = vmax.xlane.f32.xlu0 %v4653
        %v4779 = vpop.xlane.xlu0 %4778
        %4780 = vmax.xlane.f32.xlu0 %v4654
        %v4781 = vpop.xlane.xlu0 %4780
        %4782 = vmax.xlane.f32.xlu0 %v4655
        %v4783 = vpop.xlane.xlu0 %4782
        %v4784 = vsub.f32 %v4592, %v4657
        %v4785 = vsub.f32 %v4593, %v4659
        %v4786 = vsub.f32 %v4594, %v4661
        %v4787 = vsub.f32 %v4595, %v4663
        %v4788 = vsub.f32 %v4596, %v4665
        %v4789 = vsub.f32 %v4597, %v4667
        %v4790 = vsub.f32 %v4598, %v4669
        %v4791 = vsub.f32 %v4599, %v4671
        %v4792 = vsub.f32 %v4600, %v4673
        %v4793 = vsub.f32 %v4601, %v4675
        %v4794 = vsub.f32 %v4602, %v4677
        %v4795 = vsub.f32 %v4603, %v4679
        %v4796 = vsub.f32 %v4604, %v4681
        %v4797 = vsub.f32 %v4605, %v4683
        %v4798 = vsub.f32 %v4606, %v4685
        %v4799 = vsub.f32 %v4607, %v4687
        %v4800 = vsub.f32 %v4608, %v4689
        %v4801 = vsub.f32 %v4609, %v4691
        %v4802 = vsub.f32 %v4610, %v4693
        %v4803 = vsub.f32 %v4611, %v4695
        %v4804 = vsub.f32 %v4612, %v4697
        %v4805 = vsub.f32 %v4613, %v4699
        %v4806 = vsub.f32 %v4614, %v4701
        %v4807 = vsub.f32 %v4615, %v4703
        %v4808 = vsub.f32 %v4616, %v4705
        %v4809 = vsub.f32 %v4617, %v4707
        %v4810 = vsub.f32 %v4618, %v4709
        %v4811 = vsub.f32 %v4619, %v4711
        %v4812 = vsub.f32 %v4620, %v4713
        %v4813 = vsub.f32 %v4621, %v4715
        %v4814 = vsub.f32 %v4622, %v4717
        %v4815 = vsub.f32 %v4623, %v4719
        %v4816 = vsub.f32 %v4624, %v4721
        %v4817 = vsub.f32 %v4625, %v4723
        %v4818 = vsub.f32 %v4626, %v4725
        %v4819 = vsub.f32 %v4627, %v4727
        %v4820 = vsub.f32 %v4628, %v4729
        %v4821 = vsub.f32 %v4629, %v4731
        %v4822 = vsub.f32 %v4630, %v4733
        %v4823 = vsub.f32 %v4631, %v4735
        %v4824 = vsub.f32 %v4632, %v4737
        %v4825 = vsub.f32 %v4633, %v4739
        %v4826 = vsub.f32 %v4634, %v4741
        %v4827 = vsub.f32 %v4635, %v4743
        %v4828 = vsub.f32 %v4636, %v4745
        %v4829 = vsub.f32 %v4637, %v4747
        %v4830 = vsub.f32 %v4638, %v4749
        %v4831 = vsub.f32 %v4639, %v4751
        %v4832 = vsub.f32 %v4640, %v4753
        %v4833 = vsub.f32 %v4641, %v4755
        %v4834 = vsub.f32 %v4642, %v4757
        %v4835 = vsub.f32 %v4643, %v4759
        %v4836 = vsub.f32 %v4644, %v4761
        %v4837 = vsub.f32 %v4645, %v4763
        %v4838 = vsub.f32 %v4646, %v4765
        %v4839 = vsub.f32 %v4647, %v4767
        %v4840 = vsub.f32 %v4648, %v4769
        %v4841 = vsub.f32 %v4649, %v4771
        %v4842 = vsub.f32 %v4650, %v4773
        %v4843 = vsub.f32 %v4651, %v4775
        %v4844 = vsub.f32 %v4652, %v4777
        %v4845 = vsub.f32 %v4653, %v4779
        %v4846 = vsub.f32 %v4654, %v4781
        %v4847 = vsub.f32 %v4655, %v4783
        %v4848 = vmul.f32 %v4784, 1.442695
        %v4849 = vpow.pop %v4848
        %v4850 = vmul.f32 %v4785, 1.442695
        %v4851 = vpow.pop %v4850
        %v4852 = vmul.f32 %v4786, 1.442695
        %v4853 = vpow.pop %v4852
        %v4854 = vmul.f32 %v4787, 1.442695
        %v4855 = vpow.pop %v4854
        %v4856 = vmul.f32 %v4788, 1.442695
        %v4857 = vpow.pop %v4856
        %v4858 = vmul.f32 %v4789, 1.442695
        %v4859 = vpow.pop %v4858
        %v4860 = vmul.f32 %v4790, 1.442695
        %v4861 = vpow.pop %v4860
        %v4862 = vmul.f32 %v4791, 1.442695
        %v4863 = vpow.pop %v4862
        %v4864 = vmul.f32 %v4792, 1.442695
        %v4865 = vpow.pop %v4864
        %v4866 = vmul.f32 %v4793, 1.442695
        %v4867 = vpow.pop %v4866
        %v4868 = vmul.f32 %v4794, 1.442695
        %v4869 = vpow.pop %v4868
        %v4870 = vmul.f32 %v4795, 1.442695
        %v4871 = vpow.pop %v4870
        %v4872 = vmul.f32 %v4796, 1.442695
        %v4873 = vpow.pop %v4872
        %v4874 = vmul.f32 %v4797, 1.442695
        %v4875 = vpow.pop %v4874
        %v4876 = vmul.f32 %v4798, 1.442695
        %v4877 = vpow.pop %v4876
        %v4878 = vmul.f32 %v4799, 1.442695
        %v4879 = vpow.pop %v4878
        %v4880 = vmul.f32 %v4800, 1.442695
        %v4881 = vpow.pop %v4880
        %v4882 = vmul.f32 %v4801, 1.442695
        %v4883 = vpow.pop %v4882
        %v4884 = vmul.f32 %v4802, 1.442695
        %v4885 = vpow.pop %v4884
        %v4886 = vmul.f32 %v4803, 1.442695
        %v4887 = vpow.pop %v4886
        %v4888 = vmul.f32 %v4804, 1.442695
        %v4889 = vpow.pop %v4888
        %v4890 = vmul.f32 %v4805, 1.442695
        %v4891 = vpow.pop %v4890
        %v4892 = vmul.f32 %v4806, 1.442695
        %v4893 = vpow.pop %v4892
        %v4894 = vmul.f32 %v4807, 1.442695
        %v4895 = vpow.pop %v4894
        %v4896 = vmul.f32 %v4808, 1.442695
        %v4897 = vpow.pop %v4896
        %v4898 = vmul.f32 %v4809, 1.442695
        %v4899 = vpow.pop %v4898
        %v4900 = vmul.f32 %v4810, 1.442695
        %v4901 = vpow.pop %v4900
        %v4902 = vmul.f32 %v4811, 1.442695
        %v4903 = vpow.pop %v4902
        %v4904 = vmul.f32 %v4812, 1.442695
        %v4905 = vpow.pop %v4904
        %v4906 = vmul.f32 %v4813, 1.442695
        %v4907 = vpow.pop %v4906
        %v4908 = vmul.f32 %v4814, 1.442695
        %v4909 = vpow.pop %v4908
        %v4910 = vmul.f32 %v4815, 1.442695
        %v4911 = vpow.pop %v4910
        %v4912 = vmul.f32 %v4816, 1.442695
        %v4913 = vpow.pop %v4912
        %v4914 = vmul.f32 %v4817, 1.442695
        %v4915 = vpow.pop %v4914
        %v4916 = vmul.f32 %v4818, 1.442695
        %v4917 = vpow.pop %v4916
        %v4918 = vmul.f32 %v4819, 1.442695
        %v4919 = vpow.pop %v4918
        %v4920 = vmul.f32 %v4820, 1.442695
        %v4921 = vpow.pop %v4920
        %v4922 = vmul.f32 %v4821, 1.442695
        %v4923 = vpow.pop %v4922
        %v4924 = vmul.f32 %v4822, 1.442695
        %v4925 = vpow.pop %v4924
        %v4926 = vmul.f32 %v4823, 1.442695
        %v4927 = vpow.pop %v4926
        %v4928 = vmul.f32 %v4824, 1.442695
        %v4929 = vpow.pop %v4928
        %v4930 = vmul.f32 %v4825, 1.442695
        %v4931 = vpow.pop %v4930
        %v4932 = vmul.f32 %v4826, 1.442695
        %v4933 = vpow.pop %v4932
        %v4934 = vmul.f32 %v4827, 1.442695
        %v4935 = vpow.pop %v4934
        %v4936 = vmul.f32 %v4828, 1.442695
        %v4937 = vpow.pop %v4936
        %v4938 = vmul.f32 %v4829, 1.442695
        %v4939 = vpow.pop %v4938
        %v4940 = vmul.f32 %v4830, 1.442695
        %v4941 = vpow.pop %v4940
        %v4942 = vmul.f32 %v4831, 1.442695
        %v4943 = vpow.pop %v4942
        %v4944 = vmul.f32 %v4832, 1.442695
        %v4945 = vpow.pop %v4944
        %v4946 = vmul.f32 %v4833, 1.442695
        %v4947 = vpow.pop %v4946
        %v4948 = vmul.f32 %v4834, 1.442695
        %v4949 = vpow.pop %v4948
        %v4950 = vmul.f32 %v4835, 1.442695
        %v4951 = vpow.pop %v4950
        %v4952 = vmul.f32 %v4836, 1.442695
        %v4953 = vpow.pop %v4952
        %v4954 = vmul.f32 %v4837, 1.442695
        %v4955 = vpow.pop %v4954
        %v4956 = vmul.f32 %v4838, 1.442695
        %v4957 = vpow.pop %v4956
        %v4958 = vmul.f32 %v4839, 1.442695
        %v4959 = vpow.pop %v4958
        %v4960 = vmul.f32 %v4840, 1.442695
        %v4961 = vpow.pop %v4960
        %v4962 = vmul.f32 %v4841, 1.442695
        %v4963 = vpow.pop %v4962
        %v4964 = vmul.f32 %v4842, 1.442695
        %v4965 = vpow.pop %v4964
        %v4966 = vmul.f32 %v4843, 1.442695
        %v4967 = vpow.pop %v4966
        %v4968 = vmul.f32 %v4844, 1.442695
        %v4969 = vpow.pop %v4968
        %v4970 = vmul.f32 %v4845, 1.442695
        %v4971 = vpow.pop %v4970
        %v4972 = vmul.f32 %v4846, 1.442695
        %v4973 = vpow.pop %v4972
        %v4974 = vmul.f32 %v4847, 1.442695
        %v4975 = vpow.pop %v4974
        %4976 = vadd.xlane.f32.xlu0 %v4849
        %v4977 = vpop.xlane.xlu0 %4976
        %4978 = vadd.xlane.f32.xlu0 %v4851
        %v4979 = vpop.xlane.xlu0 %4978
        %4980 = vadd.xlane.f32.xlu0 %v4853
        %v4981 = vpop.xlane.xlu0 %4980
        %4982 = vadd.xlane.f32.xlu0 %v4855
        %v4983 = vpop.xlane.xlu0 %4982
        %4984 = vadd.xlane.f32.xlu0 %v4857
        %v4985 = vpop.xlane.xlu0 %4984
        %4986 = vadd.xlane.f32.xlu0 %v4859
        %v4987 = vpop.xlane.xlu0 %4986
        %4988 = vadd.xlane.f32.xlu0 %v4861
        %v4989 = vpop.xlane.xlu0 %4988
        %4990 = vadd.xlane.f32.xlu0 %v4863
        %v4991 = vpop.xlane.xlu0 %4990
        %4992 = vadd.xlane.f32.xlu0 %v4865
        %v4993 = vpop.xlane.xlu0 %4992
        %4994 = vadd.xlane.f32.xlu0 %v4867
        %v4995 = vpop.xlane.xlu0 %4994
        %4996 = vadd.xlane.f32.xlu0 %v4869
        %v4997 = vpop.xlane.xlu0 %4996
        %4998 = vadd.xlane.f32.xlu0 %v4871
        %v4999 = vpop.xlane.xlu0 %4998
        %5000 = vadd.xlane.f32.xlu0 %v4873
        %v5001 = vpop.xlane.xlu0 %5000
        %5002 = vadd.xlane.f32.xlu0 %v4875
        %v5003 = vpop.xlane.xlu0 %5002
        %5004 = vadd.xlane.f32.xlu0 %v4877
        %v5005 = vpop.xlane.xlu0 %5004
        %5006 = vadd.xlane.f32.xlu0 %v4879
        %v5007 = vpop.xlane.xlu0 %5006
        %5008 = vadd.xlane.f32.xlu0 %v4881
        %v5009 = vpop.xlane.xlu0 %5008
        %5010 = vadd.xlane.f32.xlu0 %v4883
        %v5011 = vpop.xlane.xlu0 %5010
        %5012 = vadd.xlane.f32.xlu0 %v4885
        %v5013 = vpop.xlane.xlu0 %5012
        %5014 = vadd.xlane.f32.xlu0 %v4887
        %v5015 = vpop.xlane.xlu0 %5014
        %5016 = vadd.xlane.f32.xlu0 %v4889
        %v5017 = vpop.xlane.xlu0 %5016
        %5018 = vadd.xlane.f32.xlu0 %v4891
        %v5019 = vpop.xlane.xlu0 %5018
        %5020 = vadd.xlane.f32.xlu0 %v4893
        %v5021 = vpop.xlane.xlu0 %5020
        %5022 = vadd.xlane.f32.xlu0 %v4895
        %v5023 = vpop.xlane.xlu0 %5022
        %5024 = vadd.xlane.f32.xlu0 %v4897
        %v5025 = vpop.xlane.xlu0 %5024
        %5026 = vadd.xlane.f32.xlu0 %v4899
        %v5027 = vpop.xlane.xlu0 %5026
        %5028 = vadd.xlane.f32.xlu0 %v4901
        %v5029 = vpop.xlane.xlu0 %5028
        %5030 = vadd.xlane.f32.xlu0 %v4903
        %v5031 = vpop.xlane.xlu0 %5030
        %5032 = vadd.xlane.f32.xlu0 %v4905
        %v5033 = vpop.xlane.xlu0 %5032
        %5034 = vadd.xlane.f32.xlu0 %v4907
        %v5035 = vpop.xlane.xlu0 %5034
        %5036 = vadd.xlane.f32.xlu0 %v4909
        %v5037 = vpop.xlane.xlu0 %5036
        %5038 = vadd.xlane.f32.xlu0 %v4911
        %v5039 = vpop.xlane.xlu0 %5038
        %5040 = vadd.xlane.f32.xlu0 %v4913
        %v5041 = vpop.xlane.xlu0 %5040
        %5042 = vadd.xlane.f32.xlu0 %v4915
        %v5043 = vpop.xlane.xlu0 %5042
        %5044 = vadd.xlane.f32.xlu0 %v4917
        %v5045 = vpop.xlane.xlu0 %5044
        %5046 = vadd.xlane.f32.xlu0 %v4919
        %v5047 = vpop.xlane.xlu0 %5046
        %5048 = vadd.xlane.f32.xlu0 %v4921
        %v5049 = vpop.xlane.xlu0 %5048
        %5050 = vadd.xlane.f32.xlu0 %v4923
        %v5051 = vpop.xlane.xlu0 %5050
        %5052 = vadd.xlane.f32.xlu0 %v4925
        %v5053 = vpop.xlane.xlu0 %5052
        %5054 = vadd.xlane.f32.xlu0 %v4927
        %v5055 = vpop.xlane.xlu0 %5054
        %5056 = vadd.xlane.f32.xlu0 %v4929
        %v5057 = vpop.xlane.xlu0 %5056
        %5058 = vadd.xlane.f32.xlu0 %v4931
        %v5059 = vpop.xlane.xlu0 %5058
        %5060 = vadd.xlane.f32.xlu0 %v4933
        %v5061 = vpop.xlane.xlu0 %5060
        %5062 = vadd.xlane.f32.xlu0 %v4935
        %v5063 = vpop.xlane.xlu0 %5062
        %5064 = vadd.xlane.f32.xlu0 %v4937
        %v5065 = vpop.xlane.xlu0 %5064
        %5066 = vadd.xlane.f32.xlu0 %v4939
        %v5067 = vpop.xlane.xlu0 %5066
        %5068 = vadd.xlane.f32.xlu0 %v4941
        %v5069 = vpop.xlane.xlu0 %5068
        %5070 = vadd.xlane.f32.xlu0 %v4943
        %v5071 = vpop.xlane.xlu0 %5070
        %5072 = vadd.xlane.f32.xlu0 %v4945
        %v5073 = vpop.xlane.xlu0 %5072
        %5074 = vadd.xlane.f32.xlu0 %v4947
        %v5075 = vpop.xlane.xlu0 %5074
        %5076 = vadd.xlane.f32.xlu0 %v4949
        %v5077 = vpop.xlane.xlu0 %5076
        %5078 = vadd.xlane.f32.xlu0 %v4951
        %v5079 = vpop.xlane.xlu0 %5078
        %5080 = vadd.xlane.f32.xlu0 %v4953
        %v5081 = vpop.xlane.xlu0 %5080
        %5082 = vadd.xlane.f32.xlu0 %v4955
        %v5083 = vpop.xlane.xlu0 %5082
        %5084 = vadd.xlane.f32.xlu0 %v4957
        %v5085 = vpop.xlane.xlu0 %5084
        %5086 = vadd.xlane.f32.xlu0 %v4959
        %v5087 = vpop.xlane.xlu0 %5086
        %5088 = vadd.xlane.f32.xlu0 %v4961
        %v5089 = vpop.xlane.xlu0 %5088
        %5090 = vadd.xlane.f32.xlu0 %v4963
        %v5091 = vpop.xlane.xlu0 %5090
        %5092 = vadd.xlane.f32.xlu0 %v4965
        %v5093 = vpop.xlane.xlu0 %5092
        %5094 = vadd.xlane.f32.xlu0 %v4967
        %v5095 = vpop.xlane.xlu0 %5094
        %5096 = vadd.xlane.f32.xlu0 %v4969
        %v5097 = vpop.xlane.xlu0 %5096
        %5098 = vadd.xlane.f32.xlu0 %v4971
        %v5099 = vpop.xlane.xlu0 %5098
        %5100 = vadd.xlane.f32.xlu0 %v4973
        %v5101 = vpop.xlane.xlu0 %5100
        %5102 = vadd.xlane.f32.xlu0 %v4975
        %v5103 = vpop.xlane.xlu0 %5102
        %v5104 = vrcp.pop %v4977
        %v5105 = vrcp.pop %v4979
        %v5106 = vrcp.pop %v4981
        %v5107 = vrcp.pop %v4983
        %v5108 = vrcp.pop %v4985
        %v5109 = vrcp.pop %v4987
        %v5110 = vrcp.pop %v4989
        %v5111 = vrcp.pop %v4991
        %v5112 = vrcp.pop %v4993
        %v5113 = vrcp.pop %v4995
        %v5114 = vrcp.pop %v4997
        %v5115 = vrcp.pop %v4999
        %v5116 = vrcp.pop %v5001
        %v5117 = vrcp.pop %v5003
        %v5118 = vrcp.pop %v5005
        %v5119 = vrcp.pop %v5007
        %v5120 = vrcp.pop %v5009
        %v5121 = vrcp.pop %v5011
        %v5122 = vrcp.pop %v5013
        %v5123 = vrcp.pop %v5015
        %v5124 = vrcp.pop %v5017
        %v5125 = vrcp.pop %v5019
        %v5126 = vrcp.pop %v5021
        %v5127 = vrcp.pop %v5023
        %v5128 = vrcp.pop %v5025
        %v5129 = vrcp.pop %v5027
        %v5130 = vrcp.pop %v5029
        %v5131 = vrcp.pop %v5031
        %v5132 = vrcp.pop %v5033
        %v5133 = vrcp.pop %v5035
        %v5134 = vrcp.pop %v5037
        %v5135 = vrcp.pop %v5039
        %v5136 = vrcp.pop %v5041
        %v5137 = vrcp.pop %v5043
        %v5138 = vrcp.pop %v5045
        %v5139 = vrcp.pop %v5047
        %v5140 = vrcp.pop %v5049
        %v5141 = vrcp.pop %v5051
        %v5142 = vrcp.pop %v5053
        %v5143 = vrcp.pop %v5055
        %v5144 = vrcp.pop %v5057
        %v5145 = vrcp.pop %v5059
        %v5146 = vrcp.pop %v5061
        %v5147 = vrcp.pop %v5063
        %v5148 = vrcp.pop %v5065
        %v5149 = vrcp.pop %v5067
        %v5150 = vrcp.pop %v5069
        %v5151 = vrcp.pop %v5071
        %v5152 = vrcp.pop %v5073
        %v5153 = vrcp.pop %v5075
        %v5154 = vrcp.pop %v5077
        %v5155 = vrcp.pop %v5079
        %v5156 = vrcp.pop %v5081
        %v5157 = vrcp.pop %v5083
        %v5158 = vrcp.pop %v5085
        %v5159 = vrcp.pop %v5087
        %v5160 = vrcp.pop %v5089
        %v5161 = vrcp.pop %v5091
        %v5162 = vrcp.pop %v5093
        %v5163 = vrcp.pop %v5095
        %v5164 = vrcp.pop %v5097
        %v5165 = vrcp.pop %v5099
        %v5166 = vrcp.pop %v5101
        %v5167 = vrcp.pop %v5103
        %v5168 = vmul.f32 %v4849, %v5104
        %v5169 = vmul.f32 %v4851, %v5105
        %v5170 = vmul.f32 %v4853, %v5106
        %v5171 = vmul.f32 %v4855, %v5107
        %v5172 = vmul.f32 %v4857, %v5108
        %v5173 = vmul.f32 %v4859, %v5109
        %v5174 = vmul.f32 %v4861, %v5110
        %v5175 = vmul.f32 %v4863, %v5111
        %v5176 = vmul.f32 %v4865, %v5112
        %v5177 = vmul.f32 %v4867, %v5113
        %v5178 = vmul.f32 %v4869, %v5114
        %v5179 = vmul.f32 %v4871, %v5115
        %v5180 = vmul.f32 %v4873, %v5116
        %v5181 = vmul.f32 %v4875, %v5117
        %v5182 = vmul.f32 %v4877, %v5118
        %v5183 = vmul.f32 %v4879, %v5119
        %v5184 = vmul.f32 %v4881, %v5120
        %v5185 = vmul.f32 %v4883, %v5121
        %v5186 = vmul.f32 %v4885, %v5122
        %v5187 = vmul.f32 %v4887, %v5123
        %v5188 = vmul.f32 %v4889, %v5124
        %v5189 = vmul.f32 %v4891, %v5125
        %v5190 = vmul.f32 %v4893, %v5126
        %v5191 = vmul.f32 %v4895, %v5127
        %v5192 = vmul.f32 %v4897, %v5128
        %v5193 = vmul.f32 %v4899, %v5129
        %v5194 = vmul.f32 %v4901, %v5130
        %v5195 = vmul.f32 %v4903, %v5131
        %v5196 = vmul.f32 %v4905, %v5132
        %v5197 = vmul.f32 %v4907, %v5133
        %v5198 = vmul.f32 %v4909, %v5134
        %v5199 = vmul.f32 %v4911, %v5135
        %v5200 = vmul.f32 %v4913, %v5136
        %v5201 = vmul.f32 %v4915, %v5137
        %v5202 = vmul.f32 %v4917, %v5138
        %v5203 = vmul.f32 %v4919, %v5139
        %v5204 = vmul.f32 %v4921, %v5140
        %v5205 = vmul.f32 %v4923, %v5141
        %v5206 = vmul.f32 %v4925, %v5142
        %v5207 = vmul.f32 %v4927, %v5143
        %v5208 = vmul.f32 %v4929, %v5144
        %v5209 = vmul.f32 %v4931, %v5145
        %v5210 = vmul.f32 %v4933, %v5146
        %v5211 = vmul.f32 %v4935, %v5147
        %v5212 = vmul.f32 %v4937, %v5148
        %v5213 = vmul.f32 %v4939, %v5149
        %v5214 = vmul.f32 %v4941, %v5150
        %v5215 = vmul.f32 %v4943, %v5151
        %v5216 = vmul.f32 %v4945, %v5152
        %v5217 = vmul.f32 %v4947, %v5153
        %v5218 = vmul.f32 %v4949, %v5154
        %v5219 = vmul.f32 %v4951, %v5155
        %v5220 = vmul.f32 %v4953, %v5156
        %v5221 = vmul.f32 %v4955, %v5157
        %v5222 = vmul.f32 %v4957, %v5158
        %v5223 = vmul.f32 %v4959, %v5159
        %v5224 = vmul.f32 %v4961, %v5160
        %v5225 = vmul.f32 %v4963, %v5161
        %v5226 = vmul.f32 %v4965, %v5162
        %v5227 = vmul.f32 %v4967, %v5163
        %v5228 = vmul.f32 %v4969, %v5164
        %v5229 = vmul.f32 %v4971, %v5165
        %v5230 = vmul.f32 %v4973, %v5166
        %v5231 = vmul.f32 %v4975, %v5167
        %5232 = vmatpush.xpose.msra.mxu0 0.0
        %5233 = vmatpush.xpose.msra.mxu0 0.0
        %5234 = vmatpush.xpose.msra.mxu0 0.0
        %5235 = vmatpush.xpose.msra.mxu0 0.0
        %5236 = vmatpush.xpose.msra.mxu0 0.0
        %5237 = vmatpush.xpose.msra.mxu0 0.0
        %5238 = vmatpush.xpose.msra.mxu0 0.0
        %5239 = vmatpush.xpose.msra.mxu0 0.0
        %5240 = vmatpush.xpose.msra.mxu0 0.0
        %5241 = vmatpush.xpose.msra.mxu0 0.0
        %5242 = vmatpush.xpose.msra.mxu0 0.0
        %5243 = vmatpush.xpose.msra.mxu0 0.0
        %5244 = vmatpush.xpose.msra.mxu0 %v3999
        %5245 = vmatpush.xpose.msra.mxu0 %v3998
        %5246 = vmatpush.xpose.msra.mxu0 %v3997
        %5247 = vmatpush.xpose.msra.mxu0 %v3996
        %5248 = vmatmul.f32.gmra.mxu0 %v5168
        %v5249 = vpop.f32.mrf.mxu0
        %v5250 = vadd.f32 0.0, %v5249
        %5251 = vmatmul.f32.gmra.mxu0 %v5169
        %v5252 = vpop.f32.mrf.mxu0
        %v5253 = vadd.f32 0.0, %v5252
        %5254 = vmatmul.f32.gmra.mxu0 %v5170
        %v5255 = vpop.f32.mrf.mxu0
        %v5256 = vadd.f32 0.0, %v5255
        %5257 = vmatmul.f32.gmra.mxu0 %v5171
        %v5258 = vpop.f32.mrf.mxu0
        %v5259 = vadd.f32 0.0, %v5258
        %5260 = vmatmul.f32.gmra.mxu0 %v5172
        %v5261 = vpop.f32.mrf.mxu0
        %v5262 = vadd.f32 0.0, %v5261
        %5263 = vmatmul.f32.gmra.mxu0 %v5173
        %v5264 = vpop.f32.mrf.mxu0
        %v5265 = vadd.f32 0.0, %v5264
        %5266 = vmatmul.f32.gmra.mxu0 %v5174
        %v5267 = vpop.f32.mrf.mxu0
        %v5268 = vadd.f32 0.0, %v5267
        %5269 = vmatmul.f32.gmra.mxu0 %v5175
        %v5270 = vpop.f32.mrf.mxu0
        %v5271 = vadd.f32 0.0, %v5270
        %5272 = vmatmul.f32.gmra.mxu0 %v5176
        %v5273 = vpop.f32.mrf.mxu0
        %v5274 = vadd.f32 0.0, %v5273
        %5275 = vmatmul.f32.gmra.mxu0 %v5177
        %v5276 = vpop.f32.mrf.mxu0
        %v5277 = vadd.f32 0.0, %v5276
        %5278 = vmatmul.f32.gmra.mxu0 %v5178
        %v5279 = vpop.f32.mrf.mxu0
        %v5280 = vadd.f32 0.0, %v5279
        %5281 = vmatmul.f32.gmra.mxu0 %v5179
        %v5282 = vpop.f32.mrf.mxu0
        %v5283 = vadd.f32 0.0, %v5282
        %5284 = vmatmul.f32.gmra.mxu0 %v5180
        %v5285 = vpop.f32.mrf.mxu0
        %v5286 = vadd.f32 0.0, %v5285
        %5287 = vmatmul.f32.gmra.mxu0 %v5181
        %v5288 = vpop.f32.mrf.mxu0
        %v5289 = vadd.f32 0.0, %v5288
        %5290 = vmatmul.f32.gmra.mxu0 %v5182
        %v5291 = vpop.f32.mrf.mxu0
        %v5292 = vadd.f32 0.0, %v5291
        %5293 = vmatmul.f32.gmra.mxu0 %v5183
        %v5294 = vpop.f32.mrf.mxu0
        %v5295 = vadd.f32 0.0, %v5294
        %5296 = vdwg.mxu0
        %5297 = vmatpush.xpose.msra.mxu0 0.0
        %5298 = vmatpush.xpose.msra.mxu0 0.0
        %5299 = vmatpush.xpose.msra.mxu0 0.0
        %5300 = vmatpush.xpose.msra.mxu0 0.0
        %5301 = vmatpush.xpose.msra.mxu0 0.0
        %5302 = vmatpush.xpose.msra.mxu0 0.0
        %5303 = vmatpush.xpose.msra.mxu0 0.0
        %5304 = vmatpush.xpose.msra.mxu0 0.0
        %5305 = vmatpush.xpose.msra.mxu0 0.0
        %5306 = vmatpush.xpose.msra.mxu0 0.0
        %5307 = vmatpush.xpose.msra.mxu0 0.0
        %5308 = vmatpush.xpose.msra.mxu0 0.0
        %5309 = vmatpush.xpose.msra.mxu0 %v4003
        %5310 = vmatpush.xpose.msra.mxu0 %v4002
        %5311 = vmatpush.xpose.msra.mxu0 %v4001
        %5312 = vmatpush.xpose.msra.mxu0 %v4000
        %5313 = vmatmul.f32.gmra.mxu0 %v5184
        %v5314 = vpop.f32.mrf.mxu0
        %v5315 = vadd.f32 0.0, %v5314
        %5316 = vmatmul.f32.gmra.mxu0 %v5185
        %v5317 = vpop.f32.mrf.mxu0
        %v5318 = vadd.f32 0.0, %v5317
        %5319 = vmatmul.f32.gmra.mxu0 %v5186
        %v5320 = vpop.f32.mrf.mxu0
        %v5321 = vadd.f32 0.0, %v5320
        %5322 = vmatmul.f32.gmra.mxu0 %v5187
        %v5323 = vpop.f32.mrf.mxu0
        %v5324 = vadd.f32 0.0, %v5323
        %5325 = vmatmul.f32.gmra.mxu0 %v5188
        %v5326 = vpop.f32.mrf.mxu0
        %v5327 = vadd.f32 0.0, %v5326
        %5328 = vmatmul.f32.gmra.mxu0 %v5189
        %v5329 = vpop.f32.mrf.mxu0
        %v5330 = vadd.f32 0.0, %v5329
        %5331 = vmatmul.f32.gmra.mxu0 %v5190
        %v5332 = vpop.f32.mrf.mxu0
        %v5333 = vadd.f32 0.0, %v5332
        %5334 = vmatmul.f32.gmra.mxu0 %v5191
        %v5335 = vpop.f32.mrf.mxu0
        %v5336 = vadd.f32 0.0, %v5335
        %5337 = vmatmul.f32.gmra.mxu0 %v5192
        %v5338 = vpop.f32.mrf.mxu0
        %v5339 = vadd.f32 0.0, %v5338
        %5340 = vmatmul.f32.gmra.mxu0 %v5193
        %v5341 = vpop.f32.mrf.mxu0
        %v5342 = vadd.f32 0.0, %v5341
        %5343 = vmatmul.f32.gmra.mxu0 %v5194
        %v5344 = vpop.f32.mrf.mxu0
        %v5345 = vadd.f32 0.0, %v5344
        %5346 = vmatmul.f32.gmra.mxu0 %v5195
        %v5347 = vpop.f32.mrf.mxu0
        %v5348 = vadd.f32 0.0, %v5347
        %5349 = vmatmul.f32.gmra.mxu0 %v5196
        %v5350 = vpop.f32.mrf.mxu0
        %v5351 = vadd.f32 0.0, %v5350
        %5352 = vmatmul.f32.gmra.mxu0 %v5197
        %v5353 = vpop.f32.mrf.mxu0
        %v5354 = vadd.f32 0.0, %v5353
        %5355 = vmatmul.f32.gmra.mxu0 %v5198
        %v5356 = vpop.f32.mrf.mxu0
        %v5357 = vadd.f32 0.0, %v5356
        %5358 = vmatmul.f32.gmra.mxu0 %v5199
        %v5359 = vpop.f32.mrf.mxu0
        %v5360 = vadd.f32 0.0, %v5359
        %5361 = vdwg.mxu0
        %5362 = vmatpush.xpose.msra.mxu0 0.0
        %5363 = vmatpush.xpose.msra.mxu0 0.0
        %5364 = vmatpush.xpose.msra.mxu0 0.0
        %5365 = vmatpush.xpose.msra.mxu0 0.0
        %5366 = vmatpush.xpose.msra.mxu0 0.0
        %5367 = vmatpush.xpose.msra.mxu0 0.0
        %5368 = vmatpush.xpose.msra.mxu0 0.0
        %5369 = vmatpush.xpose.msra.mxu0 0.0
        %5370 = vmatpush.xpose.msra.mxu0 0.0
        %5371 = vmatpush.xpose.msra.mxu0 0.0
        %5372 = vmatpush.xpose.msra.mxu0 0.0
        %5373 = vmatpush.xpose.msra.mxu0 0.0
        %5374 = vmatpush.xpose.msra.mxu0 %v4007
        %5375 = vmatpush.xpose.msra.mxu0 %v4006
        %5376 = vmatpush.xpose.msra.mxu0 %v4005
        %5377 = vmatpush.xpose.msra.mxu0 %v4004
        %5378 = vmatmul.f32.gmra.mxu0 %v5200
        %v5379 = vpop.f32.mrf.mxu0
        %v5380 = vadd.f32 0.0, %v5379
        %5381 = vmatmul.f32.gmra.mxu0 %v5201
        %v5382 = vpop.f32.mrf.mxu0
        %v5383 = vadd.f32 0.0, %v5382
        %5384 = vmatmul.f32.gmra.mxu0 %v5202
        %v5385 = vpop.f32.mrf.mxu0
        %v5386 = vadd.f32 0.0, %v5385
        %5387 = vmatmul.f32.gmra.mxu0 %v5203
        %v5388 = vpop.f32.mrf.mxu0
        %v5389 = vadd.f32 0.0, %v5388
        %5390 = vmatmul.f32.gmra.mxu0 %v5204
        %v5391 = vpop.f32.mrf.mxu0
        %v5392 = vadd.f32 0.0, %v5391
        %5393 = vmatmul.f32.gmra.mxu0 %v5205
        %v5394 = vpop.f32.mrf.mxu0
        %v5395 = vadd.f32 0.0, %v5394
        %5396 = vmatmul.f32.gmra.mxu0 %v5206
        %v5397 = vpop.f32.mrf.mxu0
        %v5398 = vadd.f32 0.0, %v5397
        %5399 = vmatmul.f32.gmra.mxu0 %v5207
        %v5400 = vpop.f32.mrf.mxu0
        %v5401 = vadd.f32 0.0, %v5400
        %5402 = vmatmul.f32.gmra.mxu0 %v5208
        %v5403 = vpop.f32.mrf.mxu0
        %v5404 = vadd.f32 0.0, %v5403
        %5405 = vmatmul.f32.gmra.mxu0 %v5209
        %v5406 = vpop.f32.mrf.mxu0
        %v5407 = vadd.f32 0.0, %v5406
        %5408 = vmatmul.f32.gmra.mxu0 %v5210
        %v5409 = vpop.f32.mrf.mxu0
        %v5410 = vadd.f32 0.0, %v5409
        %5411 = vmatmul.f32.gmra.mxu0 %v5211
        %v5412 = vpop.f32.mrf.mxu0
        %v5413 = vadd.f32 0.0, %v5412
        %5414 = vmatmul.f32.gmra.mxu0 %v5212
        %v5415 = vpop.f32.mrf.mxu0
        %v5416 = vadd.f32 0.0, %v5415
        %5417 = vmatmul.f32.gmra.mxu0 %v5213
        %v5418 = vpop.f32.mrf.mxu0
        %v5419 = vadd.f32 0.0, %v5418
        %5420 = vmatmul.f32.gmra.mxu0 %v5214
        %v5421 = vpop.f32.mrf.mxu0
        %v5422 = vadd.f32 0.0, %v5421
        %5423 = vmatmul.f32.gmra.mxu0 %v5215
        %v5424 = vpop.f32.mrf.mxu0
        %v5425 = vadd.f32 0.0, %v5424
        %5426 = vdwg.mxu0
        %5427 = vmatpush.xpose.msra.mxu0 0.0
        %5428 = vmatpush.xpose.msra.mxu0 0.0
        %5429 = vmatpush.xpose.msra.mxu0 0.0
        %5430 = vmatpush.xpose.msra.mxu0 0.0
        %5431 = vmatpush.xpose.msra.mxu0 0.0
        %5432 = vmatpush.xpose.msra.mxu0 0.0
        %5433 = vmatpush.xpose.msra.mxu0 0.0
        %5434 = vmatpush.xpose.msra.mxu0 0.0
        %5435 = vmatpush.xpose.msra.mxu0 0.0
        %5436 = vmatpush.xpose.msra.mxu0 0.0
        %5437 = vmatpush.xpose.msra.mxu0 0.0
        %5438 = vmatpush.xpose.msra.mxu0 0.0
        %5439 = vmatpush.xpose.msra.mxu0 %v4011
        %5440 = vmatpush.xpose.msra.mxu0 %v4010
        %5441 = vmatpush.xpose.msra.mxu0 %v4009
        %5442 = vmatpush.xpose.msra.mxu0 %v4008
        %5443 = vmatmul.f32.gmra.mxu0 %v5216
        %v5444 = vpop.f32.mrf.mxu0
        %v5445 = vadd.f32 0.0, %v5444
        %5446 = vmatmul.f32.gmra.mxu0 %v5217
        %v5447 = vpop.f32.mrf.mxu0
        %v5448 = vadd.f32 0.0, %v5447
        %5449 = vmatmul.f32.gmra.mxu0 %v5218
        %v5450 = vpop.f32.mrf.mxu0
        %v5451 = vadd.f32 0.0, %v5450
        %5452 = vmatmul.f32.gmra.mxu0 %v5219
        %v5453 = vpop.f32.mrf.mxu0
        %v5454 = vadd.f32 0.0, %v5453
        %5455 = vmatmul.f32.gmra.mxu0 %v5220
        %v5456 = vpop.f32.mrf.mxu0
        %v5457 = vadd.f32 0.0, %v5456
        %5458 = vmatmul.f32.gmra.mxu0 %v5221
        %v5459 = vpop.f32.mrf.mxu0
        %v5460 = vadd.f32 0.0, %v5459
        %5461 = vmatmul.f32.gmra.mxu0 %v5222
        %v5462 = vpop.f32.mrf.mxu0
        %v5463 = vadd.f32 0.0, %v5462
        %5464 = vmatmul.f32.gmra.mxu0 %v5223
        %v5465 = vpop.f32.mrf.mxu0
        %v5466 = vadd.f32 0.0, %v5465
        %5467 = vmatmul.f32.gmra.mxu0 %v5224
        %v5468 = vpop.f32.mrf.mxu0
        %v5469 = vadd.f32 0.0, %v5468
        %5470 = vmatmul.f32.gmra.mxu0 %v5225
        %v5471 = vpop.f32.mrf.mxu0
        %v5472 = vadd.f32 0.0, %v5471
        %5473 = vmatmul.f32.gmra.mxu0 %v5226
        %v5474 = vpop.f32.mrf.mxu0
        %v5475 = vadd.f32 0.0, %v5474
        %5476 = vmatmul.f32.gmra.mxu0 %v5227
        %v5477 = vpop.f32.mrf.mxu0
        %v5478 = vadd.f32 0.0, %v5477
        %5479 = vmatmul.f32.gmra.mxu0 %v5228
        %v5480 = vpop.f32.mrf.mxu0
        %v5481 = vadd.f32 0.0, %v5480
        %5482 = vmatmul.f32.gmra.mxu0 %v5229
        %v5483 = vpop.f32.mrf.mxu0
        %v5484 = vadd.f32 0.0, %v5483
        %5485 = vmatmul.f32.gmra.mxu0 %v5230
        %v5486 = vpop.f32.mrf.mxu0
        %v5487 = vadd.f32 0.0, %v5486
        %5488 = vmatmul.f32.gmra.mxu0 %v5231
        %v5489 = vpop.f32.mrf.mxu0
        %v5490 = vadd.f32 0.0, %v5489
        %5491 = vdwg.mxu0
        %v5492 = vld [vmem:[#allocation11] sm:$0xff]
        %v5493 = vld [vmem:[#allocation11 + $0x8] sm:$0xff]
        %v5494 = vld [vmem:[#allocation11 + $0x10] sm:$0xff]
        %v5495 = vld [vmem:[#allocation11 + $0x18] sm:$0xff]
        %v5496 = vld [vmem:[#allocation11 + $0x20] sm:$0xff]
        %v5497 = vld [vmem:[#allocation11 + $0x28] sm:$0xff]
        %v5498 = vld [vmem:[#allocation11 + $0x30] sm:$0xff]
        %v5499 = vld [vmem:[#allocation11 + $0x38] sm:$0xff]
        %v5500 = vld [vmem:[#allocation11 + $0x40] sm:$0xff]
        %v5501 = vld [vmem:[#allocation11 + $0x48] sm:$0xff]
        %v5502 = vld [vmem:[#allocation11 + $0x50] sm:$0xff]
        %v5503 = vld [vmem:[#allocation11 + $0x58] sm:$0xff]
        %v5504 = vld [vmem:[#allocation11 + $0x60] sm:$0xff]
        %v5505 = vld [vmem:[#allocation11 + $0x68] sm:$0xff]
        %v5506 = vld [vmem:[#allocation11 + $0x70] sm:$0xff]
        %v5507 = vld [vmem:[#allocation11 + $0x78] sm:$0xff]
        %v5509 = vsel %vm2047, %v5250, 0
        %v5512 = vsel %vm2047, %v5253, 0
        %v5515 = vsel %vm2047, %v5256, 0
        %v5518 = vsel %vm2047, %v5259, 0
        %v5521 = vsel %vm2047, %v5262, 0
        %v5524 = vsel %vm2047, %v5265, 0
        %v5527 = vsel %vm2047, %v5268, 0
        %v5530 = vsel %vm2047, %v5271, 0
        %v5533 = vsel %vm2047, %v5274, 0
        %v5536 = vsel %vm2047, %v5277, 0
        %v5539 = vsel %vm2047, %v5280, 0
        %v5542 = vsel %vm2047, %v5283, 0
        %v5545 = vsel %vm2047, %v5286, 0
        %v5548 = vsel %vm2047, %v5289, 0
        %v5551 = vsel %vm2047, %v5292, 0
        %v5554 = vsel %vm2047, %v5295, 0
        %5556 = vmatpush.msra.mxu0 0.0
        %5557 = vmatpush.msra.mxu0 0.0
        %5558 = vmatpush.msra.mxu0 0.0
        %5559 = vmatpush.msra.mxu0 0.0
        %5560 = vmatpush.msra.mxu0 0.0
        %5561 = vmatpush.msra.mxu0 0.0
        %5562 = vmatpush.msra.mxu0 0.0
        %5563 = vmatpush.msra.mxu0 0.0
        %5564 = vmatpush.msra.mxu0 0.0
        %5565 = vmatpush.msra.mxu0 0.0
        %5566 = vmatpush.msra.mxu0 0.0
        %5567 = vmatpush.msra.mxu0 0.0
        %5568 = vmatpush.msra.mxu0 %v5495
        %5569 = vmatpush.msra.mxu0 %v5494
        %5570 = vmatpush.msra.mxu0 %v5493
        %5571 = vmatpush.msra.mxu0 %v5492
        %5572 = vmatmul.f32.gmra.mxu0 %v5509
        %v5573 = vpop.f32.mrf.mxu0
        %v5574 = vadd.f32 0.0, %v5573
        %5575 = vmatmul.f32.gmra.mxu0 %v5512
        %v5576 = vpop.f32.mrf.mxu0
        %v5577 = vadd.f32 0.0, %v5576
        %5578 = vmatmul.f32.gmra.mxu0 %v5515
        %v5579 = vpop.f32.mrf.mxu0
        %v5580 = vadd.f32 0.0, %v5579
        %5581 = vmatmul.f32.gmra.mxu0 %v5518
        %v5582 = vpop.f32.mrf.mxu0
        %v5583 = vadd.f32 0.0, %v5582
        %5584 = vmatmul.f32.gmra.mxu0 %v5521
        %v5585 = vpop.f32.mrf.mxu0
        %v5586 = vadd.f32 0.0, %v5585
        %5587 = vmatmul.f32.gmra.mxu0 %v5524
        %v5588 = vpop.f32.mrf.mxu0
        %v5589 = vadd.f32 0.0, %v5588
        %5590 = vmatmul.f32.gmra.mxu0 %v5527
        %v5591 = vpop.f32.mrf.mxu0
        %v5592 = vadd.f32 0.0, %v5591
        %5593 = vmatmul.f32.gmra.mxu0 %v5530
        %v5594 = vpop.f32.mrf.mxu0
        %v5595 = vadd.f32 0.0, %v5594
        %5596 = vmatmul.f32.gmra.mxu0 %v5533
        %v5597 = vpop.f32.mrf.mxu0
        %v5598 = vadd.f32 0.0, %v5597
        %5599 = vmatmul.f32.gmra.mxu0 %v5536
        %v5600 = vpop.f32.mrf.mxu0
        %v5601 = vadd.f32 0.0, %v5600
        %5602 = vmatmul.f32.gmra.mxu0 %v5539
        %v5603 = vpop.f32.mrf.mxu0
        %v5604 = vadd.f32 0.0, %v5603
        %5605 = vmatmul.f32.gmra.mxu0 %v5542
        %v5606 = vpop.f32.mrf.mxu0
        %v5607 = vadd.f32 0.0, %v5606
        %5608 = vmatmul.f32.gmra.mxu0 %v5545
        %v5609 = vpop.f32.mrf.mxu0
        %v5610 = vadd.f32 0.0, %v5609
        %5611 = vmatmul.f32.gmra.mxu0 %v5548
        %v5612 = vpop.f32.mrf.mxu0
        %v5613 = vadd.f32 0.0, %v5612
        %5614 = vmatmul.f32.gmra.mxu0 %v5551
        %v5615 = vpop.f32.mrf.mxu0
        %v5616 = vadd.f32 0.0, %v5615
        %5617 = vmatmul.f32.gmra.mxu0 %v5554
        %v5618 = vpop.f32.mrf.mxu0
        %v5619 = vadd.f32 0.0, %v5618
        %5620 = vdwg.mxu0
        %v5622 = vsel %vm2047, %v5315, 0
        %v5625 = vsel %vm2047, %v5318, 0
        %v5628 = vsel %vm2047, %v5321, 0
        %v5631 = vsel %vm2047, %v5324, 0
        %v5634 = vsel %vm2047, %v5327, 0
        %v5637 = vsel %vm2047, %v5330, 0
        %v5640 = vsel %vm2047, %v5333, 0
        %v5643 = vsel %vm2047, %v5336, 0
        %v5646 = vsel %vm2047, %v5339, 0
        %v5649 = vsel %vm2047, %v5342, 0
        %v5652 = vsel %vm2047, %v5345, 0
        %v5655 = vsel %vm2047, %v5348, 0
        %v5658 = vsel %vm2047, %v5351, 0
        %v5661 = vsel %vm2047, %v5354, 0
        %v5664 = vsel %vm2047, %v5357, 0
        %v5667 = vsel %vm2047, %v5360, 0
        %5669 = vmatpush.msra.mxu0 0.0
        %5670 = vmatpush.msra.mxu0 0.0
        %5671 = vmatpush.msra.mxu0 0.0
        %5672 = vmatpush.msra.mxu0 0.0
        %5673 = vmatpush.msra.mxu0 0.0
        %5674 = vmatpush.msra.mxu0 0.0
        %5675 = vmatpush.msra.mxu0 0.0
        %5676 = vmatpush.msra.mxu0 0.0
        %5677 = vmatpush.msra.mxu0 0.0
        %5678 = vmatpush.msra.mxu0 0.0
        %5679 = vmatpush.msra.mxu0 0.0
        %5680 = vmatpush.msra.mxu0 0.0
        %5681 = vmatpush.msra.mxu0 %v5499
        %5682 = vmatpush.msra.mxu0 %v5498
        %5683 = vmatpush.msra.mxu0 %v5497
        %5684 = vmatpush.msra.mxu0 %v5496
        %5685 = vmatmul.f32.gmra.mxu0 %v5622
        %v5686 = vpop.f32.mrf.mxu0
        %v5687 = vadd.f32 0.0, %v5686
        %5688 = vmatmul.f32.gmra.mxu0 %v5625
        %v5689 = vpop.f32.mrf.mxu0
        %v5690 = vadd.f32 0.0, %v5689
        %5691 = vmatmul.f32.gmra.mxu0 %v5628
        %v5692 = vpop.f32.mrf.mxu0
        %v5693 = vadd.f32 0.0, %v5692
        %5694 = vmatmul.f32.gmra.mxu0 %v5631
        %v5695 = vpop.f32.mrf.mxu0
        %v5696 = vadd.f32 0.0, %v5695
        %5697 = vmatmul.f32.gmra.mxu0 %v5634
        %v5698 = vpop.f32.mrf.mxu0
        %v5699 = vadd.f32 0.0, %v5698
        %5700 = vmatmul.f32.gmra.mxu0 %v5637
        %v5701 = vpop.f32.mrf.mxu0
        %v5702 = vadd.f32 0.0, %v5701
        %5703 = vmatmul.f32.gmra.mxu0 %v5640
        %v5704 = vpop.f32.mrf.mxu0
        %v5705 = vadd.f32 0.0, %v5704
        %5706 = vmatmul.f32.gmra.mxu0 %v5643
        %v5707 = vpop.f32.mrf.mxu0
        %v5708 = vadd.f32 0.0, %v5707
        %5709 = vmatmul.f32.gmra.mxu0 %v5646
        %v5710 = vpop.f32.mrf.mxu0
        %v5711 = vadd.f32 0.0, %v5710
        %5712 = vmatmul.f32.gmra.mxu0 %v5649
        %v5713 = vpop.f32.mrf.mxu0
        %v5714 = vadd.f32 0.0, %v5713
        %5715 = vmatmul.f32.gmra.mxu0 %v5652
        %v5716 = vpop.f32.mrf.mxu0
        %v5717 = vadd.f32 0.0, %v5716
        %5718 = vmatmul.f32.gmra.mxu0 %v5655
        %v5719 = vpop.f32.mrf.mxu0
        %v5720 = vadd.f32 0.0, %v5719
        %5721 = vmatmul.f32.gmra.mxu0 %v5658
        %v5722 = vpop.f32.mrf.mxu0
        %v5723 = vadd.f32 0.0, %v5722
        %5724 = vmatmul.f32.gmra.mxu0 %v5661
        %v5725 = vpop.f32.mrf.mxu0
        %v5726 = vadd.f32 0.0, %v5725
        %5727 = vmatmul.f32.gmra.mxu0 %v5664
        %v5728 = vpop.f32.mrf.mxu0
        %v5729 = vadd.f32 0.0, %v5728
        %5730 = vmatmul.f32.gmra.mxu0 %v5667
        %v5731 = vpop.f32.mrf.mxu0
        %v5732 = vadd.f32 0.0, %v5731
        %5733 = vdwg.mxu0
        %v5735 = vsel %vm2047, %v5380, 0
        %v5738 = vsel %vm2047, %v5383, 0
        %v5741 = vsel %vm2047, %v5386, 0
        %v5744 = vsel %vm2047, %v5389, 0
        %v5747 = vsel %vm2047, %v5392, 0
        %v5750 = vsel %vm2047, %v5395, 0
        %v5753 = vsel %vm2047, %v5398, 0
        %v5756 = vsel %vm2047, %v5401, 0
        %v5759 = vsel %vm2047, %v5404, 0
        %v5762 = vsel %vm2047, %v5407, 0
        %v5765 = vsel %vm2047, %v5410, 0
        %v5768 = vsel %vm2047, %v5413, 0
        %v5771 = vsel %vm2047, %v5416, 0
        %v5774 = vsel %vm2047, %v5419, 0
        %v5777 = vsel %vm2047, %v5422, 0
        %v5780 = vsel %vm2047, %v5425, 0
        %5782 = vmatpush.msra.mxu0 0.0
        %5783 = vmatpush.msra.mxu0 0.0
        %5784 = vmatpush.msra.mxu0 0.0
        %5785 = vmatpush.msra.mxu0 0.0
        %5786 = vmatpush.msra.mxu0 0.0
        %5787 = vmatpush.msra.mxu0 0.0
        %5788 = vmatpush.msra.mxu0 0.0
        %5789 = vmatpush.msra.mxu0 0.0
        %5790 = vmatpush.msra.mxu0 0.0
        %5791 = vmatpush.msra.mxu0 0.0
        %5792 = vmatpush.msra.mxu0 0.0
        %5793 = vmatpush.msra.mxu0 0.0
        %5794 = vmatpush.msra.mxu0 %v5503
        %5795 = vmatpush.msra.mxu0 %v5502
        %5796 = vmatpush.msra.mxu0 %v5501
        %5797 = vmatpush.msra.mxu0 %v5500
        %5798 = vmatmul.f32.gmra.mxu0 %v5735
        %v5799 = vpop.f32.mrf.mxu0
        %v5800 = vadd.f32 0.0, %v5799
        %5801 = vmatmul.f32.gmra.mxu0 %v5738
        %v5802 = vpop.f32.mrf.mxu0
        %v5803 = vadd.f32 0.0, %v5802
        %5804 = vmatmul.f32.gmra.mxu0 %v5741
        %v5805 = vpop.f32.mrf.mxu0
        %v5806 = vadd.f32 0.0, %v5805
        %5807 = vmatmul.f32.gmra.mxu0 %v5744
        %v5808 = vpop.f32.mrf.mxu0
        %v5809 = vadd.f32 0.0, %v5808
        %5810 = vmatmul.f32.gmra.mxu0 %v5747
        %v5811 = vpop.f32.mrf.mxu0
        %v5812 = vadd.f32 0.0, %v5811
        %5813 = vmatmul.f32.gmra.mxu0 %v5750
        %v5814 = vpop.f32.mrf.mxu0
        %v5815 = vadd.f32 0.0, %v5814
        %5816 = vmatmul.f32.gmra.mxu0 %v5753
        %v5817 = vpop.f32.mrf.mxu0
        %v5818 = vadd.f32 0.0, %v5817
        %5819 = vmatmul.f32.gmra.mxu0 %v5756
        %v5820 = vpop.f32.mrf.mxu0
        %v5821 = vadd.f32 0.0, %v5820
        %5822 = vmatmul.f32.gmra.mxu0 %v5759
        %v5823 = vpop.f32.mrf.mxu0
        %v5824 = vadd.f32 0.0, %v5823
        %5825 = vmatmul.f32.gmra.mxu0 %v5762
        %v5826 = vpop.f32.mrf.mxu0
        %v5827 = vadd.f32 0.0, %v5826
        %5828 = vmatmul.f32.gmra.mxu0 %v5765
        %v5829 = vpop.f32.mrf.mxu0
        %v5830 = vadd.f32 0.0, %v5829
        %5831 = vmatmul.f32.gmra.mxu0 %v5768
        %v5832 = vpop.f32.mrf.mxu0
        %v5833 = vadd.f32 0.0, %v5832
        %5834 = vmatmul.f32.gmra.mxu0 %v5771
        %v5835 = vpop.f32.mrf.mxu0
        %v5836 = vadd.f32 0.0, %v5835
        %5837 = vmatmul.f32.gmra.mxu0 %v5774
        %v5838 = vpop.f32.mrf.mxu0
        %v5839 = vadd.f32 0.0, %v5838
        %5840 = vmatmul.f32.gmra.mxu0 %v5777
        %v5841 = vpop.f32.mrf.mxu0
        %v5842 = vadd.f32 0.0, %v5841
        %5843 = vmatmul.f32.gmra.mxu0 %v5780
        %v5844 = vpop.f32.mrf.mxu0
        %v5845 = vadd.f32 0.0, %v5844
        %5846 = vdwg.mxu0
        %v5848 = vsel %vm2047, %v5445, 0
        %v5851 = vsel %vm2047, %v5448, 0
        %v5854 = vsel %vm2047, %v5451, 0
        %v5857 = vsel %vm2047, %v5454, 0
        %v5860 = vsel %vm2047, %v5457, 0
        %v5863 = vsel %vm2047, %v5460, 0
        %v5866 = vsel %vm2047, %v5463, 0
        %v5869 = vsel %vm2047, %v5466, 0
        %v5872 = vsel %vm2047, %v5469, 0
        %v5875 = vsel %vm2047, %v5472, 0
        %v5878 = vsel %vm2047, %v5475, 0
        %v5881 = vsel %vm2047, %v5478, 0
        %v5884 = vsel %vm2047, %v5481, 0
        %v5887 = vsel %vm2047, %v5484, 0
        %v5890 = vsel %vm2047, %v5487, 0
        %v5893 = vsel %vm2047, %v5490, 0
        %5895 = vmatpush.msra.mxu0 0.0
        %5896 = vmatpush.msra.mxu0 0.0
        %5897 = vmatpush.msra.mxu0 0.0
        %5898 = vmatpush.msra.mxu0 0.0
        %5899 = vmatpush.msra.mxu0 0.0
        %5900 = vmatpush.msra.mxu0 0.0
        %5901 = vmatpush.msra.mxu0 0.0
        %5902 = vmatpush.msra.mxu0 0.0
        %5903 = vmatpush.msra.mxu0 0.0
        %5904 = vmatpush.msra.mxu0 0.0
        %5905 = vmatpush.msra.mxu0 0.0
        %5906 = vmatpush.msra.mxu0 0.0
        %5907 = vmatpush.msra.mxu0 %v5507
        %5908 = vmatpush.msra.mxu0 %v5506
        %5909 = vmatpush.msra.mxu0 %v5505
        %5910 = vmatpush.msra.mxu0 %v5504
        %5911 = vmatmul.f32.gmra.mxu0 %v5848
        %v5912 = vpop.f32.mrf.mxu0
        %v5913 = vadd.f32 0.0, %v5912
        %5914 = vmatmul.f32.gmra.mxu0 %v5851
        %v5915 = vpop.f32.mrf.mxu0
        %v5916 = vadd.f32 0.0, %v5915
        %5917 = vmatmul.f32.gmra.mxu0 %v5854
        %v5918 = vpop.f32.mrf.mxu0
        %v5919 = vadd.f32 0.0, %v5918
        %5920 = vmatmul.f32.gmra.mxu0 %v5857
        %v5921 = vpop.f32.mrf.mxu0
        %v5922 = vadd.f32 0.0, %v5921
        %5923 = vmatmul.f32.gmra.mxu0 %v5860
        %v5924 = vpop.f32.mrf.mxu0
        %v5925 = vadd.f32 0.0, %v5924
        %5926 = vmatmul.f32.gmra.mxu0 %v5863
        %v5927 = vpop.f32.mrf.mxu0
        %v5928 = vadd.f32 0.0, %v5927
        %5929 = vmatmul.f32.gmra.mxu0 %v5866
        %v5930 = vpop.f32.mrf.mxu0
        %v5931 = vadd.f32 0.0, %v5930
        %5932 = vmatmul.f32.gmra.mxu0 %v5869
        %v5933 = vpop.f32.mrf.mxu0
        %v5934 = vadd.f32 0.0, %v5933
        %5935 = vmatmul.f32.gmra.mxu0 %v5872
        %v5936 = vpop.f32.mrf.mxu0
        %v5937 = vadd.f32 0.0, %v5936
        %5938 = vmatmul.f32.gmra.mxu0 %v5875
        %v5939 = vpop.f32.mrf.mxu0
        %v5940 = vadd.f32 0.0, %v5939
        %5941 = vmatmul.f32.gmra.mxu0 %v5878
        %v5942 = vpop.f32.mrf.mxu0
        %v5943 = vadd.f32 0.0, %v5942
        %5944 = vmatmul.f32.gmra.mxu0 %v5881
        %v5945 = vpop.f32.mrf.mxu0
        %v5946 = vadd.f32 0.0, %v5945
        %5947 = vmatmul.f32.gmra.mxu0 %v5884
        %v5948 = vpop.f32.mrf.mxu0
        %v5949 = vadd.f32 0.0, %v5948
        %5950 = vmatmul.f32.gmra.mxu0 %v5887
        %v5951 = vpop.f32.mrf.mxu0
        %v5952 = vadd.f32 0.0, %v5951
        %5953 = vmatmul.f32.gmra.mxu0 %v5890
        %v5954 = vpop.f32.mrf.mxu0
        %v5955 = vadd.f32 0.0, %v5954
        %5956 = vmatmul.f32.gmra.mxu0 %v5893
        %v5957 = vpop.f32.mrf.mxu0
        %v5958 = vadd.f32 0.0, %v5957
        %5959 = vdwg.mxu0
        %v5960 = vadd.f32 %v5574, %v5687
        %v5961 = vadd.f32 %v5577, %v5690
        %v5962 = vadd.f32 %v5580, %v5693
        %v5963 = vadd.f32 %v5583, %v5696
        %v5964 = vadd.f32 %v5586, %v5699
        %v5965 = vadd.f32 %v5589, %v5702
        %v5966 = vadd.f32 %v5592, %v5705
        %v5967 = vadd.f32 %v5595, %v5708
        %v5968 = vadd.f32 %v5598, %v5711
        %v5969 = vadd.f32 %v5601, %v5714
        %v5970 = vadd.f32 %v5604, %v5717
        %v5971 = vadd.f32 %v5607, %v5720
        %v5972 = vadd.f32 %v5610, %v5723
        %v5973 = vadd.f32 %v5613, %v5726
        %v5974 = vadd.f32 %v5616, %v5729
        %v5975 = vadd.f32 %v5619, %v5732
        %v5976 = vadd.f32 %v5960, %v5800
        %v5977 = vadd.f32 %v5961, %v5803
        %v5978 = vadd.f32 %v5962, %v5806
        %v5979 = vadd.f32 %v5963, %v5809
        %v5980 = vadd.f32 %v5964, %v5812
        %v5981 = vadd.f32 %v5965, %v5815
        %v5982 = vadd.f32 %v5966, %v5818
        %v5983 = vadd.f32 %v5967, %v5821
        %v5984 = vadd.f32 %v5968, %v5824
        %v5985 = vadd.f32 %v5969, %v5827
        %v5986 = vadd.f32 %v5970, %v5830
        %v5987 = vadd.f32 %v5971, %v5833
        %v5988 = vadd.f32 %v5972, %v5836
        %v5989 = vadd.f32 %v5973, %v5839
        %v5990 = vadd.f32 %v5974, %v5842
        %v5991 = vadd.f32 %v5975, %v5845
        %v5992 = vadd.f32 %v5976, %v5913
        %v5993 = vadd.f32 %v5977, %v5916
        %v5994 = vadd.f32 %v5978, %v5919
        %v5995 = vadd.f32 %v5979, %v5922
        %v5996 = vadd.f32 %v5980, %v5925
        %v5997 = vadd.f32 %v5981, %v5928
        %v5998 = vadd.f32 %v5982, %v5931
        %v5999 = vadd.f32 %v5983, %v5934
        %v6000 = vadd.f32 %v5984, %v5937
        %v6001 = vadd.f32 %v5985, %v5940
        %v6002 = vadd.f32 %v5986, %v5943
        %v6003 = vadd.f32 %v5987, %v5946
        %v6004 = vadd.f32 %v5988, %v5949
        %v6005 = vadd.f32 %v5989, %v5952
        %v6006 = vadd.f32 %v5990, %v5955
        %v6007 = vadd.f32 %v5991, %v5958
        %v6008 = vadd.f32 %v613, %v3900
        %v6009 = vadd.f32 %v614, %v3901
        %v6010 = vadd.f32 %v615, %v3902
        %v6011 = vadd.f32 %v616, %v3903
        %v6012 = vadd.f32 %v617, %v3904
        %v6013 = vadd.f32 %v618, %v3905
        %v6014 = vadd.f32 %v619, %v3906
        %v6015 = vadd.f32 %v620, %v3907
        %v6016 = vadd.f32 %v621, %v3908
        %v6017 = vadd.f32 %v622, %v3909
        %v6018 = vadd.f32 %v623, %v3910
        %v6019 = vadd.f32 %v624, %v3911
        %v6020 = vadd.f32 %v625, %v3912
        %v6021 = vadd.f32 %v626, %v3913
        %v6022 = vadd.f32 %v627, %v3914
        %v6023 = vadd.f32 %v628, %v3915
        %v6024 = vadd.f32 %v629, %v5992
        %v6025 = vadd.f32 %v630, %v5993
        %v6026 = vadd.f32 %v631, %v5994
        %v6027 = vadd.f32 %v632, %v5995
        %v6028 = vadd.f32 %v633, %v5996
        %v6029 = vadd.f32 %v634, %v5997
        %v6030 = vadd.f32 %v635, %v5998
        %v6031 = vadd.f32 %v636, %v5999
        %v6032 = vadd.f32 %v637, %v6000
        %v6033 = vadd.f32 %v638, %v6001
        %v6034 = vadd.f32 %v639, %v6002
        %v6035 = vadd.f32 %v640, %v6003
        %v6036 = vadd.f32 %v641, %v6004
        %v6037 = vadd.f32 %v642, %v6005
        %v6038 = vadd.f32 %v643, %v6006
        %v6039 = vadd.f32 %v644, %v6007
        %v6040 = vld [vmem:[#allocation13] sm:$0x1]
        %v6042 = vperm.slane %v6040, 0
        %v6044 = vadd.f32 %v6008, %v6042
        %v6045 = vadd.f32 %v6009, %v6042
        %v6046 = vadd.f32 %v6010, %v6042
        %v6047 = vadd.f32 %v6011, %v6042
        %v6048 = vadd.f32 %v6012, %v6042
        %v6049 = vadd.f32 %v6013, %v6042
        %v6050 = vadd.f32 %v6014, %v6042
        %v6051 = vadd.f32 %v6015, %v6042
        %v6052 = vadd.f32 %v6016, %v6042
        %v6053 = vadd.f32 %v6017, %v6042
        %v6054 = vadd.f32 %v6018, %v6042
        %v6055 = vadd.f32 %v6019, %v6042
        %v6056 = vadd.f32 %v6020, %v6042
        %v6057 = vadd.f32 %v6021, %v6042
        %v6058 = vadd.f32 %v6022, %v6042
        %v6059 = vadd.f32 %v6023, %v6042
        %v6060 = vadd.f32 %v6024, %v6042
        %v6061 = vadd.f32 %v6025, %v6042
        %v6062 = vadd.f32 %v6026, %v6042
        %v6063 = vadd.f32 %v6027, %v6042
        %v6064 = vadd.f32 %v6028, %v6042
        %v6065 = vadd.f32 %v6029, %v6042
        %v6066 = vadd.f32 %v6030, %v6042
        %v6067 = vadd.f32 %v6031, %v6042
        %v6068 = vadd.f32 %v6032, %v6042
        %v6069 = vadd.f32 %v6033, %v6042
        %v6070 = vadd.f32 %v6034, %v6042
        %v6071 = vadd.f32 %v6035, %v6042
        %v6072 = vadd.f32 %v6036, %v6042
        %v6073 = vadd.f32 %v6037, %v6042
        %v6074 = vadd.f32 %v6038, %v6042
        %v6075 = vadd.f32 %v6039, %v6042
        %6076 = vadd.xlane.f32.xlu0 %v6044
        %v6077 = vpop.xlane.xlu0 %6076
        %6078 = vadd.xlane.f32.xlu0 %v6045
        %v6079 = vpop.xlane.xlu0 %6078
        %6080 = vadd.xlane.f32.xlu0 %v6046
        %v6081 = vpop.xlane.xlu0 %6080
        %6082 = vadd.xlane.f32.xlu0 %v6047
        %v6083 = vpop.xlane.xlu0 %6082
        %6084 = vadd.xlane.f32.xlu0 %v6048
        %v6085 = vpop.xlane.xlu0 %6084
        %6086 = vadd.xlane.f32.xlu0 %v6049
        %v6087 = vpop.xlane.xlu0 %6086
        %6088 = vadd.xlane.f32.xlu0 %v6050
        %v6089 = vpop.xlane.xlu0 %6088
        %6090 = vadd.xlane.f32.xlu0 %v6051
        %v6091 = vpop.xlane.xlu0 %6090
        %6092 = vadd.xlane.f32.xlu0 %v6052
        %v6093 = vpop.xlane.xlu0 %6092
        %6094 = vadd.xlane.f32.xlu0 %v6053
        %v6095 = vpop.xlane.xlu0 %6094
        %6096 = vadd.xlane.f32.xlu0 %v6054
        %v6097 = vpop.xlane.xlu0 %6096
        %6098 = vadd.xlane.f32.xlu0 %v6055
        %v6099 = vpop.xlane.xlu0 %6098
        %6100 = vadd.xlane.f32.xlu0 %v6056
        %v6101 = vpop.xlane.xlu0 %6100
        %6102 = vadd.xlane.f32.xlu0 %v6057
        %v6103 = vpop.xlane.xlu0 %6102
        %6104 = vadd.xlane.f32.xlu0 %v6058
        %v6105 = vpop.xlane.xlu0 %6104
        %6106 = vadd.xlane.f32.xlu0 %v6059
        %v6107 = vpop.xlane.xlu0 %6106
        %6108 = vadd.xlane.f32.xlu0 %v6060
        %v6109 = vpop.xlane.xlu0 %6108
        %6110 = vadd.xlane.f32.xlu0 %v6061
        %v6111 = vpop.xlane.xlu0 %6110
        %6112 = vadd.xlane.f32.xlu0 %v6062
        %v6113 = vpop.xlane.xlu0 %6112
        %6114 = vadd.xlane.f32.xlu0 %v6063
        %v6115 = vpop.xlane.xlu0 %6114
        %6116 = vadd.xlane.f32.xlu0 %v6064
        %v6117 = vpop.xlane.xlu0 %6116
        %6118 = vadd.xlane.f32.xlu0 %v6065
        %v6119 = vpop.xlane.xlu0 %6118
        %6120 = vadd.xlane.f32.xlu0 %v6066
        %v6121 = vpop.xlane.xlu0 %6120
        %6122 = vadd.xlane.f32.xlu0 %v6067
        %v6123 = vpop.xlane.xlu0 %6122
        %6124 = vadd.xlane.f32.xlu0 %v6068
        %v6125 = vpop.xlane.xlu0 %6124
        %6126 = vadd.xlane.f32.xlu0 %v6069
        %v6127 = vpop.xlane.xlu0 %6126
        %6128 = vadd.xlane.f32.xlu0 %v6070
        %v6129 = vpop.xlane.xlu0 %6128
        %6130 = vadd.xlane.f32.xlu0 %v6071
        %v6131 = vpop.xlane.xlu0 %6130
        %6132 = vadd.xlane.f32.xlu0 %v6072
        %v6133 = vpop.xlane.xlu0 %6132
        %6134 = vadd.xlane.f32.xlu0 %v6073
        %v6135 = vpop.xlane.xlu0 %6134
        %6136 = vadd.xlane.f32.xlu0 %v6074
        %v6137 = vpop.xlane.xlu0 %6136
        %6138 = vadd.xlane.f32.xlu0 %v6075
        %v6139 = vpop.xlane.xlu0 %6138
        %v6140 = vmul.f32 %v6077, %v715
        %v6141 = vmul.f32 %v6079, %v715
        %v6142 = vmul.f32 %v6081, %v715
        %v6143 = vmul.f32 %v6083, %v715
        %v6144 = vmul.f32 %v6085, %v715
        %v6145 = vmul.f32 %v6087, %v715
        %v6146 = vmul.f32 %v6089, %v715
        %v6147 = vmul.f32 %v6091, %v715
        %v6148 = vmul.f32 %v6093, %v715
        %v6149 = vmul.f32 %v6095, %v715
        %v6150 = vmul.f32 %v6097, %v715
        %v6151 = vmul.f32 %v6099, %v715
        %v6152 = vmul.f32 %v6101, %v715
        %v6153 = vmul.f32 %v6103, %v715
        %v6154 = vmul.f32 %v6105, %v715
        %v6155 = vmul.f32 %v6107, %v715
        %v6156 = vmul.f32 %v6109, %v715
        %v6157 = vmul.f32 %v6111, %v715
        %v6158 = vmul.f32 %v6113, %v715
        %v6159 = vmul.f32 %v6115, %v715
        %v6160 = vmul.f32 %v6117, %v715
        %v6161 = vmul.f32 %v6119, %v715
        %v6162 = vmul.f32 %v6121, %v715
        %v6163 = vmul.f32 %v6123, %v715
        %v6164 = vmul.f32 %v6125, %v715
        %v6165 = vmul.f32 %v6127, %v715
        %v6166 = vmul.f32 %v6129, %v715
        %v6167 = vmul.f32 %v6131, %v715
        %v6168 = vmul.f32 %v6133, %v715
        %v6169 = vmul.f32 %v6135, %v715
        %v6170 = vmul.f32 %v6137, %v715
        %v6171 = vmul.f32 %v6139, %v715
        %v6172 = vmul.f32 %v6044, %v6044
        %v6173 = vmul.f32 %v6045, %v6045
        %v6174 = vmul.f32 %v6046, %v6046
        %v6175 = vmul.f32 %v6047, %v6047
        %v6176 = vmul.f32 %v6048, %v6048
        %v6177 = vmul.f32 %v6049, %v6049
        %v6178 = vmul.f32 %v6050, %v6050
        %v6179 = vmul.f32 %v6051, %v6051
        %v6180 = vmul.f32 %v6052, %v6052
        %v6181 = vmul.f32 %v6053, %v6053
        %v6182 = vmul.f32 %v6054, %v6054
        %v6183 = vmul.f32 %v6055, %v6055
        %v6184 = vmul.f32 %v6056, %v6056
        %v6185 = vmul.f32 %v6057, %v6057
        %v6186 = vmul.f32 %v6058, %v6058
        %v6187 = vmul.f32 %v6059, %v6059
        %v6188 = vmul.f32 %v6060, %v6060
        %v6189 = vmul.f32 %v6061, %v6061
        %v6190 = vmul.f32 %v6062, %v6062
        %v6191 = vmul.f32 %v6063, %v6063
        %v6192 = vmul.f32 %v6064, %v6064
        %v6193 = vmul.f32 %v6065, %v6065
        %v6194 = vmul.f32 %v6066, %v6066
        %v6195 = vmul.f32 %v6067, %v6067
        %v6196 = vmul.f32 %v6068, %v6068
        %v6197 = vmul.f32 %v6069, %v6069
        %v6198 = vmul.f32 %v6070, %v6070
        %v6199 = vmul.f32 %v6071, %v6071
        %v6200 = vmul.f32 %v6072, %v6072
        %v6201 = vmul.f32 %v6073, %v6073
        %v6202 = vmul.f32 %v6074, %v6074
        %v6203 = vmul.f32 %v6075, %v6075
        %6204 = vadd.xlane.f32.xlu0 %v6172
        %v6205 = vpop.xlane.xlu0 %6204
        %6206 = vadd.xlane.f32.xlu0 %v6173
        %v6207 = vpop.xlane.xlu0 %6206
        %6208 = vadd.xlane.f32.xlu0 %v6174
        %v6209 = vpop.xlane.xlu0 %6208
        %6210 = vadd.xlane.f32.xlu0 %v6175
        %v6211 = vpop.xlane.xlu0 %6210
        %6212 = vadd.xlane.f32.xlu0 %v6176
        %v6213 = vpop.xlane.xlu0 %6212
        %6214 = vadd.xlane.f32.xlu0 %v6177
        %v6215 = vpop.xlane.xlu0 %6214
        %6216 = vadd.xlane.f32.xlu0 %v6178
        %v6217 = vpop.xlane.xlu0 %6216
        %6218 = vadd.xlane.f32.xlu0 %v6179
        %v6219 = vpop.xlane.xlu0 %6218
        %6220 = vadd.xlane.f32.xlu0 %v6180
        %v6221 = vpop.xlane.xlu0 %6220
        %6222 = vadd.xlane.f32.xlu0 %v6181
        %v6223 = vpop.xlane.xlu0 %6222
        %6224 = vadd.xlane.f32.xlu0 %v6182
        %v6225 = vpop.xlane.xlu0 %6224
        %6226 = vadd.xlane.f32.xlu0 %v6183
        %v6227 = vpop.xlane.xlu0 %6226
        %6228 = vadd.xlane.f32.xlu0 %v6184
        %v6229 = vpop.xlane.xlu0 %6228
        %6230 = vadd.xlane.f32.xlu0 %v6185
        %v6231 = vpop.xlane.xlu0 %6230
        %6232 = vadd.xlane.f32.xlu0 %v6186
        %v6233 = vpop.xlane.xlu0 %6232
        %6234 = vadd.xlane.f32.xlu0 %v6187
        %v6235 = vpop.xlane.xlu0 %6234
        %6236 = vadd.xlane.f32.xlu0 %v6188
        %v6237 = vpop.xlane.xlu0 %6236
        %6238 = vadd.xlane.f32.xlu0 %v6189
        %v6239 = vpop.xlane.xlu0 %6238
        %6240 = vadd.xlane.f32.xlu0 %v6190
        %v6241 = vpop.xlane.xlu0 %6240
        %6242 = vadd.xlane.f32.xlu0 %v6191
        %v6243 = vpop.xlane.xlu0 %6242
        %6244 = vadd.xlane.f32.xlu0 %v6192
        %v6245 = vpop.xlane.xlu0 %6244
        %6246 = vadd.xlane.f32.xlu0 %v6193
        %v6247 = vpop.xlane.xlu0 %6246
        %6248 = vadd.xlane.f32.xlu0 %v6194
        %v6249 = vpop.xlane.xlu0 %6248
        %6250 = vadd.xlane.f32.xlu0 %v6195
        %v6251 = vpop.xlane.xlu0 %6250
        %6252 = vadd.xlane.f32.xlu0 %v6196
        %v6253 = vpop.xlane.xlu0 %6252
        %6254 = vadd.xlane.f32.xlu0 %v6197
        %v6255 = vpop.xlane.xlu0 %6254
        %6256 = vadd.xlane.f32.xlu0 %v6198
        %v6257 = vpop.xlane.xlu0 %6256
        %6258 = vadd.xlane.f32.xlu0 %v6199
        %v6259 = vpop.xlane.xlu0 %6258
        %6260 = vadd.xlane.f32.xlu0 %v6200
        %v6261 = vpop.xlane.xlu0 %6260
        %6262 = vadd.xlane.f32.xlu0 %v6201
        %v6263 = vpop.xlane.xlu0 %6262
        %6264 = vadd.xlane.f32.xlu0 %v6202
        %v6265 = vpop.xlane.xlu0 %6264
        %6266 = vadd.xlane.f32.xlu0 %v6203
        %v6267 = vpop.xlane.xlu0 %6266
        %v6268 = vmul.f32 %v6205, %v715
        %v6269 = vmul.f32 %v6207, %v715
        %v6270 = vmul.f32 %v6209, %v715
        %v6271 = vmul.f32 %v6211, %v715
        %v6272 = vmul.f32 %v6213, %v715
        %v6273 = vmul.f32 %v6215, %v715
        %v6274 = vmul.f32 %v6217, %v715
        %v6275 = vmul.f32 %v6219, %v715
        %v6276 = vmul.f32 %v6221, %v715
        %v6277 = vmul.f32 %v6223, %v715
        %v6278 = vmul.f32 %v6225, %v715
        %v6279 = vmul.f32 %v6227, %v715
        %v6280 = vmul.f32 %v6229, %v715
        %v6281 = vmul.f32 %v6231, %v715
        %v6282 = vmul.f32 %v6233, %v715
        %v6283 = vmul.f32 %v6235, %v715
        %v6284 = vmul.f32 %v6237, %v715
        %v6285 = vmul.f32 %v6239, %v715
        %v6286 = vmul.f32 %v6241, %v715
        %v6287 = vmul.f32 %v6243, %v715
        %v6288 = vmul.f32 %v6245, %v715
        %v6289 = vmul.f32 %v6247, %v715
        %v6290 = vmul.f32 %v6249, %v715
        %v6291 = vmul.f32 %v6251, %v715
        %v6292 = vmul.f32 %v6253, %v715
        %v6293 = vmul.f32 %v6255, %v715
        %v6294 = vmul.f32 %v6257, %v715
        %v6295 = vmul.f32 %v6259, %v715
        %v6296 = vmul.f32 %v6261, %v715
        %v6297 = vmul.f32 %v6263, %v715
        %v6298 = vmul.f32 %v6265, %v715
        %v6299 = vmul.f32 %v6267, %v715
        %v6300 = vmul.f32 %v6140, %v6140
        %v6301 = vmul.f32 %v6141, %v6141
        %v6302 = vmul.f32 %v6142, %v6142
        %v6303 = vmul.f32 %v6143, %v6143
        %v6304 = vmul.f32 %v6144, %v6144
        %v6305 = vmul.f32 %v6145, %v6145
        %v6306 = vmul.f32 %v6146, %v6146
        %v6307 = vmul.f32 %v6147, %v6147
        %v6308 = vmul.f32 %v6148, %v6148
        %v6309 = vmul.f32 %v6149, %v6149
        %v6310 = vmul.f32 %v6150, %v6150
        %v6311 = vmul.f32 %v6151, %v6151
        %v6312 = vmul.f32 %v6152, %v6152
        %v6313 = vmul.f32 %v6153, %v6153
        %v6314 = vmul.f32 %v6154, %v6154
        %v6315 = vmul.f32 %v6155, %v6155
        %v6316 = vmul.f32 %v6156, %v6156
        %v6317 = vmul.f32 %v6157, %v6157
        %v6318 = vmul.f32 %v6158, %v6158
        %v6319 = vmul.f32 %v6159, %v6159
        %v6320 = vmul.f32 %v6160, %v6160
        %v6321 = vmul.f32 %v6161, %v6161
        %v6322 = vmul.f32 %v6162, %v6162
        %v6323 = vmul.f32 %v6163, %v6163
        %v6324 = vmul.f32 %v6164, %v6164
        %v6325 = vmul.f32 %v6165, %v6165
        %v6326 = vmul.f32 %v6166, %v6166
        %v6327 = vmul.f32 %v6167, %v6167
        %v6328 = vmul.f32 %v6168, %v6168
        %v6329 = vmul.f32 %v6169, %v6169
        %v6330 = vmul.f32 %v6170, %v6170
        %v6331 = vmul.f32 %v6171, %v6171
        %v6332 = vsub.f32 %v6268, %v6300
        %v6333 = vsub.f32 %v6269, %v6301
        %v6334 = vsub.f32 %v6270, %v6302
        %v6335 = vsub.f32 %v6271, %v6303
        %v6336 = vsub.f32 %v6272, %v6304
        %v6337 = vsub.f32 %v6273, %v6305
        %v6338 = vsub.f32 %v6274, %v6306
        %v6339 = vsub.f32 %v6275, %v6307
        %v6340 = vsub.f32 %v6276, %v6308
        %v6341 = vsub.f32 %v6277, %v6309
        %v6342 = vsub.f32 %v6278, %v6310
        %v6343 = vsub.f32 %v6279, %v6311
        %v6344 = vsub.f32 %v6280, %v6312
        %v6345 = vsub.f32 %v6281, %v6313
        %v6346 = vsub.f32 %v6282, %v6314
        %v6347 = vsub.f32 %v6283, %v6315
        %v6348 = vsub.f32 %v6284, %v6316
        %v6349 = vsub.f32 %v6285, %v6317
        %v6350 = vsub.f32 %v6286, %v6318
        %v6351 = vsub.f32 %v6287, %v6319
        %v6352 = vsub.f32 %v6288, %v6320
        %v6353 = vsub.f32 %v6289, %v6321
        %v6354 = vsub.f32 %v6290, %v6322
        %v6355 = vsub.f32 %v6291, %v6323
        %v6356 = vsub.f32 %v6292, %v6324
        %v6357 = vsub.f32 %v6293, %v6325
        %v6358 = vsub.f32 %v6294, %v6326
        %v6359 = vsub.f32 %v6295, %v6327
        %v6360 = vsub.f32 %v6296, %v6328
        %v6361 = vsub.f32 %v6297, %v6329
        %v6362 = vsub.f32 %v6298, %v6330
        %v6363 = vsub.f32 %v6299, %v6331
        %v6364 = vadd.f32 %v6332, 1e-05
        %v6365 = vadd.f32 %v6333, 1e-05
        %v6366 = vadd.f32 %v6334, 1e-05
        %v6367 = vadd.f32 %v6335, 1e-05
        %v6368 = vadd.f32 %v6336, 1e-05
        %v6369 = vadd.f32 %v6337, 1e-05
        %v6370 = vadd.f32 %v6338, 1e-05
        %v6371 = vadd.f32 %v6339, 1e-05
        %v6372 = vadd.f32 %v6340, 1e-05
        %v6373 = vadd.f32 %v6341, 1e-05
        %v6374 = vadd.f32 %v6342, 1e-05
        %v6375 = vadd.f32 %v6343, 1e-05
        %v6376 = vadd.f32 %v6344, 1e-05
        %v6377 = vadd.f32 %v6345, 1e-05
        %v6378 = vadd.f32 %v6346, 1e-05
        %v6379 = vadd.f32 %v6347, 1e-05
        %v6380 = vadd.f32 %v6348, 1e-05
        %v6381 = vadd.f32 %v6349, 1e-05
        %v6382 = vadd.f32 %v6350, 1e-05
        %v6383 = vadd.f32 %v6351, 1e-05
        %v6384 = vadd.f32 %v6352, 1e-05
        %v6385 = vadd.f32 %v6353, 1e-05
        %v6386 = vadd.f32 %v6354, 1e-05
        %v6387 = vadd.f32 %v6355, 1e-05
        %v6388 = vadd.f32 %v6356, 1e-05
        %v6389 = vadd.f32 %v6357, 1e-05
        %v6390 = vadd.f32 %v6358, 1e-05
        %v6391 = vadd.f32 %v6359, 1e-05
        %v6392 = vadd.f32 %v6360, 1e-05
        %v6393 = vadd.f32 %v6361, 1e-05
        %v6394 = vadd.f32 %v6362, 1e-05
        %v6395 = vadd.f32 %v6363, 1e-05
        %v6396 = vrsqrt.pop %v6364
        %v6397 = vmul.f32 %v6396, %v6364
        %v6398 = vmul.f32 %v6397, %v6396
        %v6399 = vmul.f32 0.5, %v6398
        %v6400 = vsub.f32 1.5, %v6399
        %v6401 = vmul.f32 %v6396, %v6400
        %vm6402 = vweird.f32 %v6364
        %vm6403 = vweird.f32 %v6396
        %vm6404 = vmor %vm6402, %vm6403
        %v6405 = vsel %vm6404, %v6396, %v6401
        %v6406 = vrsqrt.pop %v6365
        %v6407 = vmul.f32 %v6406, %v6365
        %v6408 = vmul.f32 %v6407, %v6406
        %v6409 = vmul.f32 0.5, %v6408
        %v6410 = vsub.f32 1.5, %v6409
        %v6411 = vmul.f32 %v6406, %v6410
        %vm6412 = vweird.f32 %v6365
        %vm6413 = vweird.f32 %v6406
        %vm6414 = vmor %vm6412, %vm6413
        %v6415 = vsel %vm6414, %v6406, %v6411
        %v6416 = vrsqrt.pop %v6366
        %v6417 = vmul.f32 %v6416, %v6366
        %v6418 = vmul.f32 %v6417, %v6416
        %v6419 = vmul.f32 0.5, %v6418
        %v6420 = vsub.f32 1.5, %v6419
        %v6421 = vmul.f32 %v6416, %v6420
        %vm6422 = vweird.f32 %v6366
        %vm6423 = vweird.f32 %v6416
        %vm6424 = vmor %vm6422, %vm6423
        %v6425 = vsel %vm6424, %v6416, %v6421
        %v6426 = vrsqrt.pop %v6367
        %v6427 = vmul.f32 %v6426, %v6367
        %v6428 = vmul.f32 %v6427, %v6426
        %v6429 = vmul.f32 0.5, %v6428
        %v6430 = vsub.f32 1.5, %v6429
        %v6431 = vmul.f32 %v6426, %v6430
        %vm6432 = vweird.f32 %v6367
        %vm6433 = vweird.f32 %v6426
        %vm6434 = vmor %vm6432, %vm6433
        %v6435 = vsel %vm6434, %v6426, %v6431
        %v6436 = vrsqrt.pop %v6368
        %v6437 = vmul.f32 %v6436, %v6368
        %v6438 = vmul.f32 %v6437, %v6436
        %v6439 = vmul.f32 0.5, %v6438
        %v6440 = vsub.f32 1.5, %v6439
        %v6441 = vmul.f32 %v6436, %v6440
        %vm6442 = vweird.f32 %v6368
        %vm6443 = vweird.f32 %v6436
        %vm6444 = vmor %vm6442, %vm6443
        %v6445 = vsel %vm6444, %v6436, %v6441
        %v6446 = vrsqrt.pop %v6369
        %v6447 = vmul.f32 %v6446, %v6369
        %v6448 = vmul.f32 %v6447, %v6446
        %v6449 = vmul.f32 0.5, %v6448
        %v6450 = vsub.f32 1.5, %v6449
        %v6451 = vmul.f32 %v6446, %v6450
        %vm6452 = vweird.f32 %v6369
        %vm6453 = vweird.f32 %v6446
        %vm6454 = vmor %vm6452, %vm6453
        %v6455 = vsel %vm6454, %v6446, %v6451
        %v6456 = vrsqrt.pop %v6370
        %v6457 = vmul.f32 %v6456, %v6370
        %v6458 = vmul.f32 %v6457, %v6456
        %v6459 = vmul.f32 0.5, %v6458
        %v6460 = vsub.f32 1.5, %v6459
        %v6461 = vmul.f32 %v6456, %v6460
        %vm6462 = vweird.f32 %v6370
        %vm6463 = vweird.f32 %v6456
        %vm6464 = vmor %vm6462, %vm6463
        %v6465 = vsel %vm6464, %v6456, %v6461
        %v6466 = vrsqrt.pop %v6371
        %v6467 = vmul.f32 %v6466, %v6371
        %v6468 = vmul.f32 %v6467, %v6466
        %v6469 = vmul.f32 0.5, %v6468
        %v6470 = vsub.f32 1.5, %v6469
        %v6471 = vmul.f32 %v6466, %v6470
        %vm6472 = vweird.f32 %v6371
        %vm6473 = vweird.f32 %v6466
        %vm6474 = vmor %vm6472, %vm6473
        %v6475 = vsel %vm6474, %v6466, %v6471
        %v6476 = vrsqrt.pop %v6372
        %v6477 = vmul.f32 %v6476, %v6372
        %v6478 = vmul.f32 %v6477, %v6476
        %v6479 = vmul.f32 0.5, %v6478
        %v6480 = vsub.f32 1.5, %v6479
        %v6481 = vmul.f32 %v6476, %v6480
        %vm6482 = vweird.f32 %v6372
        %vm6483 = vweird.f32 %v6476
        %vm6484 = vmor %vm6482, %vm6483
        %v6485 = vsel %vm6484, %v6476, %v6481
        %v6486 = vrsqrt.pop %v6373
        %v6487 = vmul.f32 %v6486, %v6373
        %v6488 = vmul.f32 %v6487, %v6486
        %v6489 = vmul.f32 0.5, %v6488
        %v6490 = vsub.f32 1.5, %v6489
        %v6491 = vmul.f32 %v6486, %v6490
        %vm6492 = vweird.f32 %v6373
        %vm6493 = vweird.f32 %v6486
        %vm6494 = vmor %vm6492, %vm6493
        %v6495 = vsel %vm6494, %v6486, %v6491
        %v6496 = vrsqrt.pop %v6374
        %v6497 = vmul.f32 %v6496, %v6374
        %v6498 = vmul.f32 %v6497, %v6496
        %v6499 = vmul.f32 0.5, %v6498
        %v6500 = vsub.f32 1.5, %v6499
        %v6501 = vmul.f32 %v6496, %v6500
        %vm6502 = vweird.f32 %v6374
        %vm6503 = vweird.f32 %v6496
        %vm6504 = vmor %vm6502, %vm6503
        %v6505 = vsel %vm6504, %v6496, %v6501
        %v6506 = vrsqrt.pop %v6375
        %v6507 = vmul.f32 %v6506, %v6375
        %v6508 = vmul.f32 %v6507, %v6506
        %v6509 = vmul.f32 0.5, %v6508
        %v6510 = vsub.f32 1.5, %v6509
        %v6511 = vmul.f32 %v6506, %v6510
        %vm6512 = vweird.f32 %v6375
        %vm6513 = vweird.f32 %v6506
        %vm6514 = vmor %vm6512, %vm6513
        %v6515 = vsel %vm6514, %v6506, %v6511
        %v6516 = vrsqrt.pop %v6376
        %v6517 = vmul.f32 %v6516, %v6376
        %v6518 = vmul.f32 %v6517, %v6516
        %v6519 = vmul.f32 0.5, %v6518
        %v6520 = vsub.f32 1.5, %v6519
        %v6521 = vmul.f32 %v6516, %v6520
        %vm6522 = vweird.f32 %v6376
        %vm6523 = vweird.f32 %v6516
        %vm6524 = vmor %vm6522, %vm6523
        %v6525 = vsel %vm6524, %v6516, %v6521
        %v6526 = vrsqrt.pop %v6377
        %v6527 = vmul.f32 %v6526, %v6377
        %v6528 = vmul.f32 %v6527, %v6526
        %v6529 = vmul.f32 0.5, %v6528
        %v6530 = vsub.f32 1.5, %v6529
        %v6531 = vmul.f32 %v6526, %v6530
        %vm6532 = vweird.f32 %v6377
        %vm6533 = vweird.f32 %v6526
        %vm6534 = vmor %vm6532, %vm6533
        %v6535 = vsel %vm6534, %v6526, %v6531
        %v6536 = vrsqrt.pop %v6378
        %v6537 = vmul.f32 %v6536, %v6378
        %v6538 = vmul.f32 %v6537, %v6536
        %v6539 = vmul.f32 0.5, %v6538
        %v6540 = vsub.f32 1.5, %v6539
        %v6541 = vmul.f32 %v6536, %v6540
        %vm6542 = vweird.f32 %v6378
        %vm6543 = vweird.f32 %v6536
        %vm6544 = vmor %vm6542, %vm6543
        %v6545 = vsel %vm6544, %v6536, %v6541
        %v6546 = vrsqrt.pop %v6379
        %v6547 = vmul.f32 %v6546, %v6379
        %v6548 = vmul.f32 %v6547, %v6546
        %v6549 = vmul.f32 0.5, %v6548
        %v6550 = vsub.f32 1.5, %v6549
        %v6551 = vmul.f32 %v6546, %v6550
        %vm6552 = vweird.f32 %v6379
        %vm6553 = vweird.f32 %v6546
        %vm6554 = vmor %vm6552, %vm6553
        %v6555 = vsel %vm6554, %v6546, %v6551
        %v6556 = vrsqrt.pop %v6380
        %v6557 = vmul.f32 %v6556, %v6380
        %v6558 = vmul.f32 %v6557, %v6556
        %v6559 = vmul.f32 0.5, %v6558
        %v6560 = vsub.f32 1.5, %v6559
        %v6561 = vmul.f32 %v6556, %v6560
        %vm6562 = vweird.f32 %v6380
        %vm6563 = vweird.f32 %v6556
        %vm6564 = vmor %vm6562, %vm6563
        %v6565 = vsel %vm6564, %v6556, %v6561
        %v6566 = vrsqrt.pop %v6381
        %v6567 = vmul.f32 %v6566, %v6381
        %v6568 = vmul.f32 %v6567, %v6566
        %v6569 = vmul.f32 0.5, %v6568
        %v6570 = vsub.f32 1.5, %v6569
        %v6571 = vmul.f32 %v6566, %v6570
        %vm6572 = vweird.f32 %v6381
        %vm6573 = vweird.f32 %v6566
        %vm6574 = vmor %vm6572, %vm6573
        %v6575 = vsel %vm6574, %v6566, %v6571
        %v6576 = vrsqrt.pop %v6382
        %v6577 = vmul.f32 %v6576, %v6382
        %v6578 = vmul.f32 %v6577, %v6576
        %v6579 = vmul.f32 0.5, %v6578
        %v6580 = vsub.f32 1.5, %v6579
        %v6581 = vmul.f32 %v6576, %v6580
        %vm6582 = vweird.f32 %v6382
        %vm6583 = vweird.f32 %v6576
        %vm6584 = vmor %vm6582, %vm6583
        %v6585 = vsel %vm6584, %v6576, %v6581
        %v6586 = vrsqrt.pop %v6383
        %v6587 = vmul.f32 %v6586, %v6383
        %v6588 = vmul.f32 %v6587, %v6586
        %v6589 = vmul.f32 0.5, %v6588
        %v6590 = vsub.f32 1.5, %v6589
        %v6591 = vmul.f32 %v6586, %v6590
        %vm6592 = vweird.f32 %v6383
        %vm6593 = vweird.f32 %v6586
        %vm6594 = vmor %vm6592, %vm6593
        %v6595 = vsel %vm6594, %v6586, %v6591
        %v6596 = vrsqrt.pop %v6384
        %v6597 = vmul.f32 %v6596, %v6384
        %v6598 = vmul.f32 %v6597, %v6596
        %v6599 = vmul.f32 0.5, %v6598
        %v6600 = vsub.f32 1.5, %v6599
        %v6601 = vmul.f32 %v6596, %v6600
        %vm6602 = vweird.f32 %v6384
        %vm6603 = vweird.f32 %v6596
        %vm6604 = vmor %vm6602, %vm6603
        %v6605 = vsel %vm6604, %v6596, %v6601
        %v6606 = vrsqrt.pop %v6385
        %v6607 = vmul.f32 %v6606, %v6385
        %v6608 = vmul.f32 %v6607, %v6606
        %v6609 = vmul.f32 0.5, %v6608
        %v6610 = vsub.f32 1.5, %v6609
        %v6611 = vmul.f32 %v6606, %v6610
        %vm6612 = vweird.f32 %v6385
        %vm6613 = vweird.f32 %v6606
        %vm6614 = vmor %vm6612, %vm6613
        %v6615 = vsel %vm6614, %v6606, %v6611
        %v6616 = vrsqrt.pop %v6386
        %v6617 = vmul.f32 %v6616, %v6386
        %v6618 = vmul.f32 %v6617, %v6616
        %v6619 = vmul.f32 0.5, %v6618
        %v6620 = vsub.f32 1.5, %v6619
        %v6621 = vmul.f32 %v6616, %v6620
        %vm6622 = vweird.f32 %v6386
        %vm6623 = vweird.f32 %v6616
        %vm6624 = vmor %vm6622, %vm6623
        %v6625 = vsel %vm6624, %v6616, %v6621
        %v6626 = vrsqrt.pop %v6387
        %v6627 = vmul.f32 %v6626, %v6387
        %v6628 = vmul.f32 %v6627, %v6626
        %v6629 = vmul.f32 0.5, %v6628
        %v6630 = vsub.f32 1.5, %v6629
        %v6631 = vmul.f32 %v6626, %v6630
        %vm6632 = vweird.f32 %v6387
        %vm6633 = vweird.f32 %v6626
        %vm6634 = vmor %vm6632, %vm6633
        %v6635 = vsel %vm6634, %v6626, %v6631
        %v6636 = vrsqrt.pop %v6388
        %v6637 = vmul.f32 %v6636, %v6388
        %v6638 = vmul.f32 %v6637, %v6636
        %v6639 = vmul.f32 0.5, %v6638
        %v6640 = vsub.f32 1.5, %v6639
        %v6641 = vmul.f32 %v6636, %v6640
        %vm6642 = vweird.f32 %v6388
        %vm6643 = vweird.f32 %v6636
        %vm6644 = vmor %vm6642, %vm6643
        %v6645 = vsel %vm6644, %v6636, %v6641
        %v6646 = vrsqrt.pop %v6389
        %v6647 = vmul.f32 %v6646, %v6389
        %v6648 = vmul.f32 %v6647, %v6646
        %v6649 = vmul.f32 0.5, %v6648
        %v6650 = vsub.f32 1.5, %v6649
        %v6651 = vmul.f32 %v6646, %v6650
        %vm6652 = vweird.f32 %v6389
        %vm6653 = vweird.f32 %v6646
        %vm6654 = vmor %vm6652, %vm6653
        %v6655 = vsel %vm6654, %v6646, %v6651
        %v6656 = vrsqrt.pop %v6390
        %v6657 = vmul.f32 %v6656, %v6390
        %v6658 = vmul.f32 %v6657, %v6656
        %v6659 = vmul.f32 0.5, %v6658
        %v6660 = vsub.f32 1.5, %v6659
        %v6661 = vmul.f32 %v6656, %v6660
        %vm6662 = vweird.f32 %v6390
        %vm6663 = vweird.f32 %v6656
        %vm6664 = vmor %vm6662, %vm6663
        %v6665 = vsel %vm6664, %v6656, %v6661
        %v6666 = vrsqrt.pop %v6391
        %v6667 = vmul.f32 %v6666, %v6391
        %v6668 = vmul.f32 %v6667, %v6666
        %v6669 = vmul.f32 0.5, %v6668
        %v6670 = vsub.f32 1.5, %v6669
        %v6671 = vmul.f32 %v6666, %v6670
        %vm6672 = vweird.f32 %v6391
        %vm6673 = vweird.f32 %v6666
        %vm6674 = vmor %vm6672, %vm6673
        %v6675 = vsel %vm6674, %v6666, %v6671
        %v6676 = vrsqrt.pop %v6392
        %v6677 = vmul.f32 %v6676, %v6392
        %v6678 = vmul.f32 %v6677, %v6676
        %v6679 = vmul.f32 0.5, %v6678
        %v6680 = vsub.f32 1.5, %v6679
        %v6681 = vmul.f32 %v6676, %v6680
        %vm6682 = vweird.f32 %v6392
        %vm6683 = vweird.f32 %v6676
        %vm6684 = vmor %vm6682, %vm6683
        %v6685 = vsel %vm6684, %v6676, %v6681
        %v6686 = vrsqrt.pop %v6393
        %v6687 = vmul.f32 %v6686, %v6393
        %v6688 = vmul.f32 %v6687, %v6686
        %v6689 = vmul.f32 0.5, %v6688
        %v6690 = vsub.f32 1.5, %v6689
        %v6691 = vmul.f32 %v6686, %v6690
        %vm6692 = vweird.f32 %v6393
        %vm6693 = vweird.f32 %v6686
        %vm6694 = vmor %vm6692, %vm6693
        %v6695 = vsel %vm6694, %v6686, %v6691
        %v6696 = vrsqrt.pop %v6394
        %v6697 = vmul.f32 %v6696, %v6394
        %v6698 = vmul.f32 %v6697, %v6696
        %v6699 = vmul.f32 0.5, %v6698
        %v6700 = vsub.f32 1.5, %v6699
        %v6701 = vmul.f32 %v6696, %v6700
        %vm6702 = vweird.f32 %v6394
        %vm6703 = vweird.f32 %v6696
        %vm6704 = vmor %vm6702, %vm6703
        %v6705 = vsel %vm6704, %v6696, %v6701
        %v6706 = vrsqrt.pop %v6395
        %v6707 = vmul.f32 %v6706, %v6395
        %v6708 = vmul.f32 %v6707, %v6706
        %v6709 = vmul.f32 0.5, %v6708
        %v6710 = vsub.f32 1.5, %v6709
        %v6711 = vmul.f32 %v6706, %v6710
        %vm6712 = vweird.f32 %v6395
        %vm6713 = vweird.f32 %v6706
        %vm6714 = vmor %vm6712, %vm6713
        %v6715 = vsel %vm6714, %v6706, %v6711
        %v6716 = vsub.f32 %v6044, %v6140
        %v6717 = vsub.f32 %v6045, %v6141
        %v6718 = vsub.f32 %v6046, %v6142
        %v6719 = vsub.f32 %v6047, %v6143
        %v6720 = vsub.f32 %v6048, %v6144
        %v6721 = vsub.f32 %v6049, %v6145
        %v6722 = vsub.f32 %v6050, %v6146
        %v6723 = vsub.f32 %v6051, %v6147
        %v6724 = vsub.f32 %v6052, %v6148
        %v6725 = vsub.f32 %v6053, %v6149
        %v6726 = vsub.f32 %v6054, %v6150
        %v6727 = vsub.f32 %v6055, %v6151
        %v6728 = vsub.f32 %v6056, %v6152
        %v6729 = vsub.f32 %v6057, %v6153
        %v6730 = vsub.f32 %v6058, %v6154
        %v6731 = vsub.f32 %v6059, %v6155
        %v6732 = vsub.f32 %v6060, %v6156
        %v6733 = vsub.f32 %v6061, %v6157
        %v6734 = vsub.f32 %v6062, %v6158
        %v6735 = vsub.f32 %v6063, %v6159
        %v6736 = vsub.f32 %v6064, %v6160
        %v6737 = vsub.f32 %v6065, %v6161
        %v6738 = vsub.f32 %v6066, %v6162
        %v6739 = vsub.f32 %v6067, %v6163
        %v6740 = vsub.f32 %v6068, %v6164
        %v6741 = vsub.f32 %v6069, %v6165
        %v6742 = vsub.f32 %v6070, %v6166
        %v6743 = vsub.f32 %v6071, %v6167
        %v6744 = vsub.f32 %v6072, %v6168
        %v6745 = vsub.f32 %v6073, %v6169
        %v6746 = vsub.f32 %v6074, %v6170
        %v6747 = vsub.f32 %v6075, %v6171
        %v6748 = vmul.f32 %v6716, %v6405
        %v6749 = vmul.f32 %v6717, %v6415
        %v6750 = vmul.f32 %v6718, %v6425
        %v6751 = vmul.f32 %v6719, %v6435
        %v6752 = vmul.f32 %v6720, %v6445
        %v6753 = vmul.f32 %v6721, %v6455
        %v6754 = vmul.f32 %v6722, %v6465
        %v6755 = vmul.f32 %v6723, %v6475
        %v6756 = vmul.f32 %v6724, %v6485
        %v6757 = vmul.f32 %v6725, %v6495
        %v6758 = vmul.f32 %v6726, %v6505
        %v6759 = vmul.f32 %v6727, %v6515
        %v6760 = vmul.f32 %v6728, %v6525
        %v6761 = vmul.f32 %v6729, %v6535
        %v6762 = vmul.f32 %v6730, %v6545
        %v6763 = vmul.f32 %v6731, %v6555
        %v6764 = vmul.f32 %v6732, %v6565
        %v6765 = vmul.f32 %v6733, %v6575
        %v6766 = vmul.f32 %v6734, %v6585
        %v6767 = vmul.f32 %v6735, %v6595
        %v6768 = vmul.f32 %v6736, %v6605
        %v6769 = vmul.f32 %v6737, %v6615
        %v6770 = vmul.f32 %v6738, %v6625
        %v6771 = vmul.f32 %v6739, %v6635
        %v6772 = vmul.f32 %v6740, %v6645
        %v6773 = vmul.f32 %v6741, %v6655
        %v6774 = vmul.f32 %v6742, %v6665
        %v6775 = vmul.f32 %v6743, %v6675
        %v6776 = vmul.f32 %v6744, %v6685
        %v6777 = vmul.f32 %v6745, %v6695
        %v6778 = vmul.f32 %v6746, %v6705
        %v6779 = vmul.f32 %v6747, %v6715
        %v6780 = vld [vmem:[#allocation14] sm:$0x1]
        %v6782 = vperm.slane %v6780, 0
        %v6784 = vmul.f32 %v6748, %v6782
        %v6785 = vmul.f32 %v6749, %v6782
        %v6786 = vmul.f32 %v6750, %v6782
        %v6787 = vmul.f32 %v6751, %v6782
        %v6788 = vmul.f32 %v6752, %v6782
        %v6789 = vmul.f32 %v6753, %v6782
        %v6790 = vmul.f32 %v6754, %v6782
        %v6791 = vmul.f32 %v6755, %v6782
        %v6792 = vmul.f32 %v6756, %v6782
        %v6793 = vmul.f32 %v6757, %v6782
        %v6794 = vmul.f32 %v6758, %v6782
        %v6795 = vmul.f32 %v6759, %v6782
        %v6796 = vmul.f32 %v6760, %v6782
        %v6797 = vmul.f32 %v6761, %v6782
        %v6798 = vmul.f32 %v6762, %v6782
        %v6799 = vmul.f32 %v6763, %v6782
        %v6800 = vmul.f32 %v6764, %v6782
        %v6801 = vmul.f32 %v6765, %v6782
        %v6802 = vmul.f32 %v6766, %v6782
        %v6803 = vmul.f32 %v6767, %v6782
        %v6804 = vmul.f32 %v6768, %v6782
        %v6805 = vmul.f32 %v6769, %v6782
        %v6806 = vmul.f32 %v6770, %v6782
        %v6807 = vmul.f32 %v6771, %v6782
        %v6808 = vmul.f32 %v6772, %v6782
        %v6809 = vmul.f32 %v6773, %v6782
        %v6810 = vmul.f32 %v6774, %v6782
        %v6811 = vmul.f32 %v6775, %v6782
        %v6812 = vmul.f32 %v6776, %v6782
        %v6813 = vmul.f32 %v6777, %v6782
        %v6814 = vmul.f32 %v6778, %v6782
        %v6815 = vmul.f32 %v6779, %v6782
        %v6816 = vld [vmem:[#allocation16] sm:$0x1]
        %v6818 = vperm.slane %v6816, 0
        %v6820 = vadd.f32 %v6784, %v6818
        %v6821 = vadd.f32 %v6785, %v6818
        %v6822 = vadd.f32 %v6786, %v6818
        %v6823 = vadd.f32 %v6787, %v6818
        %v6824 = vadd.f32 %v6788, %v6818
        %v6825 = vadd.f32 %v6789, %v6818
        %v6826 = vadd.f32 %v6790, %v6818
        %v6827 = vadd.f32 %v6791, %v6818
        %v6828 = vadd.f32 %v6792, %v6818
        %v6829 = vadd.f32 %v6793, %v6818
        %v6830 = vadd.f32 %v6794, %v6818
        %v6831 = vadd.f32 %v6795, %v6818
        %v6832 = vadd.f32 %v6796, %v6818
        %v6833 = vadd.f32 %v6797, %v6818
        %v6834 = vadd.f32 %v6798, %v6818
        %v6835 = vadd.f32 %v6799, %v6818
        %v6836 = vadd.f32 %v6800, %v6818
        %v6837 = vadd.f32 %v6801, %v6818
        %v6838 = vadd.f32 %v6802, %v6818
        %v6839 = vadd.f32 %v6803, %v6818
        %v6840 = vadd.f32 %v6804, %v6818
        %v6841 = vadd.f32 %v6805, %v6818
        %v6842 = vadd.f32 %v6806, %v6818
        %v6843 = vadd.f32 %v6807, %v6818
        %v6844 = vadd.f32 %v6808, %v6818
        %v6845 = vadd.f32 %v6809, %v6818
        %v6846 = vadd.f32 %v6810, %v6818
        %v6847 = vadd.f32 %v6811, %v6818
        %v6848 = vadd.f32 %v6812, %v6818
        %v6849 = vadd.f32 %v6813, %v6818
        %v6850 = vadd.f32 %v6814, %v6818
        %v6851 = vadd.f32 %v6815, %v6818
        %v6852 = vld [vmem:[%s9] sm:$0xff]
        %v6853 = vld [vmem:[%s9 + $0x8] sm:$0xff]
        %v6854 = vld [vmem:[%s9 + $0x10] sm:$0xff]
        %v6855 = vld [vmem:[%s9 + $0x18] sm:$0xff]
        %v6856 = vld [vmem:[%s9 + $0x20] sm:$0xff]
        %v6857 = vld [vmem:[%s9 + $0x28] sm:$0xff]
        %v6858 = vld [vmem:[%s9 + $0x30] sm:$0xff]
        %v6859 = vld [vmem:[%s9 + $0x38] sm:$0xff]
        %v6860 = vld [vmem:[%s9 + $0x40] sm:$0xff]
        %v6861 = vld [vmem:[%s9 + $0x48] sm:$0xff]
        %v6862 = vld [vmem:[%s9 + $0x50] sm:$0xff]
        %v6863 = vld [vmem:[%s9 + $0x58] sm:$0xff]
        %v6864 = vld [vmem:[%s9 + $0x60] sm:$0xff]
        %v6865 = vld [vmem:[%s9 + $0x68] sm:$0xff]
        %v6866 = vld [vmem:[%s9 + $0x70] sm:$0xff]
        %v6867 = vld [vmem:[%s9 + $0x78] sm:$0xff]
        %v6868 = vld [vmem:[%s9 + $0x80] sm:$0xff]
        %v6869 = vld [vmem:[%s9 + $0x88] sm:$0xff]
        %v6870 = vld [vmem:[%s9 + $0x90] sm:$0xff]
        %v6871 = vld [vmem:[%s9 + $0x98] sm:$0xff]
        %v6872 = vld [vmem:[%s9 + $0xa0] sm:$0xff]
        %v6873 = vld [vmem:[%s9 + $0xa8] sm:$0xff]
        %v6874 = vld [vmem:[%s9 + $0xb0] sm:$0xff]
        %v6875 = vld [vmem:[%s9 + $0xb8] sm:$0xff]
        %v6876 = vld [vmem:[%s9 + $0xc0] sm:$0xff]
        %v6877 = vld [vmem:[%s9 + $0xc8] sm:$0xff]
        %v6878 = vld [vmem:[%s9 + $0xd0] sm:$0xff]
        %v6879 = vld [vmem:[%s9 + $0xd8] sm:$0xff]
        %v6880 = vld [vmem:[%s9 + $0xe0] sm:$0xff]
        %v6881 = vld [vmem:[%s9 + $0xe8] sm:$0xff]
        %v6882 = vld [vmem:[%s9 + $0xf0] sm:$0xff]
        %v6883 = vld [vmem:[%s9 + $0xf8] sm:$0xff]
        %v6884 = vld [vmem:[%s9 + $0x100] sm:$0xff]
        %v6885 = vld [vmem:[%s9 + $0x108] sm:$0xff]
        %v6886 = vld [vmem:[%s9 + $0x110] sm:$0xff]
        %v6887 = vld [vmem:[%s9 + $0x118] sm:$0xff]
        %v6888 = vld [vmem:[%s9 + $0x120] sm:$0xff]
        %v6889 = vld [vmem:[%s9 + $0x128] sm:$0xff]
        %v6890 = vld [vmem:[%s9 + $0x130] sm:$0xff]
        %v6891 = vld [vmem:[%s9 + $0x138] sm:$0xff]
        %v6892 = vld [vmem:[%s9 + $0x140] sm:$0xff]
        %v6893 = vld [vmem:[%s9 + $0x148] sm:$0xff]
        %v6894 = vld [vmem:[%s9 + $0x150] sm:$0xff]
        %v6895 = vld [vmem:[%s9 + $0x158] sm:$0xff]
        %v6896 = vld [vmem:[%s9 + $0x160] sm:$0xff]
        %v6897 = vld [vmem:[%s9 + $0x168] sm:$0xff]
        %v6898 = vld [vmem:[%s9 + $0x170] sm:$0xff]
        %v6899 = vld [vmem:[%s9 + $0x178] sm:$0xff]
        %v6900 = vld [vmem:[%s9 + $0x180] sm:$0xff]
        %v6901 = vld [vmem:[%s9 + $0x188] sm:$0xff]
        %v6902 = vld [vmem:[%s9 + $0x190] sm:$0xff]
        %v6903 = vld [vmem:[%s9 + $0x198] sm:$0xff]
        %v6904 = vld [vmem:[%s9 + $0x1a0] sm:$0xff]
        %v6905 = vld [vmem:[%s9 + $0x1a8] sm:$0xff]
        %v6906 = vld [vmem:[%s9 + $0x1b0] sm:$0xff]
        %v6907 = vld [vmem:[%s9 + $0x1b8] sm:$0xff]
        %v6908 = vld [vmem:[%s9 + $0x1c0] sm:$0xff]
        %v6909 = vld [vmem:[%s9 + $0x1c8] sm:$0xff]
        %v6910 = vld [vmem:[%s9 + $0x1d0] sm:$0xff]
        %v6911 = vld [vmem:[%s9 + $0x1d8] sm:$0xff]
        %v6912 = vld [vmem:[%s9 + $0x1e0] sm:$0xff]
        %v6913 = vld [vmem:[%s9 + $0x1e8] sm:$0xff]
        %v6914 = vld [vmem:[%s9 + $0x1f0] sm:$0xff]
        %v6915 = vld [vmem:[%s9 + $0x1f8] sm:$0xff]
        %v6916 = vld [vmem:[#allocation17] sm:$0xf]
        %v6918 = vperm.slane %v6916, 0
        %v6919 = vperm.slane %v6916, 1
        %v6920 = vperm.slane %v6916, 2
        %v6921 = vperm.slane %v6916, 3
        %6926 = vmatpush.msra.mxu0 %v6912
        %6927 = vmatpush.msra.mxu0 %v6908
        %6928 = vmatpush.msra.mxu0 %v6904
        %6929 = vmatpush.msra.mxu0 %v6900
        %6930 = vmatpush.msra.mxu0 %v6896
        %6931 = vmatpush.msra.mxu0 %v6892
        %6932 = vmatpush.msra.mxu0 %v6888
        %6933 = vmatpush.msra.mxu0 %v6884
        %6934 = vmatpush.msra.mxu0 %v6880
        %6935 = vmatpush.msra.mxu0 %v6876
        %6936 = vmatpush.msra.mxu0 %v6872
        %6937 = vmatpush.msra.mxu0 %v6868
        %6938 = vmatpush.msra.mxu0 %v6864
        %6939 = vmatpush.msra.mxu0 %v6860
        %6940 = vmatpush.msra.mxu0 %v6856
        %6941 = vmatpush.msra.mxu0 %v6852
        %6942 = vmatmul.f32.gmra.mxu0 %v6820
        %v6943 = vpop.f32.mrf.mxu0
        %v6944 = vadd.f32 %v6918, %v6943
        %6945 = vmatmul.f32.gmra.mxu0 %v6821
        %v6946 = vpop.f32.mrf.mxu0
        %v6947 = vadd.f32 %v6918, %v6946
        %6948 = vmatmul.f32.gmra.mxu0 %v6822
        %v6949 = vpop.f32.mrf.mxu0
        %v6950 = vadd.f32 %v6918, %v6949
        %6951 = vmatmul.f32.gmra.mxu0 %v6823
        %v6952 = vpop.f32.mrf.mxu0
        %v6953 = vadd.f32 %v6918, %v6952
        %6954 = vmatmul.f32.gmra.mxu0 %v6824
        %v6955 = vpop.f32.mrf.mxu0
        %v6956 = vadd.f32 %v6918, %v6955
        %6957 = vmatmul.f32.gmra.mxu0 %v6825
        %v6958 = vpop.f32.mrf.mxu0
        %v6959 = vadd.f32 %v6918, %v6958
        %6960 = vmatmul.f32.gmra.mxu0 %v6826
        %v6961 = vpop.f32.mrf.mxu0
        %v6962 = vadd.f32 %v6918, %v6961
        %6963 = vmatmul.f32.gmra.mxu0 %v6827
        %v6964 = vpop.f32.mrf.mxu0
        %v6965 = vadd.f32 %v6918, %v6964
        %6966 = vmatmul.f32.gmra.mxu0 %v6828
        %v6967 = vpop.f32.mrf.mxu0
        %v6968 = vadd.f32 %v6918, %v6967
        %6969 = vmatmul.f32.gmra.mxu0 %v6829
        %v6970 = vpop.f32.mrf.mxu0
        %v6971 = vadd.f32 %v6918, %v6970
        %6972 = vmatmul.f32.gmra.mxu0 %v6830
        %v6973 = vpop.f32.mrf.mxu0
        %v6974 = vadd.f32 %v6918, %v6973
        %6975 = vmatmul.f32.gmra.mxu0 %v6831
        %v6976 = vpop.f32.mrf.mxu0
        %v6977 = vadd.f32 %v6918, %v6976
        %6978 = vmatmul.f32.gmra.mxu0 %v6832
        %v6979 = vpop.f32.mrf.mxu0
        %v6980 = vadd.f32 %v6918, %v6979
        %6981 = vmatmul.f32.gmra.mxu0 %v6833
        %v6982 = vpop.f32.mrf.mxu0
        %v6983 = vadd.f32 %v6918, %v6982
        %6984 = vmatmul.f32.gmra.mxu0 %v6834
        %v6985 = vpop.f32.mrf.mxu0
        %v6986 = vadd.f32 %v6918, %v6985
        %6987 = vmatmul.f32.gmra.mxu0 %v6835
        %v6988 = vpop.f32.mrf.mxu0
        %v6989 = vadd.f32 %v6918, %v6988
        %6990 = vmatmul.f32.gmra.mxu0 %v6836
        %v6991 = vpop.f32.mrf.mxu0
        %v6992 = vadd.f32 %v6918, %v6991
        %6993 = vmatmul.f32.gmra.mxu0 %v6837
        %v6994 = vpop.f32.mrf.mxu0
        %v6995 = vadd.f32 %v6918, %v6994
        %6996 = vmatmul.f32.gmra.mxu0 %v6838
        %v6997 = vpop.f32.mrf.mxu0
        %v6998 = vadd.f32 %v6918, %v6997
        %6999 = vmatmul.f32.gmra.mxu0 %v6839
        %v7000 = vpop.f32.mrf.mxu0
        %v7001 = vadd.f32 %v6918, %v7000
        %7002 = vmatmul.f32.gmra.mxu0 %v6840
        %v7003 = vpop.f32.mrf.mxu0
        %v7004 = vadd.f32 %v6918, %v7003
        %7005 = vmatmul.f32.gmra.mxu0 %v6841
        %v7006 = vpop.f32.mrf.mxu0
        %v7007 = vadd.f32 %v6918, %v7006
        %7008 = vmatmul.f32.gmra.mxu0 %v6842
        %v7009 = vpop.f32.mrf.mxu0
        %v7010 = vadd.f32 %v6918, %v7009
        %7011 = vmatmul.f32.gmra.mxu0 %v6843
        %v7012 = vpop.f32.mrf.mxu0
        %v7013 = vadd.f32 %v6918, %v7012
        %7014 = vmatmul.f32.gmra.mxu0 %v6844
        %v7015 = vpop.f32.mrf.mxu0
        %v7016 = vadd.f32 %v6918, %v7015
        %7017 = vmatmul.f32.gmra.mxu0 %v6845
        %v7018 = vpop.f32.mrf.mxu0
        %v7019 = vadd.f32 %v6918, %v7018
        %7020 = vmatmul.f32.gmra.mxu0 %v6846
        %v7021 = vpop.f32.mrf.mxu0
        %v7022 = vadd.f32 %v6918, %v7021
        %7023 = vmatmul.f32.gmra.mxu0 %v6847
        %v7024 = vpop.f32.mrf.mxu0
        %v7025 = vadd.f32 %v6918, %v7024
        %7026 = vmatmul.f32.gmra.mxu0 %v6848
        %v7027 = vpop.f32.mrf.mxu0
        %v7028 = vadd.f32 %v6918, %v7027
        %7029 = vmatmul.f32.gmra.mxu0 %v6849
        %v7030 = vpop.f32.mrf.mxu0
        %v7031 = vadd.f32 %v6918, %v7030
        %7032 = vmatmul.f32.gmra.mxu0 %v6850
        %v7033 = vpop.f32.mrf.mxu0
        %v7034 = vadd.f32 %v6918, %v7033
        %7035 = vmatmul.f32.gmra.mxu0 %v6851
        %v7036 = vpop.f32.mrf.mxu0
        %v7037 = vadd.f32 %v6918, %v7036
        %7038 = vdwg.mxu0
        %7039 = vmatpush.msra.mxu0 %v6913
        %7040 = vmatpush.msra.mxu0 %v6909
        %7041 = vmatpush.msra.mxu0 %v6905
        %7042 = vmatpush.msra.mxu0 %v6901
        %7043 = vmatpush.msra.mxu0 %v6897
        %7044 = vmatpush.msra.mxu0 %v6893
        %7045 = vmatpush.msra.mxu0 %v6889
        %7046 = vmatpush.msra.mxu0 %v6885
        %7047 = vmatpush.msra.mxu0 %v6881
        %7048 = vmatpush.msra.mxu0 %v6877
        %7049 = vmatpush.msra.mxu0 %v6873
        %7050 = vmatpush.msra.mxu0 %v6869
        %7051 = vmatpush.msra.mxu0 %v6865
        %7052 = vmatpush.msra.mxu0 %v6861
        %7053 = vmatpush.msra.mxu0 %v6857
        %7054 = vmatpush.msra.mxu0 %v6853
        %7055 = vmatmul.f32.gmra.mxu0 %v6820
        %v7056 = vpop.f32.mrf.mxu0
        %v7057 = vadd.f32 %v6919, %v7056
        %7058 = vmatmul.f32.gmra.mxu0 %v6821
        %v7059 = vpop.f32.mrf.mxu0
        %v7060 = vadd.f32 %v6919, %v7059
        %7061 = vmatmul.f32.gmra.mxu0 %v6822
        %v7062 = vpop.f32.mrf.mxu0
        %v7063 = vadd.f32 %v6919, %v7062
        %7064 = vmatmul.f32.gmra.mxu0 %v6823
        %v7065 = vpop.f32.mrf.mxu0
        %v7066 = vadd.f32 %v6919, %v7065
        %7067 = vmatmul.f32.gmra.mxu0 %v6824
        %v7068 = vpop.f32.mrf.mxu0
        %v7069 = vadd.f32 %v6919, %v7068
        %7070 = vmatmul.f32.gmra.mxu0 %v6825
        %v7071 = vpop.f32.mrf.mxu0
        %v7072 = vadd.f32 %v6919, %v7071
        %7073 = vmatmul.f32.gmra.mxu0 %v6826
        %v7074 = vpop.f32.mrf.mxu0
        %v7075 = vadd.f32 %v6919, %v7074
        %7076 = vmatmul.f32.gmra.mxu0 %v6827
        %v7077 = vpop.f32.mrf.mxu0
        %v7078 = vadd.f32 %v6919, %v7077
        %7079 = vmatmul.f32.gmra.mxu0 %v6828
        %v7080 = vpop.f32.mrf.mxu0
        %v7081 = vadd.f32 %v6919, %v7080
        %7082 = vmatmul.f32.gmra.mxu0 %v6829
        %v7083 = vpop.f32.mrf.mxu0
        %v7084 = vadd.f32 %v6919, %v7083
        %7085 = vmatmul.f32.gmra.mxu0 %v6830
        %v7086 = vpop.f32.mrf.mxu0
        %v7087 = vadd.f32 %v6919, %v7086
        %7088 = vmatmul.f32.gmra.mxu0 %v6831
        %v7089 = vpop.f32.mrf.mxu0
        %v7090 = vadd.f32 %v6919, %v7089
        %7091 = vmatmul.f32.gmra.mxu0 %v6832
        %v7092 = vpop.f32.mrf.mxu0
        %v7093 = vadd.f32 %v6919, %v7092
        %7094 = vmatmul.f32.gmra.mxu0 %v6833
        %v7095 = vpop.f32.mrf.mxu0
        %v7096 = vadd.f32 %v6919, %v7095
        %7097 = vmatmul.f32.gmra.mxu0 %v6834
        %v7098 = vpop.f32.mrf.mxu0
        %v7099 = vadd.f32 %v6919, %v7098
        %7100 = vmatmul.f32.gmra.mxu0 %v6835
        %v7101 = vpop.f32.mrf.mxu0
        %v7102 = vadd.f32 %v6919, %v7101
        %7103 = vmatmul.f32.gmra.mxu0 %v6836
        %v7104 = vpop.f32.mrf.mxu0
        %v7105 = vadd.f32 %v6919, %v7104
        %7106 = vmatmul.f32.gmra.mxu0 %v6837
        %v7107 = vpop.f32.mrf.mxu0
        %v7108 = vadd.f32 %v6919, %v7107
        %7109 = vmatmul.f32.gmra.mxu0 %v6838
        %v7110 = vpop.f32.mrf.mxu0
        %v7111 = vadd.f32 %v6919, %v7110
        %7112 = vmatmul.f32.gmra.mxu0 %v6839
        %v7113 = vpop.f32.mrf.mxu0
        %v7114 = vadd.f32 %v6919, %v7113
        %7115 = vmatmul.f32.gmra.mxu0 %v6840
        %v7116 = vpop.f32.mrf.mxu0
        %v7117 = vadd.f32 %v6919, %v7116
        %7118 = vmatmul.f32.gmra.mxu0 %v6841
        %v7119 = vpop.f32.mrf.mxu0
        %v7120 = vadd.f32 %v6919, %v7119
        %7121 = vmatmul.f32.gmra.mxu0 %v6842
        %v7122 = vpop.f32.mrf.mxu0
        %v7123 = vadd.f32 %v6919, %v7122
        %7124 = vmatmul.f32.gmra.mxu0 %v6843
        %v7125 = vpop.f32.mrf.mxu0
        %v7126 = vadd.f32 %v6919, %v7125
        %7127 = vmatmul.f32.gmra.mxu0 %v6844
        %v7128 = vpop.f32.mrf.mxu0
        %v7129 = vadd.f32 %v6919, %v7128
        %7130 = vmatmul.f32.gmra.mxu0 %v6845
        %v7131 = vpop.f32.mrf.mxu0
        %v7132 = vadd.f32 %v6919, %v7131
        %7133 = vmatmul.f32.gmra.mxu0 %v6846
        %v7134 = vpop.f32.mrf.mxu0
        %v7135 = vadd.f32 %v6919, %v7134
        %7136 = vmatmul.f32.gmra.mxu0 %v6847
        %v7137 = vpop.f32.mrf.mxu0
        %v7138 = vadd.f32 %v6919, %v7137
        %7139 = vmatmul.f32.gmra.mxu0 %v6848
        %v7140 = vpop.f32.mrf.mxu0
        %v7141 = vadd.f32 %v6919, %v7140
        %7142 = vmatmul.f32.gmra.mxu0 %v6849
        %v7143 = vpop.f32.mrf.mxu0
        %v7144 = vadd.f32 %v6919, %v7143
        %7145 = vmatmul.f32.gmra.mxu0 %v6850
        %v7146 = vpop.f32.mrf.mxu0
        %v7147 = vadd.f32 %v6919, %v7146
        %7148 = vmatmul.f32.gmra.mxu0 %v6851
        %v7149 = vpop.f32.mrf.mxu0
        %v7150 = vadd.f32 %v6919, %v7149
        %7151 = vdwg.mxu0
        %7152 = vmatpush.msra.mxu0 %v6914
        %7153 = vmatpush.msra.mxu0 %v6910
        %7154 = vmatpush.msra.mxu0 %v6906
        %7155 = vmatpush.msra.mxu0 %v6902
        %7156 = vmatpush.msra.mxu0 %v6898
        %7157 = vmatpush.msra.mxu0 %v6894
        %7158 = vmatpush.msra.mxu0 %v6890
        %7159 = vmatpush.msra.mxu0 %v6886
        %7160 = vmatpush.msra.mxu0 %v6882
        %7161 = vmatpush.msra.mxu0 %v6878
        %7162 = vmatpush.msra.mxu0 %v6874
        %7163 = vmatpush.msra.mxu0 %v6870
        %7164 = vmatpush.msra.mxu0 %v6866
        %7165 = vmatpush.msra.mxu0 %v6862
        %7166 = vmatpush.msra.mxu0 %v6858
        %7167 = vmatpush.msra.mxu0 %v6854
        %7168 = vmatmul.f32.gmra.mxu0 %v6820
        %v7169 = vpop.f32.mrf.mxu0
        %v7170 = vadd.f32 %v6920, %v7169
        %7171 = vmatmul.f32.gmra.mxu0 %v6821
        %v7172 = vpop.f32.mrf.mxu0
        %v7173 = vadd.f32 %v6920, %v7172
        %7174 = vmatmul.f32.gmra.mxu0 %v6822
        %v7175 = vpop.f32.mrf.mxu0
        %v7176 = vadd.f32 %v6920, %v7175
        %7177 = vmatmul.f32.gmra.mxu0 %v6823
        %v7178 = vpop.f32.mrf.mxu0
        %v7179 = vadd.f32 %v6920, %v7178
        %7180 = vmatmul.f32.gmra.mxu0 %v6824
        %v7181 = vpop.f32.mrf.mxu0
        %v7182 = vadd.f32 %v6920, %v7181
        %7183 = vmatmul.f32.gmra.mxu0 %v6825
        %v7184 = vpop.f32.mrf.mxu0
        %v7185 = vadd.f32 %v6920, %v7184
        %7186 = vmatmul.f32.gmra.mxu0 %v6826
        %v7187 = vpop.f32.mrf.mxu0
        %v7188 = vadd.f32 %v6920, %v7187
        %7189 = vmatmul.f32.gmra.mxu0 %v6827
        %v7190 = vpop.f32.mrf.mxu0
        %v7191 = vadd.f32 %v6920, %v7190
        %7192 = vmatmul.f32.gmra.mxu0 %v6828
        %v7193 = vpop.f32.mrf.mxu0
        %v7194 = vadd.f32 %v6920, %v7193
        %7195 = vmatmul.f32.gmra.mxu0 %v6829
        %v7196 = vpop.f32.mrf.mxu0
        %v7197 = vadd.f32 %v6920, %v7196
        %7198 = vmatmul.f32.gmra.mxu0 %v6830
        %v7199 = vpop.f32.mrf.mxu0
        %v7200 = vadd.f32 %v6920, %v7199
        %7201 = vmatmul.f32.gmra.mxu0 %v6831
        %v7202 = vpop.f32.mrf.mxu0
        %v7203 = vadd.f32 %v6920, %v7202
        %7204 = vmatmul.f32.gmra.mxu0 %v6832
        %v7205 = vpop.f32.mrf.mxu0
        %v7206 = vadd.f32 %v6920, %v7205
        %7207 = vmatmul.f32.gmra.mxu0 %v6833
        %v7208 = vpop.f32.mrf.mxu0
        %v7209 = vadd.f32 %v6920, %v7208
        %7210 = vmatmul.f32.gmra.mxu0 %v6834
        %v7211 = vpop.f32.mrf.mxu0
        %v7212 = vadd.f32 %v6920, %v7211
        %7213 = vmatmul.f32.gmra.mxu0 %v6835
        %v7214 = vpop.f32.mrf.mxu0
        %v7215 = vadd.f32 %v6920, %v7214
        %7216 = vmatmul.f32.gmra.mxu0 %v6836
        %v7217 = vpop.f32.mrf.mxu0
        %v7218 = vadd.f32 %v6920, %v7217
        %7219 = vmatmul.f32.gmra.mxu0 %v6837
        %v7220 = vpop.f32.mrf.mxu0
        %v7221 = vadd.f32 %v6920, %v7220
        %7222 = vmatmul.f32.gmra.mxu0 %v6838
        %v7223 = vpop.f32.mrf.mxu0
        %v7224 = vadd.f32 %v6920, %v7223
        %7225 = vmatmul.f32.gmra.mxu0 %v6839
        %v7226 = vpop.f32.mrf.mxu0
        %v7227 = vadd.f32 %v6920, %v7226
        %7228 = vmatmul.f32.gmra.mxu0 %v6840
        %v7229 = vpop.f32.mrf.mxu0
        %v7230 = vadd.f32 %v6920, %v7229
        %7231 = vmatmul.f32.gmra.mxu0 %v6841
        %v7232 = vpop.f32.mrf.mxu0
        %v7233 = vadd.f32 %v6920, %v7232
        %7234 = vmatmul.f32.gmra.mxu0 %v6842
        %v7235 = vpop.f32.mrf.mxu0
        %v7236 = vadd.f32 %v6920, %v7235
        %7237 = vmatmul.f32.gmra.mxu0 %v6843
        %v7238 = vpop.f32.mrf.mxu0
        %v7239 = vadd.f32 %v6920, %v7238
        %7240 = vmatmul.f32.gmra.mxu0 %v6844
        %v7241 = vpop.f32.mrf.mxu0
        %v7242 = vadd.f32 %v6920, %v7241
        %7243 = vmatmul.f32.gmra.mxu0 %v6845
        %v7244 = vpop.f32.mrf.mxu0
        %v7245 = vadd.f32 %v6920, %v7244
        %7246 = vmatmul.f32.gmra.mxu0 %v6846
        %v7247 = vpop.f32.mrf.mxu0
        %v7248 = vadd.f32 %v6920, %v7247
        %7249 = vmatmul.f32.gmra.mxu0 %v6847
        %v7250 = vpop.f32.mrf.mxu0
        %v7251 = vadd.f32 %v6920, %v7250
        %7252 = vmatmul.f32.gmra.mxu0 %v6848
        %v7253 = vpop.f32.mrf.mxu0
        %v7254 = vadd.f32 %v6920, %v7253
        %7255 = vmatmul.f32.gmra.mxu0 %v6849
        %v7256 = vpop.f32.mrf.mxu0
        %v7257 = vadd.f32 %v6920, %v7256
        %7258 = vmatmul.f32.gmra.mxu0 %v6850
        %v7259 = vpop.f32.mrf.mxu0
        %v7260 = vadd.f32 %v6920, %v7259
        %7261 = vmatmul.f32.gmra.mxu0 %v6851
        %v7262 = vpop.f32.mrf.mxu0
        %v7263 = vadd.f32 %v6920, %v7262
        %7264 = vdwg.mxu0
        %7265 = vmatpush.msra.mxu0 %v6915
        %7266 = vmatpush.msra.mxu0 %v6911
        %7267 = vmatpush.msra.mxu0 %v6907
        %7268 = vmatpush.msra.mxu0 %v6903
        %7269 = vmatpush.msra.mxu0 %v6899
        %7270 = vmatpush.msra.mxu0 %v6895
        %7271 = vmatpush.msra.mxu0 %v6891
        %7272 = vmatpush.msra.mxu0 %v6887
        %7273 = vmatpush.msra.mxu0 %v6883
        %7274 = vmatpush.msra.mxu0 %v6879
        %7275 = vmatpush.msra.mxu0 %v6875
        %7276 = vmatpush.msra.mxu0 %v6871
        %7277 = vmatpush.msra.mxu0 %v6867
        %7278 = vmatpush.msra.mxu0 %v6863
        %7279 = vmatpush.msra.mxu0 %v6859
        %7280 = vmatpush.msra.mxu0 %v6855
        %7281 = vmatmul.f32.gmra.mxu0 %v6820
        %v7282 = vpop.f32.mrf.mxu0
        %v7283 = vadd.f32 %v6921, %v7282
        %7284 = vmatmul.f32.gmra.mxu0 %v6821
        %v7285 = vpop.f32.mrf.mxu0
        %v7286 = vadd.f32 %v6921, %v7285
        %7287 = vmatmul.f32.gmra.mxu0 %v6822
        %v7288 = vpop.f32.mrf.mxu0
        %v7289 = vadd.f32 %v6921, %v7288
        %7290 = vmatmul.f32.gmra.mxu0 %v6823
        %v7291 = vpop.f32.mrf.mxu0
        %v7292 = vadd.f32 %v6921, %v7291
        %7293 = vmatmul.f32.gmra.mxu0 %v6824
        %v7294 = vpop.f32.mrf.mxu0
        %v7295 = vadd.f32 %v6921, %v7294
        %7296 = vmatmul.f32.gmra.mxu0 %v6825
        %v7297 = vpop.f32.mrf.mxu0
        %v7298 = vadd.f32 %v6921, %v7297
        %7299 = vmatmul.f32.gmra.mxu0 %v6826
        %v7300 = vpop.f32.mrf.mxu0
        %v7301 = vadd.f32 %v6921, %v7300
        %7302 = vmatmul.f32.gmra.mxu0 %v6827
        %v7303 = vpop.f32.mrf.mxu0
        %v7304 = vadd.f32 %v6921, %v7303
        %7305 = vmatmul.f32.gmra.mxu0 %v6828
        %v7306 = vpop.f32.mrf.mxu0
        %v7307 = vadd.f32 %v6921, %v7306
        %7308 = vmatmul.f32.gmra.mxu0 %v6829
        %v7309 = vpop.f32.mrf.mxu0
        %v7310 = vadd.f32 %v6921, %v7309
        %7311 = vmatmul.f32.gmra.mxu0 %v6830
        %v7312 = vpop.f32.mrf.mxu0
        %v7313 = vadd.f32 %v6921, %v7312
        %7314 = vmatmul.f32.gmra.mxu0 %v6831
        %v7315 = vpop.f32.mrf.mxu0
        %v7316 = vadd.f32 %v6921, %v7315
        %7317 = vmatmul.f32.gmra.mxu0 %v6832
        %v7318 = vpop.f32.mrf.mxu0
        %v7319 = vadd.f32 %v6921, %v7318
        %7320 = vmatmul.f32.gmra.mxu0 %v6833
        %v7321 = vpop.f32.mrf.mxu0
        %v7322 = vadd.f32 %v6921, %v7321
        %7323 = vmatmul.f32.gmra.mxu0 %v6834
        %v7324 = vpop.f32.mrf.mxu0
        %v7325 = vadd.f32 %v6921, %v7324
        %7326 = vmatmul.f32.gmra.mxu0 %v6835
        %v7327 = vpop.f32.mrf.mxu0
        %v7328 = vadd.f32 %v6921, %v7327
        %7329 = vmatmul.f32.gmra.mxu0 %v6836
        %v7330 = vpop.f32.mrf.mxu0
        %v7331 = vadd.f32 %v6921, %v7330
        %7332 = vmatmul.f32.gmra.mxu0 %v6837
        %v7333 = vpop.f32.mrf.mxu0
        %v7334 = vadd.f32 %v6921, %v7333
        %7335 = vmatmul.f32.gmra.mxu0 %v6838
        %v7336 = vpop.f32.mrf.mxu0
        %v7337 = vadd.f32 %v6921, %v7336
        %7338 = vmatmul.f32.gmra.mxu0 %v6839
        %v7339 = vpop.f32.mrf.mxu0
        %v7340 = vadd.f32 %v6921, %v7339
        %7341 = vmatmul.f32.gmra.mxu0 %v6840
        %v7342 = vpop.f32.mrf.mxu0
        %v7343 = vadd.f32 %v6921, %v7342
        %7344 = vmatmul.f32.gmra.mxu0 %v6841
        %v7345 = vpop.f32.mrf.mxu0
        %v7346 = vadd.f32 %v6921, %v7345
        %7347 = vmatmul.f32.gmra.mxu0 %v6842
        %v7348 = vpop.f32.mrf.mxu0
        %v7349 = vadd.f32 %v6921, %v7348
        %7350 = vmatmul.f32.gmra.mxu0 %v6843
        %v7351 = vpop.f32.mrf.mxu0
        %v7352 = vadd.f32 %v6921, %v7351
        %7353 = vmatmul.f32.gmra.mxu0 %v6844
        %v7354 = vpop.f32.mrf.mxu0
        %v7355 = vadd.f32 %v6921, %v7354
        %7356 = vmatmul.f32.gmra.mxu0 %v6845
        %v7357 = vpop.f32.mrf.mxu0
        %v7358 = vadd.f32 %v6921, %v7357
        %7359 = vmatmul.f32.gmra.mxu0 %v6846
        %v7360 = vpop.f32.mrf.mxu0
        %v7361 = vadd.f32 %v6921, %v7360
        %7362 = vmatmul.f32.gmra.mxu0 %v6847
        %v7363 = vpop.f32.mrf.mxu0
        %v7364 = vadd.f32 %v6921, %v7363
        %7365 = vmatmul.f32.gmra.mxu0 %v6848
        %v7366 = vpop.f32.mrf.mxu0
        %v7367 = vadd.f32 %v6921, %v7366
        %7368 = vmatmul.f32.gmra.mxu0 %v6849
        %v7369 = vpop.f32.mrf.mxu0
        %v7370 = vadd.f32 %v6921, %v7369
        %7371 = vmatmul.f32.gmra.mxu0 %v6850
        %v7372 = vpop.f32.mrf.mxu0
        %v7373 = vadd.f32 %v6921, %v7372
        %7374 = vmatmul.f32.gmra.mxu0 %v6851
        %v7375 = vpop.f32.mrf.mxu0
        %v7376 = vadd.f32 %v6921, %v7375
        %7377 = vdwg.mxu0
        %v7378 = vmul.f32 %v6944, %v6944
        %v7379 = vmul.f32 %v7057, %v7057
        %v7380 = vmul.f32 %v7170, %v7170
        %v7381 = vmul.f32 %v7283, %v7283
        %v7382 = vmul.f32 %v6947, %v6947
        %v7383 = vmul.f32 %v7060, %v7060
        %v7384 = vmul.f32 %v7173, %v7173
        %v7385 = vmul.f32 %v7286, %v7286
        %v7386 = vmul.f32 %v6950, %v6950
        %v7387 = vmul.f32 %v7063, %v7063
        %v7388 = vmul.f32 %v7176, %v7176
        %v7389 = vmul.f32 %v7289, %v7289
        %v7390 = vmul.f32 %v6953, %v6953
        %v7391 = vmul.f32 %v7066, %v7066
        %v7392 = vmul.f32 %v7179, %v7179
        %v7393 = vmul.f32 %v7292, %v7292
        %v7394 = vmul.f32 %v6956, %v6956
        %v7395 = vmul.f32 %v7069, %v7069
        %v7396 = vmul.f32 %v7182, %v7182
        %v7397 = vmul.f32 %v7295, %v7295
        %v7398 = vmul.f32 %v6959, %v6959
        %v7399 = vmul.f32 %v7072, %v7072
        %v7400 = vmul.f32 %v7185, %v7185
        %v7401 = vmul.f32 %v7298, %v7298
        %v7402 = vmul.f32 %v6962, %v6962
        %v7403 = vmul.f32 %v7075, %v7075
        %v7404 = vmul.f32 %v7188, %v7188
        %v7405 = vmul.f32 %v7301, %v7301
        %v7406 = vmul.f32 %v6965, %v6965
        %v7407 = vmul.f32 %v7078, %v7078
        %v7408 = vmul.f32 %v7191, %v7191
        %v7409 = vmul.f32 %v7304, %v7304
        %v7410 = vmul.f32 %v6968, %v6968
        %v7411 = vmul.f32 %v7081, %v7081
        %v7412 = vmul.f32 %v7194, %v7194
        %v7413 = vmul.f32 %v7307, %v7307
        %v7414 = vmul.f32 %v6971, %v6971
        %v7415 = vmul.f32 %v7084, %v7084
        %v7416 = vmul.f32 %v7197, %v7197
        %v7417 = vmul.f32 %v7310, %v7310
        %v7418 = vmul.f32 %v6974, %v6974
        %v7419 = vmul.f32 %v7087, %v7087
        %v7420 = vmul.f32 %v7200, %v7200
        %v7421 = vmul.f32 %v7313, %v7313
        %v7422 = vmul.f32 %v6977, %v6977
        %v7423 = vmul.f32 %v7090, %v7090
        %v7424 = vmul.f32 %v7203, %v7203
        %v7425 = vmul.f32 %v7316, %v7316
        %v7426 = vmul.f32 %v6980, %v6980
        %v7427 = vmul.f32 %v7093, %v7093
        %v7428 = vmul.f32 %v7206, %v7206
        %v7429 = vmul.f32 %v7319, %v7319
        %v7430 = vmul.f32 %v6983, %v6983
        %v7431 = vmul.f32 %v7096, %v7096
        %v7432 = vmul.f32 %v7209, %v7209
        %v7433 = vmul.f32 %v7322, %v7322
        %v7434 = vmul.f32 %v6986, %v6986
        %v7435 = vmul.f32 %v7099, %v7099
        %v7436 = vmul.f32 %v7212, %v7212
        %v7437 = vmul.f32 %v7325, %v7325
        %v7438 = vmul.f32 %v6989, %v6989
        %v7439 = vmul.f32 %v7102, %v7102
        %v7440 = vmul.f32 %v7215, %v7215
        %v7441 = vmul.f32 %v7328, %v7328
        %v7442 = vmul.f32 %v6992, %v6992
        %v7443 = vmul.f32 %v7105, %v7105
        %v7444 = vmul.f32 %v7218, %v7218
        %v7445 = vmul.f32 %v7331, %v7331
        %v7446 = vmul.f32 %v6995, %v6995
        %v7447 = vmul.f32 %v7108, %v7108
        %v7448 = vmul.f32 %v7221, %v7221
        %v7449 = vmul.f32 %v7334, %v7334
        %v7450 = vmul.f32 %v6998, %v6998
        %v7451 = vmul.f32 %v7111, %v7111
        %v7452 = vmul.f32 %v7224, %v7224
        %v7453 = vmul.f32 %v7337, %v7337
        %v7454 = vmul.f32 %v7001, %v7001
        %v7455 = vmul.f32 %v7114, %v7114
        %v7456 = vmul.f32 %v7227, %v7227
        %v7457 = vmul.f32 %v7340, %v7340
        %v7458 = vmul.f32 %v7004, %v7004
        %v7459 = vmul.f32 %v7117, %v7117
        %v7460 = vmul.f32 %v7230, %v7230
        %v7461 = vmul.f32 %v7343, %v7343
        %v7462 = vmul.f32 %v7007, %v7007
        %v7463 = vmul.f32 %v7120, %v7120
        %v7464 = vmul.f32 %v7233, %v7233
        %v7465 = vmul.f32 %v7346, %v7346
        %v7466 = vmul.f32 %v7010, %v7010
        %v7467 = vmul.f32 %v7123, %v7123
        %v7468 = vmul.f32 %v7236, %v7236
        %v7469 = vmul.f32 %v7349, %v7349
        %v7470 = vmul.f32 %v7013, %v7013
        %v7471 = vmul.f32 %v7126, %v7126
        %v7472 = vmul.f32 %v7239, %v7239
        %v7473 = vmul.f32 %v7352, %v7352
        %v7474 = vmul.f32 %v7016, %v7016
        %v7475 = vmul.f32 %v7129, %v7129
        %v7476 = vmul.f32 %v7242, %v7242
        %v7477 = vmul.f32 %v7355, %v7355
        %v7478 = vmul.f32 %v7019, %v7019
        %v7479 = vmul.f32 %v7132, %v7132
        %v7480 = vmul.f32 %v7245, %v7245
        %v7481 = vmul.f32 %v7358, %v7358
        %v7482 = vmul.f32 %v7022, %v7022
        %v7483 = vmul.f32 %v7135, %v7135
        %v7484 = vmul.f32 %v7248, %v7248
        %v7485 = vmul.f32 %v7361, %v7361
        %v7486 = vmul.f32 %v7025, %v7025
        %v7487 = vmul.f32 %v7138, %v7138
        %v7488 = vmul.f32 %v7251, %v7251
        %v7489 = vmul.f32 %v7364, %v7364
        %v7490 = vmul.f32 %v7028, %v7028
        %v7491 = vmul.f32 %v7141, %v7141
        %v7492 = vmul.f32 %v7254, %v7254
        %v7493 = vmul.f32 %v7367, %v7367
        %v7494 = vmul.f32 %v7031, %v7031
        %v7495 = vmul.f32 %v7144, %v7144
        %v7496 = vmul.f32 %v7257, %v7257
        %v7497 = vmul.f32 %v7370, %v7370
        %v7498 = vmul.f32 %v7034, %v7034
        %v7499 = vmul.f32 %v7147, %v7147
        %v7500 = vmul.f32 %v7260, %v7260
        %v7501 = vmul.f32 %v7373, %v7373
        %v7502 = vmul.f32 %v7037, %v7037
        %v7503 = vmul.f32 %v7150, %v7150
        %v7504 = vmul.f32 %v7263, %v7263
        %v7505 = vmul.f32 %v7376, %v7376
        %v7506 = vmul.f32 %v6944, %v7378
        %v7507 = vmul.f32 %v7057, %v7379
        %v7508 = vmul.f32 %v7170, %v7380
        %v7509 = vmul.f32 %v7283, %v7381
        %v7510 = vmul.f32 %v6947, %v7382
        %v7511 = vmul.f32 %v7060, %v7383
        %v7512 = vmul.f32 %v7173, %v7384
        %v7513 = vmul.f32 %v7286, %v7385
        %v7514 = vmul.f32 %v6950, %v7386
        %v7515 = vmul.f32 %v7063, %v7387
        %v7516 = vmul.f32 %v7176, %v7388
        %v7517 = vmul.f32 %v7289, %v7389
        %v7518 = vmul.f32 %v6953, %v7390
        %v7519 = vmul.f32 %v7066, %v7391
        %v7520 = vmul.f32 %v7179, %v7392
        %v7521 = vmul.f32 %v7292, %v7393
        %v7522 = vmul.f32 %v6956, %v7394
        %v7523 = vmul.f32 %v7069, %v7395
        %v7524 = vmul.f32 %v7182, %v7396
        %v7525 = vmul.f32 %v7295, %v7397
        %v7526 = vmul.f32 %v6959, %v7398
        %v7527 = vmul.f32 %v7072, %v7399
        %v7528 = vmul.f32 %v7185, %v7400
        %v7529 = vmul.f32 %v7298, %v7401
        %v7530 = vmul.f32 %v6962, %v7402
        %v7531 = vmul.f32 %v7075, %v7403
        %v7532 = vmul.f32 %v7188, %v7404
        %v7533 = vmul.f32 %v7301, %v7405
        %v7534 = vmul.f32 %v6965, %v7406
        %v7535 = vmul.f32 %v7078, %v7407
        %v7536 = vmul.f32 %v7191, %v7408
        %v7537 = vmul.f32 %v7304, %v7409
        %v7538 = vmul.f32 %v6968, %v7410
        %v7539 = vmul.f32 %v7081, %v7411
        %v7540 = vmul.f32 %v7194, %v7412
        %v7541 = vmul.f32 %v7307, %v7413
        %v7542 = vmul.f32 %v6971, %v7414
        %v7543 = vmul.f32 %v7084, %v7415
        %v7544 = vmul.f32 %v7197, %v7416
        %v7545 = vmul.f32 %v7310, %v7417
        %v7546 = vmul.f32 %v6974, %v7418
        %v7547 = vmul.f32 %v7087, %v7419
        %v7548 = vmul.f32 %v7200, %v7420
        %v7549 = vmul.f32 %v7313, %v7421
        %v7550 = vmul.f32 %v6977, %v7422
        %v7551 = vmul.f32 %v7090, %v7423
        %v7552 = vmul.f32 %v7203, %v7424
        %v7553 = vmul.f32 %v7316, %v7425
        %v7554 = vmul.f32 %v6980, %v7426
        %v7555 = vmul.f32 %v7093, %v7427
        %v7556 = vmul.f32 %v7206, %v7428
        %v7557 = vmul.f32 %v7319, %v7429
        %v7558 = vmul.f32 %v6983, %v7430
        %v7559 = vmul.f32 %v7096, %v7431
        %v7560 = vmul.f32 %v7209, %v7432
        %v7561 = vmul.f32 %v7322, %v7433
        %v7562 = vmul.f32 %v6986, %v7434
        %v7563 = vmul.f32 %v7099, %v7435
        %v7564 = vmul.f32 %v7212, %v7436
        %v7565 = vmul.f32 %v7325, %v7437
        %v7566 = vmul.f32 %v6989, %v7438
        %v7567 = vmul.f32 %v7102, %v7439
        %v7568 = vmul.f32 %v7215, %v7440
        %v7569 = vmul.f32 %v7328, %v7441
        %v7570 = vmul.f32 %v6992, %v7442
        %v7571 = vmul.f32 %v7105, %v7443
        %v7572 = vmul.f32 %v7218, %v7444
        %v7573 = vmul.f32 %v7331, %v7445
        %v7574 = vmul.f32 %v6995, %v7446
        %v7575 = vmul.f32 %v7108, %v7447
        %v7576 = vmul.f32 %v7221, %v7448
        %v7577 = vmul.f32 %v7334, %v7449
        %v7578 = vmul.f32 %v6998, %v7450
        %v7579 = vmul.f32 %v7111, %v7451
        %v7580 = vmul.f32 %v7224, %v7452
        %v7581 = vmul.f32 %v7337, %v7453
        %v7582 = vmul.f32 %v7001, %v7454
        %v7583 = vmul.f32 %v7114, %v7455
        %v7584 = vmul.f32 %v7227, %v7456
        %v7585 = vmul.f32 %v7340, %v7457
        %v7586 = vmul.f32 %v7004, %v7458
        %v7587 = vmul.f32 %v7117, %v7459
        %v7588 = vmul.f32 %v7230, %v7460
        %v7589 = vmul.f32 %v7343, %v7461
        %v7590 = vmul.f32 %v7007, %v7462
        %v7591 = vmul.f32 %v7120, %v7463
        %v7592 = vmul.f32 %v7233, %v7464
        %v7593 = vmul.f32 %v7346, %v7465
        %v7594 = vmul.f32 %v7010, %v7466
        %v7595 = vmul.f32 %v7123, %v7467
        %v7596 = vmul.f32 %v7236, %v7468
        %v7597 = vmul.f32 %v7349, %v7469
        %v7598 = vmul.f32 %v7013, %v7470
        %v7599 = vmul.f32 %v7126, %v7471
        %v7600 = vmul.f32 %v7239, %v7472
        %v7601 = vmul.f32 %v7352, %v7473
        %v7602 = vmul.f32 %v7016, %v7474
        %v7603 = vmul.f32 %v7129, %v7475
        %v7604 = vmul.f32 %v7242, %v7476
        %v7605 = vmul.f32 %v7355, %v7477
        %v7606 = vmul.f32 %v7019, %v7478
        %v7607 = vmul.f32 %v7132, %v7479
        %v7608 = vmul.f32 %v7245, %v7480
        %v7609 = vmul.f32 %v7358, %v7481
        %v7610 = vmul.f32 %v7022, %v7482
        %v7611 = vmul.f32 %v7135, %v7483
        %v7612 = vmul.f32 %v7248, %v7484
        %v7613 = vmul.f32 %v7361, %v7485
        %v7614 = vmul.f32 %v7025, %v7486
        %v7615 = vmul.f32 %v7138, %v7487
        %v7616 = vmul.f32 %v7251, %v7488
        %v7617 = vmul.f32 %v7364, %v7489
        %v7618 = vmul.f32 %v7028, %v7490
        %v7619 = vmul.f32 %v7141, %v7491
        %v7620 = vmul.f32 %v7254, %v7492
        %v7621 = vmul.f32 %v7367, %v7493
        %v7622 = vmul.f32 %v7031, %v7494
        %v7623 = vmul.f32 %v7144, %v7495
        %v7624 = vmul.f32 %v7257, %v7496
        %v7625 = vmul.f32 %v7370, %v7497
        %v7626 = vmul.f32 %v7034, %v7498
        %v7627 = vmul.f32 %v7147, %v7499
        %v7628 = vmul.f32 %v7260, %v7500
        %v7629 = vmul.f32 %v7373, %v7501
        %v7630 = vmul.f32 %v7037, %v7502
        %v7631 = vmul.f32 %v7150, %v7503
        %v7632 = vmul.f32 %v7263, %v7504
        %v7633 = vmul.f32 %v7376, %v7505
        %v7634 = vmul.f32 %v7506, 0.044715
        %v7635 = vmul.f32 %v7507, 0.044715
        %v7636 = vmul.f32 %v7508, 0.044715
        %v7637 = vmul.f32 %v7509, 0.044715
        %v7638 = vmul.f32 %v7510, 0.044715
        %v7639 = vmul.f32 %v7511, 0.044715
        %v7640 = vmul.f32 %v7512, 0.044715
        %v7641 = vmul.f32 %v7513, 0.044715
        %v7642 = vmul.f32 %v7514, 0.044715
        %v7643 = vmul.f32 %v7515, 0.044715
        %v7644 = vmul.f32 %v7516, 0.044715
        %v7645 = vmul.f32 %v7517, 0.044715
        %v7646 = vmul.f32 %v7518, 0.044715
        %v7647 = vmul.f32 %v7519, 0.044715
        %v7648 = vmul.f32 %v7520, 0.044715
        %v7649 = vmul.f32 %v7521, 0.044715
        %v7650 = vmul.f32 %v7522, 0.044715
        %v7651 = vmul.f32 %v7523, 0.044715
        %v7652 = vmul.f32 %v7524, 0.044715
        %v7653 = vmul.f32 %v7525, 0.044715
        %v7654 = vmul.f32 %v7526, 0.044715
        %v7655 = vmul.f32 %v7527, 0.044715
        %v7656 = vmul.f32 %v7528, 0.044715
        %v7657 = vmul.f32 %v7529, 0.044715
        %v7658 = vmul.f32 %v7530, 0.044715
        %v7659 = vmul.f32 %v7531, 0.044715
        %v7660 = vmul.f32 %v7532, 0.044715
        %v7661 = vmul.f32 %v7533, 0.044715
        %v7662 = vmul.f32 %v7534, 0.044715
        %v7663 = vmul.f32 %v7535, 0.044715
        %v7664 = vmul.f32 %v7536, 0.044715
        %v7665 = vmul.f32 %v7537, 0.044715
        %v7666 = vmul.f32 %v7538, 0.044715
        %v7667 = vmul.f32 %v7539, 0.044715
        %v7668 = vmul.f32 %v7540, 0.044715
        %v7669 = vmul.f32 %v7541, 0.044715
        %v7670 = vmul.f32 %v7542, 0.044715
        %v7671 = vmul.f32 %v7543, 0.044715
        %v7672 = vmul.f32 %v7544, 0.044715
        %v7673 = vmul.f32 %v7545, 0.044715
        %v7674 = vmul.f32 %v7546, 0.044715
        %v7675 = vmul.f32 %v7547, 0.044715
        %v7676 = vmul.f32 %v7548, 0.044715
        %v7677 = vmul.f32 %v7549, 0.044715
        %v7678 = vmul.f32 %v7550, 0.044715
        %v7679 = vmul.f32 %v7551, 0.044715
        %v7680 = vmul.f32 %v7552, 0.044715
        %v7681 = vmul.f32 %v7553, 0.044715
        %v7682 = vmul.f32 %v7554, 0.044715
        %v7683 = vmul.f32 %v7555, 0.044715
        %v7684 = vmul.f32 %v7556, 0.044715
        %v7685 = vmul.f32 %v7557, 0.044715
        %v7686 = vmul.f32 %v7558, 0.044715
        %v7687 = vmul.f32 %v7559, 0.044715
        %v7688 = vmul.f32 %v7560, 0.044715
        %v7689 = vmul.f32 %v7561, 0.044715
        %v7690 = vmul.f32 %v7562, 0.044715
        %v7691 = vmul.f32 %v7563, 0.044715
        %v7692 = vmul.f32 %v7564, 0.044715
        %v7693 = vmul.f32 %v7565, 0.044715
        %v7694 = vmul.f32 %v7566, 0.044715
        %v7695 = vmul.f32 %v7567, 0.044715
        %v7696 = vmul.f32 %v7568, 0.044715
        %v7697 = vmul.f32 %v7569, 0.044715
        %v7698 = vmul.f32 %v7570, 0.044715
        %v7699 = vmul.f32 %v7571, 0.044715
        %v7700 = vmul.f32 %v7572, 0.044715
        %v7701 = vmul.f32 %v7573, 0.044715
        %v7702 = vmul.f32 %v7574, 0.044715
        %v7703 = vmul.f32 %v7575, 0.044715
        %v7704 = vmul.f32 %v7576, 0.044715
        %v7705 = vmul.f32 %v7577, 0.044715
        %v7706 = vmul.f32 %v7578, 0.044715
        %v7707 = vmul.f32 %v7579, 0.044715
        %v7708 = vmul.f32 %v7580, 0.044715
        %v7709 = vmul.f32 %v7581, 0.044715
        %v7710 = vmul.f32 %v7582, 0.044715
        %v7711 = vmul.f32 %v7583, 0.044715
        %v7712 = vmul.f32 %v7584, 0.044715
        %v7713 = vmul.f32 %v7585, 0.044715
        %v7714 = vmul.f32 %v7586, 0.044715
        %v7715 = vmul.f32 %v7587, 0.044715
        %v7716 = vmul.f32 %v7588, 0.044715
        %v7717 = vmul.f32 %v7589, 0.044715
        %v7718 = vmul.f32 %v7590, 0.044715
        %v7719 = vmul.f32 %v7591, 0.044715
        %v7720 = vmul.f32 %v7592, 0.044715
        %v7721 = vmul.f32 %v7593, 0.044715
        %v7722 = vmul.f32 %v7594, 0.044715
        %v7723 = vmul.f32 %v7595, 0.044715
        %v7724 = vmul.f32 %v7596, 0.044715
        %v7725 = vmul.f32 %v7597, 0.044715
        %v7726 = vmul.f32 %v7598, 0.044715
        %v7727 = vmul.f32 %v7599, 0.044715
        %v7728 = vmul.f32 %v7600, 0.044715
        %v7729 = vmul.f32 %v7601, 0.044715
        %v7730 = vmul.f32 %v7602, 0.044715
        %v7731 = vmul.f32 %v7603, 0.044715
        %v7732 = vmul.f32 %v7604, 0.044715
        %v7733 = vmul.f32 %v7605, 0.044715
        %v7734 = vmul.f32 %v7606, 0.044715
        %v7735 = vmul.f32 %v7607, 0.044715
        %v7736 = vmul.f32 %v7608, 0.044715
        %v7737 = vmul.f32 %v7609, 0.044715
        %v7738 = vmul.f32 %v7610, 0.044715
        %v7739 = vmul.f32 %v7611, 0.044715
        %v7740 = vmul.f32 %v7612, 0.044715
        %v7741 = vmul.f32 %v7613, 0.044715
        %v7742 = vmul.f32 %v7614, 0.044715
        %v7743 = vmul.f32 %v7615, 0.044715
        %v7744 = vmul.f32 %v7616, 0.044715
        %v7745 = vmul.f32 %v7617, 0.044715
        %v7746 = vmul.f32 %v7618, 0.044715
        %v7747 = vmul.f32 %v7619, 0.044715
        %v7748 = vmul.f32 %v7620, 0.044715
        %v7749 = vmul.f32 %v7621, 0.044715
        %v7750 = vmul.f32 %v7622, 0.044715
        %v7751 = vmul.f32 %v7623, 0.044715
        %v7752 = vmul.f32 %v7624, 0.044715
        %v7753 = vmul.f32 %v7625, 0.044715
        %v7754 = vmul.f32 %v7626, 0.044715
        %v7755 = vmul.f32 %v7627, 0.044715
        %v7756 = vmul.f32 %v7628, 0.044715
        %v7757 = vmul.f32 %v7629, 0.044715
        %v7758 = vmul.f32 %v7630, 0.044715
        %v7759 = vmul.f32 %v7631, 0.044715
        %v7760 = vmul.f32 %v7632, 0.044715
        %v7761 = vmul.f32 %v7633, 0.044715
        %v7762 = vadd.f32 %v6944, %v7634
        %v7763 = vadd.f32 %v7057, %v7635
        %v7764 = vadd.f32 %v7170, %v7636
        %v7765 = vadd.f32 %v7283, %v7637
        %v7766 = vadd.f32 %v6947, %v7638
        %v7767 = vadd.f32 %v7060, %v7639
        %v7768 = vadd.f32 %v7173, %v7640
        %v7769 = vadd.f32 %v7286, %v7641
        %v7770 = vadd.f32 %v6950, %v7642
        %v7771 = vadd.f32 %v7063, %v7643
        %v7772 = vadd.f32 %v7176, %v7644
        %v7773 = vadd.f32 %v7289, %v7645
        %v7774 = vadd.f32 %v6953, %v7646
        %v7775 = vadd.f32 %v7066, %v7647
        %v7776 = vadd.f32 %v7179, %v7648
        %v7777 = vadd.f32 %v7292, %v7649
        %v7778 = vadd.f32 %v6956, %v7650
        %v7779 = vadd.f32 %v7069, %v7651
        %v7780 = vadd.f32 %v7182, %v7652
        %v7781 = vadd.f32 %v7295, %v7653
        %v7782 = vadd.f32 %v6959, %v7654
        %v7783 = vadd.f32 %v7072, %v7655
        %v7784 = vadd.f32 %v7185, %v7656
        %v7785 = vadd.f32 %v7298, %v7657
        %v7786 = vadd.f32 %v6962, %v7658
        %v7787 = vadd.f32 %v7075, %v7659
        %v7788 = vadd.f32 %v7188, %v7660
        %v7789 = vadd.f32 %v7301, %v7661
        %v7790 = vadd.f32 %v6965, %v7662
        %v7791 = vadd.f32 %v7078, %v7663
        %v7792 = vadd.f32 %v7191, %v7664
        %v7793 = vadd.f32 %v7304, %v7665
        %v7794 = vadd.f32 %v6968, %v7666
        %v7795 = vadd.f32 %v7081, %v7667
        %v7796 = vadd.f32 %v7194, %v7668
        %v7797 = vadd.f32 %v7307, %v7669
        %v7798 = vadd.f32 %v6971, %v7670
        %v7799 = vadd.f32 %v7084, %v7671
        %v7800 = vadd.f32 %v7197, %v7672
        %v7801 = vadd.f32 %v7310, %v7673
        %v7802 = vadd.f32 %v6974, %v7674
        %v7803 = vadd.f32 %v7087, %v7675
        %v7804 = vadd.f32 %v7200, %v7676
        %v7805 = vadd.f32 %v7313, %v7677
        %v7806 = vadd.f32 %v6977, %v7678
        %v7807 = vadd.f32 %v7090, %v7679
        %v7808 = vadd.f32 %v7203, %v7680
        %v7809 = vadd.f32 %v7316, %v7681
        %v7810 = vadd.f32 %v6980, %v7682
        %v7811 = vadd.f32 %v7093, %v7683
        %v7812 = vadd.f32 %v7206, %v7684
        %v7813 = vadd.f32 %v7319, %v7685
        %v7814 = vadd.f32 %v6983, %v7686
        %v7815 = vadd.f32 %v7096, %v7687
        %v7816 = vadd.f32 %v7209, %v7688
        %v7817 = vadd.f32 %v7322, %v7689
        %v7818 = vadd.f32 %v6986, %v7690
        %v7819 = vadd.f32 %v7099, %v7691
        %v7820 = vadd.f32 %v7212, %v7692
        %v7821 = vadd.f32 %v7325, %v7693
        %v7822 = vadd.f32 %v6989, %v7694
        %v7823 = vadd.f32 %v7102, %v7695
        %v7824 = vadd.f32 %v7215, %v7696
        %v7825 = vadd.f32 %v7328, %v7697
        %v7826 = vadd.f32 %v6992, %v7698
        %v7827 = vadd.f32 %v7105, %v7699
        %v7828 = vadd.f32 %v7218, %v7700
        %v7829 = vadd.f32 %v7331, %v7701
        %v7830 = vadd.f32 %v6995, %v7702
        %v7831 = vadd.f32 %v7108, %v7703
        %v7832 = vadd.f32 %v7221, %v7704
        %v7833 = vadd.f32 %v7334, %v7705
        %v7834 = vadd.f32 %v6998, %v7706
        %v7835 = vadd.f32 %v7111, %v7707
        %v7836 = vadd.f32 %v7224, %v7708
        %v7837 = vadd.f32 %v7337, %v7709
        %v7838 = vadd.f32 %v7001, %v7710
        %v7839 = vadd.f32 %v7114, %v7711
        %v7840 = vadd.f32 %v7227, %v7712
        %v7841 = vadd.f32 %v7340, %v7713
        %v7842 = vadd.f32 %v7004, %v7714
        %v7843 = vadd.f32 %v7117, %v7715
        %v7844 = vadd.f32 %v7230, %v7716
        %v7845 = vadd.f32 %v7343, %v7717
        %v7846 = vadd.f32 %v7007, %v7718
        %v7847 = vadd.f32 %v7120, %v7719
        %v7848 = vadd.f32 %v7233, %v7720
        %v7849 = vadd.f32 %v7346, %v7721
        %v7850 = vadd.f32 %v7010, %v7722
        %v7851 = vadd.f32 %v7123, %v7723
        %v7852 = vadd.f32 %v7236, %v7724
        %v7853 = vadd.f32 %v7349, %v7725
        %v7854 = vadd.f32 %v7013, %v7726
        %v7855 = vadd.f32 %v7126, %v7727
        %v7856 = vadd.f32 %v7239, %v7728
        %v7857 = vadd.f32 %v7352, %v7729
        %v7858 = vadd.f32 %v7016, %v7730
        %v7859 = vadd.f32 %v7129, %v7731
        %v7860 = vadd.f32 %v7242, %v7732
        %v7861 = vadd.f32 %v7355, %v7733
        %v7862 = vadd.f32 %v7019, %v7734
        %v7863 = vadd.f32 %v7132, %v7735
        %v7864 = vadd.f32 %v7245, %v7736
        %v7865 = vadd.f32 %v7358, %v7737
        %v7866 = vadd.f32 %v7022, %v7738
        %v7867 = vadd.f32 %v7135, %v7739
        %v7868 = vadd.f32 %v7248, %v7740
        %v7869 = vadd.f32 %v7361, %v7741
        %v7870 = vadd.f32 %v7025, %v7742
        %v7871 = vadd.f32 %v7138, %v7743
        %v7872 = vadd.f32 %v7251, %v7744
        %v7873 = vadd.f32 %v7364, %v7745
        %v7874 = vadd.f32 %v7028, %v7746
        %v7875 = vadd.f32 %v7141, %v7747
        %v7876 = vadd.f32 %v7254, %v7748
        %v7877 = vadd.f32 %v7367, %v7749
        %v7878 = vadd.f32 %v7031, %v7750
        %v7879 = vadd.f32 %v7144, %v7751
        %v7880 = vadd.f32 %v7257, %v7752
        %v7881 = vadd.f32 %v7370, %v7753
        %v7882 = vadd.f32 %v7034, %v7754
        %v7883 = vadd.f32 %v7147, %v7755
        %v7884 = vadd.f32 %v7260, %v7756
        %v7885 = vadd.f32 %v7373, %v7757
        %v7886 = vadd.f32 %v7037, %v7758
        %v7887 = vadd.f32 %v7150, %v7759
        %v7888 = vadd.f32 %v7263, %v7760
        %v7889 = vadd.f32 %v7376, %v7761
        %v7890 = vmul.f32 %v7762, 0.7978846
        %v7891 = vmul.f32 %v7763, 0.7978846
        %v7892 = vmul.f32 %v7764, 0.7978846
        %v7893 = vmul.f32 %v7765, 0.7978846
        %v7894 = vmul.f32 %v7766, 0.7978846
        %v7895 = vmul.f32 %v7767, 0.7978846
        %v7896 = vmul.f32 %v7768, 0.7978846
        %v7897 = vmul.f32 %v7769, 0.7978846
        %v7898 = vmul.f32 %v7770, 0.7978846
        %v7899 = vmul.f32 %v7771, 0.7978846
        %v7900 = vmul.f32 %v7772, 0.7978846
        %v7901 = vmul.f32 %v7773, 0.7978846
        %v7902 = vmul.f32 %v7774, 0.7978846
        %v7903 = vmul.f32 %v7775, 0.7978846
        %v7904 = vmul.f32 %v7776, 0.7978846
        %v7905 = vmul.f32 %v7777, 0.7978846
        %v7906 = vmul.f32 %v7778, 0.7978846
        %v7907 = vmul.f32 %v7779, 0.7978846
        %v7908 = vmul.f32 %v7780, 0.7978846
        %v7909 = vmul.f32 %v7781, 0.7978846
        %v7910 = vmul.f32 %v7782, 0.7978846
        %v7911 = vmul.f32 %v7783, 0.7978846
        %v7912 = vmul.f32 %v7784, 0.7978846
        %v7913 = vmul.f32 %v7785, 0.7978846
        %v7914 = vmul.f32 %v7786, 0.7978846
        %v7915 = vmul.f32 %v7787, 0.7978846
        %v7916 = vmul.f32 %v7788, 0.7978846
        %v7917 = vmul.f32 %v7789, 0.7978846
        %v7918 = vmul.f32 %v7790, 0.7978846
        %v7919 = vmul.f32 %v7791, 0.7978846
        %v7920 = vmul.f32 %v7792, 0.7978846
        %v7921 = vmul.f32 %v7793, 0.7978846
        %v7922 = vmul.f32 %v7794, 0.7978846
        %v7923 = vmul.f32 %v7795, 0.7978846
        %v7924 = vmul.f32 %v7796, 0.7978846
        %v7925 = vmul.f32 %v7797, 0.7978846
        %v7926 = vmul.f32 %v7798, 0.7978846
        %v7927 = vmul.f32 %v7799, 0.7978846
        %v7928 = vmul.f32 %v7800, 0.7978846
        %v7929 = vmul.f32 %v7801, 0.7978846
        %v7930 = vmul.f32 %v7802, 0.7978846
        %v7931 = vmul.f32 %v7803, 0.7978846
        %v7932 = vmul.f32 %v7804, 0.7978846
        %v7933 = vmul.f32 %v7805, 0.7978846
        %v7934 = vmul.f32 %v7806, 0.7978846
        %v7935 = vmul.f32 %v7807, 0.7978846
        %v7936 = vmul.f32 %v7808, 0.7978846
        %v7937 = vmul.f32 %v7809, 0.7978846
        %v7938 = vmul.f32 %v7810, 0.7978846
        %v7939 = vmul.f32 %v7811, 0.7978846
        %v7940 = vmul.f32 %v7812, 0.7978846
        %v7941 = vmul.f32 %v7813, 0.7978846
        %v7942 = vmul.f32 %v7814, 0.7978846
        %v7943 = vmul.f32 %v7815, 0.7978846
        %v7944 = vmul.f32 %v7816, 0.7978846
        %v7945 = vmul.f32 %v7817, 0.7978846
        %v7946 = vmul.f32 %v7818, 0.7978846
        %v7947 = vmul.f32 %v7819, 0.7978846
        %v7948 = vmul.f32 %v7820, 0.7978846
        %v7949 = vmul.f32 %v7821, 0.7978846
        %v7950 = vmul.f32 %v7822, 0.7978846
        %v7951 = vmul.f32 %v7823, 0.7978846
        %v7952 = vmul.f32 %v7824, 0.7978846
        %v7953 = vmul.f32 %v7825, 0.7978846
        %v7954 = vmul.f32 %v7826, 0.7978846
        %v7955 = vmul.f32 %v7827, 0.7978846
        %v7956 = vmul.f32 %v7828, 0.7978846
        %v7957 = vmul.f32 %v7829, 0.7978846
        %v7958 = vmul.f32 %v7830, 0.7978846
        %v7959 = vmul.f32 %v7831, 0.7978846
        %v7960 = vmul.f32 %v7832, 0.7978846
        %v7961 = vmul.f32 %v7833, 0.7978846
        %v7962 = vmul.f32 %v7834, 0.7978846
        %v7963 = vmul.f32 %v7835, 0.7978846
        %v7964 = vmul.f32 %v7836, 0.7978846
        %v7965 = vmul.f32 %v7837, 0.7978846
        %v7966 = vmul.f32 %v7838, 0.7978846
        %v7967 = vmul.f32 %v7839, 0.7978846
        %v7968 = vmul.f32 %v7840, 0.7978846
        %v7969 = vmul.f32 %v7841, 0.7978846
        %v7970 = vmul.f32 %v7842, 0.7978846
        %v7971 = vmul.f32 %v7843, 0.7978846
        %v7972 = vmul.f32 %v7844, 0.7978846
        %v7973 = vmul.f32 %v7845, 0.7978846
        %v7974 = vmul.f32 %v7846, 0.7978846
        %v7975 = vmul.f32 %v7847, 0.7978846
        %v7976 = vmul.f32 %v7848, 0.7978846
        %v7977 = vmul.f32 %v7849, 0.7978846
        %v7978 = vmul.f32 %v7850, 0.7978846
        %v7979 = vmul.f32 %v7851, 0.7978846
        %v7980 = vmul.f32 %v7852, 0.7978846
        %v7981 = vmul.f32 %v7853, 0.7978846
        %v7982 = vmul.f32 %v7854, 0.7978846
        %v7983 = vmul.f32 %v7855, 0.7978846
        %v7984 = vmul.f32 %v7856, 0.7978846
        %v7985 = vmul.f32 %v7857, 0.7978846
        %v7986 = vmul.f32 %v7858, 0.7978846
        %v7987 = vmul.f32 %v7859, 0.7978846
        %v7988 = vmul.f32 %v7860, 0.7978846
        %v7989 = vmul.f32 %v7861, 0.7978846
        %v7990 = vmul.f32 %v7862, 0.7978846
        %v7991 = vmul.f32 %v7863, 0.7978846
        %v7992 = vmul.f32 %v7864, 0.7978846
        %v7993 = vmul.f32 %v7865, 0.7978846
        %v7994 = vmul.f32 %v7866, 0.7978846
        %v7995 = vmul.f32 %v7867, 0.7978846
        %v7996 = vmul.f32 %v7868, 0.7978846
        %v7997 = vmul.f32 %v7869, 0.7978846
        %v7998 = vmul.f32 %v7870, 0.7978846
        %v7999 = vmul.f32 %v7871, 0.7978846
        %v8000 = vmul.f32 %v7872, 0.7978846
        %v8001 = vmul.f32 %v7873, 0.7978846
        %v8002 = vmul.f32 %v7874, 0.7978846
        %v8003 = vmul.f32 %v7875, 0.7978846
        %v8004 = vmul.f32 %v7876, 0.7978846
        %v8005 = vmul.f32 %v7877, 0.7978846
        %v8006 = vmul.f32 %v7878, 0.7978846
        %v8007 = vmul.f32 %v7879, 0.7978846
        %v8008 = vmul.f32 %v7880, 0.7978846
        %v8009 = vmul.f32 %v7881, 0.7978846
        %v8010 = vmul.f32 %v7882, 0.7978846
        %v8011 = vmul.f32 %v7883, 0.7978846
        %v8012 = vmul.f32 %v7884, 0.7978846
        %v8013 = vmul.f32 %v7885, 0.7978846
        %v8014 = vmul.f32 %v7886, 0.7978846
        %v8015 = vmul.f32 %v7887, 0.7978846
        %v8016 = vmul.f32 %v7888, 0.7978846
        %v8017 = vmul.f32 %v7889, 0.7978846
        %v8018 = vtanh.pop %v7890
        %v8019 = vtanh.pop %v7891
        %v8020 = vtanh.pop %v7892
        %v8021 = vtanh.pop %v7893
        %v8022 = vtanh.pop %v7894
        %v8023 = vtanh.pop %v7895
        %v8024 = vtanh.pop %v7896
        %v8025 = vtanh.pop %v7897
        %v8026 = vtanh.pop %v7898
        %v8027 = vtanh.pop %v7899
        %v8028 = vtanh.pop %v7900
        %v8029 = vtanh.pop %v7901
        %v8030 = vtanh.pop %v7902
        %v8031 = vtanh.pop %v7903
        %v8032 = vtanh.pop %v7904
        %v8033 = vtanh.pop %v7905
        %v8034 = vtanh.pop %v7906
        %v8035 = vtanh.pop %v7907
        %v8036 = vtanh.pop %v7908
        %v8037 = vtanh.pop %v7909
        %v8038 = vtanh.pop %v7910
        %v8039 = vtanh.pop %v7911
        %v8040 = vtanh.pop %v7912
        %v8041 = vtanh.pop %v7913
        %v8042 = vtanh.pop %v7914
        %v8043 = vtanh.pop %v7915
        %v8044 = vtanh.pop %v7916
        %v8045 = vtanh.pop %v7917
        %v8046 = vtanh.pop %v7918
        %v8047 = vtanh.pop %v7919
        %v8048 = vtanh.pop %v7920
        %v8049 = vtanh.pop %v7921
        %v8050 = vtanh.pop %v7922
        %v8051 = vtanh.pop %v7923
        %v8052 = vtanh.pop %v7924
        %v8053 = vtanh.pop %v7925
        %v8054 = vtanh.pop %v7926
        %v8055 = vtanh.pop %v7927
        %v8056 = vtanh.pop %v7928
        %v8057 = vtanh.pop %v7929
        %v8058 = vtanh.pop %v7930
        %v8059 = vtanh.pop %v7931
        %v8060 = vtanh.pop %v7932
        %v8061 = vtanh.pop %v7933
        %v8062 = vtanh.pop %v7934
        %v8063 = vtanh.pop %v7935
        %v8064 = vtanh.pop %v7936
        %v8065 = vtanh.pop %v7937
        %v8066 = vtanh.pop %v7938
        %v8067 = vtanh.pop %v7939
        %v8068 = vtanh.pop %v7940
        %v8069 = vtanh.pop %v7941
        %v8070 = vtanh.pop %v7942
        %v8071 = vtanh.pop %v7943
        %v8072 = vtanh.pop %v7944
        %v8073 = vtanh.pop %v7945
        %v8074 = vtanh.pop %v7946
        %v8075 = vtanh.pop %v7947
        %v8076 = vtanh.pop %v7948
        %v8077 = vtanh.pop %v7949
        %v8078 = vtanh.pop %v7950
        %v8079 = vtanh.pop %v7951
        %v8080 = vtanh.pop %v7952
        %v8081 = vtanh.pop %v7953
        %v8082 = vtanh.pop %v7954
        %v8083 = vtanh.pop %v7955
        %v8084 = vtanh.pop %v7956
        %v8085 = vtanh.pop %v7957
        %v8086 = vtanh.pop %v7958
        %v8087 = vtanh.pop %v7959
        %v8088 = vtanh.pop %v7960
        %v8089 = vtanh.pop %v7961
        %v8090 = vtanh.pop %v7962
        %v8091 = vtanh.pop %v7963
        %v8092 = vtanh.pop %v7964
        %v8093 = vtanh.pop %v7965
        %v8094 = vtanh.pop %v7966
        %v8095 = vtanh.pop %v7967
        %v8096 = vtanh.pop %v7968
        %v8097 = vtanh.pop %v7969
        %v8098 = vtanh.pop %v7970
        %v8099 = vtanh.pop %v7971
        %v8100 = vtanh.pop %v7972
        %v8101 = vtanh.pop %v7973
        %v8102 = vtanh.pop %v7974
        %v8103 = vtanh.pop %v7975
        %v8104 = vtanh.pop %v7976
        %v8105 = vtanh.pop %v7977
        %v8106 = vtanh.pop %v7978
        %v8107 = vtanh.pop %v7979
        %v8108 = vtanh.pop %v7980
        %v8109 = vtanh.pop %v7981
        %v8110 = vtanh.pop %v7982
        %v8111 = vtanh.pop %v7983
        %v8112 = vtanh.pop %v7984
        %v8113 = vtanh.pop %v7985
        %v8114 = vtanh.pop %v7986
        %v8115 = vtanh.pop %v7987
        %v8116 = vtanh.pop %v7988
        %v8117 = vtanh.pop %v7989
        %v8118 = vtanh.pop %v7990
        %v8119 = vtanh.pop %v7991
        %v8120 = vtanh.pop %v7992
        %v8121 = vtanh.pop %v7993
        %v8122 = vtanh.pop %v7994
        %v8123 = vtanh.pop %v7995
        %v8124 = vtanh.pop %v7996
        %v8125 = vtanh.pop %v7997
        %v8126 = vtanh.pop %v7998
        %v8127 = vtanh.pop %v7999
        %v8128 = vtanh.pop %v8000
        %v8129 = vtanh.pop %v8001
        %v8130 = vtanh.pop %v8002
        %v8131 = vtanh.pop %v8003
        %v8132 = vtanh.pop %v8004
        %v8133 = vtanh.pop %v8005
        %v8134 = vtanh.pop %v8006
        %v8135 = vtanh.pop %v8007
        %v8136 = vtanh.pop %v8008
        %v8137 = vtanh.pop %v8009
        %v8138 = vtanh.pop %v8010
        %v8139 = vtanh.pop %v8011
        %v8140 = vtanh.pop %v8012
        %v8141 = vtanh.pop %v8013
        %v8142 = vtanh.pop %v8014
        %v8143 = vtanh.pop %v8015
        %v8144 = vtanh.pop %v8016
        %v8145 = vtanh.pop %v8017
        %v8146 = vadd.f32 %v8018, 1.0
        %v8147 = vadd.f32 %v8019, 1.0
        %v8148 = vadd.f32 %v8020, 1.0
        %v8149 = vadd.f32 %v8021, 1.0
        %v8150 = vadd.f32 %v8022, 1.0
        %v8151 = vadd.f32 %v8023, 1.0
        %v8152 = vadd.f32 %v8024, 1.0
        %v8153 = vadd.f32 %v8025, 1.0
        %v8154 = vadd.f32 %v8026, 1.0
        %v8155 = vadd.f32 %v8027, 1.0
        %v8156 = vadd.f32 %v8028, 1.0
        %v8157 = vadd.f32 %v8029, 1.0
        %v8158 = vadd.f32 %v8030, 1.0
        %v8159 = vadd.f32 %v8031, 1.0
        %v8160 = vadd.f32 %v8032, 1.0
        %v8161 = vadd.f32 %v8033, 1.0
        %v8162 = vadd.f32 %v8034, 1.0
        %v8163 = vadd.f32 %v8035, 1.0
        %v8164 = vadd.f32 %v8036, 1.0
        %v8165 = vadd.f32 %v8037, 1.0
        %v8166 = vadd.f32 %v8038, 1.0
        %v8167 = vadd.f32 %v8039, 1.0
        %v8168 = vadd.f32 %v8040, 1.0
        %v8169 = vadd.f32 %v8041, 1.0
        %v8170 = vadd.f32 %v8042, 1.0
        %v8171 = vadd.f32 %v8043, 1.0
        %v8172 = vadd.f32 %v8044, 1.0
        %v8173 = vadd.f32 %v8045, 1.0
        %v8174 = vadd.f32 %v8046, 1.0
        %v8175 = vadd.f32 %v8047, 1.0
        %v8176 = vadd.f32 %v8048, 1.0
        %v8177 = vadd.f32 %v8049, 1.0
        %v8178 = vadd.f32 %v8050, 1.0
        %v8179 = vadd.f32 %v8051, 1.0
        %v8180 = vadd.f32 %v8052, 1.0
        %v8181 = vadd.f32 %v8053, 1.0
        %v8182 = vadd.f32 %v8054, 1.0
        %v8183 = vadd.f32 %v8055, 1.0
        %v8184 = vadd.f32 %v8056, 1.0
        %v8185 = vadd.f32 %v8057, 1.0
        %v8186 = vadd.f32 %v8058, 1.0
        %v8187 = vadd.f32 %v8059, 1.0
        %v8188 = vadd.f32 %v8060, 1.0
        %v8189 = vadd.f32 %v8061, 1.0
        %v8190 = vadd.f32 %v8062, 1.0
        %v8191 = vadd.f32 %v8063, 1.0
        %v8192 = vadd.f32 %v8064, 1.0
        %v8193 = vadd.f32 %v8065, 1.0
        %v8194 = vadd.f32 %v8066, 1.0
        %v8195 = vadd.f32 %v8067, 1.0
        %v8196 = vadd.f32 %v8068, 1.0
        %v8197 = vadd.f32 %v8069, 1.0
        %v8198 = vadd.f32 %v8070, 1.0
        %v8199 = vadd.f32 %v8071, 1.0
        %v8200 = vadd.f32 %v8072, 1.0
        %v8201 = vadd.f32 %v8073, 1.0
        %v8202 = vadd.f32 %v8074, 1.0
        %v8203 = vadd.f32 %v8075, 1.0
        %v8204 = vadd.f32 %v8076, 1.0
        %v8205 = vadd.f32 %v8077, 1.0
        %v8206 = vadd.f32 %v8078, 1.0
        %v8207 = vadd.f32 %v8079, 1.0
        %v8208 = vadd.f32 %v8080, 1.0
        %v8209 = vadd.f32 %v8081, 1.0
        %v8210 = vadd.f32 %v8082, 1.0
        %v8211 = vadd.f32 %v8083, 1.0
        %v8212 = vadd.f32 %v8084, 1.0
        %v8213 = vadd.f32 %v8085, 1.0
        %v8214 = vadd.f32 %v8086, 1.0
        %v8215 = vadd.f32 %v8087, 1.0
        %v8216 = vadd.f32 %v8088, 1.0
        %v8217 = vadd.f32 %v8089, 1.0
        %v8218 = vadd.f32 %v8090, 1.0
        %v8219 = vadd.f32 %v8091, 1.0
        %v8220 = vadd.f32 %v8092, 1.0
        %v8221 = vadd.f32 %v8093, 1.0
        %v8222 = vadd.f32 %v8094, 1.0
        %v8223 = vadd.f32 %v8095, 1.0
        %v8224 = vadd.f32 %v8096, 1.0
        %v8225 = vadd.f32 %v8097, 1.0
        %v8226 = vadd.f32 %v8098, 1.0
        %v8227 = vadd.f32 %v8099, 1.0
        %v8228 = vadd.f32 %v8100, 1.0
        %v8229 = vadd.f32 %v8101, 1.0
        %v8230 = vadd.f32 %v8102, 1.0
        %v8231 = vadd.f32 %v8103, 1.0
        %v8232 = vadd.f32 %v8104, 1.0
        %v8233 = vadd.f32 %v8105, 1.0
        %v8234 = vadd.f32 %v8106, 1.0
        %v8235 = vadd.f32 %v8107, 1.0
        %v8236 = vadd.f32 %v8108, 1.0
        %v8237 = vadd.f32 %v8109, 1.0
        %v8238 = vadd.f32 %v8110, 1.0
        %v8239 = vadd.f32 %v8111, 1.0
        %v8240 = vadd.f32 %v8112, 1.0
        %v8241 = vadd.f32 %v8113, 1.0
        %v8242 = vadd.f32 %v8114, 1.0
        %v8243 = vadd.f32 %v8115, 1.0
        %v8244 = vadd.f32 %v8116, 1.0
        %v8245 = vadd.f32 %v8117, 1.0
        %v8246 = vadd.f32 %v8118, 1.0
        %v8247 = vadd.f32 %v8119, 1.0
        %v8248 = vadd.f32 %v8120, 1.0
        %v8249 = vadd.f32 %v8121, 1.0
        %v8250 = vadd.f32 %v8122, 1.0
        %v8251 = vadd.f32 %v8123, 1.0
        %v8252 = vadd.f32 %v8124, 1.0
        %v8253 = vadd.f32 %v8125, 1.0
        %v8254 = vadd.f32 %v8126, 1.0
        %v8255 = vadd.f32 %v8127, 1.0
        %v8256 = vadd.f32 %v8128, 1.0
        %v8257 = vadd.f32 %v8129, 1.0
        %v8258 = vadd.f32 %v8130, 1.0
        %v8259 = vadd.f32 %v8131, 1.0
        %v8260 = vadd.f32 %v8132, 1.0
        %v8261 = vadd.f32 %v8133, 1.0
        %v8262 = vadd.f32 %v8134, 1.0
        %v8263 = vadd.f32 %v8135, 1.0
        %v8264 = vadd.f32 %v8136, 1.0
        %v8265 = vadd.f32 %v8137, 1.0
        %v8266 = vadd.f32 %v8138, 1.0
        %v8267 = vadd.f32 %v8139, 1.0
        %v8268 = vadd.f32 %v8140, 1.0
        %v8269 = vadd.f32 %v8141, 1.0
        %v8270 = vadd.f32 %v8142, 1.0
        %v8271 = vadd.f32 %v8143, 1.0
        %v8272 = vadd.f32 %v8144, 1.0
        %v8273 = vadd.f32 %v8145, 1.0
        %v8274 = vmul.f32 %v8146, 0.5
        %v8275 = vmul.f32 %v8147, 0.5
        %v8276 = vmul.f32 %v8148, 0.5
        %v8277 = vmul.f32 %v8149, 0.5
        %v8278 = vmul.f32 %v8150, 0.5
        %v8279 = vmul.f32 %v8151, 0.5
        %v8280 = vmul.f32 %v8152, 0.5
        %v8281 = vmul.f32 %v8153, 0.5
        %v8282 = vmul.f32 %v8154, 0.5
        %v8283 = vmul.f32 %v8155, 0.5
        %v8284 = vmul.f32 %v8156, 0.5
        %v8285 = vmul.f32 %v8157, 0.5
        %v8286 = vmul.f32 %v8158, 0.5
        %v8287 = vmul.f32 %v8159, 0.5
        %v8288 = vmul.f32 %v8160, 0.5
        %v8289 = vmul.f32 %v8161, 0.5
        %v8290 = vmul.f32 %v8162, 0.5
        %v8291 = vmul.f32 %v8163, 0.5
        %v8292 = vmul.f32 %v8164, 0.5
        %v8293 = vmul.f32 %v8165, 0.5
        %v8294 = vmul.f32 %v8166, 0.5
        %v8295 = vmul.f32 %v8167, 0.5
        %v8296 = vmul.f32 %v8168, 0.5
        %v8297 = vmul.f32 %v8169, 0.5
        %v8298 = vmul.f32 %v8170, 0.5
        %v8299 = vmul.f32 %v8171, 0.5
        %v8300 = vmul.f32 %v8172, 0.5
        %v8301 = vmul.f32 %v8173, 0.5
        %v8302 = vmul.f32 %v8174, 0.5
        %v8303 = vmul.f32 %v8175, 0.5
        %v8304 = vmul.f32 %v8176, 0.5
        %v8305 = vmul.f32 %v8177, 0.5
        %v8306 = vmul.f32 %v8178, 0.5
        %v8307 = vmul.f32 %v8179, 0.5
        %v8308 = vmul.f32 %v8180, 0.5
        %v8309 = vmul.f32 %v8181, 0.5
        %v8310 = vmul.f32 %v8182, 0.5
        %v8311 = vmul.f32 %v8183, 0.5
        %v8312 = vmul.f32 %v8184, 0.5
        %v8313 = vmul.f32 %v8185, 0.5
        %v8314 = vmul.f32 %v8186, 0.5
        %v8315 = vmul.f32 %v8187, 0.5
        %v8316 = vmul.f32 %v8188, 0.5
        %v8317 = vmul.f32 %v8189, 0.5
        %v8318 = vmul.f32 %v8190, 0.5
        %v8319 = vmul.f32 %v8191, 0.5
        %v8320 = vmul.f32 %v8192, 0.5
        %v8321 = vmul.f32 %v8193, 0.5
        %v8322 = vmul.f32 %v8194, 0.5
        %v8323 = vmul.f32 %v8195, 0.5
        %v8324 = vmul.f32 %v8196, 0.5
        %v8325 = vmul.f32 %v8197, 0.5
        %v8326 = vmul.f32 %v8198, 0.5
        %v8327 = vmul.f32 %v8199, 0.5
        %v8328 = vmul.f32 %v8200, 0.5
        %v8329 = vmul.f32 %v8201, 0.5
        %v8330 = vmul.f32 %v8202, 0.5
        %v8331 = vmul.f32 %v8203, 0.5
        %v8332 = vmul.f32 %v8204, 0.5
        %v8333 = vmul.f32 %v8205, 0.5
        %v8334 = vmul.f32 %v8206, 0.5
        %v8335 = vmul.f32 %v8207, 0.5
        %v8336 = vmul.f32 %v8208, 0.5
        %v8337 = vmul.f32 %v8209, 0.5
        %v8338 = vmul.f32 %v8210, 0.5
        %v8339 = vmul.f32 %v8211, 0.5
        %v8340 = vmul.f32 %v8212, 0.5
        %v8341 = vmul.f32 %v8213, 0.5
        %v8342 = vmul.f32 %v8214, 0.5
        %v8343 = vmul.f32 %v8215, 0.5
        %v8344 = vmul.f32 %v8216, 0.5
        %v8345 = vmul.f32 %v8217, 0.5
        %v8346 = vmul.f32 %v8218, 0.5
        %v8347 = vmul.f32 %v8219, 0.5
        %v8348 = vmul.f32 %v8220, 0.5
        %v8349 = vmul.f32 %v8221, 0.5
        %v8350 = vmul.f32 %v8222, 0.5
        %v8351 = vmul.f32 %v8223, 0.5
        %v8352 = vmul.f32 %v8224, 0.5
        %v8353 = vmul.f32 %v8225, 0.5
        %v8354 = vmul.f32 %v8226, 0.5
        %v8355 = vmul.f32 %v8227, 0.5
        %v8356 = vmul.f32 %v8228, 0.5
        %v8357 = vmul.f32 %v8229, 0.5
        %v8358 = vmul.f32 %v8230, 0.5
        %v8359 = vmul.f32 %v8231, 0.5
        %v8360 = vmul.f32 %v8232, 0.5
        %v8361 = vmul.f32 %v8233, 0.5
        %v8362 = vmul.f32 %v8234, 0.5
        %v8363 = vmul.f32 %v8235, 0.5
        %v8364 = vmul.f32 %v8236, 0.5
        %v8365 = vmul.f32 %v8237, 0.5
        %v8366 = vmul.f32 %v8238, 0.5
        %v8367 = vmul.f32 %v8239, 0.5
        %v8368 = vmul.f32 %v8240, 0.5
        %v8369 = vmul.f32 %v8241, 0.5
        %v8370 = vmul.f32 %v8242, 0.5
        %v8371 = vmul.f32 %v8243, 0.5
        %v8372 = vmul.f32 %v8244, 0.5
        %v8373 = vmul.f32 %v8245, 0.5
        %v8374 = vmul.f32 %v8246, 0.5
        %v8375 = vmul.f32 %v8247, 0.5
        %v8376 = vmul.f32 %v8248, 0.5
        %v8377 = vmul.f32 %v8249, 0.5
        %v8378 = vmul.f32 %v8250, 0.5
        %v8379 = vmul.f32 %v8251, 0.5
        %v8380 = vmul.f32 %v8252, 0.5
        %v8381 = vmul.f32 %v8253, 0.5
        %v8382 = vmul.f32 %v8254, 0.5
        %v8383 = vmul.f32 %v8255, 0.5
        %v8384 = vmul.f32 %v8256, 0.5
        %v8385 = vmul.f32 %v8257, 0.5
        %v8386 = vmul.f32 %v8258, 0.5
        %v8387 = vmul.f32 %v8259, 0.5
        %v8388 = vmul.f32 %v8260, 0.5
        %v8389 = vmul.f32 %v8261, 0.5
        %v8390 = vmul.f32 %v8262, 0.5
        %v8391 = vmul.f32 %v8263, 0.5
        %v8392 = vmul.f32 %v8264, 0.5
        %v8393 = vmul.f32 %v8265, 0.5
        %v8394 = vmul.f32 %v8266, 0.5
        %v8395 = vmul.f32 %v8267, 0.5
        %v8396 = vmul.f32 %v8268, 0.5
        %v8397 = vmul.f32 %v8269, 0.5
        %v8398 = vmul.f32 %v8270, 0.5
        %v8399 = vmul.f32 %v8271, 0.5
        %v8400 = vmul.f32 %v8272, 0.5
        %v8401 = vmul.f32 %v8273, 0.5
        %v8402 = vmul.f32 %v6944, %v8274
        %v8403 = vmul.f32 %v7057, %v8275
        %v8404 = vmul.f32 %v7170, %v8276
        %v8405 = vmul.f32 %v7283, %v8277
        %v8406 = vmul.f32 %v6947, %v8278
        %v8407 = vmul.f32 %v7060, %v8279
        %v8408 = vmul.f32 %v7173, %v8280
        %v8409 = vmul.f32 %v7286, %v8281
        %v8410 = vmul.f32 %v6950, %v8282
        %v8411 = vmul.f32 %v7063, %v8283
        %v8412 = vmul.f32 %v7176, %v8284
        %v8413 = vmul.f32 %v7289, %v8285
        %v8414 = vmul.f32 %v6953, %v8286
        %v8415 = vmul.f32 %v7066, %v8287
        %v8416 = vmul.f32 %v7179, %v8288
        %v8417 = vmul.f32 %v7292, %v8289
        %v8418 = vmul.f32 %v6956, %v8290
        %v8419 = vmul.f32 %v7069, %v8291
        %v8420 = vmul.f32 %v7182, %v8292
        %v8421 = vmul.f32 %v7295, %v8293
        %v8422 = vmul.f32 %v6959, %v8294
        %v8423 = vmul.f32 %v7072, %v8295
        %v8424 = vmul.f32 %v7185, %v8296
        %v8425 = vmul.f32 %v7298, %v8297
        %v8426 = vmul.f32 %v6962, %v8298
        %v8427 = vmul.f32 %v7075, %v8299
        %v8428 = vmul.f32 %v7188, %v8300
        %v8429 = vmul.f32 %v7301, %v8301
        %v8430 = vmul.f32 %v6965, %v8302
        %v8431 = vmul.f32 %v7078, %v8303
        %v8432 = vmul.f32 %v7191, %v8304
        %v8433 = vmul.f32 %v7304, %v8305
        %v8434 = vmul.f32 %v6968, %v8306
        %v8435 = vmul.f32 %v7081, %v8307
        %v8436 = vmul.f32 %v7194, %v8308
        %v8437 = vmul.f32 %v7307, %v8309
        %v8438 = vmul.f32 %v6971, %v8310
        %v8439 = vmul.f32 %v7084, %v8311
        %v8440 = vmul.f32 %v7197, %v8312
        %v8441 = vmul.f32 %v7310, %v8313
        %v8442 = vmul.f32 %v6974, %v8314
        %v8443 = vmul.f32 %v7087, %v8315
        %v8444 = vmul.f32 %v7200, %v8316
        %v8445 = vmul.f32 %v7313, %v8317
        %v8446 = vmul.f32 %v6977, %v8318
        %v8447 = vmul.f32 %v7090, %v8319
        %v8448 = vmul.f32 %v7203, %v8320
        %v8449 = vmul.f32 %v7316, %v8321
        %v8450 = vmul.f32 %v6980, %v8322
        %v8451 = vmul.f32 %v7093, %v8323
        %v8452 = vmul.f32 %v7206, %v8324
        %v8453 = vmul.f32 %v7319, %v8325
        %v8454 = vmul.f32 %v6983, %v8326
        %v8455 = vmul.f32 %v7096, %v8327
        %v8456 = vmul.f32 %v7209, %v8328
        %v8457 = vmul.f32 %v7322, %v8329
        %v8458 = vmul.f32 %v6986, %v8330
        %v8459 = vmul.f32 %v7099, %v8331
        %v8460 = vmul.f32 %v7212, %v8332
        %v8461 = vmul.f32 %v7325, %v8333
        %v8462 = vmul.f32 %v6989, %v8334
        %v8463 = vmul.f32 %v7102, %v8335
        %v8464 = vmul.f32 %v7215, %v8336
        %v8465 = vmul.f32 %v7328, %v8337
        %v8466 = vmul.f32 %v6992, %v8338
        %v8467 = vmul.f32 %v7105, %v8339
        %v8468 = vmul.f32 %v7218, %v8340
        %v8469 = vmul.f32 %v7331, %v8341
        %v8470 = vmul.f32 %v6995, %v8342
        %v8471 = vmul.f32 %v7108, %v8343
        %v8472 = vmul.f32 %v7221, %v8344
        %v8473 = vmul.f32 %v7334, %v8345
        %v8474 = vmul.f32 %v6998, %v8346
        %v8475 = vmul.f32 %v7111, %v8347
        %v8476 = vmul.f32 %v7224, %v8348
        %v8477 = vmul.f32 %v7337, %v8349
        %v8478 = vmul.f32 %v7001, %v8350
        %v8479 = vmul.f32 %v7114, %v8351
        %v8480 = vmul.f32 %v7227, %v8352
        %v8481 = vmul.f32 %v7340, %v8353
        %v8482 = vmul.f32 %v7004, %v8354
        %v8483 = vmul.f32 %v7117, %v8355
        %v8484 = vmul.f32 %v7230, %v8356
        %v8485 = vmul.f32 %v7343, %v8357
        %v8486 = vmul.f32 %v7007, %v8358
        %v8487 = vmul.f32 %v7120, %v8359
        %v8488 = vmul.f32 %v7233, %v8360
        %v8489 = vmul.f32 %v7346, %v8361
        %v8490 = vmul.f32 %v7010, %v8362
        %v8491 = vmul.f32 %v7123, %v8363
        %v8492 = vmul.f32 %v7236, %v8364
        %v8493 = vmul.f32 %v7349, %v8365
        %v8494 = vmul.f32 %v7013, %v8366
        %v8495 = vmul.f32 %v7126, %v8367
        %v8496 = vmul.f32 %v7239, %v8368
        %v8497 = vmul.f32 %v7352, %v8369
        %v8498 = vmul.f32 %v7016, %v8370
        %v8499 = vmul.f32 %v7129, %v8371
        %v8500 = vmul.f32 %v7242, %v8372
        %v8501 = vmul.f32 %v7355, %v8373
        %v8502 = vmul.f32 %v7019, %v8374
        %v8503 = vmul.f32 %v7132, %v8375
        %v8504 = vmul.f32 %v7245, %v8376
        %v8505 = vmul.f32 %v7358, %v8377
        %v8506 = vmul.f32 %v7022, %v8378
        %v8507 = vmul.f32 %v7135, %v8379
        %v8508 = vmul.f32 %v7248, %v8380
        %v8509 = vmul.f32 %v7361, %v8381
        %v8510 = vmul.f32 %v7025, %v8382
        %v8511 = vmul.f32 %v7138, %v8383
        %v8512 = vmul.f32 %v7251, %v8384
        %v8513 = vmul.f32 %v7364, %v8385
        %v8514 = vmul.f32 %v7028, %v8386
        %v8515 = vmul.f32 %v7141, %v8387
        %v8516 = vmul.f32 %v7254, %v8388
        %v8517 = vmul.f32 %v7367, %v8389
        %v8518 = vmul.f32 %v7031, %v8390
        %v8519 = vmul.f32 %v7144, %v8391
        %v8520 = vmul.f32 %v7257, %v8392
        %v8521 = vmul.f32 %v7370, %v8393
        %v8522 = vmul.f32 %v7034, %v8394
        %v8523 = vmul.f32 %v7147, %v8395
        %v8524 = vmul.f32 %v7260, %v8396
        %v8525 = vmul.f32 %v7373, %v8397
        %v8526 = vmul.f32 %v7037, %v8398
        %v8527 = vmul.f32 %v7150, %v8399
        %v8528 = vmul.f32 %v7263, %v8400
        %v8529 = vmul.f32 %v7376, %v8401
        %v8530 = vld [vmem:[%s11] sm:$0xff]
        %v8531 = vld [vmem:[%s11 + $0x8] sm:$0xff]
        %v8532 = vld [vmem:[%s11 + $0x10] sm:$0xff]
        %v8533 = vld [vmem:[%s11 + $0x18] sm:$0xff]
        %v8534 = vld [vmem:[%s11 + $0x20] sm:$0xff]
        %v8535 = vld [vmem:[%s11 + $0x28] sm:$0xff]
        %v8536 = vld [vmem:[%s11 + $0x30] sm:$0xff]
        %v8537 = vld [vmem:[%s11 + $0x38] sm:$0xff]
        %v8538 = vld [vmem:[%s11 + $0x40] sm:$0xff]
        %v8539 = vld [vmem:[%s11 + $0x48] sm:$0xff]
        %v8540 = vld [vmem:[%s11 + $0x50] sm:$0xff]
        %v8541 = vld [vmem:[%s11 + $0x58] sm:$0xff]
        %v8542 = vld [vmem:[%s11 + $0x60] sm:$0xff]
        %v8543 = vld [vmem:[%s11 + $0x68] sm:$0xff]
        %v8544 = vld [vmem:[%s11 + $0x70] sm:$0xff]
        %v8545 = vld [vmem:[%s11 + $0x78] sm:$0xff]
        %v8546 = vld [vmem:[%s11 + $0x80] sm:$0xff]
        %v8547 = vld [vmem:[%s11 + $0x88] sm:$0xff]
        %v8548 = vld [vmem:[%s11 + $0x90] sm:$0xff]
        %v8549 = vld [vmem:[%s11 + $0x98] sm:$0xff]
        %v8550 = vld [vmem:[%s11 + $0xa0] sm:$0xff]
        %v8551 = vld [vmem:[%s11 + $0xa8] sm:$0xff]
        %v8552 = vld [vmem:[%s11 + $0xb0] sm:$0xff]
        %v8553 = vld [vmem:[%s11 + $0xb8] sm:$0xff]
        %v8554 = vld [vmem:[%s11 + $0xc0] sm:$0xff]
        %v8555 = vld [vmem:[%s11 + $0xc8] sm:$0xff]
        %v8556 = vld [vmem:[%s11 + $0xd0] sm:$0xff]
        %v8557 = vld [vmem:[%s11 + $0xd8] sm:$0xff]
        %v8558 = vld [vmem:[%s11 + $0xe0] sm:$0xff]
        %v8559 = vld [vmem:[%s11 + $0xe8] sm:$0xff]
        %v8560 = vld [vmem:[%s11 + $0xf0] sm:$0xff]
        %v8561 = vld [vmem:[%s11 + $0xf8] sm:$0xff]
        %v8562 = vld [vmem:[%s11 + $0x100] sm:$0xff]
        %v8563 = vld [vmem:[%s11 + $0x108] sm:$0xff]
        %v8564 = vld [vmem:[%s11 + $0x110] sm:$0xff]
        %v8565 = vld [vmem:[%s11 + $0x118] sm:$0xff]
        %v8566 = vld [vmem:[%s11 + $0x120] sm:$0xff]
        %v8567 = vld [vmem:[%s11 + $0x128] sm:$0xff]
        %v8568 = vld [vmem:[%s11 + $0x130] sm:$0xff]
        %v8569 = vld [vmem:[%s11 + $0x138] sm:$0xff]
        %v8570 = vld [vmem:[%s11 + $0x140] sm:$0xff]
        %v8571 = vld [vmem:[%s11 + $0x148] sm:$0xff]
        %v8572 = vld [vmem:[%s11 + $0x150] sm:$0xff]
        %v8573 = vld [vmem:[%s11 + $0x158] sm:$0xff]
        %v8574 = vld [vmem:[%s11 + $0x160] sm:$0xff]
        %v8575 = vld [vmem:[%s11 + $0x168] sm:$0xff]
        %v8576 = vld [vmem:[%s11 + $0x170] sm:$0xff]
        %v8577 = vld [vmem:[%s11 + $0x178] sm:$0xff]
        %v8578 = vld [vmem:[%s11 + $0x180] sm:$0xff]
        %v8579 = vld [vmem:[%s11 + $0x188] sm:$0xff]
        %v8580 = vld [vmem:[%s11 + $0x190] sm:$0xff]
        %v8581 = vld [vmem:[%s11 + $0x198] sm:$0xff]
        %v8582 = vld [vmem:[%s11 + $0x1a0] sm:$0xff]
        %v8583 = vld [vmem:[%s11 + $0x1a8] sm:$0xff]
        %v8584 = vld [vmem:[%s11 + $0x1b0] sm:$0xff]
        %v8585 = vld [vmem:[%s11 + $0x1b8] sm:$0xff]
        %v8586 = vld [vmem:[%s11 + $0x1c0] sm:$0xff]
        %v8587 = vld [vmem:[%s11 + $0x1c8] sm:$0xff]
        %v8588 = vld [vmem:[%s11 + $0x1d0] sm:$0xff]
        %v8589 = vld [vmem:[%s11 + $0x1d8] sm:$0xff]
        %v8590 = vld [vmem:[%s11 + $0x1e0] sm:$0xff]
        %v8591 = vld [vmem:[%s11 + $0x1e8] sm:$0xff]
        %v8592 = vld [vmem:[%s11 + $0x1f0] sm:$0xff]
        %v8593 = vld [vmem:[%s11 + $0x1f8] sm:$0xff]
        %v8594 = vld [vmem:[#allocation19] sm:$0x1]
        %v8596 = vperm.slane %v8594, 0
        %8598 = vmatpush.msra.mxu0 %v8545
        %8599 = vmatpush.msra.mxu0 %v8544
        %8600 = vmatpush.msra.mxu0 %v8543
        %8601 = vmatpush.msra.mxu0 %v8542
        %8602 = vmatpush.msra.mxu0 %v8541
        %8603 = vmatpush.msra.mxu0 %v8540
        %8604 = vmatpush.msra.mxu0 %v8539
        %8605 = vmatpush.msra.mxu0 %v8538
        %8606 = vmatpush.msra.mxu0 %v8537
        %8607 = vmatpush.msra.mxu0 %v8536
        %8608 = vmatpush.msra.mxu0 %v8535
        %8609 = vmatpush.msra.mxu0 %v8534
        %8610 = vmatpush.msra.mxu0 %v8533
        %8611 = vmatpush.msra.mxu0 %v8532
        %8612 = vmatpush.msra.mxu0 %v8531
        %8613 = vmatpush.msra.mxu0 %v8530
        %8614 = vmatmul.f32.gmra.mxu0 %v8402
        %v8615 = vpop.f32.mrf.mxu0
        %v8616 = vadd.f32 %v8596, %v8615
        %8617 = vmatmul.f32.gmra.mxu0 %v8406
        %v8618 = vpop.f32.mrf.mxu0
        %v8619 = vadd.f32 %v8596, %v8618
        %8620 = vmatmul.f32.gmra.mxu0 %v8410
        %v8621 = vpop.f32.mrf.mxu0
        %v8622 = vadd.f32 %v8596, %v8621
        %8623 = vmatmul.f32.gmra.mxu0 %v8414
        %v8624 = vpop.f32.mrf.mxu0
        %v8625 = vadd.f32 %v8596, %v8624
        %8626 = vmatmul.f32.gmra.mxu0 %v8418
        %v8627 = vpop.f32.mrf.mxu0
        %v8628 = vadd.f32 %v8596, %v8627
        %8629 = vmatmul.f32.gmra.mxu0 %v8422
        %v8630 = vpop.f32.mrf.mxu0
        %v8631 = vadd.f32 %v8596, %v8630
        %8632 = vmatmul.f32.gmra.mxu0 %v8426
        %v8633 = vpop.f32.mrf.mxu0
        %v8634 = vadd.f32 %v8596, %v8633
        %8635 = vmatmul.f32.gmra.mxu0 %v8430
        %v8636 = vpop.f32.mrf.mxu0
        %v8637 = vadd.f32 %v8596, %v8636
        %8638 = vmatmul.f32.gmra.mxu0 %v8434
        %v8639 = vpop.f32.mrf.mxu0
        %v8640 = vadd.f32 %v8596, %v8639
        %8641 = vmatmul.f32.gmra.mxu0 %v8438
        %v8642 = vpop.f32.mrf.mxu0
        %v8643 = vadd.f32 %v8596, %v8642
        %8644 = vmatmul.f32.gmra.mxu0 %v8442
        %v8645 = vpop.f32.mrf.mxu0
        %v8646 = vadd.f32 %v8596, %v8645
        %8647 = vmatmul.f32.gmra.mxu0 %v8446
        %v8648 = vpop.f32.mrf.mxu0
        %v8649 = vadd.f32 %v8596, %v8648
        %8650 = vmatmul.f32.gmra.mxu0 %v8450
        %v8651 = vpop.f32.mrf.mxu0
        %v8652 = vadd.f32 %v8596, %v8651
        %8653 = vmatmul.f32.gmra.mxu0 %v8454
        %v8654 = vpop.f32.mrf.mxu0
        %v8655 = vadd.f32 %v8596, %v8654
        %8656 = vmatmul.f32.gmra.mxu0 %v8458
        %v8657 = vpop.f32.mrf.mxu0
        %v8658 = vadd.f32 %v8596, %v8657
        %8659 = vmatmul.f32.gmra.mxu0 %v8462
        %v8660 = vpop.f32.mrf.mxu0
        %v8661 = vadd.f32 %v8596, %v8660
        %8662 = vmatmul.f32.gmra.mxu0 %v8466
        %v8663 = vpop.f32.mrf.mxu0
        %v8664 = vadd.f32 %v8596, %v8663
        %8665 = vmatmul.f32.gmra.mxu0 %v8470
        %v8666 = vpop.f32.mrf.mxu0
        %v8667 = vadd.f32 %v8596, %v8666
        %8668 = vmatmul.f32.gmra.mxu0 %v8474
        %v8669 = vpop.f32.mrf.mxu0
        %v8670 = vadd.f32 %v8596, %v8669
        %8671 = vmatmul.f32.gmra.mxu0 %v8478
        %v8672 = vpop.f32.mrf.mxu0
        %v8673 = vadd.f32 %v8596, %v8672
        %8674 = vmatmul.f32.gmra.mxu0 %v8482
        %v8675 = vpop.f32.mrf.mxu0
        %v8676 = vadd.f32 %v8596, %v8675
        %8677 = vmatmul.f32.gmra.mxu0 %v8486
        %v8678 = vpop.f32.mrf.mxu0
        %v8679 = vadd.f32 %v8596, %v8678
        %8680 = vmatmul.f32.gmra.mxu0 %v8490
        %v8681 = vpop.f32.mrf.mxu0
        %v8682 = vadd.f32 %v8596, %v8681
        %8683 = vmatmul.f32.gmra.mxu0 %v8494
        %v8684 = vpop.f32.mrf.mxu0
        %v8685 = vadd.f32 %v8596, %v8684
        %8686 = vmatmul.f32.gmra.mxu0 %v8498
        %v8687 = vpop.f32.mrf.mxu0
        %v8688 = vadd.f32 %v8596, %v8687
        %8689 = vmatmul.f32.gmra.mxu0 %v8502
        %v8690 = vpop.f32.mrf.mxu0
        %v8691 = vadd.f32 %v8596, %v8690
        %8692 = vmatmul.f32.gmra.mxu0 %v8506
        %v8693 = vpop.f32.mrf.mxu0
        %v8694 = vadd.f32 %v8596, %v8693
        %8695 = vmatmul.f32.gmra.mxu0 %v8510
        %v8696 = vpop.f32.mrf.mxu0
        %v8697 = vadd.f32 %v8596, %v8696
        %8698 = vmatmul.f32.gmra.mxu0 %v8514
        %v8699 = vpop.f32.mrf.mxu0
        %v8700 = vadd.f32 %v8596, %v8699
        %8701 = vmatmul.f32.gmra.mxu0 %v8518
        %v8702 = vpop.f32.mrf.mxu0
        %v8703 = vadd.f32 %v8596, %v8702
        %8704 = vmatmul.f32.gmra.mxu0 %v8522
        %v8705 = vpop.f32.mrf.mxu0
        %v8706 = vadd.f32 %v8596, %v8705
        %8707 = vmatmul.f32.gmra.mxu0 %v8526
        %v8708 = vpop.f32.mrf.mxu0
        %v8709 = vadd.f32 %v8596, %v8708
        %8710 = vdwg.mxu0
        %8711 = vmatpush.msra.mxu0 %v8561
        %8712 = vmatpush.msra.mxu0 %v8560
        %8713 = vmatpush.msra.mxu0 %v8559
        %8714 = vmatpush.msra.mxu0 %v8558
        %8715 = vmatpush.msra.mxu0 %v8557
        %8716 = vmatpush.msra.mxu0 %v8556
        %8717 = vmatpush.msra.mxu0 %v8555
        %8718 = vmatpush.msra.mxu0 %v8554
        %8719 = vmatpush.msra.mxu0 %v8553
        %8720 = vmatpush.msra.mxu0 %v8552
        %8721 = vmatpush.msra.mxu0 %v8551
        %8722 = vmatpush.msra.mxu0 %v8550
        %8723 = vmatpush.msra.mxu0 %v8549
        %8724 = vmatpush.msra.mxu0 %v8548
        %8725 = vmatpush.msra.mxu0 %v8547
        %8726 = vmatpush.msra.mxu0 %v8546
        %8727 = vmatmul.f32.gmra.mxu0 %v8403
        %v8728 = vpop.f32.mrf.mxu0
        %v8729 = vadd.f32 %v8616, %v8728
        %8730 = vmatmul.f32.gmra.mxu0 %v8407
        %v8731 = vpop.f32.mrf.mxu0
        %v8732 = vadd.f32 %v8619, %v8731
        %8733 = vmatmul.f32.gmra.mxu0 %v8411
        %v8734 = vpop.f32.mrf.mxu0
        %v8735 = vadd.f32 %v8622, %v8734
        %8736 = vmatmul.f32.gmra.mxu0 %v8415
        %v8737 = vpop.f32.mrf.mxu0
        %v8738 = vadd.f32 %v8625, %v8737
        %8739 = vmatmul.f32.gmra.mxu0 %v8419
        %v8740 = vpop.f32.mrf.mxu0
        %v8741 = vadd.f32 %v8628, %v8740
        %8742 = vmatmul.f32.gmra.mxu0 %v8423
        %v8743 = vpop.f32.mrf.mxu0
        %v8744 = vadd.f32 %v8631, %v8743
        %8745 = vmatmul.f32.gmra.mxu0 %v8427
        %v8746 = vpop.f32.mrf.mxu0
        %v8747 = vadd.f32 %v8634, %v8746
        %8748 = vmatmul.f32.gmra.mxu0 %v8431
        %v8749 = vpop.f32.mrf.mxu0
        %v8750 = vadd.f32 %v8637, %v8749
        %8751 = vmatmul.f32.gmra.mxu0 %v8435
        %v8752 = vpop.f32.mrf.mxu0
        %v8753 = vadd.f32 %v8640, %v8752
        %8754 = vmatmul.f32.gmra.mxu0 %v8439
        %v8755 = vpop.f32.mrf.mxu0
        %v8756 = vadd.f32 %v8643, %v8755
        %8757 = vmatmul.f32.gmra.mxu0 %v8443
        %v8758 = vpop.f32.mrf.mxu0
        %v8759 = vadd.f32 %v8646, %v8758
        %8760 = vmatmul.f32.gmra.mxu0 %v8447
        %v8761 = vpop.f32.mrf.mxu0
        %v8762 = vadd.f32 %v8649, %v8761
        %8763 = vmatmul.f32.gmra.mxu0 %v8451
        %v8764 = vpop.f32.mrf.mxu0
        %v8765 = vadd.f32 %v8652, %v8764
        %8766 = vmatmul.f32.gmra.mxu0 %v8455
        %v8767 = vpop.f32.mrf.mxu0
        %v8768 = vadd.f32 %v8655, %v8767
        %8769 = vmatmul.f32.gmra.mxu0 %v8459
        %v8770 = vpop.f32.mrf.mxu0
        %v8771 = vadd.f32 %v8658, %v8770
        %8772 = vmatmul.f32.gmra.mxu0 %v8463
        %v8773 = vpop.f32.mrf.mxu0
        %v8774 = vadd.f32 %v8661, %v8773
        %8775 = vmatmul.f32.gmra.mxu0 %v8467
        %v8776 = vpop.f32.mrf.mxu0
        %v8777 = vadd.f32 %v8664, %v8776
        %8778 = vmatmul.f32.gmra.mxu0 %v8471
        %v8779 = vpop.f32.mrf.mxu0
        %v8780 = vadd.f32 %v8667, %v8779
        %8781 = vmatmul.f32.gmra.mxu0 %v8475
        %v8782 = vpop.f32.mrf.mxu0
        %v8783 = vadd.f32 %v8670, %v8782
        %8784 = vmatmul.f32.gmra.mxu0 %v8479
        %v8785 = vpop.f32.mrf.mxu0
        %v8786 = vadd.f32 %v8673, %v8785
        %8787 = vmatmul.f32.gmra.mxu0 %v8483
        %v8788 = vpop.f32.mrf.mxu0
        %v8789 = vadd.f32 %v8676, %v8788
        %8790 = vmatmul.f32.gmra.mxu0 %v8487
        %v8791 = vpop.f32.mrf.mxu0
        %v8792 = vadd.f32 %v8679, %v8791
        %8793 = vmatmul.f32.gmra.mxu0 %v8491
        %v8794 = vpop.f32.mrf.mxu0
        %v8795 = vadd.f32 %v8682, %v8794
        %8796 = vmatmul.f32.gmra.mxu0 %v8495
        %v8797 = vpop.f32.mrf.mxu0
        %v8798 = vadd.f32 %v8685, %v8797
        %8799 = vmatmul.f32.gmra.mxu0 %v8499
        %v8800 = vpop.f32.mrf.mxu0
        %v8801 = vadd.f32 %v8688, %v8800
        %8802 = vmatmul.f32.gmra.mxu0 %v8503
        %v8803 = vpop.f32.mrf.mxu0
        %v8804 = vadd.f32 %v8691, %v8803
        %8805 = vmatmul.f32.gmra.mxu0 %v8507
        %v8806 = vpop.f32.mrf.mxu0
        %v8807 = vadd.f32 %v8694, %v8806
        %8808 = vmatmul.f32.gmra.mxu0 %v8511
        %v8809 = vpop.f32.mrf.mxu0
        %v8810 = vadd.f32 %v8697, %v8809
        %8811 = vmatmul.f32.gmra.mxu0 %v8515
        %v8812 = vpop.f32.mrf.mxu0
        %v8813 = vadd.f32 %v8700, %v8812
        %8814 = vmatmul.f32.gmra.mxu0 %v8519
        %v8815 = vpop.f32.mrf.mxu0
        %v8816 = vadd.f32 %v8703, %v8815
        %8817 = vmatmul.f32.gmra.mxu0 %v8523
        %v8818 = vpop.f32.mrf.mxu0
        %v8819 = vadd.f32 %v8706, %v8818
        %8820 = vmatmul.f32.gmra.mxu0 %v8527
        %v8821 = vpop.f32.mrf.mxu0
        %v8822 = vadd.f32 %v8709, %v8821
        %8823 = vdwg.mxu0
        %8824 = vmatpush.msra.mxu0 %v8577
        %8825 = vmatpush.msra.mxu0 %v8576
        %8826 = vmatpush.msra.mxu0 %v8575
        %8827 = vmatpush.msra.mxu0 %v8574
        %8828 = vmatpush.msra.mxu0 %v8573
        %8829 = vmatpush.msra.mxu0 %v8572
        %8830 = vmatpush.msra.mxu0 %v8571
        %8831 = vmatpush.msra.mxu0 %v8570
        %8832 = vmatpush.msra.mxu0 %v8569
        %8833 = vmatpush.msra.mxu0 %v8568
        %8834 = vmatpush.msra.mxu0 %v8567
        %8835 = vmatpush.msra.mxu0 %v8566
        %8836 = vmatpush.msra.mxu0 %v8565
        %8837 = vmatpush.msra.mxu0 %v8564
        %8838 = vmatpush.msra.mxu0 %v8563
        %8839 = vmatpush.msra.mxu0 %v8562
        %8840 = vmatmul.f32.gmra.mxu0 %v8404
        %v8841 = vpop.f32.mrf.mxu0
        %v8842 = vadd.f32 %v8729, %v8841
        %8843 = vmatmul.f32.gmra.mxu0 %v8408
        %v8844 = vpop.f32.mrf.mxu0
        %v8845 = vadd.f32 %v8732, %v8844
        %8846 = vmatmul.f32.gmra.mxu0 %v8412
        %v8847 = vpop.f32.mrf.mxu0
        %v8848 = vadd.f32 %v8735, %v8847
        %8849 = vmatmul.f32.gmra.mxu0 %v8416
        %v8850 = vpop.f32.mrf.mxu0
        %v8851 = vadd.f32 %v8738, %v8850
        %8852 = vmatmul.f32.gmra.mxu0 %v8420
        %v8853 = vpop.f32.mrf.mxu0
        %v8854 = vadd.f32 %v8741, %v8853
        %8855 = vmatmul.f32.gmra.mxu0 %v8424
        %v8856 = vpop.f32.mrf.mxu0
        %v8857 = vadd.f32 %v8744, %v8856
        %8858 = vmatmul.f32.gmra.mxu0 %v8428
        %v8859 = vpop.f32.mrf.mxu0
        %v8860 = vadd.f32 %v8747, %v8859
        %8861 = vmatmul.f32.gmra.mxu0 %v8432
        %v8862 = vpop.f32.mrf.mxu0
        %v8863 = vadd.f32 %v8750, %v8862
        %8864 = vmatmul.f32.gmra.mxu0 %v8436
        %v8865 = vpop.f32.mrf.mxu0
        %v8866 = vadd.f32 %v8753, %v8865
        %8867 = vmatmul.f32.gmra.mxu0 %v8440
        %v8868 = vpop.f32.mrf.mxu0
        %v8869 = vadd.f32 %v8756, %v8868
        %8870 = vmatmul.f32.gmra.mxu0 %v8444
        %v8871 = vpop.f32.mrf.mxu0
        %v8872 = vadd.f32 %v8759, %v8871
        %8873 = vmatmul.f32.gmra.mxu0 %v8448
        %v8874 = vpop.f32.mrf.mxu0
        %v8875 = vadd.f32 %v8762, %v8874
        %8876 = vmatmul.f32.gmra.mxu0 %v8452
        %v8877 = vpop.f32.mrf.mxu0
        %v8878 = vadd.f32 %v8765, %v8877
        %8879 = vmatmul.f32.gmra.mxu0 %v8456
        %v8880 = vpop.f32.mrf.mxu0
        %v8881 = vadd.f32 %v8768, %v8880
        %8882 = vmatmul.f32.gmra.mxu0 %v8460
        %v8883 = vpop.f32.mrf.mxu0
        %v8884 = vadd.f32 %v8771, %v8883
        %8885 = vmatmul.f32.gmra.mxu0 %v8464
        %v8886 = vpop.f32.mrf.mxu0
        %v8887 = vadd.f32 %v8774, %v8886
        %8888 = vmatmul.f32.gmra.mxu0 %v8468
        %v8889 = vpop.f32.mrf.mxu0
        %v8890 = vadd.f32 %v8777, %v8889
        %8891 = vmatmul.f32.gmra.mxu0 %v8472
        %v8892 = vpop.f32.mrf.mxu0
        %v8893 = vadd.f32 %v8780, %v8892
        %8894 = vmatmul.f32.gmra.mxu0 %v8476
        %v8895 = vpop.f32.mrf.mxu0
        %v8896 = vadd.f32 %v8783, %v8895
        %8897 = vmatmul.f32.gmra.mxu0 %v8480
        %v8898 = vpop.f32.mrf.mxu0
        %v8899 = vadd.f32 %v8786, %v8898
        %8900 = vmatmul.f32.gmra.mxu0 %v8484
        %v8901 = vpop.f32.mrf.mxu0
        %v8902 = vadd.f32 %v8789, %v8901
        %8903 = vmatmul.f32.gmra.mxu0 %v8488
        %v8904 = vpop.f32.mrf.mxu0
        %v8905 = vadd.f32 %v8792, %v8904
        %8906 = vmatmul.f32.gmra.mxu0 %v8492
        %v8907 = vpop.f32.mrf.mxu0
        %v8908 = vadd.f32 %v8795, %v8907
        %8909 = vmatmul.f32.gmra.mxu0 %v8496
        %v8910 = vpop.f32.mrf.mxu0
        %v8911 = vadd.f32 %v8798, %v8910
        %8912 = vmatmul.f32.gmra.mxu0 %v8500
        %v8913 = vpop.f32.mrf.mxu0
        %v8914 = vadd.f32 %v8801, %v8913
        %8915 = vmatmul.f32.gmra.mxu0 %v8504
        %v8916 = vpop.f32.mrf.mxu0
        %v8917 = vadd.f32 %v8804, %v8916
        %8918 = vmatmul.f32.gmra.mxu0 %v8508
        %v8919 = vpop.f32.mrf.mxu0
        %v8920 = vadd.f32 %v8807, %v8919
        %8921 = vmatmul.f32.gmra.mxu0 %v8512
        %v8922 = vpop.f32.mrf.mxu0
        %v8923 = vadd.f32 %v8810, %v8922
        %8924 = vmatmul.f32.gmra.mxu0 %v8516
        %v8925 = vpop.f32.mrf.mxu0
        %v8926 = vadd.f32 %v8813, %v8925
        %8927 = vmatmul.f32.gmra.mxu0 %v8520
        %v8928 = vpop.f32.mrf.mxu0
        %v8929 = vadd.f32 %v8816, %v8928
        %8930 = vmatmul.f32.gmra.mxu0 %v8524
        %v8931 = vpop.f32.mrf.mxu0
        %v8932 = vadd.f32 %v8819, %v8931
        %8933 = vmatmul.f32.gmra.mxu0 %v8528
        %v8934 = vpop.f32.mrf.mxu0
        %v8935 = vadd.f32 %v8822, %v8934
        %8936 = vdwg.mxu0
        %8937 = vmatpush.msra.mxu0 %v8593
        %8938 = vmatpush.msra.mxu0 %v8592
        %8939 = vmatpush.msra.mxu0 %v8591
        %8940 = vmatpush.msra.mxu0 %v8590
        %8941 = vmatpush.msra.mxu0 %v8589
        %8942 = vmatpush.msra.mxu0 %v8588
        %8943 = vmatpush.msra.mxu0 %v8587
        %8944 = vmatpush.msra.mxu0 %v8586
        %8945 = vmatpush.msra.mxu0 %v8585
        %8946 = vmatpush.msra.mxu0 %v8584
        %8947 = vmatpush.msra.mxu0 %v8583
        %8948 = vmatpush.msra.mxu0 %v8582
        %8949 = vmatpush.msra.mxu0 %v8581
        %8950 = vmatpush.msra.mxu0 %v8580
        %8951 = vmatpush.msra.mxu0 %v8579
        %8952 = vmatpush.msra.mxu0 %v8578
        %8953 = vmatmul.f32.gmra.mxu0 %v8405
        %v8954 = vpop.f32.mrf.mxu0
        %v8955 = vadd.f32 %v8842, %v8954
        %8956 = vmatmul.f32.gmra.mxu0 %v8409
        %v8957 = vpop.f32.mrf.mxu0
        %v8958 = vadd.f32 %v8845, %v8957
        %8959 = vmatmul.f32.gmra.mxu0 %v8413
        %v8960 = vpop.f32.mrf.mxu0
        %v8961 = vadd.f32 %v8848, %v8960
        %8962 = vmatmul.f32.gmra.mxu0 %v8417
        %v8963 = vpop.f32.mrf.mxu0
        %v8964 = vadd.f32 %v8851, %v8963
        %8965 = vmatmul.f32.gmra.mxu0 %v8421
        %v8966 = vpop.f32.mrf.mxu0
        %v8967 = vadd.f32 %v8854, %v8966
        %8968 = vmatmul.f32.gmra.mxu0 %v8425
        %v8969 = vpop.f32.mrf.mxu0
        %v8970 = vadd.f32 %v8857, %v8969
        %8971 = vmatmul.f32.gmra.mxu0 %v8429
        %v8972 = vpop.f32.mrf.mxu0
        %v8973 = vadd.f32 %v8860, %v8972
        %8974 = vmatmul.f32.gmra.mxu0 %v8433
        %v8975 = vpop.f32.mrf.mxu0
        %v8976 = vadd.f32 %v8863, %v8975
        %8977 = vmatmul.f32.gmra.mxu0 %v8437
        %v8978 = vpop.f32.mrf.mxu0
        %v8979 = vadd.f32 %v8866, %v8978
        %8980 = vmatmul.f32.gmra.mxu0 %v8441
        %v8981 = vpop.f32.mrf.mxu0
        %v8982 = vadd.f32 %v8869, %v8981
        %8983 = vmatmul.f32.gmra.mxu0 %v8445
        %v8984 = vpop.f32.mrf.mxu0
        %v8985 = vadd.f32 %v8872, %v8984
        %8986 = vmatmul.f32.gmra.mxu0 %v8449
        %v8987 = vpop.f32.mrf.mxu0
        %v8988 = vadd.f32 %v8875, %v8987
        %8989 = vmatmul.f32.gmra.mxu0 %v8453
        %v8990 = vpop.f32.mrf.mxu0
        %v8991 = vadd.f32 %v8878, %v8990
        %8992 = vmatmul.f32.gmra.mxu0 %v8457
        %v8993 = vpop.f32.mrf.mxu0
        %v8994 = vadd.f32 %v8881, %v8993
        %8995 = vmatmul.f32.gmra.mxu0 %v8461
        %v8996 = vpop.f32.mrf.mxu0
        %v8997 = vadd.f32 %v8884, %v8996
        %8998 = vmatmul.f32.gmra.mxu0 %v8465
        %v8999 = vpop.f32.mrf.mxu0
        %v9000 = vadd.f32 %v8887, %v8999
        %9001 = vmatmul.f32.gmra.mxu0 %v8469
        %v9002 = vpop.f32.mrf.mxu0
        %v9003 = vadd.f32 %v8890, %v9002
        %9004 = vmatmul.f32.gmra.mxu0 %v8473
        %v9005 = vpop.f32.mrf.mxu0
        %v9006 = vadd.f32 %v8893, %v9005
        %9007 = vmatmul.f32.gmra.mxu0 %v8477
        %v9008 = vpop.f32.mrf.mxu0
        %v9009 = vadd.f32 %v8896, %v9008
        %9010 = vmatmul.f32.gmra.mxu0 %v8481
        %v9011 = vpop.f32.mrf.mxu0
        %v9012 = vadd.f32 %v8899, %v9011
        %9013 = vmatmul.f32.gmra.mxu0 %v8485
        %v9014 = vpop.f32.mrf.mxu0
        %v9015 = vadd.f32 %v8902, %v9014
        %9016 = vmatmul.f32.gmra.mxu0 %v8489
        %v9017 = vpop.f32.mrf.mxu0
        %v9018 = vadd.f32 %v8905, %v9017
        %9019 = vmatmul.f32.gmra.mxu0 %v8493
        %v9020 = vpop.f32.mrf.mxu0
        %v9021 = vadd.f32 %v8908, %v9020
        %9022 = vmatmul.f32.gmra.mxu0 %v8497
        %v9023 = vpop.f32.mrf.mxu0
        %v9024 = vadd.f32 %v8911, %v9023
        %9025 = vmatmul.f32.gmra.mxu0 %v8501
        %v9026 = vpop.f32.mrf.mxu0
        %v9027 = vadd.f32 %v8914, %v9026
        %9028 = vmatmul.f32.gmra.mxu0 %v8505
        %v9029 = vpop.f32.mrf.mxu0
        %v9030 = vadd.f32 %v8917, %v9029
        %9031 = vmatmul.f32.gmra.mxu0 %v8509
        %v9032 = vpop.f32.mrf.mxu0
        %v9033 = vadd.f32 %v8920, %v9032
        %9034 = vmatmul.f32.gmra.mxu0 %v8513
        %v9035 = vpop.f32.mrf.mxu0
        %v9036 = vadd.f32 %v8923, %v9035
        %9037 = vmatmul.f32.gmra.mxu0 %v8517
        %v9038 = vpop.f32.mrf.mxu0
        %v9039 = vadd.f32 %v8926, %v9038
        %9040 = vmatmul.f32.gmra.mxu0 %v8521
        %v9041 = vpop.f32.mrf.mxu0
        %v9042 = vadd.f32 %v8929, %v9041
        %9043 = vmatmul.f32.gmra.mxu0 %v8525
        %v9044 = vpop.f32.mrf.mxu0
        %v9045 = vadd.f32 %v8932, %v9044
        %9046 = vmatmul.f32.gmra.mxu0 %v8529
        %v9047 = vpop.f32.mrf.mxu0
        %v9048 = vadd.f32 %v8935, %v9047
        %9049 = vdwg.mxu0
        %v9050 = vadd.f32 %v6044, %v8955
        %v9051 = vadd.f32 %v6045, %v8958
        %v9052 = vadd.f32 %v6046, %v8961
        %v9053 = vadd.f32 %v6047, %v8964
        %v9054 = vadd.f32 %v6048, %v8967
        %v9055 = vadd.f32 %v6049, %v8970
        %v9056 = vadd.f32 %v6050, %v8973
        %v9057 = vadd.f32 %v6051, %v8976
        %v9058 = vadd.f32 %v6052, %v8979
        %v9059 = vadd.f32 %v6053, %v8982
        %v9060 = vadd.f32 %v6054, %v8985
        %v9061 = vadd.f32 %v6055, %v8988
        %v9062 = vadd.f32 %v6056, %v8991
        %v9063 = vadd.f32 %v6057, %v8994
        %v9064 = vadd.f32 %v6058, %v8997
        %v9065 = vadd.f32 %v6059, %v9000
        %v9066 = vadd.f32 %v6060, %v9003
        %v9067 = vadd.f32 %v6061, %v9006
        %v9068 = vadd.f32 %v6062, %v9009
        %v9069 = vadd.f32 %v6063, %v9012
        %v9070 = vadd.f32 %v6064, %v9015
        %v9071 = vadd.f32 %v6065, %v9018
        %v9072 = vadd.f32 %v6066, %v9021
        %v9073 = vadd.f32 %v6067, %v9024
        %v9074 = vadd.f32 %v6068, %v9027
        %v9075 = vadd.f32 %v6069, %v9030
        %v9076 = vadd.f32 %v6070, %v9033
        %v9077 = vadd.f32 %v6071, %v9036
        %v9078 = vadd.f32 %v6072, %v9039
        %v9079 = vadd.f32 %v6073, %v9042
        %v9080 = vadd.f32 %v6074, %v9045
        %v9081 = vadd.f32 %v6075, %v9048
        %9082 = vst [vmem:[%s610] sm:$0xff] %v9050
        %9083 = vst [vmem:[%s610 + $0x8] sm:$0xff] %v9051
        %9084 = vst [vmem:[%s610 + $0x10] sm:$0xff] %v9052
        %9085 = vst [vmem:[%s610 + $0x18] sm:$0xff] %v9053
        %9086 = vst [vmem:[%s610 + $0x20] sm:$0xff] %v9054
        %9087 = vst [vmem:[%s610 + $0x28] sm:$0xff] %v9055
        %9088 = vst [vmem:[%s610 + $0x30] sm:$0xff] %v9056
        %9089 = vst [vmem:[%s610 + $0x38] sm:$0xff] %v9057
        %9090 = vst [vmem:[%s610 + $0x40] sm:$0xff] %v9058
        %9091 = vst [vmem:[%s610 + $0x48] sm:$0xff] %v9059
        %9092 = vst [vmem:[%s610 + $0x50] sm:$0xff] %v9060
        %9093 = vst [vmem:[%s610 + $0x58] sm:$0xff] %v9061
        %9094 = vst [vmem:[%s610 + $0x60] sm:$0xff] %v9062
        %9095 = vst [vmem:[%s610 + $0x68] sm:$0xff] %v9063
        %9096 = vst [vmem:[%s610 + $0x70] sm:$0xff] %v9064
        %9097 = vst [vmem:[%s610 + $0x78] sm:$0xff] %v9065
        %9098 = vst [vmem:[%s610 + $0x80] sm:$0xff] %v9066
        %9099 = vst [vmem:[%s610 + $0x88] sm:$0xff] %v9067
        %9100 = vst [vmem:[%s610 + $0x90] sm:$0xff] %v9068
        %9101 = vst [vmem:[%s610 + $0x98] sm:$0xff] %v9069
        %9102 = vst [vmem:[%s610 + $0xa0] sm:$0xff] %v9070
        %9103 = vst [vmem:[%s610 + $0xa8] sm:$0xff] %v9071
        %9104 = vst [vmem:[%s610 + $0xb0] sm:$0xff] %v9072
        %9105 = vst [vmem:[%s610 + $0xb8] sm:$0xff] %v9073
        %9106 = vst [vmem:[%s610 + $0xc0] sm:$0xff] %v9074
        %9107 = vst [vmem:[%s610 + $0xc8] sm:$0xff] %v9075
        %9108 = vst [vmem:[%s610 + $0xd0] sm:$0xff] %v9076
        %9109 = vst [vmem:[%s610 + $0xd8] sm:$0xff] %v9077
        %9110 = vst [vmem:[%s610 + $0xe0] sm:$0xff] %v9078
        %9111 = vst [vmem:[%s610 + $0xe8] sm:$0xff] %v9079
        %9112 = vst [vmem:[%s610 + $0xf0] sm:$0xff] %v9080
        %9113 = vst [vmem:[%s610 + $0xf8] sm:$0xff] %v9081
        %s9114 = sand.u32 %s321, 1
        %s9115 = scalar_lea.sflag [#allocation4], %s9114
        %s9116 = sand.u32 %s321, 1
        %s9117 = smul.addr %s9116, 256
        %s9118 = scalar_lea.vmem [#allocation20], %s9117
        // Predicated region
        $region117: #{experimental_block_forward.1} parent=71 // pred_check
          %p9119 = pneg %p331
        $region118: #{experimental_block_forward.1} parent=71 // pred_check_branch
          %9121 = sbr.rel (%p9119) target = $region120
        $region119: #{experimental_block_forward.1} parent=71 // pred_region
          %s9122 = smul.u32 2, %s35
          %9124 = vsyncadd %s9115, 0
          %s9125 = smul.addr %s9122, 16
          %s9126 = smul.addr %s9125, 8
          %s9127 = scalar_lea.hbm %s13, %s9126
          %s9128 = sshll.u32 %s9118, 4
          %s9129 = int_to_ptr.vmem [resolvable:$true] %s9128
          %s9130 = sshll.u32 %s9127, 4
          %s9131 = int_to_ptr.hbm [resolvable:$true] %s9130
          %9136 = dma.vmem_to_hbm [thread:$0]  %s9129, 4096, %s9131, %s9115, 128, 128, 8
        $region120: #{experimental_block_forward.1} parent=71 // pred_fallthru
          _
      $region72: #{experimental_block_forward.1} parent=5 // pred_fallthru
        _
      %p9137 = scmp.le.s32.totalorder 2, %s30
      // Predicated region
      $region121: #{experimental_block_forward.1} parent=5 // pred_check
        %p9138 = pneg %p9137
      $region122: #{experimental_block_forward.1} parent=5 // pred_check_branch
        %9140 = sbr.rel (%p9138) target = $region124
      $region123: #{experimental_block_forward.1} parent=5 // pred_region
        %s9141 = ssub.s32 %s30, 2
        // Predicated region
        $region125: #{experimental_block_forward.1} parent=123 // pred_check
          %p9142 = pneg %p337
        $region126: #{experimental_block_forward.1} parent=123 // pred_check_branch
          %9144 = sbr.rel (%p9142) target = $region128
        $region127: #{experimental_block_forward.1} parent=123 // pred_region
          %s9145 = sand.u32 %s322, 1
          %s9146 = scalar_lea.sflag [#allocation4], %s9145
          %s9147 = sand.u32 %s322, 1
          %s9148 = smul.addr %s9147, 256
          %s9149 = scalar_lea.vmem [#allocation20], %s9148
          %9151 = dma.done %s9146, 4096
        $region128: #{experimental_block_forward.1} parent=123 // pred_fallthru
          _
      $region124: #{experimental_block_forward.1} parent=5 // pred_fallthru
        _
    $region6: #{experimental_block_forward.1} parent=1 // loop_footer
      %s34 = sadd.s32 1, %s30
    $region7: #{experimental_block_forward.1} parent=1 // loop_footer_branch
      %29 = sbr.rel target = $region3
    $region8: #{experimental_block_forward.1} parent=1 // loop_exit
      _
    %9152 = vsyncpa [#allocation3], 1
    %s9153 = scalar_lea.sflag [#allocation3], 1
    %9154 = vsyncpa %s9153, 1
    %9155 = vsyncpa [#allocation6], 1
    %9156 = vsyncpa [#allocation9], 1
    %9157 = vsyncpa [#allocation12], 1
    %9158 = vsyncpa [#allocation15], 1
    %9159 = vsyncpa [#allocation18], 1
    %9160 = vsyncpa [#allocation4], 1
    %s9161 = scalar_lea.sflag [#allocation4], 1
    %9162 = vsyncpa %s9161, 1

</llo_original>
